<compile_context>
chip_gen: v6e
topology: v6e:2x2x1
jax: 0.10.0
libtpu: 0.0.40
codegen_flags: <defaults>
</compile_context>

<pallas_src>
import jax
import jax.numpy as jnp
from jax.experimental import pallas as pl
from jax.experimental.pallas import tpu as pltpu

BLOCK_LEN = 2
HALF = BLOCK_LEN // 2          # 1
H = 50                         # enc_num_unit == dec_num_unit
HP = 128                       # padded hidden width (one 128-lane gate slot)
G = 3 * HP                     # fused, 128-aligned r|z|n gate width
NUM_ITER = 6


# --------------------------------- kernel ---------------------------------
#
# Packed parameter layout (built in pack_params):
#   sw   (6, G):  rows 0,1 = enc-L0 W_ih for x dims; row 2 = for feedback;
#                 row 3 = dec1-L0 W_ih (in=1); rows 4,5 = dec2-L0 W_ih (in=2)
#   bih  (6, G):  rows = [e0, e1, d10, d11, d20, d21]
#   bhh  (6, G):  same row layout
#   big768 (3, HP, 768): [0] = [enc-L1 W_ih | enc-L0 W_hh]
#                        [1] = [dec1-L1 W_ih | dec1-L0 W_hh]
#                        [2] = [dec2-L1 W_ih | dec2-L0 W_hh]
#   big512 (3, HP, 512): [0] = [enc-L1 W_hh  | enc_linear   @ col 384]
#                        [1] = [dec1-L1 W_hh | dec_output_1 @ cols 384:386]
#                        [2] = [dec2-L1 W_hh | dec_output_2 @ col 384]
#   head_b (1, 4): [enc_b, dec1_b0, dec1_b1, dec2_b]
#   noise  (B, 2*NUM_ITER): cols 0..5 = fwd noise per round, cols 6..11 = fb noise

def ae_kernel(x_ref, noise_ref, sw_ref, bih_ref, bhh_ref,
              big768_ref, big512_ref, head_b_ref, out_ref):
    B = x_ref.shape[0]
    x = x_ref[...]                                    # (B, 2)
    noise = noise_ref[...]                            # (B, 2*NUM_ITER), lane-dense
    sw = sw_ref[...]                                  # (6, G)
    bih = bih_ref[...]                                # (6, G)
    bhh = bhh_ref[...]                                # (6, G)
    hb = head_b_ref[...]                              # (1, 4)

    def dot(a, b):
        return jnp.dot(a, b, preferred_element_type=jnp.float32)

    def gru_update(gi, gh, h_prev):
        """PyTorch GRU cell; gi = x@Wih + bih, gh = h@Whh + bhh; gates 128-aligned."""
        r = jax.nn.sigmoid(gi[:, 0:HP] + gh[:, 0:HP])
        z = jax.nn.sigmoid(gi[:, HP:2 * HP] + gh[:, HP:2 * HP])
        n = jnp.tanh(gi[:, 2 * HP:3 * HP] + r * gh[:, 2 * HP:3 * HP])
        if h_prev is None:                            # peeled first round: h_prev == 0
            return (1.0 - z) * n
        return (1.0 - z) * n + z * h_prev

    def power_constraint(v):
        # torch: (v - mean(v)) / std(v), std unbiased (ddof=1) over ALL elements.
        cnt = v.shape[0] * v.shape[1]
        s = jnp.sum(jnp.sum(v, axis=1, keepdims=True), axis=0, keepdims=True)
        m = s * (1.0 / cnt)
        d = v - m
        ss = jnp.sum(jnp.sum(d * d, axis=1, keepdims=True), axis=0, keepdims=True)
        var = ss * (1.0 / (cnt - 1))
        return d * jax.lax.rsqrt(var)                 # EUP rsqrt, no divide

    def elu(v):
        return jnp.where(v > 0, v, jnp.exp(jnp.minimum(v, 0.0)) - 1.0)

    # loop-invariant x-projection of encoder layer-0 gates (VPU outer product, hoisted)
    gi_x = x[:, 0:1] * sw[0:1, :] + x[:, 1:2] * sw[1:2, :] + bih[0:1, :]

    # Carried state: h_* (B, HP) and gh_* = h_* @ W_hh + b_hh (computed eagerly in the
    # previous round).  Round 0 is peeled: h == 0 -> gh == b_hh, no hh matmuls.
    h_e0 = h_e1 = h_d10 = h_d11 = h_d20 = h_d21 = None
    gh_e0, gh_e1 = bhh[0:1, :], bhh[1:2, :]
    gh_d10, gh_d11 = bhh[2:3, :], bhh[3:4, :]
    gh_d20, gh_d21 = bhh[4:5, :], bhh[5:6, :]
    noisy_fb = jnp.full((B, HALF), 0.5, jnp.float32)  # first-round feedback

    for t in range(NUM_ITER):                         # static unroll (6 rounds)
        last = (t == NUM_ITER - 1)

        # ---- encoder layer 0 (K<=2 input contraction on the VPU)
        gi_e0 = gi_x + noisy_fb * sw[2:3, :]
        h_e0 = gru_update(gi_e0, gh_e0, h_e0)

        # fused matmul on h_e0: [enc-L1 gi(t) | enc-L0 gh(t+1)]  (slab indexed in place)
        if last:
            gi_e1 = dot(h_e0, big768_ref[0, :, 0:G]) + bih[1:2, :]
        else:
            m = dot(h_e0, big768_ref[0])
            gi_e1 = m[:, 0:G] + bih[1:2, :]
            gh_e0 = m[:, G:2 * G] + bhh[0:1, :]

        # ---- encoder layer 1
        h_e1 = gru_update(gi_e1, gh_e1, h_e1)

        # fused matmul on h_e1: [enc-L1 gh(t+1) | enc_linear head(t)]
        if last:
            mh = dot(h_e1, big512_ref[0, :, G:2 * G])        # head-only 128-wide slab
            enc_out = mh[:, 0:1] + hb[:, 0:1]
        else:
            m = dot(h_e1, big512_ref[0])
            gh_e1 = m[:, 0:G] + bhh[1:2, :]
            enc_out = m[:, G:G + 1] + hb[:, 0:1]
        enc_out = power_constraint(elu(enc_out))             # enc_act == 'elu'

        # ---- forward channel
        dec_in = enc_out + noise[:, t:t + 1]                 # (B, 1)

        # ---- decoder GRU #1, layer 0 (K=1 contraction on the VPU)
        gi_d10 = dec_in * sw[3:4, :] + bih[2:3, :]
        h_d10 = gru_update(gi_d10, gh_d10, h_d10)

        if last:
            gi_d11 = dot(h_d10, big768_ref[1, :, 0:G]) + bih[3:4, :]
        else:
            m = dot(h_d10, big768_ref[1])
            gi_d11 = m[:, 0:G] + bih[3:4, :]
            gh_d10 = m[:, G:2 * G] + bhh[2:3, :]

        # ---- decoder GRU #1, layer 1
        h_d11 = gru_update(gi_d11, gh_d11, h_d11)

        if last:
            mh = dot(h_d11, big512_ref[1, :, G:2 * G])
            dec1 = mh[:, 0:2] + hb[:, 1:3]
            out_ref[...] = jax.nn.sigmoid(dec1)
        else:
            m = dot(h_d11, big512_ref[1])
            gh_d11 = m[:, 0:G] + bhh[3:4, :]
            dec1 = m[:, G:G + 2] + hb[:, 1:3]                # (B, 2); dec_act == 'none'

            # ---- decoder GRU #2, layer 0 (K=2 contraction on the VPU)
            gi_d20 = (dec1[:, 0:1] * sw[4:5, :] + dec1[:, 1:2] * sw[5:6, :]
                      + bih[4:5, :])
            h_d20 = gru_update(gi_d20, gh_d20, h_d20)

            m = dot(h_d20, big768_ref[2])
            gi_d21 = m[:, 0:G] + bih[5:6, :]
            gh_d20 = m[:, G:2 * G] + bhh[4:5, :]

            # ---- decoder GRU #2, layer 1 + feedback head
            h_d21 = gru_update(gi_d21, gh_d21, h_d21)

            m = dot(h_d21, big512_ref[2])
            gh_d21 = m[:, 0:G] + bhh[5:6, :]
            dec2 = m[:, G:G + 1] + hb[:, 3:4]                # (B, HALF)
            dec2 = power_constraint(dec2)

            # ---- feedback channel
            noisy_fb = dec2 + noise[:, NUM_ITER + t:NUM_ITER + t + 1]


# -------------------------------- wrapper ----------------------------------

def ae_forward(x, fwd_noise, fb_noise, packed):
    """x: (B, block_len); noise: (B, 1, block_len//2, num_iter)  [torch layout]."""
    B = x.shape[0]
    # Lane-dense noise slab: fwd rounds in cols 0..5, fb rounds in cols 6..11.
    noise = jnp.concatenate([fwd_noise[:, 0, 0, :], fb_noise[:, 0, 0, :]],
                            axis=1).astype(jnp.float32)                    # (B, 12)
    inputs = (x.astype(jnp.float32), noise) + tuple(packed)
    out = pl.pallas_call(
        ae_kernel,
        out_shape=jax.ShapeDtypeStruct((B, BLOCK_LEN), jnp.float32),
        in_specs=[pl.BlockSpec(memory_space=pltpu.MemorySpace.VMEM)] * len(inputs),
        out_specs=pl.BlockSpec(memory_space=pltpu.MemorySpace.VMEM),
    )(*inputs)
    return out.reshape(B, 1, BLOCK_LEN)               # match torch (B, 1, block_len)


# -------------------------- deterministic params ----------------------------

def init_params(key):
    """Logical (unpadded) params, fused gate columns [r|z|n] of width 3H."""
    bound = 1.0 / (H ** 0.5)
    shapes = {
        'e0_wih': (3, 3 * H), 'e0_whh': (H, 3 * H), 'e0_bih': (3 * H,), 'e0_bhh': (3 * H,),
        'e1_wih': (H, 3 * H), 'e1_whh': (H, 3 * H), 'e1_bih': (3 * H,), 'e1_bhh': (3 * H,),
        'enc_w': (H, 1), 'enc_b': (1,),
        'd10_wih': (1, 3 * H), 'd10_whh': (H, 3 * H), 'd10_bih': (3 * H,), 'd10_bhh': (3 * H,),
        'd11_wih': (H, 3 * H), 'd11_whh': (H, 3 * H), 'd11_bih': (3 * H,), 'd11_bhh': (3 * H,),
        'dec1_w': (H, 2), 'dec1_b': (2,),
        'd20_wih': (2, 3 * H), 'd20_whh': (H, 3 * H), 'd20_bih': (3 * H,), 'd20_bhh': (3 * H,),
        'd21_wih': (H, 3 * H), 'd21_whh': (H, 3 * H), 'd21_bih': (3 * H,), 'd21_bhh': (3 * H,),
        'dec2_w': (H, 1), 'dec2_b': (1,),
    }
    keys = jax.random.split(key, len(shapes))
    return {name: jax.random.uniform(k, shape, jnp.float32, -bound, bound)
            for (name, shape), k in zip(shapes.items(), keys)}


def _pad_gate_cols(w):
    """(in, 3H) -> (in, G): each H-wide gate block starts on a 128-lane boundary."""
    out = jnp.zeros((w.shape[0], G), jnp.float32)
    for g in range(3):
        out = out.at[:, g * HP:g * HP + H].set(w[:, g * H:(g + 1) * H])
    return out


def _pad_rows(w):
    """(H, N) -> (HP, N): zero rows 50:128 so padded hidden lanes never contribute."""
    return jnp.zeros((HP, w.shape[1]), jnp.float32).at[:H, :].set(w)


def pack_params(p):
    pg = lambda w: _pad_rows(_pad_gate_cols(w))       # hidden-consuming gate weights

    sw = jnp.concatenate([_pad_gate_cols(p['e0_wih']),     # rows 0..2 (x0, x1, fb)
                          _pad_gate_cols(p['d10_wih']),    # row 3
                          _pad_gate_cols(p['d20_wih'])],   # rows 4..5
                         axis=0)                            # (6, G)
    bih = jnp.stack([_pad_gate_cols(p[k][None, :])[0] for k in
                     ('e0_bih', 'e1_bih', 'd10_bih', 'd11_bih', 'd20_bih', 'd21_bih')])
    bhh = jnp.stack([_pad_gate_cols(p[k][None, :])[0] for k in
                     ('e0_bhh', 'e1_bhh', 'd10_bhh', 'd11_bhh', 'd20_bhh', 'd21_bhh')])

    big768 = jnp.stack([
        jnp.concatenate([pg(p['e1_wih']), pg(p['e0_whh'])], axis=1),
        jnp.concatenate([pg(p['d11_wih']), pg(p['d10_whh'])], axis=1),
        jnp.concatenate([pg(p['d21_wih']), pg(p['d20_whh'])], axis=1),
    ])                                                  # (3, HP, 768)

    def head_pad(w):                                    # (H, n<=2) -> (HP, 128)
        return jnp.zeros((HP, 128), jnp.float32).at[:H, :w.shape[1]].set(w)

    big512 = jnp.stack([
        jnp.concatenate([pg(p['e1_whh']), head_pad(p['enc_w'])], axis=1),
        jnp.concatenate([pg(p['d11_whh']), head_pad(p['dec1_w'])], axis=1),
        jnp.concatenate([pg(p['d21_whh']), head_pad(p['dec2_w'])], axis=1),
    ])                                                  # (3, HP, 512)

    head_b = jnp.concatenate([p['enc_b'], p['dec1_b'], p['dec2_b']])[None, :]   # (1, 4)
    return (sw, bih, bhh, big768, big512, head_b)


# ---------------------------- pure-JAX reference ----------------------------

def ae_reference(x, fwd_noise, fb_noise, p):
    B = x.shape[0]
    mm = lambda a, b: jnp.dot(a, b, precision=jax.lax.Precision.HIGHEST)

    def gru(xin, h, wih, whh, bih_, bhh_):
        gi = mm(xin, wih) + bih_
        gh = mm(h, whh) + bhh_
        r = jax.nn.sigmoid(gi[:, :H] + gh[:, :H])
        z = jax.nn.sigmoid(gi[:, H:2 * H] + gh[:, H:2 * H])
        n = jnp.tanh(gi[:, 2 * H:] + r * gh[:, 2 * H:])
        return (1.0 - z) * n + z * h

    def pc(v):
        m = jnp.mean(v)
        var = jnp.sum((v - m) ** 2) / (v.size - 1)
        return (v - m) / jnp.sqrt(var)

    fwd = fwd_noise[:, 0, 0, :]                         # (B, T)
    fb = fb_noise[:, 0, 0, :]

    z0 = jnp.zeros((B, H), jnp.float32)
    h_e0, h_e1, h_d10, h_d11, h_d20, h_d21 = z0, z0, z0, z0, z0, z0
    fbk = jnp.full((B, HALF), 0.5, jnp.float32)
    for t in range(NUM_ITER):
        enc_in = jnp.concatenate([x, fbk], axis=1)
        h_e0 = gru(enc_in, h_e0, p['e0_wih'], p['e0_whh'], p['e0_bih'], p['e0_bhh'])
        h_e1 = gru(h_e0, h_e1, p['e1_wih'], p['e1_whh'], p['e1_bih'], p['e1_bhh'])
        enc_out = mm(h_e1, p['enc_w']) + p['enc_b']
        enc_out = jnp.where(enc_out > 0, enc_out,
                            jnp.exp(jnp.minimum(enc_out, 0.0)) - 1.0)
        enc_out = pc(enc_out)
        dec_in = enc_out + fwd[:, t:t + 1]
        h_d10 = gru(dec_in, h_d10, p['d10_wih'], p['d10_whh'], p['d10_bih'], p['d10_bhh'])
        h_d11 = gru(h_d10, h_d11, p['d11_wih'], p['d11_whh'], p['d11_bih'], p['d11_bhh'])
        dec1 = mm(h_d11, p['dec1_w']) + p['dec1_b']
        if t == NUM_ITER - 1:
            return jax.nn.sigmoid(dec1).reshape(B, 1, BLOCK_LEN)
        h_d20 = gru(dec1, h_d20, p['d20_wih'], p['d20_whh'], p['d20_bih'], p['d20_bhh'])
        h_d21 = gru(h_d20, h_d21, p['d21_wih'], p['d21_whh'], p['d21_bih'], p['d21_bhh'])
        dec2 = pc(mm(h_d21, p['dec2_w']) + p['dec2_b'])
        fbk = dec2 + fb[:, t:t + 1]


# ----------------------------------- main -----------------------------------

if __name__ == "__main__":
    key = jax.random.PRNGKey(0)
    k_bits, k_fwd, k_fb, k_par = jax.random.split(key, 4)

    B = 8  # small batch (multiple of 8 so no sublane masking); args.batch_size=500 in prod
    x = jax.random.bernoulli(k_bits, 0.5, (B, BLOCK_LEN)).astype(jnp.float32)
    # torch-layout noise: (batch, 1, block_len//2, num_iter)
    fwd_noise = 0.1 * jax.random.normal(k_fwd, (B, 1, HALF, NUM_ITER), jnp.float32)
    fb_noise = 0.1 * jax.random.normal(k_fb, (B, 1, HALF, NUM_ITER), jnp.float32)

    params = init_params(k_par)
    packed = pack_params(params)

    out = ae_forward(x, fwd_noise, fb_noise, packed)
    out = jax.block_until_ready(out)

    ref = ae_reference(x, fwd_noise, fb_noise, params)
    assert out.shape == (B, 1, BLOCK_LEN)
    err = float(jnp.max(jnp.abs(out - ref)))
    assert jnp.allclose(out, ref, atol=5e-3, rtol=5e-3), err
    print("KERNEL_OK")
</pallas_src>

<mosaic_0001>
module attributes {stable_mosaic.version = 11 : i64} {
  func.func @ae_kernel(%arg0: memref<8x2xf32, #tpu.memory_space<vmem>>, %arg1: memref<8x12xf32, #tpu.memory_space<vmem>>, %arg2: memref<6x384xf32, #tpu.memory_space<vmem>>, %arg3: memref<6x384xf32, #tpu.memory_space<vmem>>, %arg4: memref<6x384xf32, #tpu.memory_space<vmem>>, %arg5: memref<3x128x768xf32, #tpu.memory_space<vmem>>, %arg6: memref<3x128x512xf32, #tpu.memory_space<vmem>>, %arg7: memref<1x4xf32, #tpu.memory_space<vmem>>, %arg8: memref<8x2xf32, #tpu.memory_space<vmem>>) attributes {dimension_semantics = [], scalar_prefetch = 0 : i64, scratch_operands = 0 : i64, tpu.core_type = #tpu.core_type<tc>} {
    %c0 = arith.constant 0 : index
    %c0_0 = arith.constant 0 : index
    %0 = vector.load %arg0[%c0, %c0_0] : memref<8x2xf32, #tpu.memory_space<vmem>>, vector<8x2xf32>
    %c0_1 = arith.constant 0 : index
    %c0_2 = arith.constant 0 : index
    %1 = vector.load %arg1[%c0_1, %c0_2] : memref<8x12xf32, #tpu.memory_space<vmem>>, vector<8x12xf32>
    %c0_3 = arith.constant 0 : index
    %c0_4 = arith.constant 0 : index
    %2 = vector.load %arg2[%c0_3, %c0_4] : memref<6x384xf32, #tpu.memory_space<vmem>>, vector<6x384xf32>
    %c0_5 = arith.constant 0 : index
    %c0_6 = arith.constant 0 : index
    %3 = vector.load %arg3[%c0_5, %c0_6] : memref<6x384xf32, #tpu.memory_space<vmem>>, vector<6x384xf32>
    %c0_7 = arith.constant 0 : index
    %c0_8 = arith.constant 0 : index
    %4 = vector.load %arg4[%c0_7, %c0_8] : memref<6x384xf32, #tpu.memory_space<vmem>>, vector<6x384xf32>
    %c0_9 = arith.constant 0 : index
    %c0_10 = arith.constant 0 : index
    %5 = vector.load %arg7[%c0_9, %c0_10] : memref<1x4xf32, #tpu.memory_space<vmem>>, vector<1x4xf32>
    %6 = vector.extract_strided_slice %0 {offsets = [0, 0], sizes = [8, 1], strides = [1, 1]} : vector<8x2xf32> to vector<8x1xf32>
    %7 = vector.extract_strided_slice %2 {offsets = [0, 0], sizes = [1, 384], strides = [1, 1]} : vector<6x384xf32> to vector<1x384xf32>
    %8 = vector.broadcast %6 : vector<8x1xf32> to vector<8x384xf32>
    %9 = vector.broadcast %7 : vector<1x384xf32> to vector<8x384xf32>
    %10 = arith.mulf %8, %9 : vector<8x384xf32>
    %11 = vector.extract_strided_slice %0 {offsets = [0, 1], sizes = [8, 1], strides = [1, 1]} : vector<8x2xf32> to vector<8x1xf32>
    %12 = vector.extract_strided_slice %2 {offsets = [1, 0], sizes = [1, 384], strides = [1, 1]} : vector<6x384xf32> to vector<1x384xf32>
    %13 = vector.broadcast %11 : vector<8x1xf32> to vector<8x384xf32>
    %14 = vector.broadcast %12 : vector<1x384xf32> to vector<8x384xf32>
    %15 = arith.mulf %13, %14 : vector<8x384xf32>
    %16 = arith.addf %10, %15 : vector<8x384xf32>
    %17 = vector.extract_strided_slice %3 {offsets = [0, 0], sizes = [1, 384], strides = [1, 1]} : vector<6x384xf32> to vector<1x384xf32>
    %18 = vector.broadcast %17 : vector<1x384xf32> to vector<8x384xf32>
    %19 = arith.addf %16, %18 : vector<8x384xf32>
    %20 = vector.extract_strided_slice %4 {offsets = [0, 0], sizes = [1, 384], strides = [1, 1]} : vector<6x384xf32> to vector<1x384xf32>
    %21 = vector.extract_strided_slice %4 {offsets = [1, 0], sizes = [1, 384], strides = [1, 1]} : vector<6x384xf32> to vector<1x384xf32>
    %22 = vector.extract_strided_slice %4 {offsets = [2, 0], sizes = [1, 384], strides = [1, 1]} : vector<6x384xf32> to vector<1x384xf32>
    %23 = vector.extract_strided_slice %4 {offsets = [3, 0], sizes = [1, 384], strides = [1, 1]} : vector<6x384xf32> to vector<1x384xf32>
    %24 = vector.extract_strided_slice %4 {offsets = [4, 0], sizes = [1, 384], strides = [1, 1]} : vector<6x384xf32> to vector<1x384xf32>
    %25 = vector.extract_strided_slice %4 {offsets = [5, 0], sizes = [1, 384], strides = [1, 1]} : vector<6x384xf32> to vector<1x384xf32>
    %cst = arith.constant 5.000000e-01 : f32
    %26 = vector.broadcast %cst : f32 to vector<8x1xf32>
    %27 = vector.extract_strided_slice %2 {offsets = [2, 0], sizes = [1, 384], strides = [1, 1]} : vector<6x384xf32> to vector<1x384xf32>
    %28 = vector.broadcast %26 : vector<8x1xf32> to vector<8x384xf32>
    %29 = vector.broadcast %27 : vector<1x384xf32> to vector<8x384xf32>
    %30 = arith.mulf %28, %29 : vector<8x384xf32>
    %31 = arith.addf %19, %30 : vector<8x384xf32>
    %32 = vector.extract_strided_slice %31 {offsets = [0, 0], sizes = [8, 128], strides = [1, 1]} : vector<8x384xf32> to vector<8x128xf32>
    %33 = vector.extract_strided_slice %20 {offsets = [0, 0], sizes = [1, 128], strides = [1, 1]} : vector<1x384xf32> to vector<1x128xf32>
    %34 = vector.broadcast %33 : vector<1x128xf32> to vector<8x128xf32>
    %35 = arith.addf %32, %34 : vector<8x128xf32>
    %36 = arith.negf %35 : vector<8x128xf32>
    %37 = math.exp %36 : vector<8x128xf32>
    %cst_11 = arith.constant 1.000000e+00 : f32
    %38 = vector.broadcast %cst_11 : f32 to vector<8x128xf32>
    %39 = arith.addf %38, %37 : vector<8x128xf32>
    %40 = arith.divf %38, %39 : vector<8x128xf32>
    %41 = vector.extract_strided_slice %31 {offsets = [0, 128], sizes = [8, 128], strides = [1, 1]} : vector<8x384xf32> to vector<8x128xf32>
    %42 = vector.extract_strided_slice %20 {offsets = [0, 128], sizes = [1, 128], strides = [1, 1]} : vector<1x384xf32> to vector<1x128xf32>
    %43 = vector.broadcast %42 : vector<1x128xf32> to vector<8x128xf32>
    %44 = arith.addf %41, %43 : vector<8x128xf32>
    %45 = arith.negf %44 : vector<8x128xf32>
    %46 = math.exp %45 : vector<8x128xf32>
    %cst_12 = arith.constant 1.000000e+00 : f32
    %47 = vector.broadcast %cst_12 : f32 to vector<8x128xf32>
    %48 = arith.addf %47, %46 : vector<8x128xf32>
    %49 = arith.divf %47, %48 : vector<8x128xf32>
    %50 = vector.extract_strided_slice %31 {offsets = [0, 256], sizes = [8, 128], strides = [1, 1]} : vector<8x384xf32> to vector<8x128xf32>
    %51 = vector.extract_strided_slice %20 {offsets = [0, 256], sizes = [1, 128], strides = [1, 1]} : vector<1x384xf32> to vector<1x128xf32>
    %52 = vector.broadcast %51 : vector<1x128xf32> to vector<8x128xf32>
    %53 = arith.mulf %40, %52 : vector<8x128xf32>
    %54 = arith.addf %50, %53 : vector<8x128xf32>
    %55 = math.tanh %54 : vector<8x128xf32>
    %cst_13 = arith.constant 1.000000e+00 : f32
    %56 = vector.broadcast %cst_13 : f32 to vector<8x128xf32>
    %57 = arith.subf %56, %49 : vector<8x128xf32>
    %58 = arith.mulf %57, %55 : vector<8x128xf32>
    %c0_14 = arith.constant 0 : index
    %c0_15 = arith.constant 0 : index
    %c0_16 = arith.constant 0 : index
    %59 = vector.load %arg5[%c0_14, %c0_15, %c0_16] : memref<3x128x768xf32, #tpu.memory_space<vmem>>, vector<1x128x768xf32>
    %60 = vector.shape_cast %59 : vector<1x128x768xf32> to vector<128x768xf32>
    %cst_17 = arith.constant dense<0.000000e+00> : vector<8x768xf32>
    %61 = tpu.matmul %58, %60, %cst_17 {dimension_numbers = #tpu.dot_dimension_numbers<[1], [0], [0], [1], [0, 0, 1, 1], [], []>} : vector<8x128xf32>, vector<128x768xf32>, vector<8x768xf32> -> vector<8x768xf32>
    %62 = vector.extract_strided_slice %61 {offsets = [0, 0], sizes = [8, 384], strides = [1, 1]} : vector<8x768xf32> to vector<8x384xf32>
    %63 = vector.extract_strided_slice %3 {offsets = [1, 0], sizes = [1, 384], strides = [1, 1]} : vector<6x384xf32> to vector<1x384xf32>
    %64 = vector.broadcast %63 : vector<1x384xf32> to vector<8x384xf32>
    %65 = arith.addf %62, %64 : vector<8x384xf32>
    %66 = vector.extract_strided_slice %61 {offsets = [0, 384], sizes = [8, 384], strides = [1, 1]} : vector<8x768xf32> to vector<8x384xf32>
    %67 = vector.extract_strided_slice %4 {offsets = [0, 0], sizes = [1, 384], strides = [1, 1]} : vector<6x384xf32> to vector<1x384xf32>
    %68 = vector.broadcast %67 : vector<1x384xf32> to vector<8x384xf32>
    %69 = arith.addf %66, %68 : vector<8x384xf32>
    %70 = vector.extract_strided_slice %65 {offsets = [0, 0], sizes = [8, 128], strides = [1, 1]} : vector<8x384xf32> to vector<8x128xf32>
    %71 = vector.extract_strided_slice %21 {offsets = [0, 0], sizes = [1, 128], strides = [1, 1]} : vector<1x384xf32> to vector<1x128xf32>
    %72 = vector.broadcast %71 : vector<1x128xf32> to vector<8x128xf32>
    %73 = arith.addf %70, %72 : vector<8x128xf32>
    %74 = arith.negf %73 : vector<8x128xf32>
    %75 = math.exp %74 : vector<8x128xf32>
    %cst_18 = arith.constant 1.000000e+00 : f32
    %76 = vector.broadcast %cst_18 : f32 to vector<8x128xf32>
    %77 = arith.addf %76, %75 : vector<8x128xf32>
    %78 = arith.divf %76, %77 : vector<8x128xf32>
    %79 = vector.extract_strided_slice %65 {offsets = [0, 128], sizes = [8, 128], strides = [1, 1]} : vector<8x384xf32> to vector<8x128xf32>
    %80 = vector.extract_strided_slice %21 {offsets = [0, 128], sizes = [1, 128], strides = [1, 1]} : vector<1x384xf32> to vector<1x128xf32>
    %81 = vector.broadcast %80 : vector<1x128xf32> to vector<8x128xf32>
    %82 = arith.addf %79, %81 : vector<8x128xf32>
    %83 = arith.negf %82 : vector<8x128xf32>
    %84 = math.exp %83 : vector<8x128xf32>
    %cst_19 = arith.constant 1.000000e+00 : f32
    %85 = vector.broadcast %cst_19 : f32 to vector<8x128xf32>
    %86 = arith.addf %85, %84 : vector<8x128xf32>
    %87 = arith.divf %85, %86 : vector<8x128xf32>
    %88 = vector.extract_strided_slice %65 {offsets = [0, 256], sizes = [8, 128], strides = [1, 1]} : vector<8x384xf32> to vector<8x128xf32>
    %89 = vector.extract_strided_slice %21 {offsets = [0, 256], sizes = [1, 128], strides = [1, 1]} : vector<1x384xf32> to vector<1x128xf32>
    %90 = vector.broadcast %89 : vector<1x128xf32> to vector<8x128xf32>
    %91 = arith.mulf %78, %90 : vector<8x128xf32>
    %92 = arith.addf %88, %91 : vector<8x128xf32>
    %93 = math.tanh %92 : vector<8x128xf32>
    %cst_20 = arith.constant 1.000000e+00 : f32
    %94 = vector.broadcast %cst_20 : f32 to vector<8x128xf32>
    %95 = arith.subf %94, %87 : vector<8x128xf32>
    %96 = arith.mulf %95, %93 : vector<8x128xf32>
    %c0_21 = arith.constant 0 : index
    %c0_22 = arith.constant 0 : index
    %c0_23 = arith.constant 0 : index
    %97 = vector.load %arg6[%c0_21, %c0_22, %c0_23] : memref<3x128x512xf32, #tpu.memory_space<vmem>>, vector<1x128x512xf32>
    %98 = vector.shape_cast %97 : vector<1x128x512xf32> to vector<128x512xf32>
    %cst_24 = arith.constant dense<0.000000e+00> : vector<8x512xf32>
    %99 = tpu.matmul %96, %98, %cst_24 {dimension_numbers = #tpu.dot_dimension_numbers<[1], [0], [0], [1], [0, 0, 1, 1], [], []>} : vector<8x128xf32>, vector<128x512xf32>, vector<8x512xf32> -> vector<8x512xf32>
    %100 = vector.extract_strided_slice %99 {offsets = [0, 0], sizes = [8, 384], strides = [1, 1]} : vector<8x512xf32> to vector<8x384xf32>
    %101 = vector.extract_strided_slice %4 {offsets = [1, 0], sizes = [1, 384], strides = [1, 1]} : vector<6x384xf32> to vector<1x384xf32>
    %102 = vector.broadcast %101 : vector<1x384xf32> to vector<8x384xf32>
    %103 = arith.addf %100, %102 : vector<8x384xf32>
    %104 = vector.extract_strided_slice %99 {offsets = [0, 384], sizes = [8, 1], strides = [1, 1]} : vector<8x512xf32> to vector<8x1xf32>
    %105 = vector.extract_strided_slice %5 {offsets = [0, 0], sizes = [1, 1], strides = [1, 1]} : vector<1x4xf32> to vector<1x1xf32>
    %106 = vector.broadcast %105 : vector<1x1xf32> to vector<8x1xf32>
    %107 = arith.addf %104, %106 : vector<8x1xf32>
    %cst_25 = arith.constant 0.000000e+00 : f32
    %108 = vector.broadcast %cst_25 : f32 to vector<8x1xf32>
    %109 = arith.cmpf ogt, %107, %108 : vector<8x1xf32>
    %cst_26 = arith.constant 0.000000e+00 : f32
    %110 = vector.broadcast %cst_26 : f32 to vector<8x1xf32>
    %111 = arith.minimumf %107, %110 : vector<8x1xf32>
    %112 = math.exp %111 : vector<8x1xf32>
    %cst_27 = arith.constant 1.000000e+00 : f32
    %113 = vector.broadcast %cst_27 : f32 to vector<8x1xf32>
    %114 = arith.subf %112, %113 : vector<8x1xf32>
    %115 = arith.select %109, %107, %114 : vector<8x1xi1>, vector<8x1xf32>
    %cst_28 = arith.constant dense<0.000000e+00> : vector<8xf32>
    %116 = vector.multi_reduction <add>, %115, %cst_28 [1] : vector<8x1xf32> to vector<8xf32>
    %117 = vector.shape_cast %116 : vector<8xf32> to vector<8x1xf32>
    %cst_29 = arith.constant dense<0.000000e+00> : vector<1xf32>
    %118 = vector.multi_reduction <add>, %117, %cst_29 [0] : vector<8x1xf32> to vector<1xf32>
    %119 = vector.shape_cast %118 : vector<1xf32> to vector<1x1xf32>
    %cst_30 = arith.constant 1.250000e-01 : f32
    %120 = vector.broadcast %cst_30 : f32 to vector<1x1xf32>
    %121 = arith.mulf %119, %120 : vector<1x1xf32>
    %122 = vector.broadcast %121 : vector<1x1xf32> to vector<8x1xf32>
    %123 = arith.subf %115, %122 : vector<8x1xf32>
    %124 = arith.mulf %123, %123 : vector<8x1xf32>
    %cst_31 = arith.constant dense<0.000000e+00> : vector<8xf32>
    %125 = vector.multi_reduction <add>, %124, %cst_31 [1] : vector<8x1xf32> to vector<8xf32>
    %126 = vector.shape_cast %125 : vector<8xf32> to vector<8x1xf32>
    %cst_32 = arith.constant dense<0.000000e+00> : vector<1xf32>
    %127 = vector.multi_reduction <add>, %126, %cst_32 [0] : vector<8x1xf32> to vector<1xf32>
    %128 = vector.shape_cast %127 : vector<1xf32> to vector<1x1xf32>
    %cst_33 = arith.constant 0.142857149 : f32
    %129 = vector.broadcast %cst_33 : f32 to vector<1x1xf32>
    %130 = arith.mulf %128, %129 : vector<1x1xf32>
    %131 = math.rsqrt %130 : vector<1x1xf32>
    %132 = vector.broadcast %131 : vector<1x1xf32> to vector<8x1xf32>
    %133 = arith.mulf %123, %132 : vector<8x1xf32>
    %134 = vector.extract_strided_slice %1 {offsets = [0, 0], sizes = [8, 1], strides = [1, 1]} : vector<8x12xf32> to vector<8x1xf32>
    %135 = arith.addf %133, %134 : vector<8x1xf32>
    %136 = vector.extract_strided_slice %2 {offsets = [3, 0], sizes = [1, 384], strides = [1, 1]} : vector<6x384xf32> to vector<1x384xf32>
    %137 = vector.broadcast %135 : vector<8x1xf32> to vector<8x384xf32>
    %138 = vector.broadcast %136 : vector<1x384xf32> to vector<8x384xf32>
    %139 = arith.mulf %137, %138 : vector<8x384xf32>
    %140 = vector.extract_strided_slice %3 {offsets = [2, 0], sizes = [1, 384], strides = [1, 1]} : vector<6x384xf32> to vector<1x384xf32>
    %141 = vector.broadcast %140 : vector<1x384xf32> to vector<8x384xf32>
    %142 = arith.addf %139, %141 : vector<8x384xf32>
    %143 = vector.extract_strided_slice %142 {offsets = [0, 0], sizes = [8, 128], strides = [1, 1]} : vector<8x384xf32> to vector<8x128xf32>
    %144 = vector.extract_strided_slice %22 {offsets = [0, 0], sizes = [1, 128], strides = [1, 1]} : vector<1x384xf32> to vector<1x128xf32>
    %145 = vector.broadcast %144 : vector<1x128xf32> to vector<8x128xf32>
    %146 = arith.addf %143, %145 : vector<8x128xf32>
    %147 = arith.negf %146 : vector<8x128xf32>
    %148 = math.exp %147 : vector<8x128xf32>
    %cst_34 = arith.constant 1.000000e+00 : f32
    %149 = vector.broadcast %cst_34 : f32 to vector<8x128xf32>
    %150 = arith.addf %149, %148 : vector<8x128xf32>
    %151 = arith.divf %149, %150 : vector<8x128xf32>
    %152 = vector.extract_strided_slice %142 {offsets = [0, 128], sizes = [8, 128], strides = [1, 1]} : vector<8x384xf32> to vector<8x128xf32>
    %153 = vector.extract_strided_slice %22 {offsets = [0, 128], sizes = [1, 128], strides = [1, 1]} : vector<1x384xf32> to vector<1x128xf32>
    %154 = vector.broadcast %153 : vector<1x128xf32> to vector<8x128xf32>
    %155 = arith.addf %152, %154 : vector<8x128xf32>
    %156 = arith.negf %155 : vector<8x128xf32>
    %157 = math.exp %156 : vector<8x128xf32>
    %cst_35 = arith.constant 1.000000e+00 : f32
    %158 = vector.broadcast %cst_35 : f32 to vector<8x128xf32>
    %159 = arith.addf %158, %157 : vector<8x128xf32>
    %160 = arith.divf %158, %159 : vector<8x128xf32>
    %161 = vector.extract_strided_slice %142 {offsets = [0, 256], sizes = [8, 128], strides = [1, 1]} : vector<8x384xf32> to vector<8x128xf32>
    %162 = vector.extract_strided_slice %22 {offsets = [0, 256], sizes = [1, 128], strides = [1, 1]} : vector<1x384xf32> to vector<1x128xf32>
    %163 = vector.broadcast %162 : vector<1x128xf32> to vector<8x128xf32>
    %164 = arith.mulf %151, %163 : vector<8x128xf32>
    %165 = arith.addf %161, %164 : vector<8x128xf32>
    %166 = math.tanh %165 : vector<8x128xf32>
    %cst_36 = arith.constant 1.000000e+00 : f32
    %167 = vector.broadcast %cst_36 : f32 to vector<8x128xf32>
    %168 = arith.subf %167, %160 : vector<8x128xf32>
    %169 = arith.mulf %168, %166 : vector<8x128xf32>
    %c1 = arith.constant 1 : index
    %c0_37 = arith.constant 0 : index
    %c0_38 = arith.constant 0 : index
    %170 = vector.load %arg5[%c1, %c0_37, %c0_38] : memref<3x128x768xf32, #tpu.memory_space<vmem>>, vector<1x128x768xf32>
    %171 = vector.shape_cast %170 : vector<1x128x768xf32> to vector<128x768xf32>
    %cst_39 = arith.constant dense<0.000000e+00> : vector<8x768xf32>
    %172 = tpu.matmul %169, %171, %cst_39 {dimension_numbers = #tpu.dot_dimension_numbers<[1], [0], [0], [1], [0, 0, 1, 1], [], []>} : vector<8x128xf32>, vector<128x768xf32>, vector<8x768xf32> -> vector<8x768xf32>
    %173 = vector.extract_strided_slice %172 {offsets = [0, 0], sizes = [8, 384], strides = [1, 1]} : vector<8x768xf32> to vector<8x384xf32>
    %174 = vector.extract_strided_slice %3 {offsets = [3, 0], sizes = [1, 384], strides = [1, 1]} : vector<6x384xf32> to vector<1x384xf32>
    %175 = vector.broadcast %174 : vector<1x384xf32> to vector<8x384xf32>
    %176 = arith.addf %173, %175 : vector<8x384xf32>
    %177 = vector.extract_strided_slice %172 {offsets = [0, 384], sizes = [8, 384], strides = [1, 1]} : vector<8x768xf32> to vector<8x384xf32>
    %178 = vector.extract_strided_slice %4 {offsets = [2, 0], sizes = [1, 384], strides = [1, 1]} : vector<6x384xf32> to vector<1x384xf32>
    %179 = vector.broadcast %178 : vector<1x384xf32> to vector<8x384xf32>
    %180 = arith.addf %177, %179 : vector<8x384xf32>
    %181 = vector.extract_strided_slice %176 {offsets = [0, 0], sizes = [8, 128], strides = [1, 1]} : vector<8x384xf32> to vector<8x128xf32>
    %182 = vector.extract_strided_slice %23 {offsets = [0, 0], sizes = [1, 128], strides = [1, 1]} : vector<1x384xf32> to vector<1x128xf32>
    %183 = vector.broadcast %182 : vector<1x128xf32> to vector<8x128xf32>
    %184 = arith.addf %181, %183 : vector<8x128xf32>
    %185 = arith.negf %184 : vector<8x128xf32>
    %186 = math.exp %185 : vector<8x128xf32>
    %cst_40 = arith.constant 1.000000e+00 : f32
    %187 = vector.broadcast %cst_40 : f32 to vector<8x128xf32>
    %188 = arith.addf %187, %186 : vector<8x128xf32>
    %189 = arith.divf %187, %188 : vector<8x128xf32>
    %190 = vector.extract_strided_slice %176 {offsets = [0, 128], sizes = [8, 128], strides = [1, 1]} : vector<8x384xf32> to vector<8x128xf32>
    %191 = vector.extract_strided_slice %23 {offsets = [0, 128], sizes = [1, 128], strides = [1, 1]} : vector<1x384xf32> to vector<1x128xf32>
    %192 = vector.broadcast %191 : vector<1x128xf32> to vector<8x128xf32>
    %193 = arith.addf %190, %192 : vector<8x128xf32>
    %194 = arith.negf %193 : vector<8x128xf32>
    %195 = math.exp %194 : vector<8x128xf32>
    %cst_41 = arith.constant 1.000000e+00 : f32
    %196 = vector.broadcast %cst_41 : f32 to vector<8x128xf32>
    %197 = arith.addf %196, %195 : vector<8x128xf32>
    %198 = arith.divf %196, %197 : vector<8x128xf32>
    %199 = vector.extract_strided_slice %176 {offsets = [0, 256], sizes = [8, 128], strides = [1, 1]} : vector<8x384xf32> to vector<8x128xf32>
    %200 = vector.extract_strided_slice %23 {offsets = [0, 256], sizes = [1, 128], strides = [1, 1]} : vector<1x384xf32> to vector<1x128xf32>
    %201 = vector.broadcast %200 : vector<1x128xf32> to vector<8x128xf32>
    %202 = arith.mulf %189, %201 : vector<8x128xf32>
    %203 = arith.addf %199, %202 : vector<8x128xf32>
    %204 = math.tanh %203 : vector<8x128xf32>
    %cst_42 = arith.constant 1.000000e+00 : f32
    %205 = vector.broadcast %cst_42 : f32 to vector<8x128xf32>
    %206 = arith.subf %205, %198 : vector<8x128xf32>
    %207 = arith.mulf %206, %204 : vector<8x128xf32>
    %c1_43 = arith.constant 1 : index
    %c0_44 = arith.constant 0 : index
    %c0_45 = arith.constant 0 : index
    %208 = vector.load %arg6[%c1_43, %c0_44, %c0_45] : memref<3x128x512xf32, #tpu.memory_space<vmem>>, vector<1x128x512xf32>
    %209 = vector.shape_cast %208 : vector<1x128x512xf32> to vector<128x512xf32>
    %cst_46 = arith.constant dense<0.000000e+00> : vector<8x512xf32>
    %210 = tpu.matmul %207, %209, %cst_46 {dimension_numbers = #tpu.dot_dimension_numbers<[1], [0], [0], [1], [0, 0, 1, 1], [], []>} : vector<8x128xf32>, vector<128x512xf32>, vector<8x512xf32> -> vector<8x512xf32>
    %211 = vector.extract_strided_slice %210 {offsets = [0, 0], sizes = [8, 384], strides = [1, 1]} : vector<8x512xf32> to vector<8x384xf32>
    %212 = vector.extract_strided_slice %4 {offsets = [3, 0], sizes = [1, 384], strides = [1, 1]} : vector<6x384xf32> to vector<1x384xf32>
    %213 = vector.broadcast %212 : vector<1x384xf32> to vector<8x384xf32>
    %214 = arith.addf %211, %213 : vector<8x384xf32>
    %215 = vector.extract_strided_slice %210 {offsets = [0, 384], sizes = [8, 2], strides = [1, 1]} : vector<8x512xf32> to vector<8x2xf32>
    %216 = vector.extract_strided_slice %5 {offsets = [0, 1], sizes = [1, 2], strides = [1, 1]} : vector<1x4xf32> to vector<1x2xf32>
    %217 = vector.broadcast %216 : vector<1x2xf32> to vector<8x2xf32>
    %218 = arith.addf %215, %217 : vector<8x2xf32>
    %219 = vector.extract_strided_slice %218 {offsets = [0, 0], sizes = [8, 1], strides = [1, 1]} : vector<8x2xf32> to vector<8x1xf32>
    %220 = vector.extract_strided_slice %2 {offsets = [4, 0], sizes = [1, 384], strides = [1, 1]} : vector<6x384xf32> to vector<1x384xf32>
    %221 = vector.broadcast %219 : vector<8x1xf32> to vector<8x384xf32>
    %222 = vector.broadcast %220 : vector<1x384xf32> to vector<8x384xf32>
    %223 = arith.mulf %221, %222 : vector<8x384xf32>
    %224 = vector.extract_strided_slice %218 {offsets = [0, 1], sizes = [8, 1], strides = [1, 1]} : vector<8x2xf32> to vector<8x1xf32>
    %225 = vector.extract_strided_slice %2 {offsets = [5, 0], sizes = [1, 384], strides = [1, 1]} : vector<6x384xf32> to vector<1x384xf32>
    %226 = vector.broadcast %224 : vector<8x1xf32> to vector<8x384xf32>
    %227 = vector.broadcast %225 : vector<1x384xf32> to vector<8x384xf32>
    %228 = arith.mulf %226, %227 : vector<8x384xf32>
    %229 = arith.addf %223, %228 : vector<8x384xf32>
    %230 = vector.extract_strided_slice %3 {offsets = [4, 0], sizes = [1, 384], strides = [1, 1]} : vector<6x384xf32> to vector<1x384xf32>
    %231 = vector.broadcast %230 : vector<1x384xf32> to vector<8x384xf32>
    %232 = arith.addf %229, %231 : vector<8x384xf32>
    %233 = vector.extract_strided_slice %232 {offsets = [0, 0], sizes = [8, 128], strides = [1, 1]} : vector<8x384xf32> to vector<8x128xf32>
    %234 = vector.extract_strided_slice %24 {offsets = [0, 0], sizes = [1, 128], strides = [1, 1]} : vector<1x384xf32> to vector<1x128xf32>
    %235 = vector.broadcast %234 : vector<1x128xf32> to vector<8x128xf32>
    %236 = arith.addf %233, %235 : vector<8x128xf32>
    %237 = arith.negf %236 : vector<8x128xf32>
    %238 = math.exp %237 : vector<8x128xf32>
    %cst_47 = arith.constant 1.000000e+00 : f32
    %239 = vector.broadcast %cst_47 : f32 to vector<8x128xf32>
    %240 = arith.addf %239, %238 : vector<8x128xf32>
    %241 = arith.divf %239, %240 : vector<8x128xf32>
    %242 = vector.extract_strided_slice %232 {offsets = [0, 128], sizes = [8, 128], strides = [1, 1]} : vector<8x384xf32> to vector<8x128xf32>
    %243 = vector.extract_strided_slice %24 {offsets = [0, 128], sizes = [1, 128], strides = [1, 1]} : vector<1x384xf32> to vector<1x128xf32>
    %244 = vector.broadcast %243 : vector<1x128xf32> to vector<8x128xf32>
    %245 = arith.addf %242, %244 : vector<8x128xf32>
    %246 = arith.negf %245 : vector<8x128xf32>
    %247 = math.exp %246 : vector<8x128xf32>
    %cst_48 = arith.constant 1.000000e+00 : f32
    %248 = vector.broadcast %cst_48 : f32 to vector<8x128xf32>
    %249 = arith.addf %248, %247 : vector<8x128xf32>
    %250 = arith.divf %248, %249 : vector<8x128xf32>
    %251 = vector.extract_strided_slice %232 {offsets = [0, 256], sizes = [8, 128], strides = [1, 1]} : vector<8x384xf32> to vector<8x128xf32>
    %252 = vector.extract_strided_slice %24 {offsets = [0, 256], sizes = [1, 128], strides = [1, 1]} : vector<1x384xf32> to vector<1x128xf32>
    %253 = vector.broadcast %252 : vector<1x128xf32> to vector<8x128xf32>
    %254 = arith.mulf %241, %253 : vector<8x128xf32>
    %255 = arith.addf %251, %254 : vector<8x128xf32>
    %256 = math.tanh %255 : vector<8x128xf32>
    %cst_49 = arith.constant 1.000000e+00 : f32
    %257 = vector.broadcast %cst_49 : f32 to vector<8x128xf32>
    %258 = arith.subf %257, %250 : vector<8x128xf32>
    %259 = arith.mulf %258, %256 : vector<8x128xf32>
    %c2 = arith.constant 2 : index
    %c0_50 = arith.constant 0 : index
    %c0_51 = arith.constant 0 : index
    %260 = vector.load %arg5[%c2, %c0_50, %c0_51] : memref<3x128x768xf32, #tpu.memory_space<vmem>>, vector<1x128x768xf32>
    %261 = vector.shape_cast %260 : vector<1x128x768xf32> to vector<128x768xf32>
    %cst_52 = arith.constant dense<0.000000e+00> : vector<8x768xf32>
    %262 = tpu.matmul %259, %261, %cst_52 {dimension_numbers = #tpu.dot_dimension_numbers<[1], [0], [0], [1], [0, 0, 1, 1], [], []>} : vector<8x128xf32>, vector<128x768xf32>, vector<8x768xf32> -> vector<8x768xf32>
    %263 = vector.extract_strided_slice %262 {offsets = [0, 0], sizes = [8, 384], strides = [1, 1]} : vector<8x768xf32> to vector<8x384xf32>
    %264 = vector.extract_strided_slice %3 {offsets = [5, 0], sizes = [1, 384], strides = [1, 1]} : vector<6x384xf32> to vector<1x384xf32>
    %265 = vector.broadcast %264 : vector<1x384xf32> to vector<8x384xf32>
    %266 = arith.addf %263, %265 : vector<8x384xf32>
    %267 = vector.extract_strided_slice %262 {offsets = [0, 384], sizes = [8, 384], strides = [1, 1]} : vector<8x768xf32> to vector<8x384xf32>
    %268 = vector.extract_strided_slice %4 {offsets = [4, 0], sizes = [1, 384], strides = [1, 1]} : vector<6x384xf32> to vector<1x384xf32>
    %269 = vector.broadcast %268 : vector<1x384xf32> to vector<8x384xf32>
    %270 = arith.addf %267, %269 : vector<8x384xf32>
    %271 = vector.extract_strided_slice %266 {offsets = [0, 0], sizes = [8, 128], strides = [1, 1]} : vector<8x384xf32> to vector<8x128xf32>
    %272 = vector.extract_strided_slice %25 {offsets = [0, 0], sizes = [1, 128], strides = [1, 1]} : vector<1x384xf32> to vector<1x128xf32>
    %273 = vector.broadcast %272 : vector<1x128xf32> to vector<8x128xf32>
    %274 = arith.addf %271, %273 : vector<8x128xf32>
    %275 = arith.negf %274 : vector<8x128xf32>
    %276 = math.exp %275 : vector<8x128xf32>
    %cst_53 = arith.constant 1.000000e+00 : f32
    %277 = vector.broadcast %cst_53 : f32 to vector<8x128xf32>
    %278 = arith.addf %277, %276 : vector<8x128xf32>
    %279 = arith.divf %277, %278 : vector<8x128xf32>
    %280 = vector.extract_strided_slice %266 {offsets = [0, 128], sizes = [8, 128], strides = [1, 1]} : vector<8x384xf32> to vector<8x128xf32>
    %281 = vector.extract_strided_slice %25 {offsets = [0, 128], sizes = [1, 128], strides = [1, 1]} : vector<1x384xf32> to vector<1x128xf32>
    %282 = vector.broadcast %281 : vector<1x128xf32> to vector<8x128xf32>
    %283 = arith.addf %280, %282 : vector<8x128xf32>
    %284 = arith.negf %283 : vector<8x128xf32>
    %285 = math.exp %284 : vector<8x128xf32>
    %cst_54 = arith.constant 1.000000e+00 : f32
    %286 = vector.broadcast %cst_54 : f32 to vector<8x128xf32>
    %287 = arith.addf %286, %285 : vector<8x128xf32>
    %288 = arith.divf %286, %287 : vector<8x128xf32>
    %289 = vector.extract_strided_slice %266 {offsets = [0, 256], sizes = [8, 128], strides = [1, 1]} : vector<8x384xf32> to vector<8x128xf32>
    %290 = vector.extract_strided_slice %25 {offsets = [0, 256], sizes = [1, 128], strides = [1, 1]} : vector<1x384xf32> to vector<1x128xf32>
    %291 = vector.broadcast %290 : vector<1x128xf32> to vector<8x128xf32>
    %292 = arith.mulf %279, %291 : vector<8x128xf32>
    %293 = arith.addf %289, %292 : vector<8x128xf32>
    %294 = math.tanh %293 : vector<8x128xf32>
    %cst_55 = arith.constant 1.000000e+00 : f32
    %295 = vector.broadcast %cst_55 : f32 to vector<8x128xf32>
    %296 = arith.subf %295, %288 : vector<8x128xf32>
    %297 = arith.mulf %296, %294 : vector<8x128xf32>
    %c2_56 = arith.constant 2 : index
    %c0_57 = arith.constant 0 : index
    %c0_58 = arith.constant 0 : index
    %298 = vector.load %arg6[%c2_56, %c0_57, %c0_58] : memref<3x128x512xf32, #tpu.memory_space<vmem>>, vector<1x128x512xf32>
    %299 = vector.shape_cast %298 : vector<1x128x512xf32> to vector<128x512xf32>
    %cst_59 = arith.constant dense<0.000000e+00> : vector<8x512xf32>
    %300 = tpu.matmul %297, %299, %cst_59 {dimension_numbers = #tpu.dot_dimension_numbers<[1], [0], [0], [1], [0, 0, 1, 1], [], []>} : vector<8x128xf32>, vector<128x512xf32>, vector<8x512xf32> -> vector<8x512xf32>
    %301 = vector.extract_strided_slice %300 {offsets = [0, 0], sizes = [8, 384], strides = [1, 1]} : vector<8x512xf32> to vector<8x384xf32>
    %302 = vector.extract_strided_slice %4 {offsets = [5, 0], sizes = [1, 384], strides = [1, 1]} : vector<6x384xf32> to vector<1x384xf32>
    %303 = vector.broadcast %302 : vector<1x384xf32> to vector<8x384xf32>
    %304 = arith.addf %301, %303 : vector<8x384xf32>
    %305 = vector.extract_strided_slice %300 {offsets = [0, 384], sizes = [8, 1], strides = [1, 1]} : vector<8x512xf32> to vector<8x1xf32>
    %306 = vector.extract_strided_slice %5 {offsets = [0, 3], sizes = [1, 1], strides = [1, 1]} : vector<1x4xf32> to vector<1x1xf32>
    %307 = vector.broadcast %306 : vector<1x1xf32> to vector<8x1xf32>
    %308 = arith.addf %305, %307 : vector<8x1xf32>
    %cst_60 = arith.constant dense<0.000000e+00> : vector<8xf32>
    %309 = vector.multi_reduction <add>, %308, %cst_60 [1] : vector<8x1xf32> to vector<8xf32>
    %310 = vector.shape_cast %309 : vector<8xf32> to vector<8x1xf32>
    %cst_61 = arith.constant dense<0.000000e+00> : vector<1xf32>
    %311 = vector.multi_reduction <add>, %310, %cst_61 [0] : vector<8x1xf32> to vector<1xf32>
    %312 = vector.shape_cast %311 : vector<1xf32> to vector<1x1xf32>
    %cst_62 = arith.constant 1.250000e-01 : f32
    %313 = vector.broadcast %cst_62 : f32 to vector<1x1xf32>
    %314 = arith.mulf %312, %313 : vector<1x1xf32>
    %315 = vector.broadcast %314 : vector<1x1xf32> to vector<8x1xf32>
    %316 = arith.subf %308, %315 : vector<8x1xf32>
    %317 = arith.mulf %316, %316 : vector<8x1xf32>
    %cst_63 = arith.constant dense<0.000000e+00> : vector<8xf32>
    %318 = vector.multi_reduction <add>, %317, %cst_63 [1] : vector<8x1xf32> to vector<8xf32>
    %319 = vector.shape_cast %318 : vector<8xf32> to vector<8x1xf32>
    %cst_64 = arith.constant dense<0.000000e+00> : vector<1xf32>
    %320 = vector.multi_reduction <add>, %319, %cst_64 [0] : vector<8x1xf32> to vector<1xf32>
    %321 = vector.shape_cast %320 : vector<1xf32> to vector<1x1xf32>
    %cst_65 = arith.constant 0.142857149 : f32
    %322 = vector.broadcast %cst_65 : f32 to vector<1x1xf32>
    %323 = arith.mulf %321, %322 : vector<1x1xf32>
    %324 = math.rsqrt %323 : vector<1x1xf32>
    %325 = vector.broadcast %324 : vector<1x1xf32> to vector<8x1xf32>
    %326 = arith.mulf %316, %325 : vector<8x1xf32>
    %327 = vector.extract_strided_slice %1 {offsets = [0, 6], sizes = [8, 1], strides = [1, 1]} : vector<8x12xf32> to vector<8x1xf32>
    %328 = arith.addf %326, %327 : vector<8x1xf32>
    %329 = vector.extract_strided_slice %2 {offsets = [2, 0], sizes = [1, 384], strides = [1, 1]} : vector<6x384xf32> to vector<1x384xf32>
    %330 = vector.broadcast %328 : vector<8x1xf32> to vector<8x384xf32>
    %331 = vector.broadcast %329 : vector<1x384xf32> to vector<8x384xf32>
    %332 = arith.mulf %330, %331 : vector<8x384xf32>
    %333 = arith.addf %19, %332 : vector<8x384xf32>
    %334 = vector.extract_strided_slice %333 {offsets = [0, 0], sizes = [8, 128], strides = [1, 1]} : vector<8x384xf32> to vector<8x128xf32>
    %335 = vector.extract_strided_slice %69 {offsets = [0, 0], sizes = [8, 128], strides = [1, 1]} : vector<8x384xf32> to vector<8x128xf32>
    %336 = arith.addf %334, %335 : vector<8x128xf32>
    %337 = arith.negf %336 : vector<8x128xf32>
    %338 = math.exp %337 : vector<8x128xf32>
    %cst_66 = arith.constant 1.000000e+00 : f32
    %339 = vector.broadcast %cst_66 : f32 to vector<8x128xf32>
    %340 = arith.addf %339, %338 : vector<8x128xf32>
    %341 = arith.divf %339, %340 : vector<8x128xf32>
    %342 = vector.extract_strided_slice %333 {offsets = [0, 128], sizes = [8, 128], strides = [1, 1]} : vector<8x384xf32> to vector<8x128xf32>
    %343 = vector.extract_strided_slice %69 {offsets = [0, 128], sizes = [8, 128], strides = [1, 1]} : vector<8x384xf32> to vector<8x128xf32>
    %344 = arith.addf %342, %343 : vector<8x128xf32>
    %345 = arith.negf %344 : vector<8x128xf32>
    %346 = math.exp %345 : vector<8x128xf32>
    %cst_67 = arith.constant 1.000000e+00 : f32
    %347 = vector.broadcast %cst_67 : f32 to vector<8x128xf32>
    %348 = arith.addf %347, %346 : vector<8x128xf32>
    %349 = arith.divf %347, %348 : vector<8x128xf32>
    %350 = vector.extract_strided_slice %333 {offsets = [0, 256], sizes = [8, 128], strides = [1, 1]} : vector<8x384xf32> to vector<8x128xf32>
    %351 = vector.extract_strided_slice %69 {offsets = [0, 256], sizes = [8, 128], strides = [1, 1]} : vector<8x384xf32> to vector<8x128xf32>
    %352 = arith.mulf %341, %351 : vector<8x128xf32>
    %353 = arith.addf %350, %352 : vector<8x128xf32>
    %354 = math.tanh %353 : vector<8x128xf32>
    %cst_68 = arith.constant 1.000000e+00 : f32
    %355 = vector.broadcast %cst_68 : f32 to vector<8x128xf32>
    %356 = arith.subf %355, %349 : vector<8x128xf32>
    %357 = arith.mulf %356, %354 : vector<8x128xf32>
    %358 = arith.mulf %349, %58 : vector<8x128xf32>
    %359 = arith.addf %357, %358 : vector<8x128xf32>
    %c0_69 = arith.constant 0 : index
    %c0_70 = arith.constant 0 : index
    %c0_71 = arith.constant 0 : index
    %360 = vector.load %arg5[%c0_69, %c0_70, %c0_71] : memref<3x128x768xf32, #tpu.memory_space<vmem>>, vector<1x128x768xf32>
    %361 = vector.shape_cast %360 : vector<1x128x768xf32> to vector<128x768xf32>
    %cst_72 = arith.constant dense<0.000000e+00> : vector<8x768xf32>
    %362 = tpu.matmul %359, %361, %cst_72 {dimension_numbers = #tpu.dot_dimension_numbers<[1], [0], [0], [1], [0, 0, 1, 1], [], []>} : vector<8x128xf32>, vector<128x768xf32>, vector<8x768xf32> -> vector<8x768xf32>
    %363 = vector.extract_strided_slice %362 {offsets = [0, 0], sizes = [8, 384], strides = [1, 1]} : vector<8x768xf32> to vector<8x384xf32>
    %364 = vector.extract_strided_slice %3 {offsets = [1, 0], sizes = [1, 384], strides = [1, 1]} : vector<6x384xf32> to vector<1x384xf32>
    %365 = vector.broadcast %364 : vector<1x384xf32> to vector<8x384xf32>
    %366 = arith.addf %363, %365 : vector<8x384xf32>
    %367 = vector.extract_strided_slice %362 {offsets = [0, 384], sizes = [8, 384], strides = [1, 1]} : vector<8x768xf32> to vector<8x384xf32>
    %368 = vector.extract_strided_slice %4 {offsets = [0, 0], sizes = [1, 384], strides = [1, 1]} : vector<6x384xf32> to vector<1x384xf32>
    %369 = vector.broadcast %368 : vector<1x384xf32> to vector<8x384xf32>
    %370 = arith.addf %367, %369 : vector<8x384xf32>
    %371 = vector.extract_strided_slice %366 {offsets = [0, 0], sizes = [8, 128], strides = [1, 1]} : vector<8x384xf32> to vector<8x128xf32>
    %372 = vector.extract_strided_slice %103 {offsets = [0, 0], sizes = [8, 128], strides = [1, 1]} : vector<8x384xf32> to vector<8x128xf32>
    %373 = arith.addf %371, %372 : vector<8x128xf32>
    %374 = arith.negf %373 : vector<8x128xf32>
    %375 = math.exp %374 : vector<8x128xf32>
    %cst_73 = arith.constant 1.000000e+00 : f32
    %376 = vector.broadcast %cst_73 : f32 to vector<8x128xf32>
    %377 = arith.addf %376, %375 : vector<8x128xf32>
    %378 = arith.divf %376, %377 : vector<8x128xf32>
    %379 = vector.extract_strided_slice %366 {offsets = [0, 128], sizes = [8, 128], strides = [1, 1]} : vector<8x384xf32> to vector<8x128xf32>
    %380 = vector.extract_strided_slice %103 {offsets = [0, 128], sizes = [8, 128], strides = [1, 1]} : vector<8x384xf32> to vector<8x128xf32>
    %381 = arith.addf %379, %380 : vector<8x128xf32>
    %382 = arith.negf %381 : vector<8x128xf32>
    %383 = math.exp %382 : vector<8x128xf32>
    %cst_74 = arith.constant 1.000000e+00 : f32
    %384 = vector.broadcast %cst_74 : f32 to vector<8x128xf32>
    %385 = arith.addf %384, %383 : vector<8x128xf32>
    %386 = arith.divf %384, %385 : vector<8x128xf32>
    %387 = vector.extract_strided_slice %366 {offsets = [0, 256], sizes = [8, 128], strides = [1, 1]} : vector<8x384xf32> to vector<8x128xf32>
    %388 = vector.extract_strided_slice %103 {offsets = [0, 256], sizes = [8, 128], strides = [1, 1]} : vector<8x384xf32> to vector<8x128xf32>
    %389 = arith.mulf %378, %388 : vector<8x128xf32>
    %390 = arith.addf %387, %389 : vector<8x128xf32>
    %391 = math.tanh %390 : vector<8x128xf32>
    %cst_75 = arith.constant 1.000000e+00 : f32
    %392 = vector.broadcast %cst_75 : f32 to vector<8x128xf32>
    %393 = arith.subf %392, %386 : vector<8x128xf32>
    %394 = arith.mulf %393, %391 : vector<8x128xf32>
    %395 = arith.mulf %386, %96 : vector<8x128xf32>
    %396 = arith.addf %394, %395 : vector<8x128xf32>
    %c0_76 = arith.constant 0 : index
    %c0_77 = arith.constant 0 : index
    %c0_78 = arith.constant 0 : index
    %397 = vector.load %arg6[%c0_76, %c0_77, %c0_78] : memref<3x128x512xf32, #tpu.memory_space<vmem>>, vector<1x128x512xf32>
    %398 = vector.shape_cast %397 : vector<1x128x512xf32> to vector<128x512xf32>
    %cst_79 = arith.constant dense<0.000000e+00> : vector<8x512xf32>
    %399 = tpu.matmul %396, %398, %cst_79 {dimension_numbers = #tpu.dot_dimension_numbers<[1], [0], [0], [1], [0, 0, 1, 1], [], []>} : vector<8x128xf32>, vector<128x512xf32>, vector<8x512xf32> -> vector<8x512xf32>
    %400 = vector.extract_strided_slice %399 {offsets = [0, 0], sizes = [8, 384], strides = [1, 1]} : vector<8x512xf32> to vector<8x384xf32>
    %401 = vector.extract_strided_slice %4 {offsets = [1, 0], sizes = [1, 384], strides = [1, 1]} : vector<6x384xf32> to vector<1x384xf32>
    %402 = vector.broadcast %401 : vector<1x384xf32> to vector<8x384xf32>
    %403 = arith.addf %400, %402 : vector<8x384xf32>
    %404 = vector.extract_strided_slice %399 {offsets = [0, 384], sizes = [8, 1], strides = [1, 1]} : vector<8x512xf32> to vector<8x1xf32>
    %405 = vector.extract_strided_slice %5 {offsets = [0, 0], sizes = [1, 1], strides = [1, 1]} : vector<1x4xf32> to vector<1x1xf32>
    %406 = vector.broadcast %405 : vector<1x1xf32> to vector<8x1xf32>
    %407 = arith.addf %404, %406 : vector<8x1xf32>
    %cst_80 = arith.constant 0.000000e+00 : f32
    %408 = vector.broadcast %cst_80 : f32 to vector<8x1xf32>
    %409 = arith.cmpf ogt, %407, %408 : vector<8x1xf32>
    %cst_81 = arith.constant 0.000000e+00 : f32
    %410 = vector.broadcast %cst_81 : f32 to vector<8x1xf32>
    %411 = arith.minimumf %407, %410 : vector<8x1xf32>
    %412 = math.exp %411 : vector<8x1xf32>
    %cst_82 = arith.constant 1.000000e+00 : f32
    %413 = vector.broadcast %cst_82 : f32 to vector<8x1xf32>
    %414 = arith.subf %412, %413 : vector<8x1xf32>
    %415 = arith.select %409, %407, %414 : vector<8x1xi1>, vector<8x1xf32>
    %cst_83 = arith.constant dense<0.000000e+00> : vector<8xf32>
    %416 = vector.multi_reduction <add>, %415, %cst_83 [1] : vector<8x1xf32> to vector<8xf32>
    %417 = vector.shape_cast %416 : vector<8xf32> to vector<8x1xf32>
    %cst_84 = arith.constant dense<0.000000e+00> : vector<1xf32>
    %418 = vector.multi_reduction <add>, %417, %cst_84 [0] : vector<8x1xf32> to vector<1xf32>
    %419 = vector.shape_cast %418 : vector<1xf32> to vector<1x1xf32>
    %cst_85 = arith.constant 1.250000e-01 : f32
    %420 = vector.broadcast %cst_85 : f32 to vector<1x1xf32>
    %421 = arith.mulf %419, %420 : vector<1x1xf32>
    %422 = vector.broadcast %421 : vector<1x1xf32> to vector<8x1xf32>
    %423 = arith.subf %415, %422 : vector<8x1xf32>
    %424 = arith.mulf %423, %423 : vector<8x1xf32>
    %cst_86 = arith.constant dense<0.000000e+00> : vector<8xf32>
    %425 = vector.multi_reduction <add>, %424, %cst_86 [1] : vector<8x1xf32> to vector<8xf32>
    %426 = vector.shape_cast %425 : vector<8xf32> to vector<8x1xf32>
    %cst_87 = arith.constant dense<0.000000e+00> : vector<1xf32>
    %427 = vector.multi_reduction <add>, %426, %cst_87 [0] : vector<8x1xf32> to vector<1xf32>
    %428 = vector.shape_cast %427 : vector<1xf32> to vector<1x1xf32>
    %cst_88 = arith.constant 0.142857149 : f32
    %429 = vector.broadcast %cst_88 : f32 to vector<1x1xf32>
    %430 = arith.mulf %428, %429 : vector<1x1xf32>
    %431 = math.rsqrt %430 : vector<1x1xf32>
    %432 = vector.broadcast %431 : vector<1x1xf32> to vector<8x1xf32>
    %433 = arith.mulf %423, %432 : vector<8x1xf32>
    %434 = vector.extract_strided_slice %1 {offsets = [0, 1], sizes = [8, 1], strides = [1, 1]} : vector<8x12xf32> to vector<8x1xf32>
    %435 = arith.addf %433, %434 : vector<8x1xf32>
    %436 = vector.extract_strided_slice %2 {offsets = [3, 0], sizes = [1, 384], strides = [1, 1]} : vector<6x384xf32> to vector<1x384xf32>
    %437 = vector.broadcast %435 : vector<8x1xf32> to vector<8x384xf32>
    %438 = vector.broadcast %436 : vector<1x384xf32> to vector<8x384xf32>
    %439 = arith.mulf %437, %438 : vector<8x384xf32>
    %440 = vector.extract_strided_slice %3 {offsets = [2, 0], sizes = [1, 384], strides = [1, 1]} : vector<6x384xf32> to vector<1x384xf32>
    %441 = vector.broadcast %440 : vector<1x384xf32> to vector<8x384xf32>
    %442 = arith.addf %439, %441 : vector<8x384xf32>
    %443 = vector.extract_strided_slice %442 {offsets = [0, 0], sizes = [8, 128], strides = [1, 1]} : vector<8x384xf32> to vector<8x128xf32>
    %444 = vector.extract_strided_slice %180 {offsets = [0, 0], sizes = [8, 128], strides = [1, 1]} : vector<8x384xf32> to vector<8x128xf32>
    %445 = arith.addf %443, %444 : vector<8x128xf32>
    %446 = arith.negf %445 : vector<8x128xf32>
    %447 = math.exp %446 : vector<8x128xf32>
    %cst_89 = arith.constant 1.000000e+00 : f32
    %448 = vector.broadcast %cst_89 : f32 to vector<8x128xf32>
    %449 = arith.addf %448, %447 : vector<8x128xf32>
    %450 = arith.divf %448, %449 : vector<8x128xf32>
    %451 = vector.extract_strided_slice %442 {offsets = [0, 128], sizes = [8, 128], strides = [1, 1]} : vector<8x384xf32> to vector<8x128xf32>
    %452 = vector.extract_strided_slice %180 {offsets = [0, 128], sizes = [8, 128], strides = [1, 1]} : vector<8x384xf32> to vector<8x128xf32>
    %453 = arith.addf %451, %452 : vector<8x128xf32>
    %454 = arith.negf %453 : vector<8x128xf32>
    %455 = math.exp %454 : vector<8x128xf32>
    %cst_90 = arith.constant 1.000000e+00 : f32
    %456 = vector.broadcast %cst_90 : f32 to vector<8x128xf32>
    %457 = arith.addf %456, %455 : vector<8x128xf32>
    %458 = arith.divf %456, %457 : vector<8x128xf32>
    %459 = vector.extract_strided_slice %442 {offsets = [0, 256], sizes = [8, 128], strides = [1, 1]} : vector<8x384xf32> to vector<8x128xf32>
    %460 = vector.extract_strided_slice %180 {offsets = [0, 256], sizes = [8, 128], strides = [1, 1]} : vector<8x384xf32> to vector<8x128xf32>
    %461 = arith.mulf %450, %460 : vector<8x128xf32>
    %462 = arith.addf %459, %461 : vector<8x128xf32>
    %463 = math.tanh %462 : vector<8x128xf32>
    %cst_91 = arith.constant 1.000000e+00 : f32
    %464 = vector.broadcast %cst_91 : f32 to vector<8x128xf32>
    %465 = arith.subf %464, %458 : vector<8x128xf32>
    %466 = arith.mulf %465, %463 : vector<8x128xf32>
    %467 = arith.mulf %458, %169 : vector<8x128xf32>
    %468 = arith.addf %466, %467 : vector<8x128xf32>
    %c1_92 = arith.constant 1 : index
    %c0_93 = arith.constant 0 : index
    %c0_94 = arith.constant 0 : index
    %469 = vector.load %arg5[%c1_92, %c0_93, %c0_94] : memref<3x128x768xf32, #tpu.memory_space<vmem>>, vector<1x128x768xf32>
    %470 = vector.shape_cast %469 : vector<1x128x768xf32> to vector<128x768xf32>
    %cst_95 = arith.constant dense<0.000000e+00> : vector<8x768xf32>
    %471 = tpu.matmul %468, %470, %cst_95 {dimension_numbers = #tpu.dot_dimension_numbers<[1], [0], [0], [1], [0, 0, 1, 1], [], []>} : vector<8x128xf32>, vector<128x768xf32>, vector<8x768xf32> -> vector<8x768xf32>
    %472 = vector.extract_strided_slice %471 {offsets = [0, 0], sizes = [8, 384], strides = [1, 1]} : vector<8x768xf32> to vector<8x384xf32>
    %473 = vector.extract_strided_slice %3 {offsets = [3, 0], sizes = [1, 384], strides = [1, 1]} : vector<6x384xf32> to vector<1x384xf32>
    %474 = vector.broadcast %473 : vector<1x384xf32> to vector<8x384xf32>
    %475 = arith.addf %472, %474 : vector<8x384xf32>
    %476 = vector.extract_strided_slice %471 {offsets = [0, 384], sizes = [8, 384], strides = [1, 1]} : vector<8x768xf32> to vector<8x384xf32>
    %477 = vector.extract_strided_slice %4 {offsets = [2, 0], sizes = [1, 384], strides = [1, 1]} : vector<6x384xf32> to vector<1x384xf32>
    %478 = vector.broadcast %477 : vector<1x384xf32> to vector<8x384xf32>
    %479 = arith.addf %476, %478 : vector<8x384xf32>
    %480 = vector.extract_strided_slice %475 {offsets = [0, 0], sizes = [8, 128], strides = [1, 1]} : vector<8x384xf32> to vector<8x128xf32>
    %481 = vector.extract_strided_slice %214 {offsets = [0, 0], sizes = [8, 128], strides = [1, 1]} : vector<8x384xf32> to vector<8x128xf32>
    %482 = arith.addf %480, %481 : vector<8x128xf32>
    %483 = arith.negf %482 : vector<8x128xf32>
    %484 = math.exp %483 : vector<8x128xf32>
    %cst_96 = arith.constant 1.000000e+00 : f32
    %485 = vector.broadcast %cst_96 : f32 to vector<8x128xf32>
    %486 = arith.addf %485, %484 : vector<8x128xf32>
    %487 = arith.divf %485, %486 : vector<8x128xf32>
    %488 = vector.extract_strided_slice %475 {offsets = [0, 128], sizes = [8, 128], strides = [1, 1]} : vector<8x384xf32> to vector<8x128xf32>
    %489 = vector.extract_strided_slice %214 {offsets = [0, 128], sizes = [8, 128], strides = [1, 1]} : vector<8x384xf32> to vector<8x128xf32>
    %490 = arith.addf %488, %489 : vector<8x128xf32>
    %491 = arith.negf %490 : vector<8x128xf32>
    %492 = math.exp %491 : vector<8x128xf32>
    %cst_97 = arith.constant 1.000000e+00 : f32
    %493 = vector.broadcast %cst_97 : f32 to vector<8x128xf32>
    %494 = arith.addf %493, %492 : vector<8x128xf32>
    %495 = arith.divf %493, %494 : vector<8x128xf32>
    %496 = vector.extract_strided_slice %475 {offsets = [0, 256], sizes = [8, 128], strides = [1, 1]} : vector<8x384xf32> to vector<8x128xf32>
    %497 = vector.extract_strided_slice %214 {offsets = [0, 256], sizes = [8, 128], strides = [1, 1]} : vector<8x384xf32> to vector<8x128xf32>
    %498 = arith.mulf %487, %497 : vector<8x128xf32>
    %499 = arith.addf %496, %498 : vector<8x128xf32>
    %500 = math.tanh %499 : vector<8x128xf32>
    %cst_98 = arith.constant 1.000000e+00 : f32
    %501 = vector.broadcast %cst_98 : f32 to vector<8x128xf32>
    %502 = arith.subf %501, %495 : vector<8x128xf32>
    %503 = arith.mulf %502, %500 : vector<8x128xf32>
    %504 = arith.mulf %495, %207 : vector<8x128xf32>
    %505 = arith.addf %503, %504 : vector<8x128xf32>
    %c1_99 = arith.constant 1 : index
    %c0_100 = arith.constant 0 : index
    %c0_101 = arith.constant 0 : index
    %506 = vector.load %arg6[%c1_99, %c0_100, %c0_101] : memref<3x128x512xf32, #tpu.memory_space<vmem>>, vector<1x128x512xf32>
    %507 = vector.shape_cast %506 : vector<1x128x512xf32> to vector<128x512xf32>
    %cst_102 = arith.constant dense<0.000000e+00> : vector<8x512xf32>
    %508 = tpu.matmul %505, %507, %cst_102 {dimension_numbers = #tpu.dot_dimension_numbers<[1], [0], [0], [1], [0, 0, 1, 1], [], []>} : vector<8x128xf32>, vector<128x512xf32>, vector<8x512xf32> -> vector<8x512xf32>
    %509 = vector.extract_strided_slice %508 {offsets = [0, 0], sizes = [8, 384], strides = [1, 1]} : vector<8x512xf32> to vector<8x384xf32>
    %510 = vector.extract_strided_slice %4 {offsets = [3, 0], sizes = [1, 384], strides = [1, 1]} : vector<6x384xf32> to vector<1x384xf32>
    %511 = vector.broadcast %510 : vector<1x384xf32> to vector<8x384xf32>
    %512 = arith.addf %509, %511 : vector<8x384xf32>
    %513 = vector.extract_strided_slice %508 {offsets = [0, 384], sizes = [8, 2], strides = [1, 1]} : vector<8x512xf32> to vector<8x2xf32>
    %514 = vector.extract_strided_slice %5 {offsets = [0, 1], sizes = [1, 2], strides = [1, 1]} : vector<1x4xf32> to vector<1x2xf32>
    %515 = vector.broadcast %514 : vector<1x2xf32> to vector<8x2xf32>
    %516 = arith.addf %513, %515 : vector<8x2xf32>
    %517 = vector.extract_strided_slice %516 {offsets = [0, 0], sizes = [8, 1], strides = [1, 1]} : vector<8x2xf32> to vector<8x1xf32>
    %518 = vector.extract_strided_slice %2 {offsets = [4, 0], sizes = [1, 384], strides = [1, 1]} : vector<6x384xf32> to vector<1x384xf32>
    %519 = vector.broadcast %517 : vector<8x1xf32> to vector<8x384xf32>
    %520 = vector.broadcast %518 : vector<1x384xf32> to vector<8x384xf32>
    %521 = arith.mulf %519, %520 : vector<8x384xf32>
    %522 = vector.extract_strided_slice %516 {offsets = [0, 1], sizes = [8, 1], strides = [1, 1]} : vector<8x2xf32> to vector<8x1xf32>
    %523 = vector.extract_strided_slice %2 {offsets = [5, 0], sizes = [1, 384], strides = [1, 1]} : vector<6x384xf32> to vector<1x384xf32>
    %524 = vector.broadcast %522 : vector<8x1xf32> to vector<8x384xf32>
    %525 = vector.broadcast %523 : vector<1x384xf32> to vector<8x384xf32>
    %526 = arith.mulf %524, %525 : vector<8x384xf32>
    %527 = arith.addf %521, %526 : vector<8x384xf32>
    %528 = vector.extract_strided_slice %3 {offsets = [4, 0], sizes = [1, 384], strides = [1, 1]} : vector<6x384xf32> to vector<1x384xf32>
    %529 = vector.broadcast %528 : vector<1x384xf32> to vector<8x384xf32>
    %530 = arith.addf %527, %529 : vector<8x384xf32>
    %531 = vector.extract_strided_slice %530 {offsets = [0, 0], sizes = [8, 128], strides = [1, 1]} : vector<8x384xf32> to vector<8x128xf32>
    %532 = vector.extract_strided_slice %270 {offsets = [0, 0], sizes = [8, 128], strides = [1, 1]} : vector<8x384xf32> to vector<8x128xf32>
    %533 = arith.addf %531, %532 : vector<8x128xf32>
    %534 = arith.negf %533 : vector<8x128xf32>
    %535 = math.exp %534 : vector<8x128xf32>
    %cst_103 = arith.constant 1.000000e+00 : f32
    %536 = vector.broadcast %cst_103 : f32 to vector<8x128xf32>
    %537 = arith.addf %536, %535 : vector<8x128xf32>
    %538 = arith.divf %536, %537 : vector<8x128xf32>
    %539 = vector.extract_strided_slice %530 {offsets = [0, 128], sizes = [8, 128], strides = [1, 1]} : vector<8x384xf32> to vector<8x128xf32>
    %540 = vector.extract_strided_slice %270 {offsets = [0, 128], sizes = [8, 128], strides = [1, 1]} : vector<8x384xf32> to vector<8x128xf32>
    %541 = arith.addf %539, %540 : vector<8x128xf32>
    %542 = arith.negf %541 : vector<8x128xf32>
    %543 = math.exp %542 : vector<8x128xf32>
    %cst_104 = arith.constant 1.000000e+00 : f32
    %544 = vector.broadcast %cst_104 : f32 to vector<8x128xf32>
    %545 = arith.addf %544, %543 : vector<8x128xf32>
    %546 = arith.divf %544, %545 : vector<8x128xf32>
    %547 = vector.extract_strided_slice %530 {offsets = [0, 256], sizes = [8, 128], strides = [1, 1]} : vector<8x384xf32> to vector<8x128xf32>
    %548 = vector.extract_strided_slice %270 {offsets = [0, 256], sizes = [8, 128], strides = [1, 1]} : vector<8x384xf32> to vector<8x128xf32>
    %549 = arith.mulf %538, %548 : vector<8x128xf32>
    %550 = arith.addf %547, %549 : vector<8x128xf32>
    %551 = math.tanh %550 : vector<8x128xf32>
    %cst_105 = arith.constant 1.000000e+00 : f32
    %552 = vector.broadcast %cst_105 : f32 to vector<8x128xf32>
    %553 = arith.subf %552, %546 : vector<8x128xf32>
    %554 = arith.mulf %553, %551 : vector<8x128xf32>
    %555 = arith.mulf %546, %259 : vector<8x128xf32>
    %556 = arith.addf %554, %555 : vector<8x128xf32>
    %c2_106 = arith.constant 2 : index
    %c0_107 = arith.constant 0 : index
    %c0_108 = arith.constant 0 : index
    %557 = vector.load %arg5[%c2_106, %c0_107, %c0_108] : memref<3x128x768xf32, #tpu.memory_space<vmem>>, vector<1x128x768xf32>
    %558 = vector.shape_cast %557 : vector<1x128x768xf32> to vector<128x768xf32>
    %cst_109 = arith.constant dense<0.000000e+00> : vector<8x768xf32>
    %559 = tpu.matmul %556, %558, %cst_109 {dimension_numbers = #tpu.dot_dimension_numbers<[1], [0], [0], [1], [0, 0, 1, 1], [], []>} : vector<8x128xf32>, vector<128x768xf32>, vector<8x768xf32> -> vector<8x768xf32>
    %560 = vector.extract_strided_slice %559 {offsets = [0, 0], sizes = [8, 384], strides = [1, 1]} : vector<8x768xf32> to vector<8x384xf32>
    %561 = vector.extract_strided_slice %3 {offsets = [5, 0], sizes = [1, 384], strides = [1, 1]} : vector<6x384xf32> to vector<1x384xf32>
    %562 = vector.broadcast %561 : vector<1x384xf32> to vector<8x384xf32>
    %563 = arith.addf %560, %562 : vector<8x384xf32>
    %564 = vector.extract_strided_slice %559 {offsets = [0, 384], sizes = [8, 384], strides = [1, 1]} : vector<8x768xf32> to vector<8x384xf32>
    %565 = vector.extract_strided_slice %4 {offsets = [4, 0], sizes = [1, 384], strides = [1, 1]} : vector<6x384xf32> to vector<1x384xf32>
    %566 = vector.broadcast %565 : vector<1x384xf32> to vector<8x384xf32>
    %567 = arith.addf %564, %566 : vector<8x384xf32>
    %568 = vector.extract_strided_slice %563 {offsets = [0, 0], sizes = [8, 128], strides = [1, 1]} : vector<8x384xf32> to vector<8x128xf32>
    %569 = vector.extract_strided_slice %304 {offsets = [0, 0], sizes = [8, 128], strides = [1, 1]} : vector<8x384xf32> to vector<8x128xf32>
    %570 = arith.addf %568, %569 : vector<8x128xf32>
    %571 = arith.negf %570 : vector<8x128xf32>
    %572 = math.exp %571 : vector<8x128xf32>
    %cst_110 = arith.constant 1.000000e+00 : f32
    %573 = vector.broadcast %cst_110 : f32 to vector<8x128xf32>
    %574 = arith.addf %573, %572 : vector<8x128xf32>
    %575 = arith.divf %573, %574 : vector<8x128xf32>
    %576 = vector.extract_strided_slice %563 {offsets = [0, 128], sizes = [8, 128], strides = [1, 1]} : vector<8x384xf32> to vector<8x128xf32>
    %577 = vector.extract_strided_slice %304 {offsets = [0, 128], sizes = [8, 128], strides = [1, 1]} : vector<8x384xf32> to vector<8x128xf32>
    %578 = arith.addf %576, %577 : vector<8x128xf32>
    %579 = arith.negf %578 : vector<8x128xf32>
    %580 = math.exp %579 : vector<8x128xf32>
    %cst_111 = arith.constant 1.000000e+00 : f32
    %581 = vector.broadcast %cst_111 : f32 to vector<8x128xf32>
    %582 = arith.addf %581, %580 : vector<8x128xf32>
    %583 = arith.divf %581, %582 : vector<8x128xf32>
    %584 = vector.extract_strided_slice %563 {offsets = [0, 256], sizes = [8, 128], strides = [1, 1]} : vector<8x384xf32> to vector<8x128xf32>
    %585 = vector.extract_strided_slice %304 {offsets = [0, 256], sizes = [8, 128], strides = [1, 1]} : vector<8x384xf32> to vector<8x128xf32>
    %586 = arith.mulf %575, %585 : vector<8x128xf32>
    %587 = arith.addf %584, %586 : vector<8x128xf32>
    %588 = math.tanh %587 : vector<8x128xf32>
    %cst_112 = arith.constant 1.000000e+00 : f32
    %589 = vector.broadcast %cst_112 : f32 to vector<8x128xf32>
    %590 = arith.subf %589, %583 : vector<8x128xf32>
    %591 = arith.mulf %590, %588 : vector<8x128xf32>
    %592 = arith.mulf %583, %297 : vector<8x128xf32>
    %593 = arith.addf %591, %592 : vector<8x128xf32>
    %c2_113 = arith.constant 2 : index
    %c0_114 = arith.constant 0 : index
    %c0_115 = arith.constant 0 : index
    %594 = vector.load %arg6[%c2_113, %c0_114, %c0_115] : memref<3x128x512xf32, #tpu.memory_space<vmem>>, vector<1x128x512xf32>
    %595 = vector.shape_cast %594 : vector<1x128x512xf32> to vector<128x512xf32>
    %cst_116 = arith.constant dense<0.000000e+00> : vector<8x512xf32>
    %596 = tpu.matmul %593, %595, %cst_116 {dimension_numbers = #tpu.dot_dimension_numbers<[1], [0], [0], [1], [0, 0, 1, 1], [], []>} : vector<8x128xf32>, vector<128x512xf32>, vector<8x512xf32> -> vector<8x512xf32>
    %597 = vector.extract_strided_slice %596 {offsets = [0, 0], sizes = [8, 384], strides = [1, 1]} : vector<8x512xf32> to vector<8x384xf32>
    %598 = vector.extract_strided_slice %4 {offsets = [5, 0], sizes = [1, 384], strides = [1, 1]} : vector<6x384xf32> to vector<1x384xf32>
    %599 = vector.broadcast %598 : vector<1x384xf32> to vector<8x384xf32>
    %600 = arith.addf %597, %599 : vector<8x384xf32>
    %601 = vector.extract_strided_slice %596 {offsets = [0, 384], sizes = [8, 1], strides = [1, 1]} : vector<8x512xf32> to vector<8x1xf32>
    %602 = vector.extract_strided_slice %5 {offsets = [0, 3], sizes = [1, 1], strides = [1, 1]} : vector<1x4xf32> to vector<1x1xf32>
    %603 = vector.broadcast %602 : vector<1x1xf32> to vector<8x1xf32>
    %604 = arith.addf %601, %603 : vector<8x1xf32>
    %cst_117 = arith.constant dense<0.000000e+00> : vector<8xf32>
    %605 = vector.multi_reduction <add>, %604, %cst_117 [1] : vector<8x1xf32> to vector<8xf32>
    %606 = vector.shape_cast %605 : vector<8xf32> to vector<8x1xf32>
    %cst_118 = arith.constant dense<0.000000e+00> : vector<1xf32>
    %607 = vector.multi_reduction <add>, %606, %cst_118 [0] : vector<8x1xf32> to vector<1xf32>
    %608 = vector.shape_cast %607 : vector<1xf32> to vector<1x1xf32>
    %cst_119 = arith.constant 1.250000e-01 : f32
    %609 = vector.broadcast %cst_119 : f32 to vector<1x1xf32>
    %610 = arith.mulf %608, %609 : vector<1x1xf32>
    %611 = vector.broadcast %610 : vector<1x1xf32> to vector<8x1xf32>
    %612 = arith.subf %604, %611 : vector<8x1xf32>
    %613 = arith.mulf %612, %612 : vector<8x1xf32>
    %cst_120 = arith.constant dense<0.000000e+00> : vector<8xf32>
    %614 = vector.multi_reduction <add>, %613, %cst_120 [1] : vector<8x1xf32> to vector<8xf32>
    %615 = vector.shape_cast %614 : vector<8xf32> to vector<8x1xf32>
    %cst_121 = arith.constant dense<0.000000e+00> : vector<1xf32>
    %616 = vector.multi_reduction <add>, %615, %cst_121 [0] : vector<8x1xf32> to vector<1xf32>
    %617 = vector.shape_cast %616 : vector<1xf32> to vector<1x1xf32>
    %cst_122 = arith.constant 0.142857149 : f32
    %618 = vector.broadcast %cst_122 : f32 to vector<1x1xf32>
    %619 = arith.mulf %617, %618 : vector<1x1xf32>
    %620 = math.rsqrt %619 : vector<1x1xf32>
    %621 = vector.broadcast %620 : vector<1x1xf32> to vector<8x1xf32>
    %622 = arith.mulf %612, %621 : vector<8x1xf32>
    %623 = vector.extract_strided_slice %1 {offsets = [0, 7], sizes = [8, 1], strides = [1, 1]} : vector<8x12xf32> to vector<8x1xf32>
    %624 = arith.addf %622, %623 : vector<8x1xf32>
    %625 = vector.extract_strided_slice %2 {offsets = [2, 0], sizes = [1, 384], strides = [1, 1]} : vector<6x384xf32> to vector<1x384xf32>
    %626 = vector.broadcast %624 : vector<8x1xf32> to vector<8x384xf32>
    %627 = vector.broadcast %625 : vector<1x384xf32> to vector<8x384xf32>
    %628 = arith.mulf %626, %627 : vector<8x384xf32>
    %629 = arith.addf %19, %628 : vector<8x384xf32>
    %630 = vector.extract_strided_slice %629 {offsets = [0, 0], sizes = [8, 128], strides = [1, 1]} : vector<8x384xf32> to vector<8x128xf32>
    %631 = vector.extract_strided_slice %370 {offsets = [0, 0], sizes = [8, 128], strides = [1, 1]} : vector<8x384xf32> to vector<8x128xf32>
    %632 = arith.addf %630, %631 : vector<8x128xf32>
    %633 = arith.negf %632 : vector<8x128xf32>
    %634 = math.exp %633 : vector<8x128xf32>
    %cst_123 = arith.constant 1.000000e+00 : f32
    %635 = vector.broadcast %cst_123 : f32 to vector<8x128xf32>
    %636 = arith.addf %635, %634 : vector<8x128xf32>
    %637 = arith.divf %635, %636 : vector<8x128xf32>
    %638 = vector.extract_strided_slice %629 {offsets = [0, 128], sizes = [8, 128], strides = [1, 1]} : vector<8x384xf32> to vector<8x128xf32>
    %639 = vector.extract_strided_slice %370 {offsets = [0, 128], sizes = [8, 128], strides = [1, 1]} : vector<8x384xf32> to vector<8x128xf32>
    %640 = arith.addf %638, %639 : vector<8x128xf32>
    %641 = arith.negf %640 : vector<8x128xf32>
    %642 = math.exp %641 : vector<8x128xf32>
    %cst_124 = arith.constant 1.000000e+00 : f32
    %643 = vector.broadcast %cst_124 : f32 to vector<8x128xf32>
    %644 = arith.addf %643, %642 : vector<8x128xf32>
    %645 = arith.divf %643, %644 : vector<8x128xf32>
    %646 = vector.extract_strided_slice %629 {offsets = [0, 256], sizes = [8, 128], strides = [1, 1]} : vector<8x384xf32> to vector<8x128xf32>
    %647 = vector.extract_strided_slice %370 {offsets = [0, 256], sizes = [8, 128], strides = [1, 1]} : vector<8x384xf32> to vector<8x128xf32>
    %648 = arith.mulf %637, %647 : vector<8x128xf32>
    %649 = arith.addf %646, %648 : vector<8x128xf32>
    %650 = math.tanh %649 : vector<8x128xf32>
    %cst_125 = arith.constant 1.000000e+00 : f32
    %651 = vector.broadcast %cst_125 : f32 to vector<8x128xf32>
    %652 = arith.subf %651, %645 : vector<8x128xf32>
    %653 = arith.mulf %652, %650 : vector<8x128xf32>
    %654 = arith.mulf %645, %359 : vector<8x128xf32>
    %655 = arith.addf %653, %654 : vector<8x128xf32>
    %c0_126 = arith.constant 0 : index
    %c0_127 = arith.constant 0 : index
    %c0_128 = arith.constant 0 : index
    %656 = vector.load %arg5[%c0_126, %c0_127, %c0_128] : memref<3x128x768xf32, #tpu.memory_space<vmem>>, vector<1x128x768xf32>
    %657 = vector.shape_cast %656 : vector<1x128x768xf32> to vector<128x768xf32>
    %cst_129 = arith.constant dense<0.000000e+00> : vector<8x768xf32>
    %658 = tpu.matmul %655, %657, %cst_129 {dimension_numbers = #tpu.dot_dimension_numbers<[1], [0], [0], [1], [0, 0, 1, 1], [], []>} : vector<8x128xf32>, vector<128x768xf32>, vector<8x768xf32> -> vector<8x768xf32>
    %659 = vector.extract_strided_slice %658 {offsets = [0, 0], sizes = [8, 384], strides = [1, 1]} : vector<8x768xf32> to vector<8x384xf32>
    %660 = vector.extract_strided_slice %3 {offsets = [1, 0], sizes = [1, 384], strides = [1, 1]} : vector<6x384xf32> to vector<1x384xf32>
    %661 = vector.broadcast %660 : vector<1x384xf32> to vector<8x384xf32>
    %662 = arith.addf %659, %661 : vector<8x384xf32>
    %663 = vector.extract_strided_slice %658 {offsets = [0, 384], sizes = [8, 384], strides = [1, 1]} : vector<8x768xf32> to vector<8x384xf32>
    %664 = vector.extract_strided_slice %4 {offsets = [0, 0], sizes = [1, 384], strides = [1, 1]} : vector<6x384xf32> to vector<1x384xf32>
    %665 = vector.broadcast %664 : vector<1x384xf32> to vector<8x384xf32>
    %666 = arith.addf %663, %665 : vector<8x384xf32>
    %667 = vector.extract_strided_slice %662 {offsets = [0, 0], sizes = [8, 128], strides = [1, 1]} : vector<8x384xf32> to vector<8x128xf32>
    %668 = vector.extract_strided_slice %403 {offsets = [0, 0], sizes = [8, 128], strides = [1, 1]} : vector<8x384xf32> to vector<8x128xf32>
    %669 = arith.addf %667, %668 : vector<8x128xf32>
    %670 = arith.negf %669 : vector<8x128xf32>
    %671 = math.exp %670 : vector<8x128xf32>
    %cst_130 = arith.constant 1.000000e+00 : f32
    %672 = vector.broadcast %cst_130 : f32 to vector<8x128xf32>
    %673 = arith.addf %672, %671 : vector<8x128xf32>
    %674 = arith.divf %672, %673 : vector<8x128xf32>
    %675 = vector.extract_strided_slice %662 {offsets = [0, 128], sizes = [8, 128], strides = [1, 1]} : vector<8x384xf32> to vector<8x128xf32>
    %676 = vector.extract_strided_slice %403 {offsets = [0, 128], sizes = [8, 128], strides = [1, 1]} : vector<8x384xf32> to vector<8x128xf32>
    %677 = arith.addf %675, %676 : vector<8x128xf32>
    %678 = arith.negf %677 : vector<8x128xf32>
    %679 = math.exp %678 : vector<8x128xf32>
    %cst_131 = arith.constant 1.000000e+00 : f32
    %680 = vector.broadcast %cst_131 : f32 to vector<8x128xf32>
    %681 = arith.addf %680, %679 : vector<8x128xf32>
    %682 = arith.divf %680, %681 : vector<8x128xf32>
    %683 = vector.extract_strided_slice %662 {offsets = [0, 256], sizes = [8, 128], strides = [1, 1]} : vector<8x384xf32> to vector<8x128xf32>
    %684 = vector.extract_strided_slice %403 {offsets = [0, 256], sizes = [8, 128], strides = [1, 1]} : vector<8x384xf32> to vector<8x128xf32>
    %685 = arith.mulf %674, %684 : vector<8x128xf32>
    %686 = arith.addf %683, %685 : vector<8x128xf32>
    %687 = math.tanh %686 : vector<8x128xf32>
    %cst_132 = arith.constant 1.000000e+00 : f32
    %688 = vector.broadcast %cst_132 : f32 to vector<8x128xf32>
    %689 = arith.subf %688, %682 : vector<8x128xf32>
    %690 = arith.mulf %689, %687 : vector<8x128xf32>
    %691 = arith.mulf %682, %396 : vector<8x128xf32>
    %692 = arith.addf %690, %691 : vector<8x128xf32>
    %c0_133 = arith.constant 0 : index
    %c0_134 = arith.constant 0 : index
    %c0_135 = arith.constant 0 : index
    %693 = vector.load %arg6[%c0_133, %c0_134, %c0_135] : memref<3x128x512xf32, #tpu.memory_space<vmem>>, vector<1x128x512xf32>
    %694 = vector.shape_cast %693 : vector<1x128x512xf32> to vector<128x512xf32>
    %cst_136 = arith.constant dense<0.000000e+00> : vector<8x512xf32>
    %695 = tpu.matmul %692, %694, %cst_136 {dimension_numbers = #tpu.dot_dimension_numbers<[1], [0], [0], [1], [0, 0, 1, 1], [], []>} : vector<8x128xf32>, vector<128x512xf32>, vector<8x512xf32> -> vector<8x512xf32>
    %696 = vector.extract_strided_slice %695 {offsets = [0, 0], sizes = [8, 384], strides = [1, 1]} : vector<8x512xf32> to vector<8x384xf32>
    %697 = vector.extract_strided_slice %4 {offsets = [1, 0], sizes = [1, 384], strides = [1, 1]} : vector<6x384xf32> to vector<1x384xf32>
    %698 = vector.broadcast %697 : vector<1x384xf32> to vector<8x384xf32>
    %699 = arith.addf %696, %698 : vector<8x384xf32>
    %700 = vector.extract_strided_slice %695 {offsets = [0, 384], sizes = [8, 1], strides = [1, 1]} : vector<8x512xf32> to vector<8x1xf32>
    %701 = vector.extract_strided_slice %5 {offsets = [0, 0], sizes = [1, 1], strides = [1, 1]} : vector<1x4xf32> to vector<1x1xf32>
    %702 = vector.broadcast %701 : vector<1x1xf32> to vector<8x1xf32>
    %703 = arith.addf %700, %702 : vector<8x1xf32>
    %cst_137 = arith.constant 0.000000e+00 : f32
    %704 = vector.broadcast %cst_137 : f32 to vector<8x1xf32>
    %705 = arith.cmpf ogt, %703, %704 : vector<8x1xf32>
    %cst_138 = arith.constant 0.000000e+00 : f32
    %706 = vector.broadcast %cst_138 : f32 to vector<8x1xf32>
    %707 = arith.minimumf %703, %706 : vector<8x1xf32>
    %708 = math.exp %707 : vector<8x1xf32>
    %cst_139 = arith.constant 1.000000e+00 : f32
    %709 = vector.broadcast %cst_139 : f32 to vector<8x1xf32>
    %710 = arith.subf %708, %709 : vector<8x1xf32>
    %711 = arith.select %705, %703, %710 : vector<8x1xi1>, vector<8x1xf32>
    %cst_140 = arith.constant dense<0.000000e+00> : vector<8xf32>
    %712 = vector.multi_reduction <add>, %711, %cst_140 [1] : vector<8x1xf32> to vector<8xf32>
    %713 = vector.shape_cast %712 : vector<8xf32> to vector<8x1xf32>
    %cst_141 = arith.constant dense<0.000000e+00> : vector<1xf32>
    %714 = vector.multi_reduction <add>, %713, %cst_141 [0] : vector<8x1xf32> to vector<1xf32>
    %715 = vector.shape_cast %714 : vector<1xf32> to vector<1x1xf32>
    %cst_142 = arith.constant 1.250000e-01 : f32
    %716 = vector.broadcast %cst_142 : f32 to vector<1x1xf32>
    %717 = arith.mulf %715, %716 : vector<1x1xf32>
    %718 = vector.broadcast %717 : vector<1x1xf32> to vector<8x1xf32>
    %719 = arith.subf %711, %718 : vector<8x1xf32>
    %720 = arith.mulf %719, %719 : vector<8x1xf32>
    %cst_143 = arith.constant dense<0.000000e+00> : vector<8xf32>
    %721 = vector.multi_reduction <add>, %720, %cst_143 [1] : vector<8x1xf32> to vector<8xf32>
    %722 = vector.shape_cast %721 : vector<8xf32> to vector<8x1xf32>
    %cst_144 = arith.constant dense<0.000000e+00> : vector<1xf32>
    %723 = vector.multi_reduction <add>, %722, %cst_144 [0] : vector<8x1xf32> to vector<1xf32>
    %724 = vector.shape_cast %723 : vector<1xf32> to vector<1x1xf32>
    %cst_145 = arith.constant 0.142857149 : f32
    %725 = vector.broadcast %cst_145 : f32 to vector<1x1xf32>
    %726 = arith.mulf %724, %725 : vector<1x1xf32>
    %727 = math.rsqrt %726 : vector<1x1xf32>
    %728 = vector.broadcast %727 : vector<1x1xf32> to vector<8x1xf32>
    %729 = arith.mulf %719, %728 : vector<8x1xf32>
    %730 = vector.extract_strided_slice %1 {offsets = [0, 2], sizes = [8, 1], strides = [1, 1]} : vector<8x12xf32> to vector<8x1xf32>
    %731 = arith.addf %729, %730 : vector<8x1xf32>
    %732 = vector.extract_strided_slice %2 {offsets = [3, 0], sizes = [1, 384], strides = [1, 1]} : vector<6x384xf32> to vector<1x384xf32>
    %733 = vector.broadcast %731 : vector<8x1xf32> to vector<8x384xf32>
    %734 = vector.broadcast %732 : vector<1x384xf32> to vector<8x384xf32>
    %735 = arith.mulf %733, %734 : vector<8x384xf32>
    %736 = vector.extract_strided_slice %3 {offsets = [2, 0], sizes = [1, 384], strides = [1, 1]} : vector<6x384xf32> to vector<1x384xf32>
    %737 = vector.broadcast %736 : vector<1x384xf32> to vector<8x384xf32>
    %738 = arith.addf %735, %737 : vector<8x384xf32>
    %739 = vector.extract_strided_slice %738 {offsets = [0, 0], sizes = [8, 128], strides = [1, 1]} : vector<8x384xf32> to vector<8x128xf32>
    %740 = vector.extract_strided_slice %479 {offsets = [0, 0], sizes = [8, 128], strides = [1, 1]} : vector<8x384xf32> to vector<8x128xf32>
    %741 = arith.addf %739, %740 : vector<8x128xf32>
    %742 = arith.negf %741 : vector<8x128xf32>
    %743 = math.exp %742 : vector<8x128xf32>
    %cst_146 = arith.constant 1.000000e+00 : f32
    %744 = vector.broadcast %cst_146 : f32 to vector<8x128xf32>
    %745 = arith.addf %744, %743 : vector<8x128xf32>
    %746 = arith.divf %744, %745 : vector<8x128xf32>
    %747 = vector.extract_strided_slice %738 {offsets = [0, 128], sizes = [8, 128], strides = [1, 1]} : vector<8x384xf32> to vector<8x128xf32>
    %748 = vector.extract_strided_slice %479 {offsets = [0, 128], sizes = [8, 128], strides = [1, 1]} : vector<8x384xf32> to vector<8x128xf32>
    %749 = arith.addf %747, %748 : vector<8x128xf32>
    %750 = arith.negf %749 : vector<8x128xf32>
    %751 = math.exp %750 : vector<8x128xf32>
    %cst_147 = arith.constant 1.000000e+00 : f32
    %752 = vector.broadcast %cst_147 : f32 to vector<8x128xf32>
    %753 = arith.addf %752, %751 : vector<8x128xf32>
    %754 = arith.divf %752, %753 : vector<8x128xf32>
    %755 = vector.extract_strided_slice %738 {offsets = [0, 256], sizes = [8, 128], strides = [1, 1]} : vector<8x384xf32> to vector<8x128xf32>
    %756 = vector.extract_strided_slice %479 {offsets = [0, 256], sizes = [8, 128], strides = [1, 1]} : vector<8x384xf32> to vector<8x128xf32>
    %757 = arith.mulf %746, %756 : vector<8x128xf32>
    %758 = arith.addf %755, %757 : vector<8x128xf32>
    %759 = math.tanh %758 : vector<8x128xf32>
    %cst_148 = arith.constant 1.000000e+00 : f32
    %760 = vector.broadcast %cst_148 : f32 to vector<8x128xf32>
    %761 = arith.subf %760, %754 : vector<8x128xf32>
    %762 = arith.mulf %761, %759 : vector<8x128xf32>
    %763 = arith.mulf %754, %468 : vector<8x128xf32>
    %764 = arith.addf %762, %763 : vector<8x128xf32>
    %c1_149 = arith.constant 1 : index
    %c0_150 = arith.constant 0 : index
    %c0_151 = arith.constant 0 : index
    %765 = vector.load %arg5[%c1_149, %c0_150, %c0_151] : memref<3x128x768xf32, #tpu.memory_space<vmem>>, vector<1x128x768xf32>
    %766 = vector.shape_cast %765 : vector<1x128x768xf32> to vector<128x768xf32>
    %cst_152 = arith.constant dense<0.000000e+00> : vector<8x768xf32>
    %767 = tpu.matmul %764, %766, %cst_152 {dimension_numbers = #tpu.dot_dimension_numbers<[1], [0], [0], [1], [0, 0, 1, 1], [], []>} : vector<8x128xf32>, vector<128x768xf32>, vector<8x768xf32> -> vector<8x768xf32>
    %768 = vector.extract_strided_slice %767 {offsets = [0, 0], sizes = [8, 384], strides = [1, 1]} : vector<8x768xf32> to vector<8x384xf32>
    %769 = vector.extract_strided_slice %3 {offsets = [3, 0], sizes = [1, 384], strides = [1, 1]} : vector<6x384xf32> to vector<1x384xf32>
    %770 = vector.broadcast %769 : vector<1x384xf32> to vector<8x384xf32>
    %771 = arith.addf %768, %770 : vector<8x384xf32>
    %772 = vector.extract_strided_slice %767 {offsets = [0, 384], sizes = [8, 384], strides = [1, 1]} : vector<8x768xf32> to vector<8x384xf32>
    %773 = vector.extract_strided_slice %4 {offsets = [2, 0], sizes = [1, 384], strides = [1, 1]} : vector<6x384xf32> to vector<1x384xf32>
    %774 = vector.broadcast %773 : vector<1x384xf32> to vector<8x384xf32>
    %775 = arith.addf %772, %774 : vector<8x384xf32>
    %776 = vector.extract_strided_slice %771 {offsets = [0, 0], sizes = [8, 128], strides = [1, 1]} : vector<8x384xf32> to vector<8x128xf32>
    %777 = vector.extract_strided_slice %512 {offsets = [0, 0], sizes = [8, 128], strides = [1, 1]} : vector<8x384xf32> to vector<8x128xf32>
    %778 = arith.addf %776, %777 : vector<8x128xf32>
    %779 = arith.negf %778 : vector<8x128xf32>
    %780 = math.exp %779 : vector<8x128xf32>
    %cst_153 = arith.constant 1.000000e+00 : f32
    %781 = vector.broadcast %cst_153 : f32 to vector<8x128xf32>
    %782 = arith.addf %781, %780 : vector<8x128xf32>
    %783 = arith.divf %781, %782 : vector<8x128xf32>
    %784 = vector.extract_strided_slice %771 {offsets = [0, 128], sizes = [8, 128], strides = [1, 1]} : vector<8x384xf32> to vector<8x128xf32>
    %785 = vector.extract_strided_slice %512 {offsets = [0, 128], sizes = [8, 128], strides = [1, 1]} : vector<8x384xf32> to vector<8x128xf32>
    %786 = arith.addf %784, %785 : vector<8x128xf32>
    %787 = arith.negf %786 : vector<8x128xf32>
    %788 = math.exp %787 : vector<8x128xf32>
    %cst_154 = arith.constant 1.000000e+00 : f32
    %789 = vector.broadcast %cst_154 : f32 to vector<8x128xf32>
    %790 = arith.addf %789, %788 : vector<8x128xf32>
    %791 = arith.divf %789, %790 : vector<8x128xf32>
    %792 = vector.extract_strided_slice %771 {offsets = [0, 256], sizes = [8, 128], strides = [1, 1]} : vector<8x384xf32> to vector<8x128xf32>
    %793 = vector.extract_strided_slice %512 {offsets = [0, 256], sizes = [8, 128], strides = [1, 1]} : vector<8x384xf32> to vector<8x128xf32>
    %794 = arith.mulf %783, %793 : vector<8x128xf32>
    %795 = arith.addf %792, %794 : vector<8x128xf32>
    %796 = math.tanh %795 : vector<8x128xf32>
    %cst_155 = arith.constant 1.000000e+00 : f32
    %797 = vector.broadcast %cst_155 : f32 to vector<8x128xf32>
    %798 = arith.subf %797, %791 : vector<8x128xf32>
    %799 = arith.mulf %798, %796 : vector<8x128xf32>
    %800 = arith.mulf %791, %505 : vector<8x128xf32>
    %801 = arith.addf %799, %800 : vector<8x128xf32>
    %c1_156 = arith.constant 1 : index
    %c0_157 = arith.constant 0 : index
    %c0_158 = arith.constant 0 : index
    %802 = vector.load %arg6[%c1_156, %c0_157, %c0_158] : memref<3x128x512xf32, #tpu.memory_space<vmem>>, vector<1x128x512xf32>
    %803 = vector.shape_cast %802 : vector<1x128x512xf32> to vector<128x512xf32>
    %cst_159 = arith.constant dense<0.000000e+00> : vector<8x512xf32>
    %804 = tpu.matmul %801, %803, %cst_159 {dimension_numbers = #tpu.dot_dimension_numbers<[1], [0], [0], [1], [0, 0, 1, 1], [], []>} : vector<8x128xf32>, vector<128x512xf32>, vector<8x512xf32> -> vector<8x512xf32>
    %805 = vector.extract_strided_slice %804 {offsets = [0, 0], sizes = [8, 384], strides = [1, 1]} : vector<8x512xf32> to vector<8x384xf32>
    %806 = vector.extract_strided_slice %4 {offsets = [3, 0], sizes = [1, 384], strides = [1, 1]} : vector<6x384xf32> to vector<1x384xf32>
    %807 = vector.broadcast %806 : vector<1x384xf32> to vector<8x384xf32>
    %808 = arith.addf %805, %807 : vector<8x384xf32>
    %809 = vector.extract_strided_slice %804 {offsets = [0, 384], sizes = [8, 2], strides = [1, 1]} : vector<8x512xf32> to vector<8x2xf32>
    %810 = vector.extract_strided_slice %5 {offsets = [0, 1], sizes = [1, 2], strides = [1, 1]} : vector<1x4xf32> to vector<1x2xf32>
    %811 = vector.broadcast %810 : vector<1x2xf32> to vector<8x2xf32>
    %812 = arith.addf %809, %811 : vector<8x2xf32>
    %813 = vector.extract_strided_slice %812 {offsets = [0, 0], sizes = [8, 1], strides = [1, 1]} : vector<8x2xf32> to vector<8x1xf32>
    %814 = vector.extract_strided_slice %2 {offsets = [4, 0], sizes = [1, 384], strides = [1, 1]} : vector<6x384xf32> to vector<1x384xf32>
    %815 = vector.broadcast %813 : vector<8x1xf32> to vector<8x384xf32>
    %816 = vector.broadcast %814 : vector<1x384xf32> to vector<8x384xf32>
    %817 = arith.mulf %815, %816 : vector<8x384xf32>
    %818 = vector.extract_strided_slice %812 {offsets = [0, 1], sizes = [8, 1], strides = [1, 1]} : vector<8x2xf32> to vector<8x1xf32>
    %819 = vector.extract_strided_slice %2 {offsets = [5, 0], sizes = [1, 384], strides = [1, 1]} : vector<6x384xf32> to vector<1x384xf32>
    %820 = vector.broadcast %818 : vector<8x1xf32> to vector<8x384xf32>
    %821 = vector.broadcast %819 : vector<1x384xf32> to vector<8x384xf32>
    %822 = arith.mulf %820, %821 : vector<8x384xf32>
    %823 = arith.addf %817, %822 : vector<8x384xf32>
    %824 = vector.extract_strided_slice %3 {offsets = [4, 0], sizes = [1, 384], strides = [1, 1]} : vector<6x384xf32> to vector<1x384xf32>
    %825 = vector.broadcast %824 : vector<1x384xf32> to vector<8x384xf32>
    %826 = arith.addf %823, %825 : vector<8x384xf32>
    %827 = vector.extract_strided_slice %826 {offsets = [0, 0], sizes = [8, 128], strides = [1, 1]} : vector<8x384xf32> to vector<8x128xf32>
    %828 = vector.extract_strided_slice %567 {offsets = [0, 0], sizes = [8, 128], strides = [1, 1]} : vector<8x384xf32> to vector<8x128xf32>
    %829 = arith.addf %827, %828 : vector<8x128xf32>
    %830 = arith.negf %829 : vector<8x128xf32>
    %831 = math.exp %830 : vector<8x128xf32>
    %cst_160 = arith.constant 1.000000e+00 : f32
    %832 = vector.broadcast %cst_160 : f32 to vector<8x128xf32>
    %833 = arith.addf %832, %831 : vector<8x128xf32>
    %834 = arith.divf %832, %833 : vector<8x128xf32>
    %835 = vector.extract_strided_slice %826 {offsets = [0, 128], sizes = [8, 128], strides = [1, 1]} : vector<8x384xf32> to vector<8x128xf32>
    %836 = vector.extract_strided_slice %567 {offsets = [0, 128], sizes = [8, 128], strides = [1, 1]} : vector<8x384xf32> to vector<8x128xf32>
    %837 = arith.addf %835, %836 : vector<8x128xf32>
    %838 = arith.negf %837 : vector<8x128xf32>
    %839 = math.exp %838 : vector<8x128xf32>
    %cst_161 = arith.constant 1.000000e+00 : f32
    %840 = vector.broadcast %cst_161 : f32 to vector<8x128xf32>
    %841 = arith.addf %840, %839 : vector<8x128xf32>
    %842 = arith.divf %840, %841 : vector<8x128xf32>
    %843 = vector.extract_strided_slice %826 {offsets = [0, 256], sizes = [8, 128], strides = [1, 1]} : vector<8x384xf32> to vector<8x128xf32>
    %844 = vector.extract_strided_slice %567 {offsets = [0, 256], sizes = [8, 128], strides = [1, 1]} : vector<8x384xf32> to vector<8x128xf32>
    %845 = arith.mulf %834, %844 : vector<8x128xf32>
    %846 = arith.addf %843, %845 : vector<8x128xf32>
    %847 = math.tanh %846 : vector<8x128xf32>
    %cst_162 = arith.constant 1.000000e+00 : f32
    %848 = vector.broadcast %cst_162 : f32 to vector<8x128xf32>
    %849 = arith.subf %848, %842 : vector<8x128xf32>
    %850 = arith.mulf %849, %847 : vector<8x128xf32>
    %851 = arith.mulf %842, %556 : vector<8x128xf32>
    %852 = arith.addf %850, %851 : vector<8x128xf32>
    %c2_163 = arith.constant 2 : index
    %c0_164 = arith.constant 0 : index
    %c0_165 = arith.constant 0 : index
    %853 = vector.load %arg5[%c2_163, %c0_164, %c0_165] : memref<3x128x768xf32, #tpu.memory_space<vmem>>, vector<1x128x768xf32>
    %854 = vector.shape_cast %853 : vector<1x128x768xf32> to vector<128x768xf32>
    %cst_166 = arith.constant dense<0.000000e+00> : vector<8x768xf32>
    %855 = tpu.matmul %852, %854, %cst_166 {dimension_numbers = #tpu.dot_dimension_numbers<[1], [0], [0], [1], [0, 0, 1, 1], [], []>} : vector<8x128xf32>, vector<128x768xf32>, vector<8x768xf32> -> vector<8x768xf32>
    %856 = vector.extract_strided_slice %855 {offsets = [0, 0], sizes = [8, 384], strides = [1, 1]} : vector<8x768xf32> to vector<8x384xf32>
    %857 = vector.extract_strided_slice %3 {offsets = [5, 0], sizes = [1, 384], strides = [1, 1]} : vector<6x384xf32> to vector<1x384xf32>
    %858 = vector.broadcast %857 : vector<1x384xf32> to vector<8x384xf32>
    %859 = arith.addf %856, %858 : vector<8x384xf32>
    %860 = vector.extract_strided_slice %855 {offsets = [0, 384], sizes = [8, 384], strides = [1, 1]} : vector<8x768xf32> to vector<8x384xf32>
    %861 = vector.extract_strided_slice %4 {offsets = [4, 0], sizes = [1, 384], strides = [1, 1]} : vector<6x384xf32> to vector<1x384xf32>
    %862 = vector.broadcast %861 : vector<1x384xf32> to vector<8x384xf32>
    %863 = arith.addf %860, %862 : vector<8x384xf32>
    %864 = vector.extract_strided_slice %859 {offsets = [0, 0], sizes = [8, 128], strides = [1, 1]} : vector<8x384xf32> to vector<8x128xf32>
    %865 = vector.extract_strided_slice %600 {offsets = [0, 0], sizes = [8, 128], strides = [1, 1]} : vector<8x384xf32> to vector<8x128xf32>
    %866 = arith.addf %864, %865 : vector<8x128xf32>
    %867 = arith.negf %866 : vector<8x128xf32>
    %868 = math.exp %867 : vector<8x128xf32>
    %cst_167 = arith.constant 1.000000e+00 : f32
    %869 = vector.broadcast %cst_167 : f32 to vector<8x128xf32>
    %870 = arith.addf %869, %868 : vector<8x128xf32>
    %871 = arith.divf %869, %870 : vector<8x128xf32>
    %872 = vector.extract_strided_slice %859 {offsets = [0, 128], sizes = [8, 128], strides = [1, 1]} : vector<8x384xf32> to vector<8x128xf32>
    %873 = vector.extract_strided_slice %600 {offsets = [0, 128], sizes = [8, 128], strides = [1, 1]} : vector<8x384xf32> to vector<8x128xf32>
    %874 = arith.addf %872, %873 : vector<8x128xf32>
    %875 = arith.negf %874 : vector<8x128xf32>
    %876 = math.exp %875 : vector<8x128xf32>
    %cst_168 = arith.constant 1.000000e+00 : f32
    %877 = vector.broadcast %cst_168 : f32 to vector<8x128xf32>
    %878 = arith.addf %877, %876 : vector<8x128xf32>
    %879 = arith.divf %877, %878 : vector<8x128xf32>
    %880 = vector.extract_strided_slice %859 {offsets = [0, 256], sizes = [8, 128], strides = [1, 1]} : vector<8x384xf32> to vector<8x128xf32>
    %881 = vector.extract_strided_slice %600 {offsets = [0, 256], sizes = [8, 128], strides = [1, 1]} : vector<8x384xf32> to vector<8x128xf32>
    %882 = arith.mulf %871, %881 : vector<8x128xf32>
    %883 = arith.addf %880, %882 : vector<8x128xf32>
    %884 = math.tanh %883 : vector<8x128xf32>
    %cst_169 = arith.constant 1.000000e+00 : f32
    %885 = vector.broadcast %cst_169 : f32 to vector<8x128xf32>
    %886 = arith.subf %885, %879 : vector<8x128xf32>
    %887 = arith.mulf %886, %884 : vector<8x128xf32>
    %888 = arith.mulf %879, %593 : vector<8x128xf32>
    %889 = arith.addf %887, %888 : vector<8x128xf32>
    %c2_170 = arith.constant 2 : index
    %c0_171 = arith.constant 0 : index
    %c0_172 = arith.constant 0 : index
    %890 = vector.load %arg6[%c2_170, %c0_171, %c0_172] : memref<3x128x512xf32, #tpu.memory_space<vmem>>, vector<1x128x512xf32>
    %891 = vector.shape_cast %890 : vector<1x128x512xf32> to vector<128x512xf32>
    %cst_173 = arith.constant dense<0.000000e+00> : vector<8x512xf32>
    %892 = tpu.matmul %889, %891, %cst_173 {dimension_numbers = #tpu.dot_dimension_numbers<[1], [0], [0], [1], [0, 0, 1, 1], [], []>} : vector<8x128xf32>, vector<128x512xf32>, vector<8x512xf32> -> vector<8x512xf32>
    %893 = vector.extract_strided_slice %892 {offsets = [0, 0], sizes = [8, 384], strides = [1, 1]} : vector<8x512xf32> to vector<8x384xf32>
    %894 = vector.extract_strided_slice %4 {offsets = [5, 0], sizes = [1, 384], strides = [1, 1]} : vector<6x384xf32> to vector<1x384xf32>
    %895 = vector.broadcast %894 : vector<1x384xf32> to vector<8x384xf32>
    %896 = arith.addf %893, %895 : vector<8x384xf32>
    %897 = vector.extract_strided_slice %892 {offsets = [0, 384], sizes = [8, 1], strides = [1, 1]} : vector<8x512xf32> to vector<8x1xf32>
    %898 = vector.extract_strided_slice %5 {offsets = [0, 3], sizes = [1, 1], strides = [1, 1]} : vector<1x4xf32> to vector<1x1xf32>
    %899 = vector.broadcast %898 : vector<1x1xf32> to vector<8x1xf32>
    %900 = arith.addf %897, %899 : vector<8x1xf32>
    %cst_174 = arith.constant dense<0.000000e+00> : vector<8xf32>
    %901 = vector.multi_reduction <add>, %900, %cst_174 [1] : vector<8x1xf32> to vector<8xf32>
    %902 = vector.shape_cast %901 : vector<8xf32> to vector<8x1xf32>
    %cst_175 = arith.constant dense<0.000000e+00> : vector<1xf32>
    %903 = vector.multi_reduction <add>, %902, %cst_175 [0] : vector<8x1xf32> to vector<1xf32>
    %904 = vector.shape_cast %903 : vector<1xf32> to vector<1x1xf32>
    %cst_176 = arith.constant 1.250000e-01 : f32
    %905 = vector.broadcast %cst_176 : f32 to vector<1x1xf32>
    %906 = arith.mulf %904, %905 : vector<1x1xf32>
    %907 = vector.broadcast %906 : vector<1x1xf32> to vector<8x1xf32>
    %908 = arith.subf %900, %907 : vector<8x1xf32>
    %909 = arith.mulf %908, %908 : vector<8x1xf32>
    %cst_177 = arith.constant dense<0.000000e+00> : vector<8xf32>
    %910 = vector.multi_reduction <add>, %909, %cst_177 [1] : vector<8x1xf32> to vector<8xf32>
    %911 = vector.shape_cast %910 : vector<8xf32> to vector<8x1xf32>
    %cst_178 = arith.constant dense<0.000000e+00> : vector<1xf32>
    %912 = vector.multi_reduction <add>, %911, %cst_178 [0] : vector<8x1xf32> to vector<1xf32>
    %913 = vector.shape_cast %912 : vector<1xf32> to vector<1x1xf32>
    %cst_179 = arith.constant 0.142857149 : f32
    %914 = vector.broadcast %cst_179 : f32 to vector<1x1xf32>
    %915 = arith.mulf %913, %914 : vector<1x1xf32>
    %916 = math.rsqrt %915 : vector<1x1xf32>
    %917 = vector.broadcast %916 : vector<1x1xf32> to vector<8x1xf32>
    %918 = arith.mulf %908, %917 : vector<8x1xf32>
    %919 = vector.extract_strided_slice %1 {offsets = [0, 8], sizes = [8, 1], strides = [1, 1]} : vector<8x12xf32> to vector<8x1xf32>
    %920 = arith.addf %918, %919 : vector<8x1xf32>
    %921 = vector.extract_strided_slice %2 {offsets = [2, 0], sizes = [1, 384], strides = [1, 1]} : vector<6x384xf32> to vector<1x384xf32>
    %922 = vector.broadcast %920 : vector<8x1xf32> to vector<8x384xf32>
    %923 = vector.broadcast %921 : vector<1x384xf32> to vector<8x384xf32>
    %924 = arith.mulf %922, %923 : vector<8x384xf32>
    %925 = arith.addf %19, %924 : vector<8x384xf32>
    %926 = vector.extract_strided_slice %925 {offsets = [0, 0], sizes = [8, 128], strides = [1, 1]} : vector<8x384xf32> to vector<8x128xf32>
    %927 = vector.extract_strided_slice %666 {offsets = [0, 0], sizes = [8, 128], strides = [1, 1]} : vector<8x384xf32> to vector<8x128xf32>
    %928 = arith.addf %926, %927 : vector<8x128xf32>
    %929 = arith.negf %928 : vector<8x128xf32>
    %930 = math.exp %929 : vector<8x128xf32>
    %cst_180 = arith.constant 1.000000e+00 : f32
    %931 = vector.broadcast %cst_180 : f32 to vector<8x128xf32>
    %932 = arith.addf %931, %930 : vector<8x128xf32>
    %933 = arith.divf %931, %932 : vector<8x128xf32>
    %934 = vector.extract_strided_slice %925 {offsets = [0, 128], sizes = [8, 128], strides = [1, 1]} : vector<8x384xf32> to vector<8x128xf32>
    %935 = vector.extract_strided_slice %666 {offsets = [0, 128], sizes = [8, 128], strides = [1, 1]} : vector<8x384xf32> to vector<8x128xf32>
    %936 = arith.addf %934, %935 : vector<8x128xf32>
    %937 = arith.negf %936 : vector<8x128xf32>
    %938 = math.exp %937 : vector<8x128xf32>
    %cst_181 = arith.constant 1.000000e+00 : f32
    %939 = vector.broadcast %cst_181 : f32 to vector<8x128xf32>
    %940 = arith.addf %939, %938 : vector<8x128xf32>
    %941 = arith.divf %939, %940 : vector<8x128xf32>
    %942 = vector.extract_strided_slice %925 {offsets = [0, 256], sizes = [8, 128], strides = [1, 1]} : vector<8x384xf32> to vector<8x128xf32>
    %943 = vector.extract_strided_slice %666 {offsets = [0, 256], sizes = [8, 128], strides = [1, 1]} : vector<8x384xf32> to vector<8x128xf32>
    %944 = arith.mulf %933, %943 : vector<8x128xf32>
    %945 = arith.addf %942, %944 : vector<8x128xf32>
    %946 = math.tanh %945 : vector<8x128xf32>
    %cst_182 = arith.constant 1.000000e+00 : f32
    %947 = vector.broadcast %cst_182 : f32 to vector<8x128xf32>
    %948 = arith.subf %947, %941 : vector<8x128xf32>
    %949 = arith.mulf %948, %946 : vector<8x128xf32>
    %950 = arith.mulf %941, %655 : vector<8x128xf32>
    %951 = arith.addf %949, %950 : vector<8x128xf32>
    %c0_183 = arith.constant 0 : index
    %c0_184 = arith.constant 0 : index
    %c0_185 = arith.constant 0 : index
    %952 = vector.load %arg5[%c0_183, %c0_184, %c0_185] : memref<3x128x768xf32, #tpu.memory_space<vmem>>, vector<1x128x768xf32>
    %953 = vector.shape_cast %952 : vector<1x128x768xf32> to vector<128x768xf32>
    %cst_186 = arith.constant dense<0.000000e+00> : vector<8x768xf32>
    %954 = tpu.matmul %951, %953, %cst_186 {dimension_numbers = #tpu.dot_dimension_numbers<[1], [0], [0], [1], [0, 0, 1, 1], [], []>} : vector<8x128xf32>, vector<128x768xf32>, vector<8x768xf32> -> vector<8x768xf32>
    %955 = vector.extract_strided_slice %954 {offsets = [0, 0], sizes = [8, 384], strides = [1, 1]} : vector<8x768xf32> to vector<8x384xf32>
    %956 = vector.extract_strided_slice %3 {offsets = [1, 0], sizes = [1, 384], strides = [1, 1]} : vector<6x384xf32> to vector<1x384xf32>
    %957 = vector.broadcast %956 : vector<1x384xf32> to vector<8x384xf32>
    %958 = arith.addf %955, %957 : vector<8x384xf32>
    %959 = vector.extract_strided_slice %954 {offsets = [0, 384], sizes = [8, 384], strides = [1, 1]} : vector<8x768xf32> to vector<8x384xf32>
    %960 = vector.extract_strided_slice %4 {offsets = [0, 0], sizes = [1, 384], strides = [1, 1]} : vector<6x384xf32> to vector<1x384xf32>
    %961 = vector.broadcast %960 : vector<1x384xf32> to vector<8x384xf32>
    %962 = arith.addf %959, %961 : vector<8x384xf32>
    %963 = vector.extract_strided_slice %958 {offsets = [0, 0], sizes = [8, 128], strides = [1, 1]} : vector<8x384xf32> to vector<8x128xf32>
    %964 = vector.extract_strided_slice %699 {offsets = [0, 0], sizes = [8, 128], strides = [1, 1]} : vector<8x384xf32> to vector<8x128xf32>
    %965 = arith.addf %963, %964 : vector<8x128xf32>
    %966 = arith.negf %965 : vector<8x128xf32>
    %967 = math.exp %966 : vector<8x128xf32>
    %cst_187 = arith.constant 1.000000e+00 : f32
    %968 = vector.broadcast %cst_187 : f32 to vector<8x128xf32>
    %969 = arith.addf %968, %967 : vector<8x128xf32>
    %970 = arith.divf %968, %969 : vector<8x128xf32>
    %971 = vector.extract_strided_slice %958 {offsets = [0, 128], sizes = [8, 128], strides = [1, 1]} : vector<8x384xf32> to vector<8x128xf32>
    %972 = vector.extract_strided_slice %699 {offsets = [0, 128], sizes = [8, 128], strides = [1, 1]} : vector<8x384xf32> to vector<8x128xf32>
    %973 = arith.addf %971, %972 : vector<8x128xf32>
    %974 = arith.negf %973 : vector<8x128xf32>
    %975 = math.exp %974 : vector<8x128xf32>
    %cst_188 = arith.constant 1.000000e+00 : f32
    %976 = vector.broadcast %cst_188 : f32 to vector<8x128xf32>
    %977 = arith.addf %976, %975 : vector<8x128xf32>
    %978 = arith.divf %976, %977 : vector<8x128xf32>
    %979 = vector.extract_strided_slice %958 {offsets = [0, 256], sizes = [8, 128], strides = [1, 1]} : vector<8x384xf32> to vector<8x128xf32>
    %980 = vector.extract_strided_slice %699 {offsets = [0, 256], sizes = [8, 128], strides = [1, 1]} : vector<8x384xf32> to vector<8x128xf32>
    %981 = arith.mulf %970, %980 : vector<8x128xf32>
    %982 = arith.addf %979, %981 : vector<8x128xf32>
    %983 = math.tanh %982 : vector<8x128xf32>
    %cst_189 = arith.constant 1.000000e+00 : f32
    %984 = vector.broadcast %cst_189 : f32 to vector<8x128xf32>
    %985 = arith.subf %984, %978 : vector<8x128xf32>
    %986 = arith.mulf %985, %983 : vector<8x128xf32>
    %987 = arith.mulf %978, %692 : vector<8x128xf32>
    %988 = arith.addf %986, %987 : vector<8x128xf32>
    %c0_190 = arith.constant 0 : index
    %c0_191 = arith.constant 0 : index
    %c0_192 = arith.constant 0 : index
    %989 = vector.load %arg6[%c0_190, %c0_191, %c0_192] : memref<3x128x512xf32, #tpu.memory_space<vmem>>, vector<1x128x512xf32>
    %990 = vector.shape_cast %989 : vector<1x128x512xf32> to vector<128x512xf32>
    %cst_193 = arith.constant dense<0.000000e+00> : vector<8x512xf32>
    %991 = tpu.matmul %988, %990, %cst_193 {dimension_numbers = #tpu.dot_dimension_numbers<[1], [0], [0], [1], [0, 0, 1, 1], [], []>} : vector<8x128xf32>, vector<128x512xf32>, vector<8x512xf32> -> vector<8x512xf32>
    %992 = vector.extract_strided_slice %991 {offsets = [0, 0], sizes = [8, 384], strides = [1, 1]} : vector<8x512xf32> to vector<8x384xf32>
    %993 = vector.extract_strided_slice %4 {offsets = [1, 0], sizes = [1, 384], strides = [1, 1]} : vector<6x384xf32> to vector<1x384xf32>
    %994 = vector.broadcast %993 : vector<1x384xf32> to vector<8x384xf32>
    %995 = arith.addf %992, %994 : vector<8x384xf32>
    %996 = vector.extract_strided_slice %991 {offsets = [0, 384], sizes = [8, 1], strides = [1, 1]} : vector<8x512xf32> to vector<8x1xf32>
    %997 = vector.extract_strided_slice %5 {offsets = [0, 0], sizes = [1, 1], strides = [1, 1]} : vector<1x4xf32> to vector<1x1xf32>
    %998 = vector.broadcast %997 : vector<1x1xf32> to vector<8x1xf32>
    %999 = arith.addf %996, %998 : vector<8x1xf32>
    %cst_194 = arith.constant 0.000000e+00 : f32
    %1000 = vector.broadcast %cst_194 : f32 to vector<8x1xf32>
    %1001 = arith.cmpf ogt, %999, %1000 : vector<8x1xf32>
    %cst_195 = arith.constant 0.000000e+00 : f32
    %1002 = vector.broadcast %cst_195 : f32 to vector<8x1xf32>
    %1003 = arith.minimumf %999, %1002 : vector<8x1xf32>
    %1004 = math.exp %1003 : vector<8x1xf32>
    %cst_196 = arith.constant 1.000000e+00 : f32
    %1005 = vector.broadcast %cst_196 : f32 to vector<8x1xf32>
    %1006 = arith.subf %1004, %1005 : vector<8x1xf32>
    %1007 = arith.select %1001, %999, %1006 : vector<8x1xi1>, vector<8x1xf32>
    %cst_197 = arith.constant dense<0.000000e+00> : vector<8xf32>
    %1008 = vector.multi_reduction <add>, %1007, %cst_197 [1] : vector<8x1xf32> to vector<8xf32>
    %1009 = vector.shape_cast %1008 : vector<8xf32> to vector<8x1xf32>
    %cst_198 = arith.constant dense<0.000000e+00> : vector<1xf32>
    %1010 = vector.multi_reduction <add>, %1009, %cst_198 [0] : vector<8x1xf32> to vector<1xf32>
    %1011 = vector.shape_cast %1010 : vector<1xf32> to vector<1x1xf32>
    %cst_199 = arith.constant 1.250000e-01 : f32
    %1012 = vector.broadcast %cst_199 : f32 to vector<1x1xf32>
    %1013 = arith.mulf %1011, %1012 : vector<1x1xf32>
    %1014 = vector.broadcast %1013 : vector<1x1xf32> to vector<8x1xf32>
    %1015 = arith.subf %1007, %1014 : vector<8x1xf32>
    %1016 = arith.mulf %1015, %1015 : vector<8x1xf32>
    %cst_200 = arith.constant dense<0.000000e+00> : vector<8xf32>
    %1017 = vector.multi_reduction <add>, %1016, %cst_200 [1] : vector<8x1xf32> to vector<8xf32>
    %1018 = vector.shape_cast %1017 : vector<8xf32> to vector<8x1xf32>
    %cst_201 = arith.constant dense<0.000000e+00> : vector<1xf32>
    %1019 = vector.multi_reduction <add>, %1018, %cst_201 [0] : vector<8x1xf32> to vector<1xf32>
    %1020 = vector.shape_cast %1019 : vector<1xf32> to vector<1x1xf32>
    %cst_202 = arith.constant 0.142857149 : f32
    %1021 = vector.broadcast %cst_202 : f32 to vector<1x1xf32>
    %1022 = arith.mulf %1020, %1021 : vector<1x1xf32>
    %1023 = math.rsqrt %1022 : vector<1x1xf32>
    %1024 = vector.broadcast %1023 : vector<1x1xf32> to vector<8x1xf32>
    %1025 = arith.mulf %1015, %1024 : vector<8x1xf32>
    %1026 = vector.extract_strided_slice %1 {offsets = [0, 3], sizes = [8, 1], strides = [1, 1]} : vector<8x12xf32> to vector<8x1xf32>
    %1027 = arith.addf %1025, %1026 : vector<8x1xf32>
    %1028 = vector.extract_strided_slice %2 {offsets = [3, 0], sizes = [1, 384], strides = [1, 1]} : vector<6x384xf32> to vector<1x384xf32>
    %1029 = vector.broadcast %1027 : vector<8x1xf32> to vector<8x384xf32>
    %1030 = vector.broadcast %1028 : vector<1x384xf32> to vector<8x384xf32>
    %1031 = arith.mulf %1029, %1030 : vector<8x384xf32>
    %1032 = vector.extract_strided_slice %3 {offsets = [2, 0], sizes = [1, 384], strides = [1, 1]} : vector<6x384xf32> to vector<1x384xf32>
    %1033 = vector.broadcast %1032 : vector<1x384xf32> to vector<8x384xf32>
    %1034 = arith.addf %1031, %1033 : vector<8x384xf32>
    %1035 = vector.extract_strided_slice %1034 {offsets = [0, 0], sizes = [8, 128], strides = [1, 1]} : vector<8x384xf32> to vector<8x128xf32>
    %1036 = vector.extract_strided_slice %775 {offsets = [0, 0], sizes = [8, 128], strides = [1, 1]} : vector<8x384xf32> to vector<8x128xf32>
    %1037 = arith.addf %1035, %1036 : vector<8x128xf32>
    %1038 = arith.negf %1037 : vector<8x128xf32>
    %1039 = math.exp %1038 : vector<8x128xf32>
    %cst_203 = arith.constant 1.000000e+00 : f32
    %1040 = vector.broadcast %cst_203 : f32 to vector<8x128xf32>
    %1041 = arith.addf %1040, %1039 : vector<8x128xf32>
    %1042 = arith.divf %1040, %1041 : vector<8x128xf32>
    %1043 = vector.extract_strided_slice %1034 {offsets = [0, 128], sizes = [8, 128], strides = [1, 1]} : vector<8x384xf32> to vector<8x128xf32>
    %1044 = vector.extract_strided_slice %775 {offsets = [0, 128], sizes = [8, 128], strides = [1, 1]} : vector<8x384xf32> to vector<8x128xf32>
    %1045 = arith.addf %1043, %1044 : vector<8x128xf32>
    %1046 = arith.negf %1045 : vector<8x128xf32>
    %1047 = math.exp %1046 : vector<8x128xf32>
    %cst_204 = arith.constant 1.000000e+00 : f32
    %1048 = vector.broadcast %cst_204 : f32 to vector<8x128xf32>
    %1049 = arith.addf %1048, %1047 : vector<8x128xf32>
    %1050 = arith.divf %1048, %1049 : vector<8x128xf32>
    %1051 = vector.extract_strided_slice %1034 {offsets = [0, 256], sizes = [8, 128], strides = [1, 1]} : vector<8x384xf32> to vector<8x128xf32>
    %1052 = vector.extract_strided_slice %775 {offsets = [0, 256], sizes = [8, 128], strides = [1, 1]} : vector<8x384xf32> to vector<8x128xf32>
    %1053 = arith.mulf %1042, %1052 : vector<8x128xf32>
    %1054 = arith.addf %1051, %1053 : vector<8x128xf32>
    %1055 = math.tanh %1054 : vector<8x128xf32>
    %cst_205 = arith.constant 1.000000e+00 : f32
    %1056 = vector.broadcast %cst_205 : f32 to vector<8x128xf32>
    %1057 = arith.subf %1056, %1050 : vector<8x128xf32>
    %1058 = arith.mulf %1057, %1055 : vector<8x128xf32>
    %1059 = arith.mulf %1050, %764 : vector<8x128xf32>
    %1060 = arith.addf %1058, %1059 : vector<8x128xf32>
    %c1_206 = arith.constant 1 : index
    %c0_207 = arith.constant 0 : index
    %c0_208 = arith.constant 0 : index
    %1061 = vector.load %arg5[%c1_206, %c0_207, %c0_208] : memref<3x128x768xf32, #tpu.memory_space<vmem>>, vector<1x128x768xf32>
    %1062 = vector.shape_cast %1061 : vector<1x128x768xf32> to vector<128x768xf32>
    %cst_209 = arith.constant dense<0.000000e+00> : vector<8x768xf32>
    %1063 = tpu.matmul %1060, %1062, %cst_209 {dimension_numbers = #tpu.dot_dimension_numbers<[1], [0], [0], [1], [0, 0, 1, 1], [], []>} : vector<8x128xf32>, vector<128x768xf32>, vector<8x768xf32> -> vector<8x768xf32>
    %1064 = vector.extract_strided_slice %1063 {offsets = [0, 0], sizes = [8, 384], strides = [1, 1]} : vector<8x768xf32> to vector<8x384xf32>
    %1065 = vector.extract_strided_slice %3 {offsets = [3, 0], sizes = [1, 384], strides = [1, 1]} : vector<6x384xf32> to vector<1x384xf32>
    %1066 = vector.broadcast %1065 : vector<1x384xf32> to vector<8x384xf32>
    %1067 = arith.addf %1064, %1066 : vector<8x384xf32>
    %1068 = vector.extract_strided_slice %1063 {offsets = [0, 384], sizes = [8, 384], strides = [1, 1]} : vector<8x768xf32> to vector<8x384xf32>
    %1069 = vector.extract_strided_slice %4 {offsets = [2, 0], sizes = [1, 384], strides = [1, 1]} : vector<6x384xf32> to vector<1x384xf32>
    %1070 = vector.broadcast %1069 : vector<1x384xf32> to vector<8x384xf32>
    %1071 = arith.addf %1068, %1070 : vector<8x384xf32>
    %1072 = vector.extract_strided_slice %1067 {offsets = [0, 0], sizes = [8, 128], strides = [1, 1]} : vector<8x384xf32> to vector<8x128xf32>
    %1073 = vector.extract_strided_slice %808 {offsets = [0, 0], sizes = [8, 128], strides = [1, 1]} : vector<8x384xf32> to vector<8x128xf32>
    %1074 = arith.addf %1072, %1073 : vector<8x128xf32>
    %1075 = arith.negf %1074 : vector<8x128xf32>
    %1076 = math.exp %1075 : vector<8x128xf32>
    %cst_210 = arith.constant 1.000000e+00 : f32
    %1077 = vector.broadcast %cst_210 : f32 to vector<8x128xf32>
    %1078 = arith.addf %1077, %1076 : vector<8x128xf32>
    %1079 = arith.divf %1077, %1078 : vector<8x128xf32>
    %1080 = vector.extract_strided_slice %1067 {offsets = [0, 128], sizes = [8, 128], strides = [1, 1]} : vector<8x384xf32> to vector<8x128xf32>
    %1081 = vector.extract_strided_slice %808 {offsets = [0, 128], sizes = [8, 128], strides = [1, 1]} : vector<8x384xf32> to vector<8x128xf32>
    %1082 = arith.addf %1080, %1081 : vector<8x128xf32>
    %1083 = arith.negf %1082 : vector<8x128xf32>
    %1084 = math.exp %1083 : vector<8x128xf32>
    %cst_211 = arith.constant 1.000000e+00 : f32
    %1085 = vector.broadcast %cst_211 : f32 to vector<8x128xf32>
    %1086 = arith.addf %1085, %1084 : vector<8x128xf32>
    %1087 = arith.divf %1085, %1086 : vector<8x128xf32>
    %1088 = vector.extract_strided_slice %1067 {offsets = [0, 256], sizes = [8, 128], strides = [1, 1]} : vector<8x384xf32> to vector<8x128xf32>
    %1089 = vector.extract_strided_slice %808 {offsets = [0, 256], sizes = [8, 128], strides = [1, 1]} : vector<8x384xf32> to vector<8x128xf32>
    %1090 = arith.mulf %1079, %1089 : vector<8x128xf32>
    %1091 = arith.addf %1088, %1090 : vector<8x128xf32>
    %1092 = math.tanh %1091 : vector<8x128xf32>
    %cst_212 = arith.constant 1.000000e+00 : f32
    %1093 = vector.broadcast %cst_212 : f32 to vector<8x128xf32>
    %1094 = arith.subf %1093, %1087 : vector<8x128xf32>
    %1095 = arith.mulf %1094, %1092 : vector<8x128xf32>
    %1096 = arith.mulf %1087, %801 : vector<8x128xf32>
    %1097 = arith.addf %1095, %1096 : vector<8x128xf32>
    %c1_213 = arith.constant 1 : index
    %c0_214 = arith.constant 0 : index
    %c0_215 = arith.constant 0 : index
    %1098 = vector.load %arg6[%c1_213, %c0_214, %c0_215] : memref<3x128x512xf32, #tpu.memory_space<vmem>>, vector<1x128x512xf32>
    %1099 = vector.shape_cast %1098 : vector<1x128x512xf32> to vector<128x512xf32>
    %cst_216 = arith.constant dense<0.000000e+00> : vector<8x512xf32>
    %1100 = tpu.matmul %1097, %1099, %cst_216 {dimension_numbers = #tpu.dot_dimension_numbers<[1], [0], [0], [1], [0, 0, 1, 1], [], []>} : vector<8x128xf32>, vector<128x512xf32>, vector<8x512xf32> -> vector<8x512xf32>
    %1101 = vector.extract_strided_slice %1100 {offsets = [0, 0], sizes = [8, 384], strides = [1, 1]} : vector<8x512xf32> to vector<8x384xf32>
    %1102 = vector.extract_strided_slice %4 {offsets = [3, 0], sizes = [1, 384], strides = [1, 1]} : vector<6x384xf32> to vector<1x384xf32>
    %1103 = vector.broadcast %1102 : vector<1x384xf32> to vector<8x384xf32>
    %1104 = arith.addf %1101, %1103 : vector<8x384xf32>
    %1105 = vector.extract_strided_slice %1100 {offsets = [0, 384], sizes = [8, 2], strides = [1, 1]} : vector<8x512xf32> to vector<8x2xf32>
    %1106 = vector.extract_strided_slice %5 {offsets = [0, 1], sizes = [1, 2], strides = [1, 1]} : vector<1x4xf32> to vector<1x2xf32>
    %1107 = vector.broadcast %1106 : vector<1x2xf32> to vector<8x2xf32>
    %1108 = arith.addf %1105, %1107 : vector<8x2xf32>
    %1109 = vector.extract_strided_slice %1108 {offsets = [0, 0], sizes = [8, 1], strides = [1, 1]} : vector<8x2xf32> to vector<8x1xf32>
    %1110 = vector.extract_strided_slice %2 {offsets = [4, 0], sizes = [1, 384], strides = [1, 1]} : vector<6x384xf32> to vector<1x384xf32>
    %1111 = vector.broadcast %1109 : vector<8x1xf32> to vector<8x384xf32>
    %1112 = vector.broadcast %1110 : vector<1x384xf32> to vector<8x384xf32>
    %1113 = arith.mulf %1111, %1112 : vector<8x384xf32>
    %1114 = vector.extract_strided_slice %1108 {offsets = [0, 1], sizes = [8, 1], strides = [1, 1]} : vector<8x2xf32> to vector<8x1xf32>
    %1115 = vector.extract_strided_slice %2 {offsets = [5, 0], sizes = [1, 384], strides = [1, 1]} : vector<6x384xf32> to vector<1x384xf32>
    %1116 = vector.broadcast %1114 : vector<8x1xf32> to vector<8x384xf32>
    %1117 = vector.broadcast %1115 : vector<1x384xf32> to vector<8x384xf32>
    %1118 = arith.mulf %1116, %1117 : vector<8x384xf32>
    %1119 = arith.addf %1113, %1118 : vector<8x384xf32>
    %1120 = vector.extract_strided_slice %3 {offsets = [4, 0], sizes = [1, 384], strides = [1, 1]} : vector<6x384xf32> to vector<1x384xf32>
    %1121 = vector.broadcast %1120 : vector<1x384xf32> to vector<8x384xf32>
    %1122 = arith.addf %1119, %1121 : vector<8x384xf32>
    %1123 = vector.extract_strided_slice %1122 {offsets = [0, 0], sizes = [8, 128], strides = [1, 1]} : vector<8x384xf32> to vector<8x128xf32>
    %1124 = vector.extract_strided_slice %863 {offsets = [0, 0], sizes = [8, 128], strides = [1, 1]} : vector<8x384xf32> to vector<8x128xf32>
    %1125 = arith.addf %1123, %1124 : vector<8x128xf32>
    %1126 = arith.negf %1125 : vector<8x128xf32>
    %1127 = math.exp %1126 : vector<8x128xf32>
    %cst_217 = arith.constant 1.000000e+00 : f32
    %1128 = vector.broadcast %cst_217 : f32 to vector<8x128xf32>
    %1129 = arith.addf %1128, %1127 : vector<8x128xf32>
    %1130 = arith.divf %1128, %1129 : vector<8x128xf32>
    %1131 = vector.extract_strided_slice %1122 {offsets = [0, 128], sizes = [8, 128], strides = [1, 1]} : vector<8x384xf32> to vector<8x128xf32>
    %1132 = vector.extract_strided_slice %863 {offsets = [0, 128], sizes = [8, 128], strides = [1, 1]} : vector<8x384xf32> to vector<8x128xf32>
    %1133 = arith.addf %1131, %1132 : vector<8x128xf32>
    %1134 = arith.negf %1133 : vector<8x128xf32>
    %1135 = math.exp %1134 : vector<8x128xf32>
    %cst_218 = arith.constant 1.000000e+00 : f32
    %1136 = vector.broadcast %cst_218 : f32 to vector<8x128xf32>
    %1137 = arith.addf %1136, %1135 : vector<8x128xf32>
    %1138 = arith.divf %1136, %1137 : vector<8x128xf32>
    %1139 = vector.extract_strided_slice %1122 {offsets = [0, 256], sizes = [8, 128], strides = [1, 1]} : vector<8x384xf32> to vector<8x128xf32>
    %1140 = vector.extract_strided_slice %863 {offsets = [0, 256], sizes = [8, 128], strides = [1, 1]} : vector<8x384xf32> to vector<8x128xf32>
    %1141 = arith.mulf %1130, %1140 : vector<8x128xf32>
    %1142 = arith.addf %1139, %1141 : vector<8x128xf32>
    %1143 = math.tanh %1142 : vector<8x128xf32>
    %cst_219 = arith.constant 1.000000e+00 : f32
    %1144 = vector.broadcast %cst_219 : f32 to vector<8x128xf32>
    %1145 = arith.subf %1144, %1138 : vector<8x128xf32>
    %1146 = arith.mulf %1145, %1143 : vector<8x128xf32>
    %1147 = arith.mulf %1138, %852 : vector<8x128xf32>
    %1148 = arith.addf %1146, %1147 : vector<8x128xf32>
    %c2_220 = arith.constant 2 : index
    %c0_221 = arith.constant 0 : index
    %c0_222 = arith.constant 0 : index
    %1149 = vector.load %arg5[%c2_220, %c0_221, %c0_222] : memref<3x128x768xf32, #tpu.memory_space<vmem>>, vector<1x128x768xf32>
    %1150 = vector.shape_cast %1149 : vector<1x128x768xf32> to vector<128x768xf32>
    %cst_223 = arith.constant dense<0.000000e+00> : vector<8x768xf32>
    %1151 = tpu.matmul %1148, %1150, %cst_223 {dimension_numbers = #tpu.dot_dimension_numbers<[1], [0], [0], [1], [0, 0, 1, 1], [], []>} : vector<8x128xf32>, vector<128x768xf32>, vector<8x768xf32> -> vector<8x768xf32>
    %1152 = vector.extract_strided_slice %1151 {offsets = [0, 0], sizes = [8, 384], strides = [1, 1]} : vector<8x768xf32> to vector<8x384xf32>
    %1153 = vector.extract_strided_slice %3 {offsets = [5, 0], sizes = [1, 384], strides = [1, 1]} : vector<6x384xf32> to vector<1x384xf32>
    %1154 = vector.broadcast %1153 : vector<1x384xf32> to vector<8x384xf32>
    %1155 = arith.addf %1152, %1154 : vector<8x384xf32>
    %1156 = vector.extract_strided_slice %1151 {offsets = [0, 384], sizes = [8, 384], strides = [1, 1]} : vector<8x768xf32> to vector<8x384xf32>
    %1157 = vector.extract_strided_slice %4 {offsets = [4, 0], sizes = [1, 384], strides = [1, 1]} : vector<6x384xf32> to vector<1x384xf32>
    %1158 = vector.broadcast %1157 : vector<1x384xf32> to vector<8x384xf32>
    %1159 = arith.addf %1156, %1158 : vector<8x384xf32>
    %1160 = vector.extract_strided_slice %1155 {offsets = [0, 0], sizes = [8, 128], strides = [1, 1]} : vector<8x384xf32> to vector<8x128xf32>
    %1161 = vector.extract_strided_slice %896 {offsets = [0, 0], sizes = [8, 128], strides = [1, 1]} : vector<8x384xf32> to vector<8x128xf32>
    %1162 = arith.addf %1160, %1161 : vector<8x128xf32>
    %1163 = arith.negf %1162 : vector<8x128xf32>
    %1164 = math.exp %1163 : vector<8x128xf32>
    %cst_224 = arith.constant 1.000000e+00 : f32
    %1165 = vector.broadcast %cst_224 : f32 to vector<8x128xf32>
    %1166 = arith.addf %1165, %1164 : vector<8x128xf32>
    %1167 = arith.divf %1165, %1166 : vector<8x128xf32>
    %1168 = vector.extract_strided_slice %1155 {offsets = [0, 128], sizes = [8, 128], strides = [1, 1]} : vector<8x384xf32> to vector<8x128xf32>
    %1169 = vector.extract_strided_slice %896 {offsets = [0, 128], sizes = [8, 128], strides = [1, 1]} : vector<8x384xf32> to vector<8x128xf32>
    %1170 = arith.addf %1168, %1169 : vector<8x128xf32>
    %1171 = arith.negf %1170 : vector<8x128xf32>
    %1172 = math.exp %1171 : vector<8x128xf32>
    %cst_225 = arith.constant 1.000000e+00 : f32
    %1173 = vector.broadcast %cst_225 : f32 to vector<8x128xf32>
    %1174 = arith.addf %1173, %1172 : vector<8x128xf32>
    %1175 = arith.divf %1173, %1174 : vector<8x128xf32>
    %1176 = vector.extract_strided_slice %1155 {offsets = [0, 256], sizes = [8, 128], strides = [1, 1]} : vector<8x384xf32> to vector<8x128xf32>
    %1177 = vector.extract_strided_slice %896 {offsets = [0, 256], sizes = [8, 128], strides = [1, 1]} : vector<8x384xf32> to vector<8x128xf32>
    %1178 = arith.mulf %1167, %1177 : vector<8x128xf32>
    %1179 = arith.addf %1176, %1178 : vector<8x128xf32>
    %1180 = math.tanh %1179 : vector<8x128xf32>
    %cst_226 = arith.constant 1.000000e+00 : f32
    %1181 = vector.broadcast %cst_226 : f32 to vector<8x128xf32>
    %1182 = arith.subf %1181, %1175 : vector<8x128xf32>
    %1183 = arith.mulf %1182, %1180 : vector<8x128xf32>
    %1184 = arith.mulf %1175, %889 : vector<8x128xf32>
    %1185 = arith.addf %1183, %1184 : vector<8x128xf32>
    %c2_227 = arith.constant 2 : index
    %c0_228 = arith.constant 0 : index
    %c0_229 = arith.constant 0 : index
    %1186 = vector.load %arg6[%c2_227, %c0_228, %c0_229] : memref<3x128x512xf32, #tpu.memory_space<vmem>>, vector<1x128x512xf32>
    %1187 = vector.shape_cast %1186 : vector<1x128x512xf32> to vector<128x512xf32>
    %cst_230 = arith.constant dense<0.000000e+00> : vector<8x512xf32>
    %1188 = tpu.matmul %1185, %1187, %cst_230 {dimension_numbers = #tpu.dot_dimension_numbers<[1], [0], [0], [1], [0, 0, 1, 1], [], []>} : vector<8x128xf32>, vector<128x512xf32>, vector<8x512xf32> -> vector<8x512xf32>
    %1189 = vector.extract_strided_slice %1188 {offsets = [0, 0], sizes = [8, 384], strides = [1, 1]} : vector<8x512xf32> to vector<8x384xf32>
    %1190 = vector.extract_strided_slice %4 {offsets = [5, 0], sizes = [1, 384], strides = [1, 1]} : vector<6x384xf32> to vector<1x384xf32>
    %1191 = vector.broadcast %1190 : vector<1x384xf32> to vector<8x384xf32>
    %1192 = arith.addf %1189, %1191 : vector<8x384xf32>
    %1193 = vector.extract_strided_slice %1188 {offsets = [0, 384], sizes = [8, 1], strides = [1, 1]} : vector<8x512xf32> to vector<8x1xf32>
    %1194 = vector.extract_strided_slice %5 {offsets = [0, 3], sizes = [1, 1], strides = [1, 1]} : vector<1x4xf32> to vector<1x1xf32>
    %1195 = vector.broadcast %1194 : vector<1x1xf32> to vector<8x1xf32>
    %1196 = arith.addf %1193, %1195 : vector<8x1xf32>
    %cst_231 = arith.constant dense<0.000000e+00> : vector<8xf32>
    %1197 = vector.multi_reduction <add>, %1196, %cst_231 [1] : vector<8x1xf32> to vector<8xf32>
    %1198 = vector.shape_cast %1197 : vector<8xf32> to vector<8x1xf32>
    %cst_232 = arith.constant dense<0.000000e+00> : vector<1xf32>
    %1199 = vector.multi_reduction <add>, %1198, %cst_232 [0] : vector<8x1xf32> to vector<1xf32>
    %1200 = vector.shape_cast %1199 : vector<1xf32> to vector<1x1xf32>
    %cst_233 = arith.constant 1.250000e-01 : f32
    %1201 = vector.broadcast %cst_233 : f32 to vector<1x1xf32>
    %1202 = arith.mulf %1200, %1201 : vector<1x1xf32>
    %1203 = vector.broadcast %1202 : vector<1x1xf32> to vector<8x1xf32>
    %1204 = arith.subf %1196, %1203 : vector<8x1xf32>
    %1205 = arith.mulf %1204, %1204 : vector<8x1xf32>
    %cst_234 = arith.constant dense<0.000000e+00> : vector<8xf32>
    %1206 = vector.multi_reduction <add>, %1205, %cst_234 [1] : vector<8x1xf32> to vector<8xf32>
    %1207 = vector.shape_cast %1206 : vector<8xf32> to vector<8x1xf32>
    %cst_235 = arith.constant dense<0.000000e+00> : vector<1xf32>
    %1208 = vector.multi_reduction <add>, %1207, %cst_235 [0] : vector<8x1xf32> to vector<1xf32>
    %1209 = vector.shape_cast %1208 : vector<1xf32> to vector<1x1xf32>
    %cst_236 = arith.constant 0.142857149 : f32
    %1210 = vector.broadcast %cst_236 : f32 to vector<1x1xf32>
    %1211 = arith.mulf %1209, %1210 : vector<1x1xf32>
    %1212 = math.rsqrt %1211 : vector<1x1xf32>
    %1213 = vector.broadcast %1212 : vector<1x1xf32> to vector<8x1xf32>
    %1214 = arith.mulf %1204, %1213 : vector<8x1xf32>
    %1215 = vector.extract_strided_slice %1 {offsets = [0, 9], sizes = [8, 1], strides = [1, 1]} : vector<8x12xf32> to vector<8x1xf32>
    %1216 = arith.addf %1214, %1215 : vector<8x1xf32>
    %1217 = vector.extract_strided_slice %2 {offsets = [2, 0], sizes = [1, 384], strides = [1, 1]} : vector<6x384xf32> to vector<1x384xf32>
    %1218 = vector.broadcast %1216 : vector<8x1xf32> to vector<8x384xf32>
    %1219 = vector.broadcast %1217 : vector<1x384xf32> to vector<8x384xf32>
    %1220 = arith.mulf %1218, %1219 : vector<8x384xf32>
    %1221 = arith.addf %19, %1220 : vector<8x384xf32>
    %1222 = vector.extract_strided_slice %1221 {offsets = [0, 0], sizes = [8, 128], strides = [1, 1]} : vector<8x384xf32> to vector<8x128xf32>
    %1223 = vector.extract_strided_slice %962 {offsets = [0, 0], sizes = [8, 128], strides = [1, 1]} : vector<8x384xf32> to vector<8x128xf32>
    %1224 = arith.addf %1222, %1223 : vector<8x128xf32>
    %1225 = arith.negf %1224 : vector<8x128xf32>
    %1226 = math.exp %1225 : vector<8x128xf32>
    %cst_237 = arith.constant 1.000000e+00 : f32
    %1227 = vector.broadcast %cst_237 : f32 to vector<8x128xf32>
    %1228 = arith.addf %1227, %1226 : vector<8x128xf32>
    %1229 = arith.divf %1227, %1228 : vector<8x128xf32>
    %1230 = vector.extract_strided_slice %1221 {offsets = [0, 128], sizes = [8, 128], strides = [1, 1]} : vector<8x384xf32> to vector<8x128xf32>
    %1231 = vector.extract_strided_slice %962 {offsets = [0, 128], sizes = [8, 128], strides = [1, 1]} : vector<8x384xf32> to vector<8x128xf32>
    %1232 = arith.addf %1230, %1231 : vector<8x128xf32>
    %1233 = arith.negf %1232 : vector<8x128xf32>
    %1234 = math.exp %1233 : vector<8x128xf32>
    %cst_238 = arith.constant 1.000000e+00 : f32
    %1235 = vector.broadcast %cst_238 : f32 to vector<8x128xf32>
    %1236 = arith.addf %1235, %1234 : vector<8x128xf32>
    %1237 = arith.divf %1235, %1236 : vector<8x128xf32>
    %1238 = vector.extract_strided_slice %1221 {offsets = [0, 256], sizes = [8, 128], strides = [1, 1]} : vector<8x384xf32> to vector<8x128xf32>
    %1239 = vector.extract_strided_slice %962 {offsets = [0, 256], sizes = [8, 128], strides = [1, 1]} : vector<8x384xf32> to vector<8x128xf32>
    %1240 = arith.mulf %1229, %1239 : vector<8x128xf32>
    %1241 = arith.addf %1238, %1240 : vector<8x128xf32>
    %1242 = math.tanh %1241 : vector<8x128xf32>
    %cst_239 = arith.constant 1.000000e+00 : f32
    %1243 = vector.broadcast %cst_239 : f32 to vector<8x128xf32>
    %1244 = arith.subf %1243, %1237 : vector<8x128xf32>
    %1245 = arith.mulf %1244, %1242 : vector<8x128xf32>
    %1246 = arith.mulf %1237, %951 : vector<8x128xf32>
    %1247 = arith.addf %1245, %1246 : vector<8x128xf32>
    %c0_240 = arith.constant 0 : index
    %c0_241 = arith.constant 0 : index
    %c0_242 = arith.constant 0 : index
    %1248 = vector.load %arg5[%c0_240, %c0_241, %c0_242] : memref<3x128x768xf32, #tpu.memory_space<vmem>>, vector<1x128x768xf32>
    %1249 = vector.shape_cast %1248 : vector<1x128x768xf32> to vector<128x768xf32>
    %cst_243 = arith.constant dense<0.000000e+00> : vector<8x768xf32>
    %1250 = tpu.matmul %1247, %1249, %cst_243 {dimension_numbers = #tpu.dot_dimension_numbers<[1], [0], [0], [1], [0, 0, 1, 1], [], []>} : vector<8x128xf32>, vector<128x768xf32>, vector<8x768xf32> -> vector<8x768xf32>
    %1251 = vector.extract_strided_slice %1250 {offsets = [0, 0], sizes = [8, 384], strides = [1, 1]} : vector<8x768xf32> to vector<8x384xf32>
    %1252 = vector.extract_strided_slice %3 {offsets = [1, 0], sizes = [1, 384], strides = [1, 1]} : vector<6x384xf32> to vector<1x384xf32>
    %1253 = vector.broadcast %1252 : vector<1x384xf32> to vector<8x384xf32>
    %1254 = arith.addf %1251, %1253 : vector<8x384xf32>
    %1255 = vector.extract_strided_slice %1250 {offsets = [0, 384], sizes = [8, 384], strides = [1, 1]} : vector<8x768xf32> to vector<8x384xf32>
    %1256 = vector.extract_strided_slice %4 {offsets = [0, 0], sizes = [1, 384], strides = [1, 1]} : vector<6x384xf32> to vector<1x384xf32>
    %1257 = vector.broadcast %1256 : vector<1x384xf32> to vector<8x384xf32>
    %1258 = arith.addf %1255, %1257 : vector<8x384xf32>
    %1259 = vector.extract_strided_slice %1254 {offsets = [0, 0], sizes = [8, 128], strides = [1, 1]} : vector<8x384xf32> to vector<8x128xf32>
    %1260 = vector.extract_strided_slice %995 {offsets = [0, 0], sizes = [8, 128], strides = [1, 1]} : vector<8x384xf32> to vector<8x128xf32>
    %1261 = arith.addf %1259, %1260 : vector<8x128xf32>
    %1262 = arith.negf %1261 : vector<8x128xf32>
    %1263 = math.exp %1262 : vector<8x128xf32>
    %cst_244 = arith.constant 1.000000e+00 : f32
    %1264 = vector.broadcast %cst_244 : f32 to vector<8x128xf32>
    %1265 = arith.addf %1264, %1263 : vector<8x128xf32>
    %1266 = arith.divf %1264, %1265 : vector<8x128xf32>
    %1267 = vector.extract_strided_slice %1254 {offsets = [0, 128], sizes = [8, 128], strides = [1, 1]} : vector<8x384xf32> to vector<8x128xf32>
    %1268 = vector.extract_strided_slice %995 {offsets = [0, 128], sizes = [8, 128], strides = [1, 1]} : vector<8x384xf32> to vector<8x128xf32>
    %1269 = arith.addf %1267, %1268 : vector<8x128xf32>
    %1270 = arith.negf %1269 : vector<8x128xf32>
    %1271 = math.exp %1270 : vector<8x128xf32>
    %cst_245 = arith.constant 1.000000e+00 : f32
    %1272 = vector.broadcast %cst_245 : f32 to vector<8x128xf32>
    %1273 = arith.addf %1272, %1271 : vector<8x128xf32>
    %1274 = arith.divf %1272, %1273 : vector<8x128xf32>
    %1275 = vector.extract_strided_slice %1254 {offsets = [0, 256], sizes = [8, 128], strides = [1, 1]} : vector<8x384xf32> to vector<8x128xf32>
    %1276 = vector.extract_strided_slice %995 {offsets = [0, 256], sizes = [8, 128], strides = [1, 1]} : vector<8x384xf32> to vector<8x128xf32>
    %1277 = arith.mulf %1266, %1276 : vector<8x128xf32>
    %1278 = arith.addf %1275, %1277 : vector<8x128xf32>
    %1279 = math.tanh %1278 : vector<8x128xf32>
    %cst_246 = arith.constant 1.000000e+00 : f32
    %1280 = vector.broadcast %cst_246 : f32 to vector<8x128xf32>
    %1281 = arith.subf %1280, %1274 : vector<8x128xf32>
    %1282 = arith.mulf %1281, %1279 : vector<8x128xf32>
    %1283 = arith.mulf %1274, %988 : vector<8x128xf32>
    %1284 = arith.addf %1282, %1283 : vector<8x128xf32>
    %c0_247 = arith.constant 0 : index
    %c0_248 = arith.constant 0 : index
    %c0_249 = arith.constant 0 : index
    %1285 = vector.load %arg6[%c0_247, %c0_248, %c0_249] : memref<3x128x512xf32, #tpu.memory_space<vmem>>, vector<1x128x512xf32>
    %1286 = vector.shape_cast %1285 : vector<1x128x512xf32> to vector<128x512xf32>
    %cst_250 = arith.constant dense<0.000000e+00> : vector<8x512xf32>
    %1287 = tpu.matmul %1284, %1286, %cst_250 {dimension_numbers = #tpu.dot_dimension_numbers<[1], [0], [0], [1], [0, 0, 1, 1], [], []>} : vector<8x128xf32>, vector<128x512xf32>, vector<8x512xf32> -> vector<8x512xf32>
    %1288 = vector.extract_strided_slice %1287 {offsets = [0, 0], sizes = [8, 384], strides = [1, 1]} : vector<8x512xf32> to vector<8x384xf32>
    %1289 = vector.extract_strided_slice %4 {offsets = [1, 0], sizes = [1, 384], strides = [1, 1]} : vector<6x384xf32> to vector<1x384xf32>
    %1290 = vector.broadcast %1289 : vector<1x384xf32> to vector<8x384xf32>
    %1291 = arith.addf %1288, %1290 : vector<8x384xf32>
    %1292 = vector.extract_strided_slice %1287 {offsets = [0, 384], sizes = [8, 1], strides = [1, 1]} : vector<8x512xf32> to vector<8x1xf32>
    %1293 = vector.extract_strided_slice %5 {offsets = [0, 0], sizes = [1, 1], strides = [1, 1]} : vector<1x4xf32> to vector<1x1xf32>
    %1294 = vector.broadcast %1293 : vector<1x1xf32> to vector<8x1xf32>
    %1295 = arith.addf %1292, %1294 : vector<8x1xf32>
    %cst_251 = arith.constant 0.000000e+00 : f32
    %1296 = vector.broadcast %cst_251 : f32 to vector<8x1xf32>
    %1297 = arith.cmpf ogt, %1295, %1296 : vector<8x1xf32>
    %cst_252 = arith.constant 0.000000e+00 : f32
    %1298 = vector.broadcast %cst_252 : f32 to vector<8x1xf32>
    %1299 = arith.minimumf %1295, %1298 : vector<8x1xf32>
    %1300 = math.exp %1299 : vector<8x1xf32>
    %cst_253 = arith.constant 1.000000e+00 : f32
    %1301 = vector.broadcast %cst_253 : f32 to vector<8x1xf32>
    %1302 = arith.subf %1300, %1301 : vector<8x1xf32>
    %1303 = arith.select %1297, %1295, %1302 : vector<8x1xi1>, vector<8x1xf32>
    %cst_254 = arith.constant dense<0.000000e+00> : vector<8xf32>
    %1304 = vector.multi_reduction <add>, %1303, %cst_254 [1] : vector<8x1xf32> to vector<8xf32>
    %1305 = vector.shape_cast %1304 : vector<8xf32> to vector<8x1xf32>
    %cst_255 = arith.constant dense<0.000000e+00> : vector<1xf32>
    %1306 = vector.multi_reduction <add>, %1305, %cst_255 [0] : vector<8x1xf32> to vector<1xf32>
    %1307 = vector.shape_cast %1306 : vector<1xf32> to vector<1x1xf32>
    %cst_256 = arith.constant 1.250000e-01 : f32
    %1308 = vector.broadcast %cst_256 : f32 to vector<1x1xf32>
    %1309 = arith.mulf %1307, %1308 : vector<1x1xf32>
    %1310 = vector.broadcast %1309 : vector<1x1xf32> to vector<8x1xf32>
    %1311 = arith.subf %1303, %1310 : vector<8x1xf32>
    %1312 = arith.mulf %1311, %1311 : vector<8x1xf32>
    %cst_257 = arith.constant dense<0.000000e+00> : vector<8xf32>
    %1313 = vector.multi_reduction <add>, %1312, %cst_257 [1] : vector<8x1xf32> to vector<8xf32>
    %1314 = vector.shape_cast %1313 : vector<8xf32> to vector<8x1xf32>
    %cst_258 = arith.constant dense<0.000000e+00> : vector<1xf32>
    %1315 = vector.multi_reduction <add>, %1314, %cst_258 [0] : vector<8x1xf32> to vector<1xf32>
    %1316 = vector.shape_cast %1315 : vector<1xf32> to vector<1x1xf32>
    %cst_259 = arith.constant 0.142857149 : f32
    %1317 = vector.broadcast %cst_259 : f32 to vector<1x1xf32>
    %1318 = arith.mulf %1316, %1317 : vector<1x1xf32>
    %1319 = math.rsqrt %1318 : vector<1x1xf32>
    %1320 = vector.broadcast %1319 : vector<1x1xf32> to vector<8x1xf32>
    %1321 = arith.mulf %1311, %1320 : vector<8x1xf32>
    %1322 = vector.extract_strided_slice %1 {offsets = [0, 4], sizes = [8, 1], strides = [1, 1]} : vector<8x12xf32> to vector<8x1xf32>
    %1323 = arith.addf %1321, %1322 : vector<8x1xf32>
    %1324 = vector.extract_strided_slice %2 {offsets = [3, 0], sizes = [1, 384], strides = [1, 1]} : vector<6x384xf32> to vector<1x384xf32>
    %1325 = vector.broadcast %1323 : vector<8x1xf32> to vector<8x384xf32>
    %1326 = vector.broadcast %1324 : vector<1x384xf32> to vector<8x384xf32>
    %1327 = arith.mulf %1325, %1326 : vector<8x384xf32>
    %1328 = vector.extract_strided_slice %3 {offsets = [2, 0], sizes = [1, 384], strides = [1, 1]} : vector<6x384xf32> to vector<1x384xf32>
    %1329 = vector.broadcast %1328 : vector<1x384xf32> to vector<8x384xf32>
    %1330 = arith.addf %1327, %1329 : vector<8x384xf32>
    %1331 = vector.extract_strided_slice %1330 {offsets = [0, 0], sizes = [8, 128], strides = [1, 1]} : vector<8x384xf32> to vector<8x128xf32>
    %1332 = vector.extract_strided_slice %1071 {offsets = [0, 0], sizes = [8, 128], strides = [1, 1]} : vector<8x384xf32> to vector<8x128xf32>
    %1333 = arith.addf %1331, %1332 : vector<8x128xf32>
    %1334 = arith.negf %1333 : vector<8x128xf32>
    %1335 = math.exp %1334 : vector<8x128xf32>
    %cst_260 = arith.constant 1.000000e+00 : f32
    %1336 = vector.broadcast %cst_260 : f32 to vector<8x128xf32>
    %1337 = arith.addf %1336, %1335 : vector<8x128xf32>
    %1338 = arith.divf %1336, %1337 : vector<8x128xf32>
    %1339 = vector.extract_strided_slice %1330 {offsets = [0, 128], sizes = [8, 128], strides = [1, 1]} : vector<8x384xf32> to vector<8x128xf32>
    %1340 = vector.extract_strided_slice %1071 {offsets = [0, 128], sizes = [8, 128], strides = [1, 1]} : vector<8x384xf32> to vector<8x128xf32>
    %1341 = arith.addf %1339, %1340 : vector<8x128xf32>
    %1342 = arith.negf %1341 : vector<8x128xf32>
    %1343 = math.exp %1342 : vector<8x128xf32>
    %cst_261 = arith.constant 1.000000e+00 : f32
    %1344 = vector.broadcast %cst_261 : f32 to vector<8x128xf32>
    %1345 = arith.addf %1344, %1343 : vector<8x128xf32>
    %1346 = arith.divf %1344, %1345 : vector<8x128xf32>
    %1347 = vector.extract_strided_slice %1330 {offsets = [0, 256], sizes = [8, 128], strides = [1, 1]} : vector<8x384xf32> to vector<8x128xf32>
    %1348 = vector.extract_strided_slice %1071 {offsets = [0, 256], sizes = [8, 128], strides = [1, 1]} : vector<8x384xf32> to vector<8x128xf32>
    %1349 = arith.mulf %1338, %1348 : vector<8x128xf32>
    %1350 = arith.addf %1347, %1349 : vector<8x128xf32>
    %1351 = math.tanh %1350 : vector<8x128xf32>
    %cst_262 = arith.constant 1.000000e+00 : f32
    %1352 = vector.broadcast %cst_262 : f32 to vector<8x128xf32>
    %1353 = arith.subf %1352, %1346 : vector<8x128xf32>
    %1354 = arith.mulf %1353, %1351 : vector<8x128xf32>
    %1355 = arith.mulf %1346, %1060 : vector<8x128xf32>
    %1356 = arith.addf %1354, %1355 : vector<8x128xf32>
    %c1_263 = arith.constant 1 : index
    %c0_264 = arith.constant 0 : index
    %c0_265 = arith.constant 0 : index
    %1357 = vector.load %arg5[%c1_263, %c0_264, %c0_265] : memref<3x128x768xf32, #tpu.memory_space<vmem>>, vector<1x128x768xf32>
    %1358 = vector.shape_cast %1357 : vector<1x128x768xf32> to vector<128x768xf32>
    %cst_266 = arith.constant dense<0.000000e+00> : vector<8x768xf32>
    %1359 = tpu.matmul %1356, %1358, %cst_266 {dimension_numbers = #tpu.dot_dimension_numbers<[1], [0], [0], [1], [0, 0, 1, 1], [], []>} : vector<8x128xf32>, vector<128x768xf32>, vector<8x768xf32> -> vector<8x768xf32>
    %1360 = vector.extract_strided_slice %1359 {offsets = [0, 0], sizes = [8, 384], strides = [1, 1]} : vector<8x768xf32> to vector<8x384xf32>
    %1361 = vector.extract_strided_slice %3 {offsets = [3, 0], sizes = [1, 384], strides = [1, 1]} : vector<6x384xf32> to vector<1x384xf32>
    %1362 = vector.broadcast %1361 : vector<1x384xf32> to vector<8x384xf32>
    %1363 = arith.addf %1360, %1362 : vector<8x384xf32>
    %1364 = vector.extract_strided_slice %1359 {offsets = [0, 384], sizes = [8, 384], strides = [1, 1]} : vector<8x768xf32> to vector<8x384xf32>
    %1365 = vector.extract_strided_slice %4 {offsets = [2, 0], sizes = [1, 384], strides = [1, 1]} : vector<6x384xf32> to vector<1x384xf32>
    %1366 = vector.broadcast %1365 : vector<1x384xf32> to vector<8x384xf32>
    %1367 = arith.addf %1364, %1366 : vector<8x384xf32>
    %1368 = vector.extract_strided_slice %1363 {offsets = [0, 0], sizes = [8, 128], strides = [1, 1]} : vector<8x384xf32> to vector<8x128xf32>
    %1369 = vector.extract_strided_slice %1104 {offsets = [0, 0], sizes = [8, 128], strides = [1, 1]} : vector<8x384xf32> to vector<8x128xf32>
    %1370 = arith.addf %1368, %1369 : vector<8x128xf32>
    %1371 = arith.negf %1370 : vector<8x128xf32>
    %1372 = math.exp %1371 : vector<8x128xf32>
    %cst_267 = arith.constant 1.000000e+00 : f32
    %1373 = vector.broadcast %cst_267 : f32 to vector<8x128xf32>
    %1374 = arith.addf %1373, %1372 : vector<8x128xf32>
    %1375 = arith.divf %1373, %1374 : vector<8x128xf32>
    %1376 = vector.extract_strided_slice %1363 {offsets = [0, 128], sizes = [8, 128], strides = [1, 1]} : vector<8x384xf32> to vector<8x128xf32>
    %1377 = vector.extract_strided_slice %1104 {offsets = [0, 128], sizes = [8, 128], strides = [1, 1]} : vector<8x384xf32> to vector<8x128xf32>
    %1378 = arith.addf %1376, %1377 : vector<8x128xf32>
    %1379 = arith.negf %1378 : vector<8x128xf32>
    %1380 = math.exp %1379 : vector<8x128xf32>
    %cst_268 = arith.constant 1.000000e+00 : f32
    %1381 = vector.broadcast %cst_268 : f32 to vector<8x128xf32>
    %1382 = arith.addf %1381, %1380 : vector<8x128xf32>
    %1383 = arith.divf %1381, %1382 : vector<8x128xf32>
    %1384 = vector.extract_strided_slice %1363 {offsets = [0, 256], sizes = [8, 128], strides = [1, 1]} : vector<8x384xf32> to vector<8x128xf32>
    %1385 = vector.extract_strided_slice %1104 {offsets = [0, 256], sizes = [8, 128], strides = [1, 1]} : vector<8x384xf32> to vector<8x128xf32>
    %1386 = arith.mulf %1375, %1385 : vector<8x128xf32>
    %1387 = arith.addf %1384, %1386 : vector<8x128xf32>
    %1388 = math.tanh %1387 : vector<8x128xf32>
    %cst_269 = arith.constant 1.000000e+00 : f32
    %1389 = vector.broadcast %cst_269 : f32 to vector<8x128xf32>
    %1390 = arith.subf %1389, %1383 : vector<8x128xf32>
    %1391 = arith.mulf %1390, %1388 : vector<8x128xf32>
    %1392 = arith.mulf %1383, %1097 : vector<8x128xf32>
    %1393 = arith.addf %1391, %1392 : vector<8x128xf32>
    %c1_270 = arith.constant 1 : index
    %c0_271 = arith.constant 0 : index
    %c0_272 = arith.constant 0 : index
    %1394 = vector.load %arg6[%c1_270, %c0_271, %c0_272] : memref<3x128x512xf32, #tpu.memory_space<vmem>>, vector<1x128x512xf32>
    %1395 = vector.shape_cast %1394 : vector<1x128x512xf32> to vector<128x512xf32>
    %cst_273 = arith.constant dense<0.000000e+00> : vector<8x512xf32>
    %1396 = tpu.matmul %1393, %1395, %cst_273 {dimension_numbers = #tpu.dot_dimension_numbers<[1], [0], [0], [1], [0, 0, 1, 1], [], []>} : vector<8x128xf32>, vector<128x512xf32>, vector<8x512xf32> -> vector<8x512xf32>
    %1397 = vector.extract_strided_slice %1396 {offsets = [0, 0], sizes = [8, 384], strides = [1, 1]} : vector<8x512xf32> to vector<8x384xf32>
    %1398 = vector.extract_strided_slice %4 {offsets = [3, 0], sizes = [1, 384], strides = [1, 1]} : vector<6x384xf32> to vector<1x384xf32>
    %1399 = vector.broadcast %1398 : vector<1x384xf32> to vector<8x384xf32>
    %1400 = arith.addf %1397, %1399 : vector<8x384xf32>
    %1401 = vector.extract_strided_slice %1396 {offsets = [0, 384], sizes = [8, 2], strides = [1, 1]} : vector<8x512xf32> to vector<8x2xf32>
    %1402 = vector.extract_strided_slice %5 {offsets = [0, 1], sizes = [1, 2], strides = [1, 1]} : vector<1x4xf32> to vector<1x2xf32>
    %1403 = vector.broadcast %1402 : vector<1x2xf32> to vector<8x2xf32>
    %1404 = arith.addf %1401, %1403 : vector<8x2xf32>
    %1405 = vector.extract_strided_slice %1404 {offsets = [0, 0], sizes = [8, 1], strides = [1, 1]} : vector<8x2xf32> to vector<8x1xf32>
    %1406 = vector.extract_strided_slice %2 {offsets = [4, 0], sizes = [1, 384], strides = [1, 1]} : vector<6x384xf32> to vector<1x384xf32>
    %1407 = vector.broadcast %1405 : vector<8x1xf32> to vector<8x384xf32>
    %1408 = vector.broadcast %1406 : vector<1x384xf32> to vector<8x384xf32>
    %1409 = arith.mulf %1407, %1408 : vector<8x384xf32>
    %1410 = vector.extract_strided_slice %1404 {offsets = [0, 1], sizes = [8, 1], strides = [1, 1]} : vector<8x2xf32> to vector<8x1xf32>
    %1411 = vector.extract_strided_slice %2 {offsets = [5, 0], sizes = [1, 384], strides = [1, 1]} : vector<6x384xf32> to vector<1x384xf32>
    %1412 = vector.broadcast %1410 : vector<8x1xf32> to vector<8x384xf32>
    %1413 = vector.broadcast %1411 : vector<1x384xf32> to vector<8x384xf32>
    %1414 = arith.mulf %1412, %1413 : vector<8x384xf32>
    %1415 = arith.addf %1409, %1414 : vector<8x384xf32>
    %1416 = vector.extract_strided_slice %3 {offsets = [4, 0], sizes = [1, 384], strides = [1, 1]} : vector<6x384xf32> to vector<1x384xf32>
    %1417 = vector.broadcast %1416 : vector<1x384xf32> to vector<8x384xf32>
    %1418 = arith.addf %1415, %1417 : vector<8x384xf32>
    %1419 = vector.extract_strided_slice %1418 {offsets = [0, 0], sizes = [8, 128], strides = [1, 1]} : vector<8x384xf32> to vector<8x128xf32>
    %1420 = vector.extract_strided_slice %1159 {offsets = [0, 0], sizes = [8, 128], strides = [1, 1]} : vector<8x384xf32> to vector<8x128xf32>
    %1421 = arith.addf %1419, %1420 : vector<8x128xf32>
    %1422 = arith.negf %1421 : vector<8x128xf32>
    %1423 = math.exp %1422 : vector<8x128xf32>
    %cst_274 = arith.constant 1.000000e+00 : f32
    %1424 = vector.broadcast %cst_274 : f32 to vector<8x128xf32>
    %1425 = arith.addf %1424, %1423 : vector<8x128xf32>
    %1426 = arith.divf %1424, %1425 : vector<8x128xf32>
    %1427 = vector.extract_strided_slice %1418 {offsets = [0, 128], sizes = [8, 128], strides = [1, 1]} : vector<8x384xf32> to vector<8x128xf32>
    %1428 = vector.extract_strided_slice %1159 {offsets = [0, 128], sizes = [8, 128], strides = [1, 1]} : vector<8x384xf32> to vector<8x128xf32>
    %1429 = arith.addf %1427, %1428 : vector<8x128xf32>
    %1430 = arith.negf %1429 : vector<8x128xf32>
    %1431 = math.exp %1430 : vector<8x128xf32>
    %cst_275 = arith.constant 1.000000e+00 : f32
    %1432 = vector.broadcast %cst_275 : f32 to vector<8x128xf32>
    %1433 = arith.addf %1432, %1431 : vector<8x128xf32>
    %1434 = arith.divf %1432, %1433 : vector<8x128xf32>
    %1435 = vector.extract_strided_slice %1418 {offsets = [0, 256], sizes = [8, 128], strides = [1, 1]} : vector<8x384xf32> to vector<8x128xf32>
    %1436 = vector.extract_strided_slice %1159 {offsets = [0, 256], sizes = [8, 128], strides = [1, 1]} : vector<8x384xf32> to vector<8x128xf32>
    %1437 = arith.mulf %1426, %1436 : vector<8x128xf32>
    %1438 = arith.addf %1435, %1437 : vector<8x128xf32>
    %1439 = math.tanh %1438 : vector<8x128xf32>
    %cst_276 = arith.constant 1.000000e+00 : f32
    %1440 = vector.broadcast %cst_276 : f32 to vector<8x128xf32>
    %1441 = arith.subf %1440, %1434 : vector<8x128xf32>
    %1442 = arith.mulf %1441, %1439 : vector<8x128xf32>
    %1443 = arith.mulf %1434, %1148 : vector<8x128xf32>
    %1444 = arith.addf %1442, %1443 : vector<8x128xf32>
    %c2_277 = arith.constant 2 : index
    %c0_278 = arith.constant 0 : index
    %c0_279 = arith.constant 0 : index
    %1445 = vector.load %arg5[%c2_277, %c0_278, %c0_279] : memref<3x128x768xf32, #tpu.memory_space<vmem>>, vector<1x128x768xf32>
    %1446 = vector.shape_cast %1445 : vector<1x128x768xf32> to vector<128x768xf32>
    %cst_280 = arith.constant dense<0.000000e+00> : vector<8x768xf32>
    %1447 = tpu.matmul %1444, %1446, %cst_280 {dimension_numbers = #tpu.dot_dimension_numbers<[1], [0], [0], [1], [0, 0, 1, 1], [], []>} : vector<8x128xf32>, vector<128x768xf32>, vector<8x768xf32> -> vector<8x768xf32>
    %1448 = vector.extract_strided_slice %1447 {offsets = [0, 0], sizes = [8, 384], strides = [1, 1]} : vector<8x768xf32> to vector<8x384xf32>
    %1449 = vector.extract_strided_slice %3 {offsets = [5, 0], sizes = [1, 384], strides = [1, 1]} : vector<6x384xf32> to vector<1x384xf32>
    %1450 = vector.broadcast %1449 : vector<1x384xf32> to vector<8x384xf32>
    %1451 = arith.addf %1448, %1450 : vector<8x384xf32>
    %1452 = vector.extract_strided_slice %1451 {offsets = [0, 0], sizes = [8, 128], strides = [1, 1]} : vector<8x384xf32> to vector<8x128xf32>
    %1453 = vector.extract_strided_slice %1192 {offsets = [0, 0], sizes = [8, 128], strides = [1, 1]} : vector<8x384xf32> to vector<8x128xf32>
    %1454 = arith.addf %1452, %1453 : vector<8x128xf32>
    %1455 = arith.negf %1454 : vector<8x128xf32>
    %1456 = math.exp %1455 : vector<8x128xf32>
    %cst_281 = arith.constant 1.000000e+00 : f32
    %1457 = vector.broadcast %cst_281 : f32 to vector<8x128xf32>
    %1458 = arith.addf %1457, %1456 : vector<8x128xf32>
    %1459 = arith.divf %1457, %1458 : vector<8x128xf32>
    %1460 = vector.extract_strided_slice %1451 {offsets = [0, 128], sizes = [8, 128], strides = [1, 1]} : vector<8x384xf32> to vector<8x128xf32>
    %1461 = vector.extract_strided_slice %1192 {offsets = [0, 128], sizes = [8, 128], strides = [1, 1]} : vector<8x384xf32> to vector<8x128xf32>
    %1462 = arith.addf %1460, %1461 : vector<8x128xf32>
    %1463 = arith.negf %1462 : vector<8x128xf32>
    %1464 = math.exp %1463 : vector<8x128xf32>
    %cst_282 = arith.constant 1.000000e+00 : f32
    %1465 = vector.broadcast %cst_282 : f32 to vector<8x128xf32>
    %1466 = arith.addf %1465, %1464 : vector<8x128xf32>
    %1467 = arith.divf %1465, %1466 : vector<8x128xf32>
    %1468 = vector.extract_strided_slice %1451 {offsets = [0, 256], sizes = [8, 128], strides = [1, 1]} : vector<8x384xf32> to vector<8x128xf32>
    %1469 = vector.extract_strided_slice %1192 {offsets = [0, 256], sizes = [8, 128], strides = [1, 1]} : vector<8x384xf32> to vector<8x128xf32>
    %1470 = arith.mulf %1459, %1469 : vector<8x128xf32>
    %1471 = arith.addf %1468, %1470 : vector<8x128xf32>
    %1472 = math.tanh %1471 : vector<8x128xf32>
    %cst_283 = arith.constant 1.000000e+00 : f32
    %1473 = vector.broadcast %cst_283 : f32 to vector<8x128xf32>
    %1474 = arith.subf %1473, %1467 : vector<8x128xf32>
    %1475 = arith.mulf %1474, %1472 : vector<8x128xf32>
    %1476 = arith.mulf %1467, %1185 : vector<8x128xf32>
    %1477 = arith.addf %1475, %1476 : vector<8x128xf32>
    %c2_284 = arith.constant 2 : index
    %c0_285 = arith.constant 0 : index
    %c0_286 = arith.constant 0 : index
    %1478 = vector.load %arg6[%c2_284, %c0_285, %c0_286] : memref<3x128x512xf32, #tpu.memory_space<vmem>>, vector<1x128x512xf32>
    %1479 = vector.shape_cast %1478 : vector<1x128x512xf32> to vector<128x512xf32>
    %cst_287 = arith.constant dense<0.000000e+00> : vector<8x512xf32>
    %1480 = tpu.matmul %1477, %1479, %cst_287 {dimension_numbers = #tpu.dot_dimension_numbers<[1], [0], [0], [1], [0, 0, 1, 1], [], []>} : vector<8x128xf32>, vector<128x512xf32>, vector<8x512xf32> -> vector<8x512xf32>
    %1481 = vector.extract_strided_slice %1480 {offsets = [0, 384], sizes = [8, 1], strides = [1, 1]} : vector<8x512xf32> to vector<8x1xf32>
    %1482 = vector.extract_strided_slice %5 {offsets = [0, 3], sizes = [1, 1], strides = [1, 1]} : vector<1x4xf32> to vector<1x1xf32>
    %1483 = vector.broadcast %1482 : vector<1x1xf32> to vector<8x1xf32>
    %1484 = arith.addf %1481, %1483 : vector<8x1xf32>
    %cst_288 = arith.constant dense<0.000000e+00> : vector<8xf32>
    %1485 = vector.multi_reduction <add>, %1484, %cst_288 [1] : vector<8x1xf32> to vector<8xf32>
    %1486 = vector.shape_cast %1485 : vector<8xf32> to vector<8x1xf32>
    %cst_289 = arith.constant dense<0.000000e+00> : vector<1xf32>
    %1487 = vector.multi_reduction <add>, %1486, %cst_289 [0] : vector<8x1xf32> to vector<1xf32>
    %1488 = vector.shape_cast %1487 : vector<1xf32> to vector<1x1xf32>
    %cst_290 = arith.constant 1.250000e-01 : f32
    %1489 = vector.broadcast %cst_290 : f32 to vector<1x1xf32>
    %1490 = arith.mulf %1488, %1489 : vector<1x1xf32>
    %1491 = vector.broadcast %1490 : vector<1x1xf32> to vector<8x1xf32>
    %1492 = arith.subf %1484, %1491 : vector<8x1xf32>
    %1493 = arith.mulf %1492, %1492 : vector<8x1xf32>
    %cst_291 = arith.constant dense<0.000000e+00> : vector<8xf32>
    %1494 = vector.multi_reduction <add>, %1493, %cst_291 [1] : vector<8x1xf32> to vector<8xf32>
    %1495 = vector.shape_cast %1494 : vector<8xf32> to vector<8x1xf32>
    %cst_292 = arith.constant dense<0.000000e+00> : vector<1xf32>
    %1496 = vector.multi_reduction <add>, %1495, %cst_292 [0] : vector<8x1xf32> to vector<1xf32>
    %1497 = vector.shape_cast %1496 : vector<1xf32> to vector<1x1xf32>
    %cst_293 = arith.constant 0.142857149 : f32
    %1498 = vector.broadcast %cst_293 : f32 to vector<1x1xf32>
    %1499 = arith.mulf %1497, %1498 : vector<1x1xf32>
    %1500 = math.rsqrt %1499 : vector<1x1xf32>
    %1501 = vector.broadcast %1500 : vector<1x1xf32> to vector<8x1xf32>
    %1502 = arith.mulf %1492, %1501 : vector<8x1xf32>
    %1503 = vector.extract_strided_slice %1 {offsets = [0, 10], sizes = [8, 1], strides = [1, 1]} : vector<8x12xf32> to vector<8x1xf32>
    %1504 = arith.addf %1502, %1503 : vector<8x1xf32>
    %1505 = vector.extract_strided_slice %2 {offsets = [2, 0], sizes = [1, 384], strides = [1, 1]} : vector<6x384xf32> to vector<1x384xf32>
    %1506 = vector.broadcast %1504 : vector<8x1xf32> to vector<8x384xf32>
    %1507 = vector.broadcast %1505 : vector<1x384xf32> to vector<8x384xf32>
    %1508 = arith.mulf %1506, %1507 : vector<8x384xf32>
    %1509 = arith.addf %19, %1508 : vector<8x384xf32>
    %1510 = vector.extract_strided_slice %1509 {offsets = [0, 0], sizes = [8, 128], strides = [1, 1]} : vector<8x384xf32> to vector<8x128xf32>
    %1511 = vector.extract_strided_slice %1258 {offsets = [0, 0], sizes = [8, 128], strides = [1, 1]} : vector<8x384xf32> to vector<8x128xf32>
    %1512 = arith.addf %1510, %1511 : vector<8x128xf32>
    %1513 = arith.negf %1512 : vector<8x128xf32>
    %1514 = math.exp %1513 : vector<8x128xf32>
    %cst_294 = arith.constant 1.000000e+00 : f32
    %1515 = vector.broadcast %cst_294 : f32 to vector<8x128xf32>
    %1516 = arith.addf %1515, %1514 : vector<8x128xf32>
    %1517 = arith.divf %1515, %1516 : vector<8x128xf32>
    %1518 = vector.extract_strided_slice %1509 {offsets = [0, 128], sizes = [8, 128], strides = [1, 1]} : vector<8x384xf32> to vector<8x128xf32>
    %1519 = vector.extract_strided_slice %1258 {offsets = [0, 128], sizes = [8, 128], strides = [1, 1]} : vector<8x384xf32> to vector<8x128xf32>
    %1520 = arith.addf %1518, %1519 : vector<8x128xf32>
    %1521 = arith.negf %1520 : vector<8x128xf32>
    %1522 = math.exp %1521 : vector<8x128xf32>
    %cst_295 = arith.constant 1.000000e+00 : f32
    %1523 = vector.broadcast %cst_295 : f32 to vector<8x128xf32>
    %1524 = arith.addf %1523, %1522 : vector<8x128xf32>
    %1525 = arith.divf %1523, %1524 : vector<8x128xf32>
    %1526 = vector.extract_strided_slice %1509 {offsets = [0, 256], sizes = [8, 128], strides = [1, 1]} : vector<8x384xf32> to vector<8x128xf32>
    %1527 = vector.extract_strided_slice %1258 {offsets = [0, 256], sizes = [8, 128], strides = [1, 1]} : vector<8x384xf32> to vector<8x128xf32>
    %1528 = arith.mulf %1517, %1527 : vector<8x128xf32>
    %1529 = arith.addf %1526, %1528 : vector<8x128xf32>
    %1530 = math.tanh %1529 : vector<8x128xf32>
    %cst_296 = arith.constant 1.000000e+00 : f32
    %1531 = vector.broadcast %cst_296 : f32 to vector<8x128xf32>
    %1532 = arith.subf %1531, %1525 : vector<8x128xf32>
    %1533 = arith.mulf %1532, %1530 : vector<8x128xf32>
    %1534 = arith.mulf %1525, %1247 : vector<8x128xf32>
    %1535 = arith.addf %1533, %1534 : vector<8x128xf32>
    %c0_297 = arith.constant 0 : index
    %c0_298 = arith.constant 0 : index
    %c0_299 = arith.constant 0 : index
    %1536 = vector.load %arg5[%c0_297, %c0_298, %c0_299] : memref<3x128x768xf32, #tpu.memory_space<vmem>>, vector<1x128x384xf32>
    %1537 = vector.shape_cast %1536 : vector<1x128x384xf32> to vector<128x384xf32>
    %cst_300 = arith.constant dense<0.000000e+00> : vector<8x384xf32>
    %1538 = tpu.matmul %1535, %1537, %cst_300 {dimension_numbers = #tpu.dot_dimension_numbers<[1], [0], [0], [1], [0, 0, 1, 1], [], []>} : vector<8x128xf32>, vector<128x384xf32>, vector<8x384xf32> -> vector<8x384xf32>
    %1539 = vector.extract_strided_slice %3 {offsets = [1, 0], sizes = [1, 384], strides = [1, 1]} : vector<6x384xf32> to vector<1x384xf32>
    %1540 = vector.broadcast %1539 : vector<1x384xf32> to vector<8x384xf32>
    %1541 = arith.addf %1538, %1540 : vector<8x384xf32>
    %1542 = vector.extract_strided_slice %1541 {offsets = [0, 0], sizes = [8, 128], strides = [1, 1]} : vector<8x384xf32> to vector<8x128xf32>
    %1543 = vector.extract_strided_slice %1291 {offsets = [0, 0], sizes = [8, 128], strides = [1, 1]} : vector<8x384xf32> to vector<8x128xf32>
    %1544 = arith.addf %1542, %1543 : vector<8x128xf32>
    %1545 = arith.negf %1544 : vector<8x128xf32>
    %1546 = math.exp %1545 : vector<8x128xf32>
    %cst_301 = arith.constant 1.000000e+00 : f32
    %1547 = vector.broadcast %cst_301 : f32 to vector<8x128xf32>
    %1548 = arith.addf %1547, %1546 : vector<8x128xf32>
    %1549 = arith.divf %1547, %1548 : vector<8x128xf32>
    %1550 = vector.extract_strided_slice %1541 {offsets = [0, 128], sizes = [8, 128], strides = [1, 1]} : vector<8x384xf32> to vector<8x128xf32>
    %1551 = vector.extract_strided_slice %1291 {offsets = [0, 128], sizes = [8, 128], strides = [1, 1]} : vector<8x384xf32> to vector<8x128xf32>
    %1552 = arith.addf %1550, %1551 : vector<8x128xf32>
    %1553 = arith.negf %1552 : vector<8x128xf32>
    %1554 = math.exp %1553 : vector<8x128xf32>
    %cst_302 = arith.constant 1.000000e+00 : f32
    %1555 = vector.broadcast %cst_302 : f32 to vector<8x128xf32>
    %1556 = arith.addf %1555, %1554 : vector<8x128xf32>
    %1557 = arith.divf %1555, %1556 : vector<8x128xf32>
    %1558 = vector.extract_strided_slice %1541 {offsets = [0, 256], sizes = [8, 128], strides = [1, 1]} : vector<8x384xf32> to vector<8x128xf32>
    %1559 = vector.extract_strided_slice %1291 {offsets = [0, 256], sizes = [8, 128], strides = [1, 1]} : vector<8x384xf32> to vector<8x128xf32>
    %1560 = arith.mulf %1549, %1559 : vector<8x128xf32>
    %1561 = arith.addf %1558, %1560 : vector<8x128xf32>
    %1562 = math.tanh %1561 : vector<8x128xf32>
    %cst_303 = arith.constant 1.000000e+00 : f32
    %1563 = vector.broadcast %cst_303 : f32 to vector<8x128xf32>
    %1564 = arith.subf %1563, %1557 : vector<8x128xf32>
    %1565 = arith.mulf %1564, %1562 : vector<8x128xf32>
    %1566 = arith.mulf %1557, %1284 : vector<8x128xf32>
    %1567 = arith.addf %1565, %1566 : vector<8x128xf32>
    %c0_304 = arith.constant 0 : index
    %c0_305 = arith.constant 0 : index
    %c384 = arith.constant 384 : index
    %1568 = vector.load %arg6[%c0_304, %c0_305, %c384] : memref<3x128x512xf32, #tpu.memory_space<vmem>>, vector<1x128x128xf32>
    %1569 = vector.shape_cast %1568 : vector<1x128x128xf32> to vector<128x128xf32>
    %cst_306 = arith.constant dense<0.000000e+00> : vector<8x128xf32>
    %1570 = tpu.matmul %1567, %1569, %cst_306 {dimension_numbers = #tpu.dot_dimension_numbers<[1], [0], [0], [1], [0, 0, 1, 1], [], []>} : vector<8x128xf32>, vector<128x128xf32>, vector<8x128xf32> -> vector<8x128xf32>
    %1571 = vector.extract_strided_slice %1570 {offsets = [0, 0], sizes = [8, 1], strides = [1, 1]} : vector<8x128xf32> to vector<8x1xf32>
    %1572 = vector.extract_strided_slice %5 {offsets = [0, 0], sizes = [1, 1], strides = [1, 1]} : vector<1x4xf32> to vector<1x1xf32>
    %1573 = vector.broadcast %1572 : vector<1x1xf32> to vector<8x1xf32>
    %1574 = arith.addf %1571, %1573 : vector<8x1xf32>
    %cst_307 = arith.constant 0.000000e+00 : f32
    %1575 = vector.broadcast %cst_307 : f32 to vector<8x1xf32>
    %1576 = arith.cmpf ogt, %1574, %1575 : vector<8x1xf32>
    %cst_308 = arith.constant 0.000000e+00 : f32
    %1577 = vector.broadcast %cst_308 : f32 to vector<8x1xf32>
    %1578 = arith.minimumf %1574, %1577 : vector<8x1xf32>
    %1579 = math.exp %1578 : vector<8x1xf32>
    %cst_309 = arith.constant 1.000000e+00 : f32
    %1580 = vector.broadcast %cst_309 : f32 to vector<8x1xf32>
    %1581 = arith.subf %1579, %1580 : vector<8x1xf32>
    %1582 = arith.select %1576, %1574, %1581 : vector<8x1xi1>, vector<8x1xf32>
    %cst_310 = arith.constant dense<0.000000e+00> : vector<8xf32>
    %1583 = vector.multi_reduction <add>, %1582, %cst_310 [1] : vector<8x1xf32> to vector<8xf32>
    %1584 = vector.shape_cast %1583 : vector<8xf32> to vector<8x1xf32>
    %cst_311 = arith.constant dense<0.000000e+00> : vector<1xf32>
    %1585 = vector.multi_reduction <add>, %1584, %cst_311 [0] : vector<8x1xf32> to vector<1xf32>
    %1586 = vector.shape_cast %1585 : vector<1xf32> to vector<1x1xf32>
    %cst_312 = arith.constant 1.250000e-01 : f32
    %1587 = vector.broadcast %cst_312 : f32 to vector<1x1xf32>
    %1588 = arith.mulf %1586, %1587 : vector<1x1xf32>
    %1589 = vector.broadcast %1588 : vector<1x1xf32> to vector<8x1xf32>
    %1590 = arith.subf %1582, %1589 : vector<8x1xf32>
    %1591 = arith.mulf %1590, %1590 : vector<8x1xf32>
    %cst_313 = arith.constant dense<0.000000e+00> : vector<8xf32>
    %1592 = vector.multi_reduction <add>, %1591, %cst_313 [1] : vector<8x1xf32> to vector<8xf32>
    %1593 = vector.shape_cast %1592 : vector<8xf32> to vector<8x1xf32>
    %cst_314 = arith.constant dense<0.000000e+00> : vector<1xf32>
    %1594 = vector.multi_reduction <add>, %1593, %cst_314 [0] : vector<8x1xf32> to vector<1xf32>
    %1595 = vector.shape_cast %1594 : vector<1xf32> to vector<1x1xf32>
    %cst_315 = arith.constant 0.142857149 : f32
    %1596 = vector.broadcast %cst_315 : f32 to vector<1x1xf32>
    %1597 = arith.mulf %1595, %1596 : vector<1x1xf32>
    %1598 = math.rsqrt %1597 : vector<1x1xf32>
    %1599 = vector.broadcast %1598 : vector<1x1xf32> to vector<8x1xf32>
    %1600 = arith.mulf %1590, %1599 : vector<8x1xf32>
    %1601 = vector.extract_strided_slice %1 {offsets = [0, 5], sizes = [8, 1], strides = [1, 1]} : vector<8x12xf32> to vector<8x1xf32>
    %1602 = arith.addf %1600, %1601 : vector<8x1xf32>
    %1603 = vector.extract_strided_slice %2 {offsets = [3, 0], sizes = [1, 384], strides = [1, 1]} : vector<6x384xf32> to vector<1x384xf32>
    %1604 = vector.broadcast %1602 : vector<8x1xf32> to vector<8x384xf32>
    %1605 = vector.broadcast %1603 : vector<1x384xf32> to vector<8x384xf32>
    %1606 = arith.mulf %1604, %1605 : vector<8x384xf32>
    %1607 = vector.extract_strided_slice %3 {offsets = [2, 0], sizes = [1, 384], strides = [1, 1]} : vector<6x384xf32> to vector<1x384xf32>
    %1608 = vector.broadcast %1607 : vector<1x384xf32> to vector<8x384xf32>
    %1609 = arith.addf %1606, %1608 : vector<8x384xf32>
    %1610 = vector.extract_strided_slice %1609 {offsets = [0, 0], sizes = [8, 128], strides = [1, 1]} : vector<8x384xf32> to vector<8x128xf32>
    %1611 = vector.extract_strided_slice %1367 {offsets = [0, 0], sizes = [8, 128], strides = [1, 1]} : vector<8x384xf32> to vector<8x128xf32>
    %1612 = arith.addf %1610, %1611 : vector<8x128xf32>
    %1613 = arith.negf %1612 : vector<8x128xf32>
    %1614 = math.exp %1613 : vector<8x128xf32>
    %cst_316 = arith.constant 1.000000e+00 : f32
    %1615 = vector.broadcast %cst_316 : f32 to vector<8x128xf32>
    %1616 = arith.addf %1615, %1614 : vector<8x128xf32>
    %1617 = arith.divf %1615, %1616 : vector<8x128xf32>
    %1618 = vector.extract_strided_slice %1609 {offsets = [0, 128], sizes = [8, 128], strides = [1, 1]} : vector<8x384xf32> to vector<8x128xf32>
    %1619 = vector.extract_strided_slice %1367 {offsets = [0, 128], sizes = [8, 128], strides = [1, 1]} : vector<8x384xf32> to vector<8x128xf32>
    %1620 = arith.addf %1618, %1619 : vector<8x128xf32>
    %1621 = arith.negf %1620 : vector<8x128xf32>
    %1622 = math.exp %1621 : vector<8x128xf32>
    %cst_317 = arith.constant 1.000000e+00 : f32
    %1623 = vector.broadcast %cst_317 : f32 to vector<8x128xf32>
    %1624 = arith.addf %1623, %1622 : vector<8x128xf32>
    %1625 = arith.divf %1623, %1624 : vector<8x128xf32>
    %1626 = vector.extract_strided_slice %1609 {offsets = [0, 256], sizes = [8, 128], strides = [1, 1]} : vector<8x384xf32> to vector<8x128xf32>
    %1627 = vector.extract_strided_slice %1367 {offsets = [0, 256], sizes = [8, 128], strides = [1, 1]} : vector<8x384xf32> to vector<8x128xf32>
    %1628 = arith.mulf %1617, %1627 : vector<8x128xf32>
    %1629 = arith.addf %1626, %1628 : vector<8x128xf32>
    %1630 = math.tanh %1629 : vector<8x128xf32>
    %cst_318 = arith.constant 1.000000e+00 : f32
    %1631 = vector.broadcast %cst_318 : f32 to vector<8x128xf32>
    %1632 = arith.subf %1631, %1625 : vector<8x128xf32>
    %1633 = arith.mulf %1632, %1630 : vector<8x128xf32>
    %1634 = arith.mulf %1625, %1356 : vector<8x128xf32>
    %1635 = arith.addf %1633, %1634 : vector<8x128xf32>
    %c1_319 = arith.constant 1 : index
    %c0_320 = arith.constant 0 : index
    %c0_321 = arith.constant 0 : index
    %1636 = vector.load %arg5[%c1_319, %c0_320, %c0_321] : memref<3x128x768xf32, #tpu.memory_space<vmem>>, vector<1x128x384xf32>
    %1637 = vector.shape_cast %1636 : vector<1x128x384xf32> to vector<128x384xf32>
    %cst_322 = arith.constant dense<0.000000e+00> : vector<8x384xf32>
    %1638 = tpu.matmul %1635, %1637, %cst_322 {dimension_numbers = #tpu.dot_dimension_numbers<[1], [0], [0], [1], [0, 0, 1, 1], [], []>} : vector<8x128xf32>, vector<128x384xf32>, vector<8x384xf32> -> vector<8x384xf32>
    %1639 = vector.extract_strided_slice %3 {offsets = [3, 0], sizes = [1, 384], strides = [1, 1]} : vector<6x384xf32> to vector<1x384xf32>
    %1640 = vector.broadcast %1639 : vector<1x384xf32> to vector<8x384xf32>
    %1641 = arith.addf %1638, %1640 : vector<8x384xf32>
    %1642 = vector.extract_strided_slice %1641 {offsets = [0, 0], sizes = [8, 128], strides = [1, 1]} : vector<8x384xf32> to vector<8x128xf32>
    %1643 = vector.extract_strided_slice %1400 {offsets = [0, 0], sizes = [8, 128], strides = [1, 1]} : vector<8x384xf32> to vector<8x128xf32>
    %1644 = arith.addf %1642, %1643 : vector<8x128xf32>
    %1645 = arith.negf %1644 : vector<8x128xf32>
    %1646 = math.exp %1645 : vector<8x128xf32>
    %cst_323 = arith.constant 1.000000e+00 : f32
    %1647 = vector.broadcast %cst_323 : f32 to vector<8x128xf32>
    %1648 = arith.addf %1647, %1646 : vector<8x128xf32>
    %1649 = arith.divf %1647, %1648 : vector<8x128xf32>
    %1650 = vector.extract_strided_slice %1641 {offsets = [0, 128], sizes = [8, 128], strides = [1, 1]} : vector<8x384xf32> to vector<8x128xf32>
    %1651 = vector.extract_strided_slice %1400 {offsets = [0, 128], sizes = [8, 128], strides = [1, 1]} : vector<8x384xf32> to vector<8x128xf32>
    %1652 = arith.addf %1650, %1651 : vector<8x128xf32>
    %1653 = arith.negf %1652 : vector<8x128xf32>
    %1654 = math.exp %1653 : vector<8x128xf32>
    %cst_324 = arith.constant 1.000000e+00 : f32
    %1655 = vector.broadcast %cst_324 : f32 to vector<8x128xf32>
    %1656 = arith.addf %1655, %1654 : vector<8x128xf32>
    %1657 = arith.divf %1655, %1656 : vector<8x128xf32>
    %1658 = vector.extract_strided_slice %1641 {offsets = [0, 256], sizes = [8, 128], strides = [1, 1]} : vector<8x384xf32> to vector<8x128xf32>
    %1659 = vector.extract_strided_slice %1400 {offsets = [0, 256], sizes = [8, 128], strides = [1, 1]} : vector<8x384xf32> to vector<8x128xf32>
    %1660 = arith.mulf %1649, %1659 : vector<8x128xf32>
    %1661 = arith.addf %1658, %1660 : vector<8x128xf32>
    %1662 = math.tanh %1661 : vector<8x128xf32>
    %cst_325 = arith.constant 1.000000e+00 : f32
    %1663 = vector.broadcast %cst_325 : f32 to vector<8x128xf32>
    %1664 = arith.subf %1663, %1657 : vector<8x128xf32>
    %1665 = arith.mulf %1664, %1662 : vector<8x128xf32>
    %1666 = arith.mulf %1657, %1393 : vector<8x128xf32>
    %1667 = arith.addf %1665, %1666 : vector<8x128xf32>
    %c1_326 = arith.constant 1 : index
    %c0_327 = arith.constant 0 : index
    %c384_328 = arith.constant 384 : index
    %1668 = vector.load %arg6[%c1_326, %c0_327, %c384_328] : memref<3x128x512xf32, #tpu.memory_space<vmem>>, vector<1x128x128xf32>
    %1669 = vector.shape_cast %1668 : vector<1x128x128xf32> to vector<128x128xf32>
    %cst_329 = arith.constant dense<0.000000e+00> : vector<8x128xf32>
    %1670 = tpu.matmul %1667, %1669, %cst_329 {dimension_numbers = #tpu.dot_dimension_numbers<[1], [0], [0], [1], [0, 0, 1, 1], [], []>} : vector<8x128xf32>, vector<128x128xf32>, vector<8x128xf32> -> vector<8x128xf32>
    %1671 = vector.extract_strided_slice %1670 {offsets = [0, 0], sizes = [8, 2], strides = [1, 1]} : vector<8x128xf32> to vector<8x2xf32>
    %1672 = vector.extract_strided_slice %5 {offsets = [0, 1], sizes = [1, 2], strides = [1, 1]} : vector<1x4xf32> to vector<1x2xf32>
    %1673 = vector.broadcast %1672 : vector<1x2xf32> to vector<8x2xf32>
    %1674 = arith.addf %1671, %1673 : vector<8x2xf32>
    %1675 = arith.negf %1674 : vector<8x2xf32>
    %1676 = math.exp %1675 : vector<8x2xf32>
    %cst_330 = arith.constant 1.000000e+00 : f32
    %1677 = vector.broadcast %cst_330 : f32 to vector<8x2xf32>
    %1678 = arith.addf %1677, %1676 : vector<8x2xf32>
    %1679 = arith.divf %1677, %1678 : vector<8x2xf32>
    %c0_331 = arith.constant 0 : index
    %c0_332 = arith.constant 0 : index
    %1680 = vector.load %arg8[%c0_331, %c0_332] : memref<8x2xf32, #tpu.memory_space<vmem>>, vector<8x2xf32>
    tpu.vector_store %arg8[%c0_331, %c0_332], %1679 {strides = array<i32>} : memref<8x2xf32, #tpu.memory_space<vmem>>, vector<8x2xf32>,
    return
  }
}

</mosaic_0001>

<llo_original>
// kernel: tpu_custom_call.1
$region0: #{tpu_custom_call.1}
  #allocation0 [shape = 'u32[]', space=smem, size = 0x4, offset = 0x4, fixed_abs, tag = 'smem constant byte address 0x4 - core index']
  #allocation1 [shape = 'u32[144,128]{1,0:T(1,128)}', space=vmem, size = 0x12000, scoped, tag = 'internal scratch']
  %s0 = inlined_call_operand.vmem [shape: f32[8,2], index: 0, kind: input, shape index: {}]
  %s1 = inlined_call_operand.hbm [shape: f32[8,12], index: 1, kind: input, shape index: {}]
  %s2 = inlined_call_operand.hbm [shape: f32[6,384], index: 2, kind: input, shape index: {}]
  %s3 = inlined_call_operand.hbm [shape: f32[6,384], index: 3, kind: input, shape index: {}]
  %s4 = inlined_call_operand.hbm [shape: f32[6,384], index: 4, kind: input, shape index: {}]
  %s5 = inlined_call_operand.hbm [shape: f32[3,128,768], index: 5, kind: input, shape index: {}]
  %s6 = inlined_call_operand.hbm [shape: f32[3,128,512], index: 6, kind: input, shape index: {}]
  %s7 = inlined_call_operand.hbm [shape: f32[1,4], index: 7, kind: input, shape index: {}]
  %s8 = inlined_call_operand.vmem [shape: f32[8,2], index: 8, kind: output, shape index: {}]
  %s9 = sld [smem:[#allocation0]]
  $region70: #{tpu_custom_call.1} parent=0
    _
  %s11 = ssub.s32 1, %s9
  %s12 = scalar_select 0, %s11, %s9
  $region1: #{tpu_custom_call.1} parent=0
    #allocation2 [shape = 'u8[4096]{0}', space=vmem, size = 0x1000, scoped, tag = 'input window, operand 1, single buffered']
    #allocation3 [shape = 's32[1]{0}', space=sflag, size = 0x4, scoped, tag = 'scoped memory for tpu_custom_call.1']
    #allocation4 [shape = 'u8[12288]{0}', space=vmem, size = 0x3000, scoped, tag = 'input window, operand 2, single buffered']
    #allocation5 [shape = 's32[1]{0}', space=sflag, size = 0x4, scoped, tag = 'scoped memory for tpu_custom_call.1']
    #allocation6 [shape = 'u8[12288]{0}', space=vmem, size = 0x3000, scoped, tag = 'input window, operand 3, single buffered']
    #allocation7 [shape = 'u8[12288]{0}', space=vmem, size = 0x3000, scoped, tag = 'input window, operand 4, single buffered']
    #allocation8 [shape = 's32[1]{0}', space=sflag, size = 0x4, scoped, tag = 'scoped memory for tpu_custom_call.1']
    #allocation9 [shape = 'u8[1179648]{0}', space=vmem, size = 0x120000, scoped, tag = 'input window, operand 5, single buffered']
    #allocation10 [shape = 'u8[786432]{0}', space=vmem, size = 0xc0000, scoped, tag = 'input window, operand 6, single buffered']
    #allocation11 [shape = 's32[1]{0}', space=sflag, size = 0x4, scoped, tag = 'scoped memory for tpu_custom_call.1']
    #allocation12 [shape = 'u8[512]{0}', space=vmem, size = 0x400, scoped, tag = 'input window, operand 7, single buffered']
    %13 = vsyncpa [#allocation3], 0
    %14 = vsyncpa [#allocation5], 0
    %15 = vsyncpa [#allocation8], 0
    %16 = vsyncpa [#allocation11], 0
    // Predicated region
    $region2: #{tpu_custom_call.1} parent=1 // pred_check
      _
    $region3: #{tpu_custom_call.1} parent=1 // pred_check_branch
      %18 = sbr.rel (0) target = $region5
    $region4: #{tpu_custom_call.1} parent=1 // pred_region
      _
    $region5: #{tpu_custom_call.1} parent=1 // pred_fallthru
      _
    // Predicated region
    $region6: #{tpu_custom_call.1} parent=1 // pred_check
      _
    $region7: #{tpu_custom_call.1} parent=1 // pred_check_branch
      %20 = sbr.rel (0) target = $region9
    $region8: #{tpu_custom_call.1} parent=1 // pred_region
      %s22 = ssub.s32 128, 128
      %23 = vsyncadd [#allocation3], %s22
      %s25 = sshll.u32 [#allocation2], 4
      %s26 = int_to_ptr.vmem [resolvable:$true] %s25
      %28 = dma.hbm_to_vmem [thread:$0]  %s1, 128, %s26, [#allocation3]
    $region9: #{tpu_custom_call.1} parent=1 // pred_fallthru
      _
    // Predicated region
    $region10: #{tpu_custom_call.1} parent=1 // pred_check
      _
    $region11: #{tpu_custom_call.1} parent=1 // pred_check_branch
      %30 = sbr.rel (0) target = $region13
    $region12: #{tpu_custom_call.1} parent=1 // pred_region
      %s32 = ssub.s32 384, 384
      %33 = vsyncadd [#allocation5], %s32
      %s35 = sshll.u32 [#allocation4], 4
      %s36 = int_to_ptr.vmem [resolvable:$true] %s35
      %38 = dma.hbm_to_vmem [thread:$0]  %s2, 384, %s36, [#allocation5]
    $region13: #{tpu_custom_call.1} parent=1 // pred_fallthru
      _
    // Predicated region
    $region14: #{tpu_custom_call.1} parent=1 // pred_check
      _
    $region15: #{tpu_custom_call.1} parent=1 // pred_check_branch
      %40 = sbr.rel (0) target = $region17
    $region16: #{tpu_custom_call.1} parent=1 // pred_region
      %s42 = ssub.s32 384, 384
      %43 = vsyncadd [#allocation5], %s42
      %s45 = sshll.u32 [#allocation6], 4
      %s46 = int_to_ptr.vmem [resolvable:$true] %s45
      %48 = dma.hbm_to_vmem [thread:$0]  %s3, 384, %s46, [#allocation5]
    $region17: #{tpu_custom_call.1} parent=1 // pred_fallthru
      _
    // Predicated region
    $region18: #{tpu_custom_call.1} parent=1 // pred_check
      _
    $region19: #{tpu_custom_call.1} parent=1 // pred_check_branch
      %50 = sbr.rel (0) target = $region21
    $region20: #{tpu_custom_call.1} parent=1 // pred_region
      %s52 = ssub.s32 384, 384
      %53 = vsyncadd [#allocation8], %s52
      %s55 = sshll.u32 [#allocation7], 4
      %s56 = int_to_ptr.vmem [resolvable:$true] %s55
      %58 = dma.hbm_to_vmem [thread:$0]  %s4, 384, %s56, [#allocation8]
    $region21: #{tpu_custom_call.1} parent=1 // pred_fallthru
      _
    // Predicated region
    $region22: #{tpu_custom_call.1} parent=1 // pred_check
      _
    $region23: #{tpu_custom_call.1} parent=1 // pred_check_branch
      %60 = sbr.rel (0) target = $region25
    $region24: #{tpu_custom_call.1} parent=1 // pred_region
      %s62 = ssub.s32 36864, 36864
      %63 = vsyncadd [#allocation8], %s62
      %s64 = sshll.u32 [#allocation9], 4
      %s65 = int_to_ptr.vmem [resolvable:$true] %s64
      %70 = dma.hbm_to_vmem [thread:$0]  %s5, 36864, %s65, [#allocation8], 768, 768, 48
    $region25: #{tpu_custom_call.1} parent=1 // pred_fallthru
      _
    // Predicated region
    $region26: #{tpu_custom_call.1} parent=1 // pred_check
      _
    $region27: #{tpu_custom_call.1} parent=1 // pred_check_branch
      %72 = sbr.rel (0) target = $region29
    $region28: #{tpu_custom_call.1} parent=1 // pred_region
      %s74 = ssub.s32 24576, 24576
      %75 = vsyncadd [#allocation11], %s74
      %s76 = sshll.u32 [#allocation10], 4
      %s77 = int_to_ptr.vmem [resolvable:$true] %s76
      %82 = dma.hbm_to_vmem [thread:$0]  %s6, 24576, %s77, [#allocation11], 512, 512, 32
    $region29: #{tpu_custom_call.1} parent=1 // pred_fallthru
      _
    // Predicated region
    $region30: #{tpu_custom_call.1} parent=1 // pred_check
      _
    $region31: #{tpu_custom_call.1} parent=1 // pred_check_branch
      %84 = sbr.rel (0) target = $region33
    $region32: #{tpu_custom_call.1} parent=1 // pred_region
      %s86 = ssub.s32 16, 16
      %87 = vsyncadd [#allocation11], %s86
      %s89 = sshll.u32 [#allocation12], 4
      %s90 = int_to_ptr.vmem [resolvable:$true] %s89
      %92 = dma.hbm_to_vmem [thread:$0]  %s7, 16, %s90, [#allocation11]
    $region33: #{tpu_custom_call.1} parent=1 // pred_fallthru
      _
    // Predicated region
    $region34: #{tpu_custom_call.1} parent=1 // pred_check
      _
    $region35: #{tpu_custom_call.1} parent=1 // pred_check_branch
      %94 = sbr.rel (0) target = $region37
    $region36: #{tpu_custom_call.1} parent=1 // pred_region
      %95 = dma.done [#allocation3], 128
    $region37: #{tpu_custom_call.1} parent=1 // pred_fallthru
      _
    // Predicated region
    $region38: #{tpu_custom_call.1} parent=1 // pred_check
      _
    $region39: #{tpu_custom_call.1} parent=1 // pred_check_branch
      %97 = sbr.rel (0) target = $region41
    $region40: #{tpu_custom_call.1} parent=1 // pred_region
      %98 = dma.done [#allocation5], 384
    $region41: #{tpu_custom_call.1} parent=1 // pred_fallthru
      _
    // Predicated region
    $region42: #{tpu_custom_call.1} parent=1 // pred_check
      _
    $region43: #{tpu_custom_call.1} parent=1 // pred_check_branch
      %100 = sbr.rel (0) target = $region45
    $region44: #{tpu_custom_call.1} parent=1 // pred_region
      %101 = dma.done [#allocation5], 384
    $region45: #{tpu_custom_call.1} parent=1 // pred_fallthru
      _
    // Predicated region
    $region46: #{tpu_custom_call.1} parent=1 // pred_check
      _
    $region47: #{tpu_custom_call.1} parent=1 // pred_check_branch
      %103 = sbr.rel (0) target = $region49
    $region48: #{tpu_custom_call.1} parent=1 // pred_region
      %104 = dma.done [#allocation8], 384
    $region49: #{tpu_custom_call.1} parent=1 // pred_fallthru
      _
    // Predicated region
    $region50: #{tpu_custom_call.1} parent=1 // pred_check
      _
    $region51: #{tpu_custom_call.1} parent=1 // pred_check_branch
      %106 = sbr.rel (0) target = $region53
    $region52: #{tpu_custom_call.1} parent=1 // pred_region
      %107 = dma.done [#allocation8], 36864
    $region53: #{tpu_custom_call.1} parent=1 // pred_fallthru
      _
    // Predicated region
    $region54: #{tpu_custom_call.1} parent=1 // pred_check
      _
    $region55: #{tpu_custom_call.1} parent=1 // pred_check_branch
      %109 = sbr.rel (0) target = $region57
    $region56: #{tpu_custom_call.1} parent=1 // pred_region
      %110 = dma.done [#allocation11], 24576
    $region57: #{tpu_custom_call.1} parent=1 // pred_fallthru
      _
    // Predicated region
    $region58: #{tpu_custom_call.1} parent=1 // pred_check
      _
    $region59: #{tpu_custom_call.1} parent=1 // pred_check_branch
      %112 = sbr.rel (0) target = $region61
    $region60: #{tpu_custom_call.1} parent=1 // pred_region
      %113 = dma.done [#allocation11], 16
    $region61: #{tpu_custom_call.1} parent=1 // pred_fallthru
      _
    %v114 = vld [vmem:[%s0] sm:$0xff]
    %v115 = vld [vmem:[#allocation2] sm:$0xff]
    %v116 = vld [vmem:[#allocation4] sm:$0x3f]
    %v117 = vld [vmem:[#allocation4 + $0x8] sm:$0x3f]
    %v118 = vld [vmem:[#allocation4 + $0x10] sm:$0x3f]
    %v119 = vld [vmem:[#allocation6] sm:$0x3f]
    %v120 = vld [vmem:[#allocation6 + $0x8] sm:$0x3f]
    %v121 = vld [vmem:[#allocation6 + $0x10] sm:$0x3f]
    %v122 = vld [vmem:[#allocation7] sm:$0x3f]
    %v123 = vld [vmem:[#allocation7 + $0x8] sm:$0x3f]
    %v124 = vld [vmem:[#allocation7 + $0x10] sm:$0x3f]
    %v125 = vld [vmem:[#allocation12] sm:$0x1]
    %127 = vset.pattern.permute.xlu0 0
    %128 = vperm.xlu0 %127, %v114
    %v129 = vpop.permute.xlu0 %128
    %v131 = vlaneseq
    %v132 = vshrl.u32 %v131, 7
    %v133 = vsub.s32 0, %v132
    %v134 = vrot.slane %v116, %v133
    %v135 = vlaneseq
    %v136 = vshrl.u32 %v135, 7
    %v137 = vsub.s32 0, %v136
    %v138 = vrot.slane %v117, %v137
    %v139 = vlaneseq
    %v140 = vshrl.u32 %v139, 7
    %v141 = vsub.s32 0, %v140
    %v142 = vrot.slane %v118, %v141
    %v143 = vmul.f32 %v129, %v134
    %v144 = vmul.f32 %v129, %v138
    %v145 = vmul.f32 %v129, %v142
    %146 = vset.pattern.permute.xlu0 1
    %147 = vperm.xlu0 %146, %v114
    %v148 = vpop.permute.xlu0 %147
    %v150 = vlaneseq
    %v151 = vshrl.u32 %v150, 7
    %v152 = vsub.s32 1, %v151
    %v153 = vrot.slane %v116, %v152
    %v154 = vlaneseq
    %v155 = vshrl.u32 %v154, 7
    %v156 = vsub.s32 1, %v155
    %v157 = vrot.slane %v117, %v156
    %v158 = vlaneseq
    %v159 = vshrl.u32 %v158, 7
    %v160 = vsub.s32 1, %v159
    %v161 = vrot.slane %v118, %v160
    %v162 = vmul.f32 %v148, %v153
    %v163 = vmul.f32 %v148, %v157
    %v164 = vmul.f32 %v148, %v161
    %v165 = vadd.f32 %v143, %v162
    %v166 = vadd.f32 %v144, %v163
    %v167 = vadd.f32 %v145, %v164
    %v168 = vlaneseq
    %v169 = vshrl.u32 %v168, 7
    %v170 = vsub.s32 0, %v169
    %v171 = vrot.slane %v119, %v170
    %v172 = vlaneseq
    %v173 = vshrl.u32 %v172, 7
    %v174 = vsub.s32 0, %v173
    %v175 = vrot.slane %v120, %v174
    %v176 = vlaneseq
    %v177 = vshrl.u32 %v176, 7
    %v178 = vsub.s32 0, %v177
    %v179 = vrot.slane %v121, %v178
    %v180 = vadd.f32 %v165, %v171
    %v181 = vadd.f32 %v166, %v175
    %v182 = vadd.f32 %v167, %v179
    %v183 = vlaneseq
    %v184 = vshrl.u32 %v183, 7
    %v185 = vsub.s32 2, %v184
    %v186 = vrot.slane %v116, %v185
    %v187 = vlaneseq
    %v188 = vshrl.u32 %v187, 7
    %v189 = vsub.s32 2, %v188
    %v190 = vrot.slane %v117, %v189
    %v191 = vlaneseq
    %v192 = vshrl.u32 %v191, 7
    %v193 = vsub.s32 2, %v192
    %v194 = vrot.slane %v118, %v193
    %v195 = vmul.f32 %v186, 0.5
    %v196 = vmul.f32 %v190, 0.5
    %v197 = vmul.f32 %v194, 0.5
    %v198 = vadd.f32 %v180, %v195
    %v199 = vadd.f32 %v181, %v196
    %v200 = vadd.f32 %v182, %v197
    %v201 = vlaneseq
    %v202 = vshrl.u32 %v201, 7
    %v203 = vsub.s32 0, %v202
    %v204 = vrot.slane %v122, %v203
    %v205 = vadd.f32 %v198, %v204
    %v206 = vxor.u32 %v205, 2147483648
    %v207 = vmul.f32 %v206, 1.442695
    %v208 = vpow.pop %v207
    %v209 = vadd.f32 %v208, 1.0
    %v210 = vrcp.pop %v209
    %v211 = vmul.f32 1.0, %v210
    %v212 = vlaneseq
    %v213 = vshrl.u32 %v212, 7
    %v214 = vsub.s32 0, %v213
    %v215 = vrot.slane %v123, %v214
    %v216 = vadd.f32 %v199, %v215
    %v217 = vxor.u32 %v216, 2147483648
    %v218 = vmul.f32 %v217, 1.442695
    %v219 = vpow.pop %v218
    %v220 = vadd.f32 %v219, 1.0
    %v221 = vrcp.pop %v220
    %v222 = vmul.f32 1.0, %v221
    %v223 = vlaneseq
    %v224 = vshrl.u32 %v223, 7
    %v225 = vsub.s32 0, %v224
    %v226 = vrot.slane %v124, %v225
    %v227 = vmul.f32 %v211, %v226
    %v228 = vadd.f32 %v200, %v227
    %v229 = vtanh.pop %v228
    %v230 = vsub.f32 1.0, %v222
    %v231 = vmul.f32 %v230, %v229
    %v232 = vld [vmem:[#allocation9] sm:$0xff]
    %v233 = vld [vmem:[#allocation9 + $0x8] sm:$0xff]
    %v234 = vld [vmem:[#allocation9 + $0x10] sm:$0xff]
    %v235 = vld [vmem:[#allocation9 + $0x18] sm:$0xff]
    %v236 = vld [vmem:[#allocation9 + $0x20] sm:$0xff]
    %v237 = vld [vmem:[#allocation9 + $0x28] sm:$0xff]
    %v238 = vld [vmem:[#allocation9 + $0x30] sm:$0xff]
    %v239 = vld [vmem:[#allocation9 + $0x38] sm:$0xff]
    %v240 = vld [vmem:[#allocation9 + $0x40] sm:$0xff]
    %v241 = vld [vmem:[#allocation9 + $0x48] sm:$0xff]
    %v242 = vld [vmem:[#allocation9 + $0x50] sm:$0xff]
    %v243 = vld [vmem:[#allocation9 + $0x58] sm:$0xff]
    %v244 = vld [vmem:[#allocation9 + $0x60] sm:$0xff]
    %v245 = vld [vmem:[#allocation9 + $0x68] sm:$0xff]
    %v246 = vld [vmem:[#allocation9 + $0x70] sm:$0xff]
    %v247 = vld [vmem:[#allocation9 + $0x78] sm:$0xff]
    %v248 = vld [vmem:[#allocation9 + $0x80] sm:$0xff]
    %v249 = vld [vmem:[#allocation9 + $0x88] sm:$0xff]
    %v250 = vld [vmem:[#allocation9 + $0x90] sm:$0xff]
    %v251 = vld [vmem:[#allocation9 + $0x98] sm:$0xff]
    %v252 = vld [vmem:[#allocation9 + $0xa0] sm:$0xff]
    %v253 = vld [vmem:[#allocation9 + $0xa8] sm:$0xff]
    %v254 = vld [vmem:[#allocation9 + $0xb0] sm:$0xff]
    %v255 = vld [vmem:[#allocation9 + $0xb8] sm:$0xff]
    %v256 = vld [vmem:[#allocation9 + $0xc0] sm:$0xff]
    %v257 = vld [vmem:[#allocation9 + $0xc8] sm:$0xff]
    %v258 = vld [vmem:[#allocation9 + $0xd0] sm:$0xff]
    %v259 = vld [vmem:[#allocation9 + $0xd8] sm:$0xff]
    %v260 = vld [vmem:[#allocation9 + $0xe0] sm:$0xff]
    %v261 = vld [vmem:[#allocation9 + $0xe8] sm:$0xff]
    %v262 = vld [vmem:[#allocation9 + $0xf0] sm:$0xff]
    %v263 = vld [vmem:[#allocation9 + $0xf8] sm:$0xff]
    %v264 = vld [vmem:[#allocation9 + $0x100] sm:$0xff]
    %v265 = vld [vmem:[#allocation9 + $0x108] sm:$0xff]
    %v266 = vld [vmem:[#allocation9 + $0x110] sm:$0xff]
    %v267 = vld [vmem:[#allocation9 + $0x118] sm:$0xff]
    %v268 = vld [vmem:[#allocation9 + $0x120] sm:$0xff]
    %v269 = vld [vmem:[#allocation9 + $0x128] sm:$0xff]
    %v270 = vld [vmem:[#allocation9 + $0x130] sm:$0xff]
    %v271 = vld [vmem:[#allocation9 + $0x138] sm:$0xff]
    %v272 = vld [vmem:[#allocation9 + $0x140] sm:$0xff]
    %v273 = vld [vmem:[#allocation9 + $0x148] sm:$0xff]
    %v274 = vld [vmem:[#allocation9 + $0x150] sm:$0xff]
    %v275 = vld [vmem:[#allocation9 + $0x158] sm:$0xff]
    %v276 = vld [vmem:[#allocation9 + $0x160] sm:$0xff]
    %v277 = vld [vmem:[#allocation9 + $0x168] sm:$0xff]
    %v278 = vld [vmem:[#allocation9 + $0x170] sm:$0xff]
    %v279 = vld [vmem:[#allocation9 + $0x178] sm:$0xff]
    %v280 = vld [vmem:[#allocation9 + $0x180] sm:$0xff]
    %v281 = vld [vmem:[#allocation9 + $0x188] sm:$0xff]
    %v282 = vld [vmem:[#allocation9 + $0x190] sm:$0xff]
    %v283 = vld [vmem:[#allocation9 + $0x198] sm:$0xff]
    %v284 = vld [vmem:[#allocation9 + $0x1a0] sm:$0xff]
    %v285 = vld [vmem:[#allocation9 + $0x1a8] sm:$0xff]
    %v286 = vld [vmem:[#allocation9 + $0x1b0] sm:$0xff]
    %v287 = vld [vmem:[#allocation9 + $0x1b8] sm:$0xff]
    %v288 = vld [vmem:[#allocation9 + $0x1c0] sm:$0xff]
    %v289 = vld [vmem:[#allocation9 + $0x1c8] sm:$0xff]
    %v290 = vld [vmem:[#allocation9 + $0x1d0] sm:$0xff]
    %v291 = vld [vmem:[#allocation9 + $0x1d8] sm:$0xff]
    %v292 = vld [vmem:[#allocation9 + $0x1e0] sm:$0xff]
    %v293 = vld [vmem:[#allocation9 + $0x1e8] sm:$0xff]
    %v294 = vld [vmem:[#allocation9 + $0x1f0] sm:$0xff]
    %v295 = vld [vmem:[#allocation9 + $0x1f8] sm:$0xff]
    %v296 = vld [vmem:[#allocation9 + $0x200] sm:$0xff]
    %v297 = vld [vmem:[#allocation9 + $0x208] sm:$0xff]
    %v298 = vld [vmem:[#allocation9 + $0x210] sm:$0xff]
    %v299 = vld [vmem:[#allocation9 + $0x218] sm:$0xff]
    %v300 = vld [vmem:[#allocation9 + $0x220] sm:$0xff]
    %v301 = vld [vmem:[#allocation9 + $0x228] sm:$0xff]
    %v302 = vld [vmem:[#allocation9 + $0x230] sm:$0xff]
    %v303 = vld [vmem:[#allocation9 + $0x238] sm:$0xff]
    %v304 = vld [vmem:[#allocation9 + $0x240] sm:$0xff]
    %v305 = vld [vmem:[#allocation9 + $0x248] sm:$0xff]
    %v306 = vld [vmem:[#allocation9 + $0x250] sm:$0xff]
    %v307 = vld [vmem:[#allocation9 + $0x258] sm:$0xff]
    %v308 = vld [vmem:[#allocation9 + $0x260] sm:$0xff]
    %v309 = vld [vmem:[#allocation9 + $0x268] sm:$0xff]
    %v310 = vld [vmem:[#allocation9 + $0x270] sm:$0xff]
    %v311 = vld [vmem:[#allocation9 + $0x278] sm:$0xff]
    %v312 = vld [vmem:[#allocation9 + $0x280] sm:$0xff]
    %v313 = vld [vmem:[#allocation9 + $0x288] sm:$0xff]
    %v314 = vld [vmem:[#allocation9 + $0x290] sm:$0xff]
    %v315 = vld [vmem:[#allocation9 + $0x298] sm:$0xff]
    %v316 = vld [vmem:[#allocation9 + $0x2a0] sm:$0xff]
    %v317 = vld [vmem:[#allocation9 + $0x2a8] sm:$0xff]
    %v318 = vld [vmem:[#allocation9 + $0x2b0] sm:$0xff]
    %v319 = vld [vmem:[#allocation9 + $0x2b8] sm:$0xff]
    %v320 = vld [vmem:[#allocation9 + $0x2c0] sm:$0xff]
    %v321 = vld [vmem:[#allocation9 + $0x2c8] sm:$0xff]
    %v322 = vld [vmem:[#allocation9 + $0x2d0] sm:$0xff]
    %v323 = vld [vmem:[#allocation9 + $0x2d8] sm:$0xff]
    %v324 = vld [vmem:[#allocation9 + $0x2e0] sm:$0xff]
    %v325 = vld [vmem:[#allocation9 + $0x2e8] sm:$0xff]
    %v326 = vld [vmem:[#allocation9 + $0x2f0] sm:$0xff]
    %v327 = vld [vmem:[#allocation9 + $0x2f8] sm:$0xff]
    %328 = vmatprep.subr.mxu0 %v323
    %329 = vmatpush1.msra.mxu0 %v322
    %330 = vmatprep.subr.mxu0 %v317
    %331 = vmatpush1.msra.mxu0 %v316
    %332 = vmatprep.subr.mxu0 %v311
    %333 = vmatpush1.msra.mxu0 %v310
    %334 = vmatprep.subr.mxu0 %v305
    %335 = vmatpush1.msra.mxu0 %v304
    %336 = vmatprep.subr.mxu0 %v299
    %337 = vmatpush1.msra.mxu0 %v298
    %338 = vmatprep.subr.mxu0 %v293
    %339 = vmatpush1.msra.mxu0 %v292
    %340 = vmatprep.subr.mxu0 %v287
    %341 = vmatpush1.msra.mxu0 %v286
    %342 = vmatprep.subr.mxu0 %v281
    %343 = vmatpush1.msra.mxu0 %v280
    %344 = vmatprep.subr.mxu0 %v275
    %345 = vmatpush1.msra.mxu0 %v274
    %346 = vmatprep.subr.mxu0 %v269
    %347 = vmatpush1.msra.mxu0 %v268
    %348 = vmatprep.subr.mxu0 %v263
    %349 = vmatpush1.msra.mxu0 %v262
    %350 = vmatprep.subr.mxu0 %v257
    %351 = vmatpush1.msra.mxu0 %v256
    %352 = vmatprep.subr.mxu0 %v251
    %353 = vmatpush1.msra.mxu0 %v250
    %354 = vmatprep.subr.mxu0 %v245
    %355 = vmatpush1.msra.mxu0 %v244
    %356 = vmatprep.subr.mxu0 %v239
    %357 = vmatpush1.msra.mxu0 %v238
    %358 = vmatprep.subr.mxu0 %v233
    %359 = vmatpush1.msra.mxu0 %v232
    %360 = vmatprep.subr.mxu0 0.0
    %361 = vmatpush2.msra.mxu0 0.0
    %362 = vmatprep.subr.mxu0 0.0
    %363 = vmatpush2.msra.mxu0 0.0
    %364 = vmatprep.subr.mxu0 0.0
    %365 = vmatpush2.msra.mxu0 0.0
    %366 = vmatprep.subr.mxu0 0.0
    %367 = vmatpush2.msra.mxu0 0.0
    %368 = vmatprep.subr.mxu0 0.0
    %369 = vmatpush2.msra.mxu0 0.0
    %370 = vmatprep.subr.mxu0 0.0
    %371 = vmatpush2.msra.mxu0 0.0
    %372 = vmatprep.subr.mxu0 0.0
    %373 = vmatpush2.msra.mxu0 0.0
    %374 = vmatprep.subr.mxu0 0.0
    %375 = vmatpush2.msra.mxu0 0.0
    %376 = vmatprep.subr.mxu0 0.0
    %377 = vmatpush2.msra.mxu0 0.0
    %378 = vmatprep.subr.mxu0 0.0
    %379 = vmatpush2.msra.mxu0 0.0
    %380 = vmatprep.subr.mxu0 0.0
    %381 = vmatpush2.msra.mxu0 0.0
    %382 = vmatprep.subr.mxu0 0.0
    %383 = vmatpush2.msra.mxu0 0.0
    %384 = vmatprep.subr.mxu0 0.0
    %385 = vmatpush2.msra.mxu0 0.0
    %386 = vmatprep.subr.mxu0 0.0
    %387 = vmatpush2.msra.mxu0 0.0
    %388 = vmatprep.subr.mxu0 0.0
    %389 = vmatpush2.msra.mxu0 0.0
    %390 = vmatprep.subr.mxu0 0.0
    %391 = vmatpush2.msra.mxu0 0.0
    %392 = vmatprep.mubr.f32.mxu0 0.0
    %393 = vmatmul.mubr.f32.gmra.mxu0 %v231
    %v394 = vpop.f32.mrf.mxu0
    %v395 = vadd.f32 0.0, %v394
    %v396 = vpop.f32.mrf.mxu0
    %v397 = vadd.f32 0.0, %v396
    %398 = vdwg.mxu0
    %399 = vmatprep.subr.mxu0 %v325
    %400 = vmatpush1.msra.mxu0 %v324
    %401 = vmatprep.subr.mxu0 %v319
    %402 = vmatpush1.msra.mxu0 %v318
    %403 = vmatprep.subr.mxu0 %v313
    %404 = vmatpush1.msra.mxu0 %v312
    %405 = vmatprep.subr.mxu0 %v307
    %406 = vmatpush1.msra.mxu0 %v306
    %407 = vmatprep.subr.mxu0 %v301
    %408 = vmatpush1.msra.mxu0 %v300
    %409 = vmatprep.subr.mxu0 %v295
    %410 = vmatpush1.msra.mxu0 %v294
    %411 = vmatprep.subr.mxu0 %v289
    %412 = vmatpush1.msra.mxu0 %v288
    %413 = vmatprep.subr.mxu0 %v283
    %414 = vmatpush1.msra.mxu0 %v282
    %415 = vmatprep.subr.mxu0 %v277
    %416 = vmatpush1.msra.mxu0 %v276
    %417 = vmatprep.subr.mxu0 %v271
    %418 = vmatpush1.msra.mxu0 %v270
    %419 = vmatprep.subr.mxu0 %v265
    %420 = vmatpush1.msra.mxu0 %v264
    %421 = vmatprep.subr.mxu0 %v259
    %422 = vmatpush1.msra.mxu0 %v258
    %423 = vmatprep.subr.mxu0 %v253
    %424 = vmatpush1.msra.mxu0 %v252
    %425 = vmatprep.subr.mxu0 %v247
    %426 = vmatpush1.msra.mxu0 %v246
    %427 = vmatprep.subr.mxu0 %v241
    %428 = vmatpush1.msra.mxu0 %v240
    %429 = vmatprep.subr.mxu0 %v235
    %430 = vmatpush1.msra.mxu0 %v234
    %431 = vmatprep.subr.mxu0 0.0
    %432 = vmatpush2.msra.mxu0 0.0
    %433 = vmatprep.subr.mxu0 0.0
    %434 = vmatpush2.msra.mxu0 0.0
    %435 = vmatprep.subr.mxu0 0.0
    %436 = vmatpush2.msra.mxu0 0.0
    %437 = vmatprep.subr.mxu0 0.0
    %438 = vmatpush2.msra.mxu0 0.0
    %439 = vmatprep.subr.mxu0 0.0
    %440 = vmatpush2.msra.mxu0 0.0
    %441 = vmatprep.subr.mxu0 0.0
    %442 = vmatpush2.msra.mxu0 0.0
    %443 = vmatprep.subr.mxu0 0.0
    %444 = vmatpush2.msra.mxu0 0.0
    %445 = vmatprep.subr.mxu0 0.0
    %446 = vmatpush2.msra.mxu0 0.0
    %447 = vmatprep.subr.mxu0 0.0
    %448 = vmatpush2.msra.mxu0 0.0
    %449 = vmatprep.subr.mxu0 0.0
    %450 = vmatpush2.msra.mxu0 0.0
    %451 = vmatprep.subr.mxu0 0.0
    %452 = vmatpush2.msra.mxu0 0.0
    %453 = vmatprep.subr.mxu0 0.0
    %454 = vmatpush2.msra.mxu0 0.0
    %455 = vmatprep.subr.mxu0 0.0
    %456 = vmatpush2.msra.mxu0 0.0
    %457 = vmatprep.subr.mxu0 0.0
    %458 = vmatpush2.msra.mxu0 0.0
    %459 = vmatprep.subr.mxu0 0.0
    %460 = vmatpush2.msra.mxu0 0.0
    %461 = vmatprep.subr.mxu0 0.0
    %462 = vmatpush2.msra.mxu0 0.0
    %463 = vmatprep.mubr.f32.mxu0 0.0
    %464 = vmatmul.mubr.f32.gmra.mxu0 %v231
    %v465 = vpop.f32.mrf.mxu0
    %v466 = vadd.f32 0.0, %v465
    %v467 = vpop.f32.mrf.mxu0
    %v468 = vadd.f32 0.0, %v467
    %469 = vdwg.mxu0
    %470 = vmatprep.subr.mxu0 %v327
    %471 = vmatpush1.msra.mxu0 %v326
    %472 = vmatprep.subr.mxu0 %v321
    %473 = vmatpush1.msra.mxu0 %v320
    %474 = vmatprep.subr.mxu0 %v315
    %475 = vmatpush1.msra.mxu0 %v314
    %476 = vmatprep.subr.mxu0 %v309
    %477 = vmatpush1.msra.mxu0 %v308
    %478 = vmatprep.subr.mxu0 %v303
    %479 = vmatpush1.msra.mxu0 %v302
    %480 = vmatprep.subr.mxu0 %v297
    %481 = vmatpush1.msra.mxu0 %v296
    %482 = vmatprep.subr.mxu0 %v291
    %483 = vmatpush1.msra.mxu0 %v290
    %484 = vmatprep.subr.mxu0 %v285
    %485 = vmatpush1.msra.mxu0 %v284
    %486 = vmatprep.subr.mxu0 %v279
    %487 = vmatpush1.msra.mxu0 %v278
    %488 = vmatprep.subr.mxu0 %v273
    %489 = vmatpush1.msra.mxu0 %v272
    %490 = vmatprep.subr.mxu0 %v267
    %491 = vmatpush1.msra.mxu0 %v266
    %492 = vmatprep.subr.mxu0 %v261
    %493 = vmatpush1.msra.mxu0 %v260
    %494 = vmatprep.subr.mxu0 %v255
    %495 = vmatpush1.msra.mxu0 %v254
    %496 = vmatprep.subr.mxu0 %v249
    %497 = vmatpush1.msra.mxu0 %v248
    %498 = vmatprep.subr.mxu0 %v243
    %499 = vmatpush1.msra.mxu0 %v242
    %500 = vmatprep.subr.mxu0 %v237
    %501 = vmatpush1.msra.mxu0 %v236
    %502 = vmatprep.subr.mxu0 0.0
    %503 = vmatpush2.msra.mxu0 0.0
    %504 = vmatprep.subr.mxu0 0.0
    %505 = vmatpush2.msra.mxu0 0.0
    %506 = vmatprep.subr.mxu0 0.0
    %507 = vmatpush2.msra.mxu0 0.0
    %508 = vmatprep.subr.mxu0 0.0
    %509 = vmatpush2.msra.mxu0 0.0
    %510 = vmatprep.subr.mxu0 0.0
    %511 = vmatpush2.msra.mxu0 0.0
    %512 = vmatprep.subr.mxu0 0.0
    %513 = vmatpush2.msra.mxu0 0.0
    %514 = vmatprep.subr.mxu0 0.0
    %515 = vmatpush2.msra.mxu0 0.0
    %516 = vmatprep.subr.mxu0 0.0
    %517 = vmatpush2.msra.mxu0 0.0
    %518 = vmatprep.subr.mxu0 0.0
    %519 = vmatpush2.msra.mxu0 0.0
    %520 = vmatprep.subr.mxu0 0.0
    %521 = vmatpush2.msra.mxu0 0.0
    %522 = vmatprep.subr.mxu0 0.0
    %523 = vmatpush2.msra.mxu0 0.0
    %524 = vmatprep.subr.mxu0 0.0
    %525 = vmatpush2.msra.mxu0 0.0
    %526 = vmatprep.subr.mxu0 0.0
    %527 = vmatpush2.msra.mxu0 0.0
    %528 = vmatprep.subr.mxu0 0.0
    %529 = vmatpush2.msra.mxu0 0.0
    %530 = vmatprep.subr.mxu0 0.0
    %531 = vmatpush2.msra.mxu0 0.0
    %532 = vmatprep.subr.mxu0 0.0
    %533 = vmatpush2.msra.mxu0 0.0
    %534 = vmatprep.mubr.f32.mxu0 0.0
    %535 = vmatmul.mubr.f32.gmra.mxu0 %v231
    %v536 = vpop.f32.mrf.mxu0
    %v537 = vadd.f32 0.0, %v536
    %v538 = vpop.f32.mrf.mxu0
    %v539 = vadd.f32 0.0, %v538
    %540 = vdwg.mxu0
    %v541 = vlaneseq
    %v542 = vshrl.u32 %v541, 7
    %v543 = vsub.s32 1, %v542
    %v544 = vrot.slane %v119, %v543
    %v545 = vlaneseq
    %v546 = vshrl.u32 %v545, 7
    %v547 = vsub.s32 1, %v546
    %v548 = vrot.slane %v120, %v547
    %v549 = vlaneseq
    %v550 = vshrl.u32 %v549, 7
    %v551 = vsub.s32 1, %v550
    %v552 = vrot.slane %v121, %v551
    %v553 = vadd.f32 %v395, %v544
    %v554 = vadd.f32 %v397, %v548
    %v555 = vadd.f32 %v466, %v552
    %v556 = vadd.f32 %v468, %v204
    %v557 = vadd.f32 %v537, %v215
    %v558 = vadd.f32 %v539, %v226
    %v559 = vlaneseq
    %v560 = vshrl.u32 %v559, 7
    %v561 = vsub.s32 1, %v560
    %v562 = vrot.slane %v122, %v561
    %v563 = vadd.f32 %v553, %v562
    %v564 = vxor.u32 %v563, 2147483648
    %v565 = vmul.f32 %v564, 1.442695
    %v566 = vpow.pop %v565
    %v567 = vadd.f32 %v566, 1.0
    %v568 = vrcp.pop %v567
    %v569 = vmul.f32 1.0, %v568
    %v570 = vlaneseq
    %v571 = vshrl.u32 %v570, 7
    %v572 = vsub.s32 1, %v571
    %v573 = vrot.slane %v123, %v572
    %v574 = vadd.f32 %v554, %v573
    %v575 = vxor.u32 %v574, 2147483648
    %v576 = vmul.f32 %v575, 1.442695
    %v577 = vpow.pop %v576
    %v578 = vadd.f32 %v577, 1.0
    %v579 = vrcp.pop %v578
    %v580 = vmul.f32 1.0, %v579
    %v581 = vlaneseq
    %v582 = vshrl.u32 %v581, 7
    %v583 = vsub.s32 1, %v582
    %v584 = vrot.slane %v124, %v583
    %v585 = vmul.f32 %v569, %v584
    %v586 = vadd.f32 %v555, %v585
    %v587 = vtanh.pop %v586
    %v588 = vsub.f32 1.0, %v580
    %v589 = vmul.f32 %v588, %v587
    %v590 = vld [vmem:[#allocation10] sm:$0xff]
    %v591 = vld [vmem:[#allocation10 + $0x8] sm:$0xff]
    %v592 = vld [vmem:[#allocation10 + $0x10] sm:$0xff]
    %v593 = vld [vmem:[#allocation10 + $0x18] sm:$0xff]
    %v594 = vld [vmem:[#allocation10 + $0x20] sm:$0xff]
    %v595 = vld [vmem:[#allocation10 + $0x28] sm:$0xff]
    %v596 = vld [vmem:[#allocation10 + $0x30] sm:$0xff]
    %v597 = vld [vmem:[#allocation10 + $0x38] sm:$0xff]
    %v598 = vld [vmem:[#allocation10 + $0x40] sm:$0xff]
    %v599 = vld [vmem:[#allocation10 + $0x48] sm:$0xff]
    %v600 = vld [vmem:[#allocation10 + $0x50] sm:$0xff]
    %v601 = vld [vmem:[#allocation10 + $0x58] sm:$0xff]
    %v602 = vld [vmem:[#allocation10 + $0x60] sm:$0xff]
    %v603 = vld [vmem:[#allocation10 + $0x68] sm:$0xff]
    %v604 = vld [vmem:[#allocation10 + $0x70] sm:$0xff]
    %v605 = vld [vmem:[#allocation10 + $0x78] sm:$0xff]
    %v606 = vld [vmem:[#allocation10 + $0x80] sm:$0xff]
    %v607 = vld [vmem:[#allocation10 + $0x88] sm:$0xff]
    %v608 = vld [vmem:[#allocation10 + $0x90] sm:$0xff]
    %v609 = vld [vmem:[#allocation10 + $0x98] sm:$0xff]
    %v610 = vld [vmem:[#allocation10 + $0xa0] sm:$0xff]
    %v611 = vld [vmem:[#allocation10 + $0xa8] sm:$0xff]
    %v612 = vld [vmem:[#allocation10 + $0xb0] sm:$0xff]
    %v613 = vld [vmem:[#allocation10 + $0xb8] sm:$0xff]
    %v614 = vld [vmem:[#allocation10 + $0xc0] sm:$0xff]
    %v615 = vld [vmem:[#allocation10 + $0xc8] sm:$0xff]
    %v616 = vld [vmem:[#allocation10 + $0xd0] sm:$0xff]
    %v617 = vld [vmem:[#allocation10 + $0xd8] sm:$0xff]
    %v618 = vld [vmem:[#allocation10 + $0xe0] sm:$0xff]
    %v619 = vld [vmem:[#allocation10 + $0xe8] sm:$0xff]
    %v620 = vld [vmem:[#allocation10 + $0xf0] sm:$0xff]
    %v621 = vld [vmem:[#allocation10 + $0xf8] sm:$0xff]
    %v622 = vld [vmem:[#allocation10 + $0x100] sm:$0xff]
    %v623 = vld [vmem:[#allocation10 + $0x108] sm:$0xff]
    %v624 = vld [vmem:[#allocation10 + $0x110] sm:$0xff]
    %v625 = vld [vmem:[#allocation10 + $0x118] sm:$0xff]
    %v626 = vld [vmem:[#allocation10 + $0x120] sm:$0xff]
    %v627 = vld [vmem:[#allocation10 + $0x128] sm:$0xff]
    %v628 = vld [vmem:[#allocation10 + $0x130] sm:$0xff]
    %v629 = vld [vmem:[#allocation10 + $0x138] sm:$0xff]
    %v630 = vld [vmem:[#allocation10 + $0x140] sm:$0xff]
    %v631 = vld [vmem:[#allocation10 + $0x148] sm:$0xff]
    %v632 = vld [vmem:[#allocation10 + $0x150] sm:$0xff]
    %v633 = vld [vmem:[#allocation10 + $0x158] sm:$0xff]
    %v634 = vld [vmem:[#allocation10 + $0x160] sm:$0xff]
    %v635 = vld [vmem:[#allocation10 + $0x168] sm:$0xff]
    %v636 = vld [vmem:[#allocation10 + $0x170] sm:$0xff]
    %v637 = vld [vmem:[#allocation10 + $0x178] sm:$0xff]
    %v638 = vld [vmem:[#allocation10 + $0x180] sm:$0xff]
    %v639 = vld [vmem:[#allocation10 + $0x188] sm:$0xff]
    %v640 = vld [vmem:[#allocation10 + $0x190] sm:$0xff]
    %v641 = vld [vmem:[#allocation10 + $0x198] sm:$0xff]
    %v642 = vld [vmem:[#allocation10 + $0x1a0] sm:$0xff]
    %v643 = vld [vmem:[#allocation10 + $0x1a8] sm:$0xff]
    %v644 = vld [vmem:[#allocation10 + $0x1b0] sm:$0xff]
    %v645 = vld [vmem:[#allocation10 + $0x1b8] sm:$0xff]
    %v646 = vld [vmem:[#allocation10 + $0x1c0] sm:$0xff]
    %v647 = vld [vmem:[#allocation10 + $0x1c8] sm:$0xff]
    %v648 = vld [vmem:[#allocation10 + $0x1d0] sm:$0xff]
    %v649 = vld [vmem:[#allocation10 + $0x1d8] sm:$0xff]
    %v650 = vld [vmem:[#allocation10 + $0x1e0] sm:$0xff]
    %v651 = vld [vmem:[#allocation10 + $0x1e8] sm:$0xff]
    %v652 = vld [vmem:[#allocation10 + $0x1f0] sm:$0xff]
    %v653 = vld [vmem:[#allocation10 + $0x1f8] sm:$0xff]
    %654 = vmatprep.subr.mxu0 %v651
    %655 = vmatpush1.msra.mxu0 %v650
    %656 = vmatprep.subr.mxu0 %v647
    %657 = vmatpush1.msra.mxu0 %v646
    %658 = vmatprep.subr.mxu0 %v643
    %659 = vmatpush1.msra.mxu0 %v642
    %660 = vmatprep.subr.mxu0 %v639
    %661 = vmatpush1.msra.mxu0 %v638
    %662 = vmatprep.subr.mxu0 %v635
    %663 = vmatpush1.msra.mxu0 %v634
    %664 = vmatprep.subr.mxu0 %v631
    %665 = vmatpush1.msra.mxu0 %v630
    %666 = vmatprep.subr.mxu0 %v627
    %667 = vmatpush1.msra.mxu0 %v626
    %668 = vmatprep.subr.mxu0 %v623
    %669 = vmatpush1.msra.mxu0 %v622
    %670 = vmatprep.subr.mxu0 %v619
    %671 = vmatpush1.msra.mxu0 %v618
    %672 = vmatprep.subr.mxu0 %v615
    %673 = vmatpush1.msra.mxu0 %v614
    %674 = vmatprep.subr.mxu0 %v611
    %675 = vmatpush1.msra.mxu0 %v610
    %676 = vmatprep.subr.mxu0 %v607
    %677 = vmatpush1.msra.mxu0 %v606
    %678 = vmatprep.subr.mxu0 %v603
    %679 = vmatpush1.msra.mxu0 %v602
    %680 = vmatprep.subr.mxu0 %v599
    %681 = vmatpush1.msra.mxu0 %v598
    %682 = vmatprep.subr.mxu0 %v595
    %683 = vmatpush1.msra.mxu0 %v594
    %684 = vmatprep.subr.mxu0 %v591
    %685 = vmatpush1.msra.mxu0 %v590
    %686 = vmatprep.subr.mxu0 0.0
    %687 = vmatpush2.msra.mxu0 0.0
    %688 = vmatprep.subr.mxu0 0.0
    %689 = vmatpush2.msra.mxu0 0.0
    %690 = vmatprep.subr.mxu0 0.0
    %691 = vmatpush2.msra.mxu0 0.0
    %692 = vmatprep.subr.mxu0 0.0
    %693 = vmatpush2.msra.mxu0 0.0
    %694 = vmatprep.subr.mxu0 0.0
    %695 = vmatpush2.msra.mxu0 0.0
    %696 = vmatprep.subr.mxu0 0.0
    %697 = vmatpush2.msra.mxu0 0.0
    %698 = vmatprep.subr.mxu0 0.0
    %699 = vmatpush2.msra.mxu0 0.0
    %700 = vmatprep.subr.mxu0 0.0
    %701 = vmatpush2.msra.mxu0 0.0
    %702 = vmatprep.subr.mxu0 0.0
    %703 = vmatpush2.msra.mxu0 0.0
    %704 = vmatprep.subr.mxu0 0.0
    %705 = vmatpush2.msra.mxu0 0.0
    %706 = vmatprep.subr.mxu0 0.0
    %707 = vmatpush2.msra.mxu0 0.0
    %708 = vmatprep.subr.mxu0 0.0
    %709 = vmatpush2.msra.mxu0 0.0
    %710 = vmatprep.subr.mxu0 0.0
    %711 = vmatpush2.msra.mxu0 0.0
    %712 = vmatprep.subr.mxu0 0.0
    %713 = vmatpush2.msra.mxu0 0.0
    %714 = vmatprep.subr.mxu0 0.0
    %715 = vmatpush2.msra.mxu0 0.0
    %716 = vmatprep.subr.mxu0 0.0
    %717 = vmatpush2.msra.mxu0 0.0
    %718 = vmatprep.mubr.f32.mxu0 0.0
    %719 = vmatmul.mubr.f32.gmra.mxu0 %v589
    %v720 = vpop.f32.mrf.mxu0
    %v721 = vadd.f32 0.0, %v720
    %v722 = vpop.f32.mrf.mxu0
    %v723 = vadd.f32 0.0, %v722
    %724 = vdwg.mxu0
    %725 = vmatprep.subr.mxu0 %v653
    %726 = vmatpush1.msra.mxu0 %v652
    %727 = vmatprep.subr.mxu0 %v649
    %728 = vmatpush1.msra.mxu0 %v648
    %729 = vmatprep.subr.mxu0 %v645
    %730 = vmatpush1.msra.mxu0 %v644
    %731 = vmatprep.subr.mxu0 %v641
    %732 = vmatpush1.msra.mxu0 %v640
    %733 = vmatprep.subr.mxu0 %v637
    %734 = vmatpush1.msra.mxu0 %v636
    %735 = vmatprep.subr.mxu0 %v633
    %736 = vmatpush1.msra.mxu0 %v632
    %737 = vmatprep.subr.mxu0 %v629
    %738 = vmatpush1.msra.mxu0 %v628
    %739 = vmatprep.subr.mxu0 %v625
    %740 = vmatpush1.msra.mxu0 %v624
    %741 = vmatprep.subr.mxu0 %v621
    %742 = vmatpush1.msra.mxu0 %v620
    %743 = vmatprep.subr.mxu0 %v617
    %744 = vmatpush1.msra.mxu0 %v616
    %745 = vmatprep.subr.mxu0 %v613
    %746 = vmatpush1.msra.mxu0 %v612
    %747 = vmatprep.subr.mxu0 %v609
    %748 = vmatpush1.msra.mxu0 %v608
    %749 = vmatprep.subr.mxu0 %v605
    %750 = vmatpush1.msra.mxu0 %v604
    %751 = vmatprep.subr.mxu0 %v601
    %752 = vmatpush1.msra.mxu0 %v600
    %753 = vmatprep.subr.mxu0 %v597
    %754 = vmatpush1.msra.mxu0 %v596
    %755 = vmatprep.subr.mxu0 %v593
    %756 = vmatpush1.msra.mxu0 %v592
    %757 = vmatprep.subr.mxu0 0.0
    %758 = vmatpush2.msra.mxu0 0.0
    %759 = vmatprep.subr.mxu0 0.0
    %760 = vmatpush2.msra.mxu0 0.0
    %761 = vmatprep.subr.mxu0 0.0
    %762 = vmatpush2.msra.mxu0 0.0
    %763 = vmatprep.subr.mxu0 0.0
    %764 = vmatpush2.msra.mxu0 0.0
    %765 = vmatprep.subr.mxu0 0.0
    %766 = vmatpush2.msra.mxu0 0.0
    %767 = vmatprep.subr.mxu0 0.0
    %768 = vmatpush2.msra.mxu0 0.0
    %769 = vmatprep.subr.mxu0 0.0
    %770 = vmatpush2.msra.mxu0 0.0
    %771 = vmatprep.subr.mxu0 0.0
    %772 = vmatpush2.msra.mxu0 0.0
    %773 = vmatprep.subr.mxu0 0.0
    %774 = vmatpush2.msra.mxu0 0.0
    %775 = vmatprep.subr.mxu0 0.0
    %776 = vmatpush2.msra.mxu0 0.0
    %777 = vmatprep.subr.mxu0 0.0
    %778 = vmatpush2.msra.mxu0 0.0
    %779 = vmatprep.subr.mxu0 0.0
    %780 = vmatpush2.msra.mxu0 0.0
    %781 = vmatprep.subr.mxu0 0.0
    %782 = vmatpush2.msra.mxu0 0.0
    %783 = vmatprep.subr.mxu0 0.0
    %784 = vmatpush2.msra.mxu0 0.0
    %785 = vmatprep.subr.mxu0 0.0
    %786 = vmatpush2.msra.mxu0 0.0
    %787 = vmatprep.subr.mxu0 0.0
    %788 = vmatpush2.msra.mxu0 0.0
    %789 = vmatprep.mubr.f32.mxu0 0.0
    %790 = vmatmul.mubr.f32.gmra.mxu0 %v589
    %v791 = vpop.f32.mrf.mxu0
    %v792 = vadd.f32 0.0, %v791
    %v793 = vpop.f32.mrf.mxu0
    %v794 = vadd.f32 0.0, %v793
    %795 = vdwg.mxu0
    %v796 = vadd.f32 %v721, %v562
    %v797 = vadd.f32 %v723, %v573
    %v798 = vadd.f32 %v792, %v584
    %v800 = vlaneseq
    %v801 = vshrl.u32 %v800, 7
    %v802 = vsub.s32 0, %v801
    %v803 = vrot.slane %v125, %v802
    %v805 = vadd.f32 %v794, %v803
    %vm806 = vcmp.gt.f32.partialorder %v805, 0.0
    %v807 = vmin.f32 %v805, 0.0
    %v808 = vmul.f32 %v807, 1.442695
    %v809 = vpow.pop %v808
    %v810 = vsub.f32 %v809, 1.0
    %v811 = vsel %vm806, %v805, %v810
    %v812 = vadd.f32 %v811, 0.0
    %vm813 = vcmask 7168
    %v814 = vsel %vm813, %v812, 0.0
    %v815 = vrot.slane %v814, 4
    %v816 = vadd.f32 %v814, %v815
    %v817 = vrot.slane %v816, 2
    %v818 = vadd.f32 %v816, %v817
    %v819 = vrot.slane %v818, 1
    %v820 = vadd.f32 %v818, %v819
    %v821 = vmul.f32 %v820, 0.125
    %v822 = vsub.f32 %v811, %v821
    %v823 = vmul.f32 %v822, %v822
    %v824 = vadd.f32 %v823, 0.0
    %v825 = vsel %vm813, %v824, 0.0
    %v826 = vrot.slane %v825, 4
    %v827 = vadd.f32 %v825, %v826
    %v828 = vrot.slane %v827, 2
    %v829 = vadd.f32 %v827, %v828
    %v830 = vrot.slane %v829, 1
    %v831 = vadd.f32 %v829, %v830
    %v832 = vmul.f32 %v831, 0.14285715
    %v833 = vrsqrt.pop %v832
    %v834 = vmul.f32 %v822, %v833
    %v835 = vadd.f32 %v834, %v115
    %837 = vset.pattern.permute.xlu0 0
    %838 = vperm.xlu0 %837, %v835
    %v839 = vpop.permute.xlu0 %838
    %v841 = vlaneseq
    %v842 = vshrl.u32 %v841, 7
    %v843 = vsub.s32 3, %v842
    %v844 = vrot.slane %v116, %v843
    %v845 = vlaneseq
    %v846 = vshrl.u32 %v845, 7
    %v847 = vsub.s32 3, %v846
    %v848 = vrot.slane %v117, %v847
    %v849 = vlaneseq
    %v850 = vshrl.u32 %v849, 7
    %v851 = vsub.s32 3, %v850
    %v852 = vrot.slane %v118, %v851
    %v853 = vmul.f32 %v839, %v844
    %v854 = vmul.f32 %v839, %v848
    %v855 = vmul.f32 %v839, %v852
    %v856 = vlaneseq
    %v857 = vshrl.u32 %v856, 7
    %v858 = vsub.s32 2, %v857
    %v859 = vrot.slane %v119, %v858
    %v860 = vlaneseq
    %v861 = vshrl.u32 %v860, 7
    %v862 = vsub.s32 2, %v861
    %v863 = vrot.slane %v120, %v862
    %v864 = vlaneseq
    %v865 = vshrl.u32 %v864, 7
    %v866 = vsub.s32 2, %v865
    %v867 = vrot.slane %v121, %v866
    %v868 = vadd.f32 %v853, %v859
    %v869 = vadd.f32 %v854, %v863
    %v870 = vadd.f32 %v855, %v867
    %v871 = vlaneseq
    %v872 = vshrl.u32 %v871, 7
    %v873 = vsub.s32 2, %v872
    %v874 = vrot.slane %v122, %v873
    %v875 = vadd.f32 %v868, %v874
    %v876 = vxor.u32 %v875, 2147483648
    %v877 = vmul.f32 %v876, 1.442695
    %v878 = vpow.pop %v877
    %v879 = vadd.f32 %v878, 1.0
    %v880 = vrcp.pop %v879
    %v881 = vmul.f32 1.0, %v880
    %v882 = vlaneseq
    %v883 = vshrl.u32 %v882, 7
    %v884 = vsub.s32 2, %v883
    %v885 = vrot.slane %v123, %v884
    %v886 = vadd.f32 %v869, %v885
    %v887 = vxor.u32 %v886, 2147483648
    %v888 = vmul.f32 %v887, 1.442695
    %v889 = vpow.pop %v888
    %v890 = vadd.f32 %v889, 1.0
    %v891 = vrcp.pop %v890
    %v892 = vmul.f32 1.0, %v891
    %v893 = vlaneseq
    %v894 = vshrl.u32 %v893, 7
    %v895 = vsub.s32 2, %v894
    %v896 = vrot.slane %v124, %v895
    %v897 = vmul.f32 %v881, %v896
    %v898 = vadd.f32 %v870, %v897
    %v899 = vtanh.pop %v898
    %v900 = vsub.f32 1.0, %v892
    %v901 = vmul.f32 %v900, %v899
    %s902 = scalar_lea.vmem [#allocation9], 768
    %v903 = vld [vmem:[%s902] sm:$0xff]
    %v904 = vld [vmem:[%s902 + $0x8] sm:$0xff]
    %v905 = vld [vmem:[%s902 + $0x10] sm:$0xff]
    %v906 = vld [vmem:[%s902 + $0x18] sm:$0xff]
    %v907 = vld [vmem:[%s902 + $0x20] sm:$0xff]
    %v908 = vld [vmem:[%s902 + $0x28] sm:$0xff]
    %v909 = vld [vmem:[%s902 + $0x30] sm:$0xff]
    %v910 = vld [vmem:[%s902 + $0x38] sm:$0xff]
    %v911 = vld [vmem:[%s902 + $0x40] sm:$0xff]
    %v912 = vld [vmem:[%s902 + $0x48] sm:$0xff]
    %v913 = vld [vmem:[%s902 + $0x50] sm:$0xff]
    %v914 = vld [vmem:[%s902 + $0x58] sm:$0xff]
    %v915 = vld [vmem:[%s902 + $0x60] sm:$0xff]
    %v916 = vld [vmem:[%s902 + $0x68] sm:$0xff]
    %v917 = vld [vmem:[%s902 + $0x70] sm:$0xff]
    %v918 = vld [vmem:[%s902 + $0x78] sm:$0xff]
    %v919 = vld [vmem:[%s902 + $0x80] sm:$0xff]
    %v920 = vld [vmem:[%s902 + $0x88] sm:$0xff]
    %v921 = vld [vmem:[%s902 + $0x90] sm:$0xff]
    %v922 = vld [vmem:[%s902 + $0x98] sm:$0xff]
    %v923 = vld [vmem:[%s902 + $0xa0] sm:$0xff]
    %v924 = vld [vmem:[%s902 + $0xa8] sm:$0xff]
    %v925 = vld [vmem:[%s902 + $0xb0] sm:$0xff]
    %v926 = vld [vmem:[%s902 + $0xb8] sm:$0xff]
    %v927 = vld [vmem:[%s902 + $0xc0] sm:$0xff]
    %v928 = vld [vmem:[%s902 + $0xc8] sm:$0xff]
    %v929 = vld [vmem:[%s902 + $0xd0] sm:$0xff]
    %v930 = vld [vmem:[%s902 + $0xd8] sm:$0xff]
    %v931 = vld [vmem:[%s902 + $0xe0] sm:$0xff]
    %v932 = vld [vmem:[%s902 + $0xe8] sm:$0xff]
    %v933 = vld [vmem:[%s902 + $0xf0] sm:$0xff]
    %v934 = vld [vmem:[%s902 + $0xf8] sm:$0xff]
    %v935 = vld [vmem:[%s902 + $0x100] sm:$0xff]
    %v936 = vld [vmem:[%s902 + $0x108] sm:$0xff]
    %v937 = vld [vmem:[%s902 + $0x110] sm:$0xff]
    %v938 = vld [vmem:[%s902 + $0x118] sm:$0xff]
    %v939 = vld [vmem:[%s902 + $0x120] sm:$0xff]
    %v940 = vld [vmem:[%s902 + $0x128] sm:$0xff]
    %v941 = vld [vmem:[%s902 + $0x130] sm:$0xff]
    %v942 = vld [vmem:[%s902 + $0x138] sm:$0xff]
    %v943 = vld [vmem:[%s902 + $0x140] sm:$0xff]
    %v944 = vld [vmem:[%s902 + $0x148] sm:$0xff]
    %v945 = vld [vmem:[%s902 + $0x150] sm:$0xff]
    %v946 = vld [vmem:[%s902 + $0x158] sm:$0xff]
    %v947 = vld [vmem:[%s902 + $0x160] sm:$0xff]
    %v948 = vld [vmem:[%s902 + $0x168] sm:$0xff]
    %v949 = vld [vmem:[%s902 + $0x170] sm:$0xff]
    %v950 = vld [vmem:[%s902 + $0x178] sm:$0xff]
    %v951 = vld [vmem:[%s902 + $0x180] sm:$0xff]
    %v952 = vld [vmem:[%s902 + $0x188] sm:$0xff]
    %v953 = vld [vmem:[%s902 + $0x190] sm:$0xff]
    %v954 = vld [vmem:[%s902 + $0x198] sm:$0xff]
    %v955 = vld [vmem:[%s902 + $0x1a0] sm:$0xff]
    %v956 = vld [vmem:[%s902 + $0x1a8] sm:$0xff]
    %v957 = vld [vmem:[%s902 + $0x1b0] sm:$0xff]
    %v958 = vld [vmem:[%s902 + $0x1b8] sm:$0xff]
    %v959 = vld [vmem:[%s902 + $0x1c0] sm:$0xff]
    %v960 = vld [vmem:[%s902 + $0x1c8] sm:$0xff]
    %v961 = vld [vmem:[%s902 + $0x1d0] sm:$0xff]
    %v962 = vld [vmem:[%s902 + $0x1d8] sm:$0xff]
    %v963 = vld [vmem:[%s902 + $0x1e0] sm:$0xff]
    %v964 = vld [vmem:[%s902 + $0x1e8] sm:$0xff]
    %v965 = vld [vmem:[%s902 + $0x1f0] sm:$0xff]
    %v966 = vld [vmem:[%s902 + $0x1f8] sm:$0xff]
    %v967 = vld [vmem:[%s902 + $0x200] sm:$0xff]
    %v968 = vld [vmem:[%s902 + $0x208] sm:$0xff]
    %v969 = vld [vmem:[%s902 + $0x210] sm:$0xff]
    %v970 = vld [vmem:[%s902 + $0x218] sm:$0xff]
    %v971 = vld [vmem:[%s902 + $0x220] sm:$0xff]
    %v972 = vld [vmem:[%s902 + $0x228] sm:$0xff]
    %v973 = vld [vmem:[%s902 + $0x230] sm:$0xff]
    %v974 = vld [vmem:[%s902 + $0x238] sm:$0xff]
    %v975 = vld [vmem:[%s902 + $0x240] sm:$0xff]
    %v976 = vld [vmem:[%s902 + $0x248] sm:$0xff]
    %v977 = vld [vmem:[%s902 + $0x250] sm:$0xff]
    %v978 = vld [vmem:[%s902 + $0x258] sm:$0xff]
    %v979 = vld [vmem:[%s902 + $0x260] sm:$0xff]
    %v980 = vld [vmem:[%s902 + $0x268] sm:$0xff]
    %v981 = vld [vmem:[%s902 + $0x270] sm:$0xff]
    %v982 = vld [vmem:[%s902 + $0x278] sm:$0xff]
    %v983 = vld [vmem:[%s902 + $0x280] sm:$0xff]
    %v984 = vld [vmem:[%s902 + $0x288] sm:$0xff]
    %v985 = vld [vmem:[%s902 + $0x290] sm:$0xff]
    %v986 = vld [vmem:[%s902 + $0x298] sm:$0xff]
    %v987 = vld [vmem:[%s902 + $0x2a0] sm:$0xff]
    %v988 = vld [vmem:[%s902 + $0x2a8] sm:$0xff]
    %v989 = vld [vmem:[%s902 + $0x2b0] sm:$0xff]
    %v990 = vld [vmem:[%s902 + $0x2b8] sm:$0xff]
    %v991 = vld [vmem:[%s902 + $0x2c0] sm:$0xff]
    %v992 = vld [vmem:[%s902 + $0x2c8] sm:$0xff]
    %v993 = vld [vmem:[%s902 + $0x2d0] sm:$0xff]
    %v994 = vld [vmem:[%s902 + $0x2d8] sm:$0xff]
    %v995 = vld [vmem:[%s902 + $0x2e0] sm:$0xff]
    %v996 = vld [vmem:[%s902 + $0x2e8] sm:$0xff]
    %v997 = vld [vmem:[%s902 + $0x2f0] sm:$0xff]
    %v998 = vld [vmem:[%s902 + $0x2f8] sm:$0xff]
    %999 = vmatprep.subr.mxu0 %v994
    %1000 = vmatpush1.msra.mxu0 %v993
    %1001 = vmatprep.subr.mxu0 %v988
    %1002 = vmatpush1.msra.mxu0 %v987
    %1003 = vmatprep.subr.mxu0 %v982
    %1004 = vmatpush1.msra.mxu0 %v981
    %1005 = vmatprep.subr.mxu0 %v976
    %1006 = vmatpush1.msra.mxu0 %v975
    %1007 = vmatprep.subr.mxu0 %v970
    %1008 = vmatpush1.msra.mxu0 %v969
    %1009 = vmatprep.subr.mxu0 %v964
    %1010 = vmatpush1.msra.mxu0 %v963
    %1011 = vmatprep.subr.mxu0 %v958
    %1012 = vmatpush1.msra.mxu0 %v957
    %1013 = vmatprep.subr.mxu0 %v952
    %1014 = vmatpush1.msra.mxu0 %v951
    %1015 = vmatprep.subr.mxu0 %v946
    %1016 = vmatpush1.msra.mxu0 %v945
    %1017 = vmatprep.subr.mxu0 %v940
    %1018 = vmatpush1.msra.mxu0 %v939
    %1019 = vmatprep.subr.mxu0 %v934
    %1020 = vmatpush1.msra.mxu0 %v933
    %1021 = vmatprep.subr.mxu0 %v928
    %1022 = vmatpush1.msra.mxu0 %v927
    %1023 = vmatprep.subr.mxu0 %v922
    %1024 = vmatpush1.msra.mxu0 %v921
    %1025 = vmatprep.subr.mxu0 %v916
    %1026 = vmatpush1.msra.mxu0 %v915
    %1027 = vmatprep.subr.mxu0 %v910
    %1028 = vmatpush1.msra.mxu0 %v909
    %1029 = vmatprep.subr.mxu0 %v904
    %1030 = vmatpush1.msra.mxu0 %v903
    %1031 = vmatprep.subr.mxu0 0.0
    %1032 = vmatpush2.msra.mxu0 0.0
    %1033 = vmatprep.subr.mxu0 0.0
    %1034 = vmatpush2.msra.mxu0 0.0
    %1035 = vmatprep.subr.mxu0 0.0
    %1036 = vmatpush2.msra.mxu0 0.0
    %1037 = vmatprep.subr.mxu0 0.0
    %1038 = vmatpush2.msra.mxu0 0.0
    %1039 = vmatprep.subr.mxu0 0.0
    %1040 = vmatpush2.msra.mxu0 0.0
    %1041 = vmatprep.subr.mxu0 0.0
    %1042 = vmatpush2.msra.mxu0 0.0
    %1043 = vmatprep.subr.mxu0 0.0
    %1044 = vmatpush2.msra.mxu0 0.0
    %1045 = vmatprep.subr.mxu0 0.0
    %1046 = vmatpush2.msra.mxu0 0.0
    %1047 = vmatprep.subr.mxu0 0.0
    %1048 = vmatpush2.msra.mxu0 0.0
    %1049 = vmatprep.subr.mxu0 0.0
    %1050 = vmatpush2.msra.mxu0 0.0
    %1051 = vmatprep.subr.mxu0 0.0
    %1052 = vmatpush2.msra.mxu0 0.0
    %1053 = vmatprep.subr.mxu0 0.0
    %1054 = vmatpush2.msra.mxu0 0.0
    %1055 = vmatprep.subr.mxu0 0.0
    %1056 = vmatpush2.msra.mxu0 0.0
    %1057 = vmatprep.subr.mxu0 0.0
    %1058 = vmatpush2.msra.mxu0 0.0
    %1059 = vmatprep.subr.mxu0 0.0
    %1060 = vmatpush2.msra.mxu0 0.0
    %1061 = vmatprep.subr.mxu0 0.0
    %1062 = vmatpush2.msra.mxu0 0.0
    %1063 = vmatprep.mubr.f32.mxu0 0.0
    %1064 = vmatmul.mubr.f32.gmra.mxu0 %v901
    %v1065 = vpop.f32.mrf.mxu0
    %v1066 = vadd.f32 0.0, %v1065
    %v1067 = vpop.f32.mrf.mxu0
    %v1068 = vadd.f32 0.0, %v1067
    %1069 = vdwg.mxu0
    %1070 = vmatprep.subr.mxu0 %v996
    %1071 = vmatpush1.msra.mxu0 %v995
    %1072 = vmatprep.subr.mxu0 %v990
    %1073 = vmatpush1.msra.mxu0 %v989
    %1074 = vmatprep.subr.mxu0 %v984
    %1075 = vmatpush1.msra.mxu0 %v983
    %1076 = vmatprep.subr.mxu0 %v978
    %1077 = vmatpush1.msra.mxu0 %v977
    %1078 = vmatprep.subr.mxu0 %v972
    %1079 = vmatpush1.msra.mxu0 %v971
    %1080 = vmatprep.subr.mxu0 %v966
    %1081 = vmatpush1.msra.mxu0 %v965
    %1082 = vmatprep.subr.mxu0 %v960
    %1083 = vmatpush1.msra.mxu0 %v959
    %1084 = vmatprep.subr.mxu0 %v954
    %1085 = vmatpush1.msra.mxu0 %v953
    %1086 = vmatprep.subr.mxu0 %v948
    %1087 = vmatpush1.msra.mxu0 %v947
    %1088 = vmatprep.subr.mxu0 %v942
    %1089 = vmatpush1.msra.mxu0 %v941
    %1090 = vmatprep.subr.mxu0 %v936
    %1091 = vmatpush1.msra.mxu0 %v935
    %1092 = vmatprep.subr.mxu0 %v930
    %1093 = vmatpush1.msra.mxu0 %v929
    %1094 = vmatprep.subr.mxu0 %v924
    %1095 = vmatpush1.msra.mxu0 %v923
    %1096 = vmatprep.subr.mxu0 %v918
    %1097 = vmatpush1.msra.mxu0 %v917
    %1098 = vmatprep.subr.mxu0 %v912
    %1099 = vmatpush1.msra.mxu0 %v911
    %1100 = vmatprep.subr.mxu0 %v906
    %1101 = vmatpush1.msra.mxu0 %v905
    %1102 = vmatprep.subr.mxu0 0.0
    %1103 = vmatpush2.msra.mxu0 0.0
    %1104 = vmatprep.subr.mxu0 0.0
    %1105 = vmatpush2.msra.mxu0 0.0
    %1106 = vmatprep.subr.mxu0 0.0
    %1107 = vmatpush2.msra.mxu0 0.0
    %1108 = vmatprep.subr.mxu0 0.0
    %1109 = vmatpush2.msra.mxu0 0.0
    %1110 = vmatprep.subr.mxu0 0.0
    %1111 = vmatpush2.msra.mxu0 0.0
    %1112 = vmatprep.subr.mxu0 0.0
    %1113 = vmatpush2.msra.mxu0 0.0
    %1114 = vmatprep.subr.mxu0 0.0
    %1115 = vmatpush2.msra.mxu0 0.0
    %1116 = vmatprep.subr.mxu0 0.0
    %1117 = vmatpush2.msra.mxu0 0.0
    %1118 = vmatprep.subr.mxu0 0.0
    %1119 = vmatpush2.msra.mxu0 0.0
    %1120 = vmatprep.subr.mxu0 0.0
    %1121 = vmatpush2.msra.mxu0 0.0
    %1122 = vmatprep.subr.mxu0 0.0
    %1123 = vmatpush2.msra.mxu0 0.0
    %1124 = vmatprep.subr.mxu0 0.0
    %1125 = vmatpush2.msra.mxu0 0.0
    %1126 = vmatprep.subr.mxu0 0.0
    %1127 = vmatpush2.msra.mxu0 0.0
    %1128 = vmatprep.subr.mxu0 0.0
    %1129 = vmatpush2.msra.mxu0 0.0
    %1130 = vmatprep.subr.mxu0 0.0
    %1131 = vmatpush2.msra.mxu0 0.0
    %1132 = vmatprep.subr.mxu0 0.0
    %1133 = vmatpush2.msra.mxu0 0.0
    %1134 = vmatprep.mubr.f32.mxu0 0.0
    %1135 = vmatmul.mubr.f32.gmra.mxu0 %v901
    %v1136 = vpop.f32.mrf.mxu0
    %v1137 = vadd.f32 0.0, %v1136
    %v1138 = vpop.f32.mrf.mxu0
    %v1139 = vadd.f32 0.0, %v1138
    %1140 = vdwg.mxu0
    %1141 = vmatprep.subr.mxu0 %v998
    %1142 = vmatpush1.msra.mxu0 %v997
    %1143 = vmatprep.subr.mxu0 %v992
    %1144 = vmatpush1.msra.mxu0 %v991
    %1145 = vmatprep.subr.mxu0 %v986
    %1146 = vmatpush1.msra.mxu0 %v985
    %1147 = vmatprep.subr.mxu0 %v980
    %1148 = vmatpush1.msra.mxu0 %v979
    %1149 = vmatprep.subr.mxu0 %v974
    %1150 = vmatpush1.msra.mxu0 %v973
    %1151 = vmatprep.subr.mxu0 %v968
    %1152 = vmatpush1.msra.mxu0 %v967
    %1153 = vmatprep.subr.mxu0 %v962
    %1154 = vmatpush1.msra.mxu0 %v961
    %1155 = vmatprep.subr.mxu0 %v956
    %1156 = vmatpush1.msra.mxu0 %v955
    %1157 = vmatprep.subr.mxu0 %v950
    %1158 = vmatpush1.msra.mxu0 %v949
    %1159 = vmatprep.subr.mxu0 %v944
    %1160 = vmatpush1.msra.mxu0 %v943
    %1161 = vmatprep.subr.mxu0 %v938
    %1162 = vmatpush1.msra.mxu0 %v937
    %1163 = vmatprep.subr.mxu0 %v932
    %1164 = vmatpush1.msra.mxu0 %v931
    %1165 = vmatprep.subr.mxu0 %v926
    %1166 = vmatpush1.msra.mxu0 %v925
    %1167 = vmatprep.subr.mxu0 %v920
    %1168 = vmatpush1.msra.mxu0 %v919
    %1169 = vmatprep.subr.mxu0 %v914
    %1170 = vmatpush1.msra.mxu0 %v913
    %1171 = vmatprep.subr.mxu0 %v908
    %1172 = vmatpush1.msra.mxu0 %v907
    %1173 = vmatprep.subr.mxu0 0.0
    %1174 = vmatpush2.msra.mxu0 0.0
    %1175 = vmatprep.subr.mxu0 0.0
    %1176 = vmatpush2.msra.mxu0 0.0
    %1177 = vmatprep.subr.mxu0 0.0
    %1178 = vmatpush2.msra.mxu0 0.0
    %1179 = vmatprep.subr.mxu0 0.0
    %1180 = vmatpush2.msra.mxu0 0.0
    %1181 = vmatprep.subr.mxu0 0.0
    %1182 = vmatpush2.msra.mxu0 0.0
    %1183 = vmatprep.subr.mxu0 0.0
    %1184 = vmatpush2.msra.mxu0 0.0
    %1185 = vmatprep.subr.mxu0 0.0
    %1186 = vmatpush2.msra.mxu0 0.0
    %1187 = vmatprep.subr.mxu0 0.0
    %1188 = vmatpush2.msra.mxu0 0.0
    %1189 = vmatprep.subr.mxu0 0.0
    %1190 = vmatpush2.msra.mxu0 0.0
    %1191 = vmatprep.subr.mxu0 0.0
    %1192 = vmatpush2.msra.mxu0 0.0
    %1193 = vmatprep.subr.mxu0 0.0
    %1194 = vmatpush2.msra.mxu0 0.0
    %1195 = vmatprep.subr.mxu0 0.0
    %1196 = vmatpush2.msra.mxu0 0.0
    %1197 = vmatprep.subr.mxu0 0.0
    %1198 = vmatpush2.msra.mxu0 0.0
    %1199 = vmatprep.subr.mxu0 0.0
    %1200 = vmatpush2.msra.mxu0 0.0
    %1201 = vmatprep.subr.mxu0 0.0
    %1202 = vmatpush2.msra.mxu0 0.0
    %1203 = vmatprep.subr.mxu0 0.0
    %1204 = vmatpush2.msra.mxu0 0.0
    %1205 = vmatprep.mubr.f32.mxu0 0.0
    %1206 = vmatmul.mubr.f32.gmra.mxu0 %v901
    %v1207 = vpop.f32.mrf.mxu0
    %v1208 = vadd.f32 0.0, %v1207
    %v1209 = vpop.f32.mrf.mxu0
    %v1210 = vadd.f32 0.0, %v1209
    %1211 = vdwg.mxu0
    %v1212 = vlaneseq
    %v1213 = vshrl.u32 %v1212, 7
    %v1214 = vsub.s32 3, %v1213
    %v1215 = vrot.slane %v119, %v1214
    %v1216 = vlaneseq
    %v1217 = vshrl.u32 %v1216, 7
    %v1218 = vsub.s32 3, %v1217
    %v1219 = vrot.slane %v120, %v1218
    %v1220 = vlaneseq
    %v1221 = vshrl.u32 %v1220, 7
    %v1222 = vsub.s32 3, %v1221
    %v1223 = vrot.slane %v121, %v1222
    %v1224 = vadd.f32 %v1066, %v1215
    %v1225 = vadd.f32 %v1068, %v1219
    %v1226 = vadd.f32 %v1137, %v1223
    %v1227 = vadd.f32 %v1139, %v874
    %v1228 = vadd.f32 %v1208, %v885
    %v1229 = vadd.f32 %v1210, %v896
    %v1230 = vlaneseq
    %v1231 = vshrl.u32 %v1230, 7
    %v1232 = vsub.s32 3, %v1231
    %v1233 = vrot.slane %v122, %v1232
    %v1234 = vadd.f32 %v1224, %v1233
    %v1235 = vxor.u32 %v1234, 2147483648
    %v1236 = vmul.f32 %v1235, 1.442695
    %v1237 = vpow.pop %v1236
    %v1238 = vadd.f32 %v1237, 1.0
    %v1239 = vrcp.pop %v1238
    %v1240 = vmul.f32 1.0, %v1239
    %v1241 = vlaneseq
    %v1242 = vshrl.u32 %v1241, 7
    %v1243 = vsub.s32 3, %v1242
    %v1244 = vrot.slane %v123, %v1243
    %v1245 = vadd.f32 %v1225, %v1244
    %v1246 = vxor.u32 %v1245, 2147483648
    %v1247 = vmul.f32 %v1246, 1.442695
    %v1248 = vpow.pop %v1247
    %v1249 = vadd.f32 %v1248, 1.0
    %v1250 = vrcp.pop %v1249
    %v1251 = vmul.f32 1.0, %v1250
    %v1252 = vlaneseq
    %v1253 = vshrl.u32 %v1252, 7
    %v1254 = vsub.s32 3, %v1253
    %v1255 = vrot.slane %v124, %v1254
    %v1256 = vmul.f32 %v1240, %v1255
    %v1257 = vadd.f32 %v1226, %v1256
    %v1258 = vtanh.pop %v1257
    %v1259 = vsub.f32 1.0, %v1251
    %v1260 = vmul.f32 %v1259, %v1258
    %s1261 = scalar_lea.vmem [#allocation10], 512
    %v1262 = vld [vmem:[%s1261] sm:$0xff]
    %v1263 = vld [vmem:[%s1261 + $0x8] sm:$0xff]
    %v1264 = vld [vmem:[%s1261 + $0x10] sm:$0xff]
    %v1265 = vld [vmem:[%s1261 + $0x18] sm:$0xff]
    %v1266 = vld [vmem:[%s1261 + $0x20] sm:$0xff]
    %v1267 = vld [vmem:[%s1261 + $0x28] sm:$0xff]
    %v1268 = vld [vmem:[%s1261 + $0x30] sm:$0xff]
    %v1269 = vld [vmem:[%s1261 + $0x38] sm:$0xff]
    %v1270 = vld [vmem:[%s1261 + $0x40] sm:$0xff]
    %v1271 = vld [vmem:[%s1261 + $0x48] sm:$0xff]
    %v1272 = vld [vmem:[%s1261 + $0x50] sm:$0xff]
    %v1273 = vld [vmem:[%s1261 + $0x58] sm:$0xff]
    %v1274 = vld [vmem:[%s1261 + $0x60] sm:$0xff]
    %v1275 = vld [vmem:[%s1261 + $0x68] sm:$0xff]
    %v1276 = vld [vmem:[%s1261 + $0x70] sm:$0xff]
    %v1277 = vld [vmem:[%s1261 + $0x78] sm:$0xff]
    %v1278 = vld [vmem:[%s1261 + $0x80] sm:$0xff]
    %v1279 = vld [vmem:[%s1261 + $0x88] sm:$0xff]
    %v1280 = vld [vmem:[%s1261 + $0x90] sm:$0xff]
    %v1281 = vld [vmem:[%s1261 + $0x98] sm:$0xff]
    %v1282 = vld [vmem:[%s1261 + $0xa0] sm:$0xff]
    %v1283 = vld [vmem:[%s1261 + $0xa8] sm:$0xff]
    %v1284 = vld [vmem:[%s1261 + $0xb0] sm:$0xff]
    %v1285 = vld [vmem:[%s1261 + $0xb8] sm:$0xff]
    %v1286 = vld [vmem:[%s1261 + $0xc0] sm:$0xff]
    %v1287 = vld [vmem:[%s1261 + $0xc8] sm:$0xff]
    %v1288 = vld [vmem:[%s1261 + $0xd0] sm:$0xff]
    %v1289 = vld [vmem:[%s1261 + $0xd8] sm:$0xff]
    %v1290 = vld [vmem:[%s1261 + $0xe0] sm:$0xff]
    %v1291 = vld [vmem:[%s1261 + $0xe8] sm:$0xff]
    %v1292 = vld [vmem:[%s1261 + $0xf0] sm:$0xff]
    %v1293 = vld [vmem:[%s1261 + $0xf8] sm:$0xff]
    %v1294 = vld [vmem:[%s1261 + $0x100] sm:$0xff]
    %v1295 = vld [vmem:[%s1261 + $0x108] sm:$0xff]
    %v1296 = vld [vmem:[%s1261 + $0x110] sm:$0xff]
    %v1297 = vld [vmem:[%s1261 + $0x118] sm:$0xff]
    %v1298 = vld [vmem:[%s1261 + $0x120] sm:$0xff]
    %v1299 = vld [vmem:[%s1261 + $0x128] sm:$0xff]
    %v1300 = vld [vmem:[%s1261 + $0x130] sm:$0xff]
    %v1301 = vld [vmem:[%s1261 + $0x138] sm:$0xff]
    %v1302 = vld [vmem:[%s1261 + $0x140] sm:$0xff]
    %v1303 = vld [vmem:[%s1261 + $0x148] sm:$0xff]
    %v1304 = vld [vmem:[%s1261 + $0x150] sm:$0xff]
    %v1305 = vld [vmem:[%s1261 + $0x158] sm:$0xff]
    %v1306 = vld [vmem:[%s1261 + $0x160] sm:$0xff]
    %v1307 = vld [vmem:[%s1261 + $0x168] sm:$0xff]
    %v1308 = vld [vmem:[%s1261 + $0x170] sm:$0xff]
    %v1309 = vld [vmem:[%s1261 + $0x178] sm:$0xff]
    %v1310 = vld [vmem:[%s1261 + $0x180] sm:$0xff]
    %v1311 = vld [vmem:[%s1261 + $0x188] sm:$0xff]
    %v1312 = vld [vmem:[%s1261 + $0x190] sm:$0xff]
    %v1313 = vld [vmem:[%s1261 + $0x198] sm:$0xff]
    %v1314 = vld [vmem:[%s1261 + $0x1a0] sm:$0xff]
    %v1315 = vld [vmem:[%s1261 + $0x1a8] sm:$0xff]
    %v1316 = vld [vmem:[%s1261 + $0x1b0] sm:$0xff]
    %v1317 = vld [vmem:[%s1261 + $0x1b8] sm:$0xff]
    %v1318 = vld [vmem:[%s1261 + $0x1c0] sm:$0xff]
    %v1319 = vld [vmem:[%s1261 + $0x1c8] sm:$0xff]
    %v1320 = vld [vmem:[%s1261 + $0x1d0] sm:$0xff]
    %v1321 = vld [vmem:[%s1261 + $0x1d8] sm:$0xff]
    %v1322 = vld [vmem:[%s1261 + $0x1e0] sm:$0xff]
    %v1323 = vld [vmem:[%s1261 + $0x1e8] sm:$0xff]
    %v1324 = vld [vmem:[%s1261 + $0x1f0] sm:$0xff]
    %v1325 = vld [vmem:[%s1261 + $0x1f8] sm:$0xff]
    %1326 = vmatprep.subr.mxu0 %v1323
    %1327 = vmatpush1.msra.mxu0 %v1322
    %1328 = vmatprep.subr.mxu0 %v1319
    %1329 = vmatpush1.msra.mxu0 %v1318
    %1330 = vmatprep.subr.mxu0 %v1315
    %1331 = vmatpush1.msra.mxu0 %v1314
    %1332 = vmatprep.subr.mxu0 %v1311
    %1333 = vmatpush1.msra.mxu0 %v1310
    %1334 = vmatprep.subr.mxu0 %v1307
    %1335 = vmatpush1.msra.mxu0 %v1306
    %1336 = vmatprep.subr.mxu0 %v1303
    %1337 = vmatpush1.msra.mxu0 %v1302
    %1338 = vmatprep.subr.mxu0 %v1299
    %1339 = vmatpush1.msra.mxu0 %v1298
    %1340 = vmatprep.subr.mxu0 %v1295
    %1341 = vmatpush1.msra.mxu0 %v1294
    %1342 = vmatprep.subr.mxu0 %v1291
    %1343 = vmatpush1.msra.mxu0 %v1290
    %1344 = vmatprep.subr.mxu0 %v1287
    %1345 = vmatpush1.msra.mxu0 %v1286
    %1346 = vmatprep.subr.mxu0 %v1283
    %1347 = vmatpush1.msra.mxu0 %v1282
    %1348 = vmatprep.subr.mxu0 %v1279
    %1349 = vmatpush1.msra.mxu0 %v1278
    %1350 = vmatprep.subr.mxu0 %v1275
    %1351 = vmatpush1.msra.mxu0 %v1274
    %1352 = vmatprep.subr.mxu0 %v1271
    %1353 = vmatpush1.msra.mxu0 %v1270
    %1354 = vmatprep.subr.mxu0 %v1267
    %1355 = vmatpush1.msra.mxu0 %v1266
    %1356 = vmatprep.subr.mxu0 %v1263
    %1357 = vmatpush1.msra.mxu0 %v1262
    %1358 = vmatprep.subr.mxu0 0.0
    %1359 = vmatpush2.msra.mxu0 0.0
    %1360 = vmatprep.subr.mxu0 0.0
    %1361 = vmatpush2.msra.mxu0 0.0
    %1362 = vmatprep.subr.mxu0 0.0
    %1363 = vmatpush2.msra.mxu0 0.0
    %1364 = vmatprep.subr.mxu0 0.0
    %1365 = vmatpush2.msra.mxu0 0.0
    %1366 = vmatprep.subr.mxu0 0.0
    %1367 = vmatpush2.msra.mxu0 0.0
    %1368 = vmatprep.subr.mxu0 0.0
    %1369 = vmatpush2.msra.mxu0 0.0
    %1370 = vmatprep.subr.mxu0 0.0
    %1371 = vmatpush2.msra.mxu0 0.0
    %1372 = vmatprep.subr.mxu0 0.0
    %1373 = vmatpush2.msra.mxu0 0.0
    %1374 = vmatprep.subr.mxu0 0.0
    %1375 = vmatpush2.msra.mxu0 0.0
    %1376 = vmatprep.subr.mxu0 0.0
    %1377 = vmatpush2.msra.mxu0 0.0
    %1378 = vmatprep.subr.mxu0 0.0
    %1379 = vmatpush2.msra.mxu0 0.0
    %1380 = vmatprep.subr.mxu0 0.0
    %1381 = vmatpush2.msra.mxu0 0.0
    %1382 = vmatprep.subr.mxu0 0.0
    %1383 = vmatpush2.msra.mxu0 0.0
    %1384 = vmatprep.subr.mxu0 0.0
    %1385 = vmatpush2.msra.mxu0 0.0
    %1386 = vmatprep.subr.mxu0 0.0
    %1387 = vmatpush2.msra.mxu0 0.0
    %1388 = vmatprep.subr.mxu0 0.0
    %1389 = vmatpush2.msra.mxu0 0.0
    %1390 = vmatprep.mubr.f32.mxu0 0.0
    %1391 = vmatmul.mubr.f32.gmra.mxu0 %v1260
    %v1392 = vpop.f32.mrf.mxu0
    %v1393 = vadd.f32 0.0, %v1392
    %v1394 = vpop.f32.mrf.mxu0
    %v1395 = vadd.f32 0.0, %v1394
    %1396 = vdwg.mxu0
    %1397 = vmatprep.subr.mxu0 %v1325
    %1398 = vmatpush1.msra.mxu0 %v1324
    %1399 = vmatprep.subr.mxu0 %v1321
    %1400 = vmatpush1.msra.mxu0 %v1320
    %1401 = vmatprep.subr.mxu0 %v1317
    %1402 = vmatpush1.msra.mxu0 %v1316
    %1403 = vmatprep.subr.mxu0 %v1313
    %1404 = vmatpush1.msra.mxu0 %v1312
    %1405 = vmatprep.subr.mxu0 %v1309
    %1406 = vmatpush1.msra.mxu0 %v1308
    %1407 = vmatprep.subr.mxu0 %v1305
    %1408 = vmatpush1.msra.mxu0 %v1304
    %1409 = vmatprep.subr.mxu0 %v1301
    %1410 = vmatpush1.msra.mxu0 %v1300
    %1411 = vmatprep.subr.mxu0 %v1297
    %1412 = vmatpush1.msra.mxu0 %v1296
    %1413 = vmatprep.subr.mxu0 %v1293
    %1414 = vmatpush1.msra.mxu0 %v1292
    %1415 = vmatprep.subr.mxu0 %v1289
    %1416 = vmatpush1.msra.mxu0 %v1288
    %1417 = vmatprep.subr.mxu0 %v1285
    %1418 = vmatpush1.msra.mxu0 %v1284
    %1419 = vmatprep.subr.mxu0 %v1281
    %1420 = vmatpush1.msra.mxu0 %v1280
    %1421 = vmatprep.subr.mxu0 %v1277
    %1422 = vmatpush1.msra.mxu0 %v1276
    %1423 = vmatprep.subr.mxu0 %v1273
    %1424 = vmatpush1.msra.mxu0 %v1272
    %1425 = vmatprep.subr.mxu0 %v1269
    %1426 = vmatpush1.msra.mxu0 %v1268
    %1427 = vmatprep.subr.mxu0 %v1265
    %1428 = vmatpush1.msra.mxu0 %v1264
    %1429 = vmatprep.subr.mxu0 0.0
    %1430 = vmatpush2.msra.mxu0 0.0
    %1431 = vmatprep.subr.mxu0 0.0
    %1432 = vmatpush2.msra.mxu0 0.0
    %1433 = vmatprep.subr.mxu0 0.0
    %1434 = vmatpush2.msra.mxu0 0.0
    %1435 = vmatprep.subr.mxu0 0.0
    %1436 = vmatpush2.msra.mxu0 0.0
    %1437 = vmatprep.subr.mxu0 0.0
    %1438 = vmatpush2.msra.mxu0 0.0
    %1439 = vmatprep.subr.mxu0 0.0
    %1440 = vmatpush2.msra.mxu0 0.0
    %1441 = vmatprep.subr.mxu0 0.0
    %1442 = vmatpush2.msra.mxu0 0.0
    %1443 = vmatprep.subr.mxu0 0.0
    %1444 = vmatpush2.msra.mxu0 0.0
    %1445 = vmatprep.subr.mxu0 0.0
    %1446 = vmatpush2.msra.mxu0 0.0
    %1447 = vmatprep.subr.mxu0 0.0
    %1448 = vmatpush2.msra.mxu0 0.0
    %1449 = vmatprep.subr.mxu0 0.0
    %1450 = vmatpush2.msra.mxu0 0.0
    %1451 = vmatprep.subr.mxu0 0.0
    %1452 = vmatpush2.msra.mxu0 0.0
    %1453 = vmatprep.subr.mxu0 0.0
    %1454 = vmatpush2.msra.mxu0 0.0
    %1455 = vmatprep.subr.mxu0 0.0
    %1456 = vmatpush2.msra.mxu0 0.0
    %1457 = vmatprep.subr.mxu0 0.0
    %1458 = vmatpush2.msra.mxu0 0.0
    %1459 = vmatprep.subr.mxu0 0.0
    %1460 = vmatpush2.msra.mxu0 0.0
    %1461 = vmatprep.mubr.f32.mxu0 0.0
    %1462 = vmatmul.mubr.f32.gmra.mxu0 %v1260
    %v1463 = vpop.f32.mrf.mxu0
    %v1464 = vadd.f32 0.0, %v1463
    %v1465 = vpop.f32.mrf.mxu0
    %v1466 = vadd.f32 0.0, %v1465
    %1467 = vdwg.mxu0
    %v1468 = vadd.f32 %v1393, %v1233
    %v1469 = vadd.f32 %v1395, %v1244
    %v1470 = vadd.f32 %v1464, %v1255
    %1471 = vrot.lane.b32.xlu0 %v803, 127
    %v1472 = vpop.permute.xlu0 %1471
    %v1474 = vadd.f32 %v1466, %v1472
    %1476 = vset.pattern.permute.xlu0 0
    %1477 = vperm.xlu0 %1476, %v1474
    %v1478 = vpop.permute.xlu0 %1477
    %v1480 = vlaneseq
    %v1481 = vshrl.u32 %v1480, 7
    %v1482 = vsub.s32 4, %v1481
    %v1483 = vrot.slane %v116, %v1482
    %v1484 = vlaneseq
    %v1485 = vshrl.u32 %v1484, 7
    %v1486 = vsub.s32 4, %v1485
    %v1487 = vrot.slane %v117, %v1486
    %v1488 = vlaneseq
    %v1489 = vshrl.u32 %v1488, 7
    %v1490 = vsub.s32 4, %v1489
    %v1491 = vrot.slane %v118, %v1490
    %v1492 = vmul.f32 %v1478, %v1483
    %v1493 = vmul.f32 %v1478, %v1487
    %v1494 = vmul.f32 %v1478, %v1491
    %1495 = vset.pattern.permute.xlu0 1
    %1496 = vperm.xlu0 %1495, %v1474
    %v1497 = vpop.permute.xlu0 %1496
    %v1499 = vlaneseq
    %v1500 = vshrl.u32 %v1499, 7
    %v1501 = vsub.s32 5, %v1500
    %v1502 = vrot.slane %v116, %v1501
    %v1503 = vlaneseq
    %v1504 = vshrl.u32 %v1503, 7
    %v1505 = vsub.s32 5, %v1504
    %v1506 = vrot.slane %v117, %v1505
    %v1507 = vlaneseq
    %v1508 = vshrl.u32 %v1507, 7
    %v1509 = vsub.s32 5, %v1508
    %v1510 = vrot.slane %v118, %v1509
    %v1511 = vmul.f32 %v1497, %v1502
    %v1512 = vmul.f32 %v1497, %v1506
    %v1513 = vmul.f32 %v1497, %v1510
    %v1514 = vadd.f32 %v1492, %v1511
    %v1515 = vadd.f32 %v1493, %v1512
    %v1516 = vadd.f32 %v1494, %v1513
    %v1517 = vlaneseq
    %v1518 = vshrl.u32 %v1517, 7
    %v1519 = vsub.s32 4, %v1518
    %v1520 = vrot.slane %v119, %v1519
    %v1521 = vlaneseq
    %v1522 = vshrl.u32 %v1521, 7
    %v1523 = vsub.s32 4, %v1522
    %v1524 = vrot.slane %v120, %v1523
    %v1525 = vlaneseq
    %v1526 = vshrl.u32 %v1525, 7
    %v1527 = vsub.s32 4, %v1526
    %v1528 = vrot.slane %v121, %v1527
    %v1529 = vadd.f32 %v1514, %v1520
    %v1530 = vadd.f32 %v1515, %v1524
    %v1531 = vadd.f32 %v1516, %v1528
    %v1532 = vlaneseq
    %v1533 = vshrl.u32 %v1532, 7
    %v1534 = vsub.s32 4, %v1533
    %v1535 = vrot.slane %v122, %v1534
    %v1536 = vadd.f32 %v1529, %v1535
    %v1537 = vxor.u32 %v1536, 2147483648
    %v1538 = vmul.f32 %v1537, 1.442695
    %v1539 = vpow.pop %v1538
    %v1540 = vadd.f32 %v1539, 1.0
    %v1541 = vrcp.pop %v1540
    %v1542 = vmul.f32 1.0, %v1541
    %v1543 = vlaneseq
    %v1544 = vshrl.u32 %v1543, 7
    %v1545 = vsub.s32 4, %v1544
    %v1546 = vrot.slane %v123, %v1545
    %v1547 = vadd.f32 %v1530, %v1546
    %v1548 = vxor.u32 %v1547, 2147483648
    %v1549 = vmul.f32 %v1548, 1.442695
    %v1550 = vpow.pop %v1549
    %v1551 = vadd.f32 %v1550, 1.0
    %v1552 = vrcp.pop %v1551
    %v1553 = vmul.f32 1.0, %v1552
    %v1554 = vlaneseq
    %v1555 = vshrl.u32 %v1554, 7
    %v1556 = vsub.s32 4, %v1555
    %v1557 = vrot.slane %v124, %v1556
    %v1558 = vmul.f32 %v1542, %v1557
    %v1559 = vadd.f32 %v1531, %v1558
    %v1560 = vtanh.pop %v1559
    %v1561 = vsub.f32 1.0, %v1553
    %v1562 = vmul.f32 %v1561, %v1560
    %s1563 = scalar_lea.vmem [#allocation9], 1536
    %v1564 = vld [vmem:[%s1563] sm:$0xff]
    %v1565 = vld [vmem:[%s1563 + $0x8] sm:$0xff]
    %v1566 = vld [vmem:[%s1563 + $0x10] sm:$0xff]
    %v1567 = vld [vmem:[%s1563 + $0x18] sm:$0xff]
    %v1568 = vld [vmem:[%s1563 + $0x20] sm:$0xff]
    %v1569 = vld [vmem:[%s1563 + $0x28] sm:$0xff]
    %v1570 = vld [vmem:[%s1563 + $0x30] sm:$0xff]
    %v1571 = vld [vmem:[%s1563 + $0x38] sm:$0xff]
    %v1572 = vld [vmem:[%s1563 + $0x40] sm:$0xff]
    %v1573 = vld [vmem:[%s1563 + $0x48] sm:$0xff]
    %v1574 = vld [vmem:[%s1563 + $0x50] sm:$0xff]
    %v1575 = vld [vmem:[%s1563 + $0x58] sm:$0xff]
    %v1576 = vld [vmem:[%s1563 + $0x60] sm:$0xff]
    %v1577 = vld [vmem:[%s1563 + $0x68] sm:$0xff]
    %v1578 = vld [vmem:[%s1563 + $0x70] sm:$0xff]
    %v1579 = vld [vmem:[%s1563 + $0x78] sm:$0xff]
    %v1580 = vld [vmem:[%s1563 + $0x80] sm:$0xff]
    %v1581 = vld [vmem:[%s1563 + $0x88] sm:$0xff]
    %v1582 = vld [vmem:[%s1563 + $0x90] sm:$0xff]
    %v1583 = vld [vmem:[%s1563 + $0x98] sm:$0xff]
    %v1584 = vld [vmem:[%s1563 + $0xa0] sm:$0xff]
    %v1585 = vld [vmem:[%s1563 + $0xa8] sm:$0xff]
    %v1586 = vld [vmem:[%s1563 + $0xb0] sm:$0xff]
    %v1587 = vld [vmem:[%s1563 + $0xb8] sm:$0xff]
    %v1588 = vld [vmem:[%s1563 + $0xc0] sm:$0xff]
    %v1589 = vld [vmem:[%s1563 + $0xc8] sm:$0xff]
    %v1590 = vld [vmem:[%s1563 + $0xd0] sm:$0xff]
    %v1591 = vld [vmem:[%s1563 + $0xd8] sm:$0xff]
    %v1592 = vld [vmem:[%s1563 + $0xe0] sm:$0xff]
    %v1593 = vld [vmem:[%s1563 + $0xe8] sm:$0xff]
    %v1594 = vld [vmem:[%s1563 + $0xf0] sm:$0xff]
    %v1595 = vld [vmem:[%s1563 + $0xf8] sm:$0xff]
    %v1596 = vld [vmem:[%s1563 + $0x100] sm:$0xff]
    %v1597 = vld [vmem:[%s1563 + $0x108] sm:$0xff]
    %v1598 = vld [vmem:[%s1563 + $0x110] sm:$0xff]
    %v1599 = vld [vmem:[%s1563 + $0x118] sm:$0xff]
    %v1600 = vld [vmem:[%s1563 + $0x120] sm:$0xff]
    %v1601 = vld [vmem:[%s1563 + $0x128] sm:$0xff]
    %v1602 = vld [vmem:[%s1563 + $0x130] sm:$0xff]
    %v1603 = vld [vmem:[%s1563 + $0x138] sm:$0xff]
    %v1604 = vld [vmem:[%s1563 + $0x140] sm:$0xff]
    %v1605 = vld [vmem:[%s1563 + $0x148] sm:$0xff]
    %v1606 = vld [vmem:[%s1563 + $0x150] sm:$0xff]
    %v1607 = vld [vmem:[%s1563 + $0x158] sm:$0xff]
    %v1608 = vld [vmem:[%s1563 + $0x160] sm:$0xff]
    %v1609 = vld [vmem:[%s1563 + $0x168] sm:$0xff]
    %v1610 = vld [vmem:[%s1563 + $0x170] sm:$0xff]
    %v1611 = vld [vmem:[%s1563 + $0x178] sm:$0xff]
    %v1612 = vld [vmem:[%s1563 + $0x180] sm:$0xff]
    %v1613 = vld [vmem:[%s1563 + $0x188] sm:$0xff]
    %v1614 = vld [vmem:[%s1563 + $0x190] sm:$0xff]
    %v1615 = vld [vmem:[%s1563 + $0x198] sm:$0xff]
    %v1616 = vld [vmem:[%s1563 + $0x1a0] sm:$0xff]
    %v1617 = vld [vmem:[%s1563 + $0x1a8] sm:$0xff]
    %v1618 = vld [vmem:[%s1563 + $0x1b0] sm:$0xff]
    %v1619 = vld [vmem:[%s1563 + $0x1b8] sm:$0xff]
    %v1620 = vld [vmem:[%s1563 + $0x1c0] sm:$0xff]
    %v1621 = vld [vmem:[%s1563 + $0x1c8] sm:$0xff]
    %v1622 = vld [vmem:[%s1563 + $0x1d0] sm:$0xff]
    %v1623 = vld [vmem:[%s1563 + $0x1d8] sm:$0xff]
    %v1624 = vld [vmem:[%s1563 + $0x1e0] sm:$0xff]
    %v1625 = vld [vmem:[%s1563 + $0x1e8] sm:$0xff]
    %v1626 = vld [vmem:[%s1563 + $0x1f0] sm:$0xff]
    %v1627 = vld [vmem:[%s1563 + $0x1f8] sm:$0xff]
    %v1628 = vld [vmem:[%s1563 + $0x200] sm:$0xff]
    %v1629 = vld [vmem:[%s1563 + $0x208] sm:$0xff]
    %v1630 = vld [vmem:[%s1563 + $0x210] sm:$0xff]
    %v1631 = vld [vmem:[%s1563 + $0x218] sm:$0xff]
    %v1632 = vld [vmem:[%s1563 + $0x220] sm:$0xff]
    %v1633 = vld [vmem:[%s1563 + $0x228] sm:$0xff]
    %v1634 = vld [vmem:[%s1563 + $0x230] sm:$0xff]
    %v1635 = vld [vmem:[%s1563 + $0x238] sm:$0xff]
    %v1636 = vld [vmem:[%s1563 + $0x240] sm:$0xff]
    %v1637 = vld [vmem:[%s1563 + $0x248] sm:$0xff]
    %v1638 = vld [vmem:[%s1563 + $0x250] sm:$0xff]
    %v1639 = vld [vmem:[%s1563 + $0x258] sm:$0xff]
    %v1640 = vld [vmem:[%s1563 + $0x260] sm:$0xff]
    %v1641 = vld [vmem:[%s1563 + $0x268] sm:$0xff]
    %v1642 = vld [vmem:[%s1563 + $0x270] sm:$0xff]
    %v1643 = vld [vmem:[%s1563 + $0x278] sm:$0xff]
    %v1644 = vld [vmem:[%s1563 + $0x280] sm:$0xff]
    %v1645 = vld [vmem:[%s1563 + $0x288] sm:$0xff]
    %v1646 = vld [vmem:[%s1563 + $0x290] sm:$0xff]
    %v1647 = vld [vmem:[%s1563 + $0x298] sm:$0xff]
    %v1648 = vld [vmem:[%s1563 + $0x2a0] sm:$0xff]
    %v1649 = vld [vmem:[%s1563 + $0x2a8] sm:$0xff]
    %v1650 = vld [vmem:[%s1563 + $0x2b0] sm:$0xff]
    %v1651 = vld [vmem:[%s1563 + $0x2b8] sm:$0xff]
    %v1652 = vld [vmem:[%s1563 + $0x2c0] sm:$0xff]
    %v1653 = vld [vmem:[%s1563 + $0x2c8] sm:$0xff]
    %v1654 = vld [vmem:[%s1563 + $0x2d0] sm:$0xff]
    %v1655 = vld [vmem:[%s1563 + $0x2d8] sm:$0xff]
    %v1656 = vld [vmem:[%s1563 + $0x2e0] sm:$0xff]
    %v1657 = vld [vmem:[%s1563 + $0x2e8] sm:$0xff]
    %v1658 = vld [vmem:[%s1563 + $0x2f0] sm:$0xff]
    %v1659 = vld [vmem:[%s1563 + $0x2f8] sm:$0xff]
    %1660 = vmatprep.subr.mxu0 %v1655
    %1661 = vmatpush1.msra.mxu0 %v1654
    %1662 = vmatprep.subr.mxu0 %v1649
    %1663 = vmatpush1.msra.mxu0 %v1648
    %1664 = vmatprep.subr.mxu0 %v1643
    %1665 = vmatpush1.msra.mxu0 %v1642
    %1666 = vmatprep.subr.mxu0 %v1637
    %1667 = vmatpush1.msra.mxu0 %v1636
    %1668 = vmatprep.subr.mxu0 %v1631
    %1669 = vmatpush1.msra.mxu0 %v1630
    %1670 = vmatprep.subr.mxu0 %v1625
    %1671 = vmatpush1.msra.mxu0 %v1624
    %1672 = vmatprep.subr.mxu0 %v1619
    %1673 = vmatpush1.msra.mxu0 %v1618
    %1674 = vmatprep.subr.mxu0 %v1613
    %1675 = vmatpush1.msra.mxu0 %v1612
    %1676 = vmatprep.subr.mxu0 %v1607
    %1677 = vmatpush1.msra.mxu0 %v1606
    %1678 = vmatprep.subr.mxu0 %v1601
    %1679 = vmatpush1.msra.mxu0 %v1600
    %1680 = vmatprep.subr.mxu0 %v1595
    %1681 = vmatpush1.msra.mxu0 %v1594
    %1682 = vmatprep.subr.mxu0 %v1589
    %1683 = vmatpush1.msra.mxu0 %v1588
    %1684 = vmatprep.subr.mxu0 %v1583
    %1685 = vmatpush1.msra.mxu0 %v1582
    %1686 = vmatprep.subr.mxu0 %v1577
    %1687 = vmatpush1.msra.mxu0 %v1576
    %1688 = vmatprep.subr.mxu0 %v1571
    %1689 = vmatpush1.msra.mxu0 %v1570
    %1690 = vmatprep.subr.mxu0 %v1565
    %1691 = vmatpush1.msra.mxu0 %v1564
    %1692 = vmatprep.subr.mxu0 0.0
    %1693 = vmatpush2.msra.mxu0 0.0
    %1694 = vmatprep.subr.mxu0 0.0
    %1695 = vmatpush2.msra.mxu0 0.0
    %1696 = vmatprep.subr.mxu0 0.0
    %1697 = vmatpush2.msra.mxu0 0.0
    %1698 = vmatprep.subr.mxu0 0.0
    %1699 = vmatpush2.msra.mxu0 0.0
    %1700 = vmatprep.subr.mxu0 0.0
    %1701 = vmatpush2.msra.mxu0 0.0
    %1702 = vmatprep.subr.mxu0 0.0
    %1703 = vmatpush2.msra.mxu0 0.0
    %1704 = vmatprep.subr.mxu0 0.0
    %1705 = vmatpush2.msra.mxu0 0.0
    %1706 = vmatprep.subr.mxu0 0.0
    %1707 = vmatpush2.msra.mxu0 0.0
    %1708 = vmatprep.subr.mxu0 0.0
    %1709 = vmatpush2.msra.mxu0 0.0
    %1710 = vmatprep.subr.mxu0 0.0
    %1711 = vmatpush2.msra.mxu0 0.0
    %1712 = vmatprep.subr.mxu0 0.0
    %1713 = vmatpush2.msra.mxu0 0.0
    %1714 = vmatprep.subr.mxu0 0.0
    %1715 = vmatpush2.msra.mxu0 0.0
    %1716 = vmatprep.subr.mxu0 0.0
    %1717 = vmatpush2.msra.mxu0 0.0
    %1718 = vmatprep.subr.mxu0 0.0
    %1719 = vmatpush2.msra.mxu0 0.0
    %1720 = vmatprep.subr.mxu0 0.0
    %1721 = vmatpush2.msra.mxu0 0.0
    %1722 = vmatprep.subr.mxu0 0.0
    %1723 = vmatpush2.msra.mxu0 0.0
    %1724 = vmatprep.mubr.f32.mxu0 0.0
    %1725 = vmatmul.mubr.f32.gmra.mxu0 %v1562
    %v1726 = vpop.f32.mrf.mxu0
    %v1727 = vadd.f32 0.0, %v1726
    %v1728 = vpop.f32.mrf.mxu0
    %v1729 = vadd.f32 0.0, %v1728
    %1730 = vdwg.mxu0
    %1731 = vmatprep.subr.mxu0 %v1657
    %1732 = vmatpush1.msra.mxu0 %v1656
    %1733 = vmatprep.subr.mxu0 %v1651
    %1734 = vmatpush1.msra.mxu0 %v1650
    %1735 = vmatprep.subr.mxu0 %v1645
    %1736 = vmatpush1.msra.mxu0 %v1644
    %1737 = vmatprep.subr.mxu0 %v1639
    %1738 = vmatpush1.msra.mxu0 %v1638
    %1739 = vmatprep.subr.mxu0 %v1633
    %1740 = vmatpush1.msra.mxu0 %v1632
    %1741 = vmatprep.subr.mxu0 %v1627
    %1742 = vmatpush1.msra.mxu0 %v1626
    %1743 = vmatprep.subr.mxu0 %v1621
    %1744 = vmatpush1.msra.mxu0 %v1620
    %1745 = vmatprep.subr.mxu0 %v1615
    %1746 = vmatpush1.msra.mxu0 %v1614
    %1747 = vmatprep.subr.mxu0 %v1609
    %1748 = vmatpush1.msra.mxu0 %v1608
    %1749 = vmatprep.subr.mxu0 %v1603
    %1750 = vmatpush1.msra.mxu0 %v1602
    %1751 = vmatprep.subr.mxu0 %v1597
    %1752 = vmatpush1.msra.mxu0 %v1596
    %1753 = vmatprep.subr.mxu0 %v1591
    %1754 = vmatpush1.msra.mxu0 %v1590
    %1755 = vmatprep.subr.mxu0 %v1585
    %1756 = vmatpush1.msra.mxu0 %v1584
    %1757 = vmatprep.subr.mxu0 %v1579
    %1758 = vmatpush1.msra.mxu0 %v1578
    %1759 = vmatprep.subr.mxu0 %v1573
    %1760 = vmatpush1.msra.mxu0 %v1572
    %1761 = vmatprep.subr.mxu0 %v1567
    %1762 = vmatpush1.msra.mxu0 %v1566
    %1763 = vmatprep.subr.mxu0 0.0
    %1764 = vmatpush2.msra.mxu0 0.0
    %1765 = vmatprep.subr.mxu0 0.0
    %1766 = vmatpush2.msra.mxu0 0.0
    %1767 = vmatprep.subr.mxu0 0.0
    %1768 = vmatpush2.msra.mxu0 0.0
    %1769 = vmatprep.subr.mxu0 0.0
    %1770 = vmatpush2.msra.mxu0 0.0
    %1771 = vmatprep.subr.mxu0 0.0
    %1772 = vmatpush2.msra.mxu0 0.0
    %1773 = vmatprep.subr.mxu0 0.0
    %1774 = vmatpush2.msra.mxu0 0.0
    %1775 = vmatprep.subr.mxu0 0.0
    %1776 = vmatpush2.msra.mxu0 0.0
    %1777 = vmatprep.subr.mxu0 0.0
    %1778 = vmatpush2.msra.mxu0 0.0
    %1779 = vmatprep.subr.mxu0 0.0
    %1780 = vmatpush2.msra.mxu0 0.0
    %1781 = vmatprep.subr.mxu0 0.0
    %1782 = vmatpush2.msra.mxu0 0.0
    %1783 = vmatprep.subr.mxu0 0.0
    %1784 = vmatpush2.msra.mxu0 0.0
    %1785 = vmatprep.subr.mxu0 0.0
    %1786 = vmatpush2.msra.mxu0 0.0
    %1787 = vmatprep.subr.mxu0 0.0
    %1788 = vmatpush2.msra.mxu0 0.0
    %1789 = vmatprep.subr.mxu0 0.0
    %1790 = vmatpush2.msra.mxu0 0.0
    %1791 = vmatprep.subr.mxu0 0.0
    %1792 = vmatpush2.msra.mxu0 0.0
    %1793 = vmatprep.subr.mxu0 0.0
    %1794 = vmatpush2.msra.mxu0 0.0
    %1795 = vmatprep.mubr.f32.mxu0 0.0
    %1796 = vmatmul.mubr.f32.gmra.mxu0 %v1562
    %v1797 = vpop.f32.mrf.mxu0
    %v1798 = vadd.f32 0.0, %v1797
    %v1799 = vpop.f32.mrf.mxu0
    %v1800 = vadd.f32 0.0, %v1799
    %1801 = vdwg.mxu0
    %1802 = vmatprep.subr.mxu0 %v1659
    %1803 = vmatpush1.msra.mxu0 %v1658
    %1804 = vmatprep.subr.mxu0 %v1653
    %1805 = vmatpush1.msra.mxu0 %v1652
    %1806 = vmatprep.subr.mxu0 %v1647
    %1807 = vmatpush1.msra.mxu0 %v1646
    %1808 = vmatprep.subr.mxu0 %v1641
    %1809 = vmatpush1.msra.mxu0 %v1640
    %1810 = vmatprep.subr.mxu0 %v1635
    %1811 = vmatpush1.msra.mxu0 %v1634
    %1812 = vmatprep.subr.mxu0 %v1629
    %1813 = vmatpush1.msra.mxu0 %v1628
    %1814 = vmatprep.subr.mxu0 %v1623
    %1815 = vmatpush1.msra.mxu0 %v1622
    %1816 = vmatprep.subr.mxu0 %v1617
    %1817 = vmatpush1.msra.mxu0 %v1616
    %1818 = vmatprep.subr.mxu0 %v1611
    %1819 = vmatpush1.msra.mxu0 %v1610
    %1820 = vmatprep.subr.mxu0 %v1605
    %1821 = vmatpush1.msra.mxu0 %v1604
    %1822 = vmatprep.subr.mxu0 %v1599
    %1823 = vmatpush1.msra.mxu0 %v1598
    %1824 = vmatprep.subr.mxu0 %v1593
    %1825 = vmatpush1.msra.mxu0 %v1592
    %1826 = vmatprep.subr.mxu0 %v1587
    %1827 = vmatpush1.msra.mxu0 %v1586
    %1828 = vmatprep.subr.mxu0 %v1581
    %1829 = vmatpush1.msra.mxu0 %v1580
    %1830 = vmatprep.subr.mxu0 %v1575
    %1831 = vmatpush1.msra.mxu0 %v1574
    %1832 = vmatprep.subr.mxu0 %v1569
    %1833 = vmatpush1.msra.mxu0 %v1568
    %1834 = vmatprep.subr.mxu0 0.0
    %1835 = vmatpush2.msra.mxu0 0.0
    %1836 = vmatprep.subr.mxu0 0.0
    %1837 = vmatpush2.msra.mxu0 0.0
    %1838 = vmatprep.subr.mxu0 0.0
    %1839 = vmatpush2.msra.mxu0 0.0
    %1840 = vmatprep.subr.mxu0 0.0
    %1841 = vmatpush2.msra.mxu0 0.0
    %1842 = vmatprep.subr.mxu0 0.0
    %1843 = vmatpush2.msra.mxu0 0.0
    %1844 = vmatprep.subr.mxu0 0.0
    %1845 = vmatpush2.msra.mxu0 0.0
    %1846 = vmatprep.subr.mxu0 0.0
    %1847 = vmatpush2.msra.mxu0 0.0
    %1848 = vmatprep.subr.mxu0 0.0
    %1849 = vmatpush2.msra.mxu0 0.0
    %1850 = vmatprep.subr.mxu0 0.0
    %1851 = vmatpush2.msra.mxu0 0.0
    %1852 = vmatprep.subr.mxu0 0.0
    %1853 = vmatpush2.msra.mxu0 0.0
    %1854 = vmatprep.subr.mxu0 0.0
    %1855 = vmatpush2.msra.mxu0 0.0
    %1856 = vmatprep.subr.mxu0 0.0
    %1857 = vmatpush2.msra.mxu0 0.0
    %1858 = vmatprep.subr.mxu0 0.0
    %1859 = vmatpush2.msra.mxu0 0.0
    %1860 = vmatprep.subr.mxu0 0.0
    %1861 = vmatpush2.msra.mxu0 0.0
    %1862 = vmatprep.subr.mxu0 0.0
    %1863 = vmatpush2.msra.mxu0 0.0
    %1864 = vmatprep.subr.mxu0 0.0
    %1865 = vmatpush2.msra.mxu0 0.0
    %1866 = vmatprep.mubr.f32.mxu0 0.0
    %1867 = vmatmul.mubr.f32.gmra.mxu0 %v1562
    %v1868 = vpop.f32.mrf.mxu0
    %v1869 = vadd.f32 0.0, %v1868
    %v1870 = vpop.f32.mrf.mxu0
    %v1871 = vadd.f32 0.0, %v1870
    %1872 = vdwg.mxu0
    %v1873 = vlaneseq
    %v1874 = vshrl.u32 %v1873, 7
    %v1875 = vsub.s32 5, %v1874
    %v1876 = vrot.slane %v119, %v1875
    %v1877 = vlaneseq
    %v1878 = vshrl.u32 %v1877, 7
    %v1879 = vsub.s32 5, %v1878
    %v1880 = vrot.slane %v120, %v1879
    %v1881 = vlaneseq
    %v1882 = vshrl.u32 %v1881, 7
    %v1883 = vsub.s32 5, %v1882
    %v1884 = vrot.slane %v121, %v1883
    %v1885 = vadd.f32 %v1727, %v1876
    %v1886 = vadd.f32 %v1729, %v1880
    %v1887 = vadd.f32 %v1798, %v1884
    %v1888 = vadd.f32 %v1800, %v1535
    %v1889 = vadd.f32 %v1869, %v1546
    %v1890 = vadd.f32 %v1871, %v1557
    %v1891 = vlaneseq
    %v1892 = vshrl.u32 %v1891, 7
    %v1893 = vsub.s32 5, %v1892
    %v1894 = vrot.slane %v122, %v1893
    %v1895 = vadd.f32 %v1885, %v1894
    %v1896 = vxor.u32 %v1895, 2147483648
    %v1897 = vmul.f32 %v1896, 1.442695
    %v1898 = vpow.pop %v1897
    %v1899 = vadd.f32 %v1898, 1.0
    %v1900 = vrcp.pop %v1899
    %v1901 = vmul.f32 1.0, %v1900
    %v1902 = vlaneseq
    %v1903 = vshrl.u32 %v1902, 7
    %v1904 = vsub.s32 5, %v1903
    %v1905 = vrot.slane %v123, %v1904
    %v1906 = vadd.f32 %v1886, %v1905
    %v1907 = vxor.u32 %v1906, 2147483648
    %v1908 = vmul.f32 %v1907, 1.442695
    %v1909 = vpow.pop %v1908
    %v1910 = vadd.f32 %v1909, 1.0
    %v1911 = vrcp.pop %v1910
    %v1912 = vmul.f32 1.0, %v1911
    %v1913 = vlaneseq
    %v1914 = vshrl.u32 %v1913, 7
    %v1915 = vsub.s32 5, %v1914
    %v1916 = vrot.slane %v124, %v1915
    %v1917 = vmul.f32 %v1901, %v1916
    %v1918 = vadd.f32 %v1887, %v1917
    %v1919 = vtanh.pop %v1918
    %v1920 = vsub.f32 1.0, %v1912
    %v1921 = vmul.f32 %v1920, %v1919
    %s1922 = scalar_lea.vmem [#allocation10], 1024
    %v1923 = vld [vmem:[%s1922] sm:$0xff]
    %v1924 = vld [vmem:[%s1922 + $0x8] sm:$0xff]
    %v1925 = vld [vmem:[%s1922 + $0x10] sm:$0xff]
    %v1926 = vld [vmem:[%s1922 + $0x18] sm:$0xff]
    %v1927 = vld [vmem:[%s1922 + $0x20] sm:$0xff]
    %v1928 = vld [vmem:[%s1922 + $0x28] sm:$0xff]
    %v1929 = vld [vmem:[%s1922 + $0x30] sm:$0xff]
    %v1930 = vld [vmem:[%s1922 + $0x38] sm:$0xff]
    %v1931 = vld [vmem:[%s1922 + $0x40] sm:$0xff]
    %v1932 = vld [vmem:[%s1922 + $0x48] sm:$0xff]
    %v1933 = vld [vmem:[%s1922 + $0x50] sm:$0xff]
    %v1934 = vld [vmem:[%s1922 + $0x58] sm:$0xff]
    %v1935 = vld [vmem:[%s1922 + $0x60] sm:$0xff]
    %v1936 = vld [vmem:[%s1922 + $0x68] sm:$0xff]
    %v1937 = vld [vmem:[%s1922 + $0x70] sm:$0xff]
    %v1938 = vld [vmem:[%s1922 + $0x78] sm:$0xff]
    %v1939 = vld [vmem:[%s1922 + $0x80] sm:$0xff]
    %v1940 = vld [vmem:[%s1922 + $0x88] sm:$0xff]
    %v1941 = vld [vmem:[%s1922 + $0x90] sm:$0xff]
    %v1942 = vld [vmem:[%s1922 + $0x98] sm:$0xff]
    %v1943 = vld [vmem:[%s1922 + $0xa0] sm:$0xff]
    %v1944 = vld [vmem:[%s1922 + $0xa8] sm:$0xff]
    %v1945 = vld [vmem:[%s1922 + $0xb0] sm:$0xff]
    %v1946 = vld [vmem:[%s1922 + $0xb8] sm:$0xff]
    %v1947 = vld [vmem:[%s1922 + $0xc0] sm:$0xff]
    %v1948 = vld [vmem:[%s1922 + $0xc8] sm:$0xff]
    %v1949 = vld [vmem:[%s1922 + $0xd0] sm:$0xff]
    %v1950 = vld [vmem:[%s1922 + $0xd8] sm:$0xff]
    %v1951 = vld [vmem:[%s1922 + $0xe0] sm:$0xff]
    %v1952 = vld [vmem:[%s1922 + $0xe8] sm:$0xff]
    %v1953 = vld [vmem:[%s1922 + $0xf0] sm:$0xff]
    %v1954 = vld [vmem:[%s1922 + $0xf8] sm:$0xff]
    %v1955 = vld [vmem:[%s1922 + $0x100] sm:$0xff]
    %v1956 = vld [vmem:[%s1922 + $0x108] sm:$0xff]
    %v1957 = vld [vmem:[%s1922 + $0x110] sm:$0xff]
    %v1958 = vld [vmem:[%s1922 + $0x118] sm:$0xff]
    %v1959 = vld [vmem:[%s1922 + $0x120] sm:$0xff]
    %v1960 = vld [vmem:[%s1922 + $0x128] sm:$0xff]
    %v1961 = vld [vmem:[%s1922 + $0x130] sm:$0xff]
    %v1962 = vld [vmem:[%s1922 + $0x138] sm:$0xff]
    %v1963 = vld [vmem:[%s1922 + $0x140] sm:$0xff]
    %v1964 = vld [vmem:[%s1922 + $0x148] sm:$0xff]
    %v1965 = vld [vmem:[%s1922 + $0x150] sm:$0xff]
    %v1966 = vld [vmem:[%s1922 + $0x158] sm:$0xff]
    %v1967 = vld [vmem:[%s1922 + $0x160] sm:$0xff]
    %v1968 = vld [vmem:[%s1922 + $0x168] sm:$0xff]
    %v1969 = vld [vmem:[%s1922 + $0x170] sm:$0xff]
    %v1970 = vld [vmem:[%s1922 + $0x178] sm:$0xff]
    %v1971 = vld [vmem:[%s1922 + $0x180] sm:$0xff]
    %v1972 = vld [vmem:[%s1922 + $0x188] sm:$0xff]
    %v1973 = vld [vmem:[%s1922 + $0x190] sm:$0xff]
    %v1974 = vld [vmem:[%s1922 + $0x198] sm:$0xff]
    %v1975 = vld [vmem:[%s1922 + $0x1a0] sm:$0xff]
    %v1976 = vld [vmem:[%s1922 + $0x1a8] sm:$0xff]
    %v1977 = vld [vmem:[%s1922 + $0x1b0] sm:$0xff]
    %v1978 = vld [vmem:[%s1922 + $0x1b8] sm:$0xff]
    %v1979 = vld [vmem:[%s1922 + $0x1c0] sm:$0xff]
    %v1980 = vld [vmem:[%s1922 + $0x1c8] sm:$0xff]
    %v1981 = vld [vmem:[%s1922 + $0x1d0] sm:$0xff]
    %v1982 = vld [vmem:[%s1922 + $0x1d8] sm:$0xff]
    %v1983 = vld [vmem:[%s1922 + $0x1e0] sm:$0xff]
    %v1984 = vld [vmem:[%s1922 + $0x1e8] sm:$0xff]
    %v1985 = vld [vmem:[%s1922 + $0x1f0] sm:$0xff]
    %v1986 = vld [vmem:[%s1922 + $0x1f8] sm:$0xff]
    %1987 = vmatprep.subr.mxu0 %v1984
    %1988 = vmatpush1.msra.mxu0 %v1983
    %1989 = vmatprep.subr.mxu0 %v1980
    %1990 = vmatpush1.msra.mxu0 %v1979
    %1991 = vmatprep.subr.mxu0 %v1976
    %1992 = vmatpush1.msra.mxu0 %v1975
    %1993 = vmatprep.subr.mxu0 %v1972
    %1994 = vmatpush1.msra.mxu0 %v1971
    %1995 = vmatprep.subr.mxu0 %v1968
    %1996 = vmatpush1.msra.mxu0 %v1967
    %1997 = vmatprep.subr.mxu0 %v1964
    %1998 = vmatpush1.msra.mxu0 %v1963
    %1999 = vmatprep.subr.mxu0 %v1960
    %2000 = vmatpush1.msra.mxu0 %v1959
    %2001 = vmatprep.subr.mxu0 %v1956
    %2002 = vmatpush1.msra.mxu0 %v1955
    %2003 = vmatprep.subr.mxu0 %v1952
    %2004 = vmatpush1.msra.mxu0 %v1951
    %2005 = vmatprep.subr.mxu0 %v1948
    %2006 = vmatpush1.msra.mxu0 %v1947
    %2007 = vmatprep.subr.mxu0 %v1944
    %2008 = vmatpush1.msra.mxu0 %v1943
    %2009 = vmatprep.subr.mxu0 %v1940
    %2010 = vmatpush1.msra.mxu0 %v1939
    %2011 = vmatprep.subr.mxu0 %v1936
    %2012 = vmatpush1.msra.mxu0 %v1935
    %2013 = vmatprep.subr.mxu0 %v1932
    %2014 = vmatpush1.msra.mxu0 %v1931
    %2015 = vmatprep.subr.mxu0 %v1928
    %2016 = vmatpush1.msra.mxu0 %v1927
    %2017 = vmatprep.subr.mxu0 %v1924
    %2018 = vmatpush1.msra.mxu0 %v1923
    %2019 = vmatprep.subr.mxu0 0.0
    %2020 = vmatpush2.msra.mxu0 0.0
    %2021 = vmatprep.subr.mxu0 0.0
    %2022 = vmatpush2.msra.mxu0 0.0
    %2023 = vmatprep.subr.mxu0 0.0
    %2024 = vmatpush2.msra.mxu0 0.0
    %2025 = vmatprep.subr.mxu0 0.0
    %2026 = vmatpush2.msra.mxu0 0.0
    %2027 = vmatprep.subr.mxu0 0.0
    %2028 = vmatpush2.msra.mxu0 0.0
    %2029 = vmatprep.subr.mxu0 0.0
    %2030 = vmatpush2.msra.mxu0 0.0
    %2031 = vmatprep.subr.mxu0 0.0
    %2032 = vmatpush2.msra.mxu0 0.0
    %2033 = vmatprep.subr.mxu0 0.0
    %2034 = vmatpush2.msra.mxu0 0.0
    %2035 = vmatprep.subr.mxu0 0.0
    %2036 = vmatpush2.msra.mxu0 0.0
    %2037 = vmatprep.subr.mxu0 0.0
    %2038 = vmatpush2.msra.mxu0 0.0
    %2039 = vmatprep.subr.mxu0 0.0
    %2040 = vmatpush2.msra.mxu0 0.0
    %2041 = vmatprep.subr.mxu0 0.0
    %2042 = vmatpush2.msra.mxu0 0.0
    %2043 = vmatprep.subr.mxu0 0.0
    %2044 = vmatpush2.msra.mxu0 0.0
    %2045 = vmatprep.subr.mxu0 0.0
    %2046 = vmatpush2.msra.mxu0 0.0
    %2047 = vmatprep.subr.mxu0 0.0
    %2048 = vmatpush2.msra.mxu0 0.0
    %2049 = vmatprep.subr.mxu0 0.0
    %2050 = vmatpush2.msra.mxu0 0.0
    %2051 = vmatprep.mubr.f32.mxu0 0.0
    %2052 = vmatmul.mubr.f32.gmra.mxu0 %v1921
    %v2053 = vpop.f32.mrf.mxu0
    %v2054 = vadd.f32 0.0, %v2053
    %v2055 = vpop.f32.mrf.mxu0
    %v2056 = vadd.f32 0.0, %v2055
    %2057 = vdwg.mxu0
    %2058 = vmatprep.subr.mxu0 %v1986
    %2059 = vmatpush1.msra.mxu0 %v1985
    %2060 = vmatprep.subr.mxu0 %v1982
    %2061 = vmatpush1.msra.mxu0 %v1981
    %2062 = vmatprep.subr.mxu0 %v1978
    %2063 = vmatpush1.msra.mxu0 %v1977
    %2064 = vmatprep.subr.mxu0 %v1974
    %2065 = vmatpush1.msra.mxu0 %v1973
    %2066 = vmatprep.subr.mxu0 %v1970
    %2067 = vmatpush1.msra.mxu0 %v1969
    %2068 = vmatprep.subr.mxu0 %v1966
    %2069 = vmatpush1.msra.mxu0 %v1965
    %2070 = vmatprep.subr.mxu0 %v1962
    %2071 = vmatpush1.msra.mxu0 %v1961
    %2072 = vmatprep.subr.mxu0 %v1958
    %2073 = vmatpush1.msra.mxu0 %v1957
    %2074 = vmatprep.subr.mxu0 %v1954
    %2075 = vmatpush1.msra.mxu0 %v1953
    %2076 = vmatprep.subr.mxu0 %v1950
    %2077 = vmatpush1.msra.mxu0 %v1949
    %2078 = vmatprep.subr.mxu0 %v1946
    %2079 = vmatpush1.msra.mxu0 %v1945
    %2080 = vmatprep.subr.mxu0 %v1942
    %2081 = vmatpush1.msra.mxu0 %v1941
    %2082 = vmatprep.subr.mxu0 %v1938
    %2083 = vmatpush1.msra.mxu0 %v1937
    %2084 = vmatprep.subr.mxu0 %v1934
    %2085 = vmatpush1.msra.mxu0 %v1933
    %2086 = vmatprep.subr.mxu0 %v1930
    %2087 = vmatpush1.msra.mxu0 %v1929
    %2088 = vmatprep.subr.mxu0 %v1926
    %2089 = vmatpush1.msra.mxu0 %v1925
    %2090 = vmatprep.subr.mxu0 0.0
    %2091 = vmatpush2.msra.mxu0 0.0
    %2092 = vmatprep.subr.mxu0 0.0
    %2093 = vmatpush2.msra.mxu0 0.0
    %2094 = vmatprep.subr.mxu0 0.0
    %2095 = vmatpush2.msra.mxu0 0.0
    %2096 = vmatprep.subr.mxu0 0.0
    %2097 = vmatpush2.msra.mxu0 0.0
    %2098 = vmatprep.subr.mxu0 0.0
    %2099 = vmatpush2.msra.mxu0 0.0
    %2100 = vmatprep.subr.mxu0 0.0
    %2101 = vmatpush2.msra.mxu0 0.0
    %2102 = vmatprep.subr.mxu0 0.0
    %2103 = vmatpush2.msra.mxu0 0.0
    %2104 = vmatprep.subr.mxu0 0.0
    %2105 = vmatpush2.msra.mxu0 0.0
    %2106 = vmatprep.subr.mxu0 0.0
    %2107 = vmatpush2.msra.mxu0 0.0
    %2108 = vmatprep.subr.mxu0 0.0
    %2109 = vmatpush2.msra.mxu0 0.0
    %2110 = vmatprep.subr.mxu0 0.0
    %2111 = vmatpush2.msra.mxu0 0.0
    %2112 = vmatprep.subr.mxu0 0.0
    %2113 = vmatpush2.msra.mxu0 0.0
    %2114 = vmatprep.subr.mxu0 0.0
    %2115 = vmatpush2.msra.mxu0 0.0
    %2116 = vmatprep.subr.mxu0 0.0
    %2117 = vmatpush2.msra.mxu0 0.0
    %2118 = vmatprep.subr.mxu0 0.0
    %2119 = vmatpush2.msra.mxu0 0.0
    %2120 = vmatprep.subr.mxu0 0.0
    %2121 = vmatpush2.msra.mxu0 0.0
    %2122 = vmatprep.mubr.f32.mxu0 0.0
    %2123 = vmatmul.mubr.f32.gmra.mxu0 %v1921
    %v2124 = vpop.f32.mrf.mxu0
    %v2125 = vadd.f32 0.0, %v2124
    %v2126 = vpop.f32.mrf.mxu0
    %v2127 = vadd.f32 0.0, %v2126
    %2128 = vdwg.mxu0
    %v2129 = vadd.f32 %v2054, %v1894
    %v2130 = vadd.f32 %v2056, %v1905
    %v2131 = vadd.f32 %v2125, %v1916
    %2132 = vrot.lane.b32.xlu0 %v803, 125
    %v2133 = vpop.permute.xlu0 %2132
    %v2135 = vadd.f32 %v2127, %v2133
    %v2136 = vadd.f32 %v2135, 0.0
    %v2137 = vsel %vm813, %v2136, 0.0
    %v2138 = vrot.slane %v2137, 4
    %v2139 = vadd.f32 %v2137, %v2138
    %v2140 = vrot.slane %v2139, 2
    %v2141 = vadd.f32 %v2139, %v2140
    %v2142 = vrot.slane %v2141, 1
    %v2143 = vadd.f32 %v2141, %v2142
    %v2144 = vmul.f32 %v2143, 0.125
    %v2145 = vsub.f32 %v2135, %v2144
    %v2146 = vmul.f32 %v2145, %v2145
    %v2147 = vadd.f32 %v2146, 0.0
    %v2148 = vsel %vm813, %v2147, 0.0
    %v2149 = vrot.slane %v2148, 4
    %v2150 = vadd.f32 %v2148, %v2149
    %v2151 = vrot.slane %v2150, 2
    %v2152 = vadd.f32 %v2150, %v2151
    %v2153 = vrot.slane %v2152, 1
    %v2154 = vadd.f32 %v2152, %v2153
    %v2155 = vmul.f32 %v2154, 0.14285715
    %v2156 = vrsqrt.pop %v2155
    %v2157 = vmul.f32 %v2145, %v2156
    %2159 = vrot.lane.b32.xlu0 %v115, 122
    %v2160 = vpop.permute.xlu0 %2159
    %v2162 = vadd.f32 %v2157, %v2160
    %2164 = vset.pattern.permute.xlu0 0
    %2165 = vperm.xlu0 %2164, %v2162
    %v2166 = vpop.permute.xlu0 %2165
    %v2168 = vmul.f32 %v2166, %v186
    %v2169 = vmul.f32 %v2166, %v190
    %v2170 = vmul.f32 %v2166, %v194
    %v2171 = vadd.f32 %v180, %v2168
    %v2172 = vadd.f32 %v181, %v2169
    %v2173 = vadd.f32 %v182, %v2170
    %v2174 = vadd.f32 %v2171, %v556
    %v2175 = vxor.u32 %v2174, 2147483648
    %v2176 = vmul.f32 %v2175, 1.442695
    %v2177 = vpow.pop %v2176
    %v2178 = vadd.f32 %v2177, 1.0
    %v2179 = vrcp.pop %v2178
    %v2180 = vmul.f32 1.0, %v2179
    %v2181 = vadd.f32 %v2172, %v557
    %v2182 = vxor.u32 %v2181, 2147483648
    %v2183 = vmul.f32 %v2182, 1.442695
    %v2184 = vpow.pop %v2183
    %v2185 = vadd.f32 %v2184, 1.0
    %v2186 = vrcp.pop %v2185
    %v2187 = vmul.f32 1.0, %v2186
    %v2188 = vmul.f32 %v2180, %v558
    %v2189 = vadd.f32 %v2173, %v2188
    %v2190 = vtanh.pop %v2189
    %v2191 = vsub.f32 1.0, %v2187
    %v2192 = vmul.f32 %v2191, %v2190
    %v2193 = vmul.f32 %v2187, %v231
    %v2194 = vadd.f32 %v2192, %v2193
    %2195 = vmatprep.subr.mxu0 %v323
    %2196 = vmatpush1.msra.mxu0 %v322
    %2197 = vmatprep.subr.mxu0 %v317
    %2198 = vmatpush1.msra.mxu0 %v316
    %2199 = vmatprep.subr.mxu0 %v311
    %2200 = vmatpush1.msra.mxu0 %v310
    %2201 = vmatprep.subr.mxu0 %v305
    %2202 = vmatpush1.msra.mxu0 %v304
    %2203 = vmatprep.subr.mxu0 %v299
    %2204 = vmatpush1.msra.mxu0 %v298
    %2205 = vmatprep.subr.mxu0 %v293
    %2206 = vmatpush1.msra.mxu0 %v292
    %2207 = vmatprep.subr.mxu0 %v287
    %2208 = vmatpush1.msra.mxu0 %v286
    %2209 = vmatprep.subr.mxu0 %v281
    %2210 = vmatpush1.msra.mxu0 %v280
    %2211 = vmatprep.subr.mxu0 %v275
    %2212 = vmatpush1.msra.mxu0 %v274
    %2213 = vmatprep.subr.mxu0 %v269
    %2214 = vmatpush1.msra.mxu0 %v268
    %2215 = vmatprep.subr.mxu0 %v263
    %2216 = vmatpush1.msra.mxu0 %v262
    %2217 = vmatprep.subr.mxu0 %v257
    %2218 = vmatpush1.msra.mxu0 %v256
    %2219 = vmatprep.subr.mxu0 %v251
    %2220 = vmatpush1.msra.mxu0 %v250
    %2221 = vmatprep.subr.mxu0 %v245
    %2222 = vmatpush1.msra.mxu0 %v244
    %2223 = vmatprep.subr.mxu0 %v239
    %2224 = vmatpush1.msra.mxu0 %v238
    %2225 = vmatprep.subr.mxu0 %v233
    %2226 = vmatpush1.msra.mxu0 %v232
    %2227 = vmatprep.subr.mxu0 0.0
    %2228 = vmatpush2.msra.mxu0 0.0
    %2229 = vmatprep.subr.mxu0 0.0
    %2230 = vmatpush2.msra.mxu0 0.0
    %2231 = vmatprep.subr.mxu0 0.0
    %2232 = vmatpush2.msra.mxu0 0.0
    %2233 = vmatprep.subr.mxu0 0.0
    %2234 = vmatpush2.msra.mxu0 0.0
    %2235 = vmatprep.subr.mxu0 0.0
    %2236 = vmatpush2.msra.mxu0 0.0
    %2237 = vmatprep.subr.mxu0 0.0
    %2238 = vmatpush2.msra.mxu0 0.0
    %2239 = vmatprep.subr.mxu0 0.0
    %2240 = vmatpush2.msra.mxu0 0.0
    %2241 = vmatprep.subr.mxu0 0.0
    %2242 = vmatpush2.msra.mxu0 0.0
    %2243 = vmatprep.subr.mxu0 0.0
    %2244 = vmatpush2.msra.mxu0 0.0
    %2245 = vmatprep.subr.mxu0 0.0
    %2246 = vmatpush2.msra.mxu0 0.0
    %2247 = vmatprep.subr.mxu0 0.0
    %2248 = vmatpush2.msra.mxu0 0.0
    %2249 = vmatprep.subr.mxu0 0.0
    %2250 = vmatpush2.msra.mxu0 0.0
    %2251 = vmatprep.subr.mxu0 0.0
    %2252 = vmatpush2.msra.mxu0 0.0
    %2253 = vmatprep.subr.mxu0 0.0
    %2254 = vmatpush2.msra.mxu0 0.0
    %2255 = vmatprep.subr.mxu0 0.0
    %2256 = vmatpush2.msra.mxu0 0.0
    %2257 = vmatprep.subr.mxu0 0.0
    %2258 = vmatpush2.msra.mxu0 0.0
    %2259 = vmatprep.mubr.f32.mxu0 0.0
    %2260 = vmatmul.mubr.f32.gmra.mxu0 %v2194
    %v2261 = vpop.f32.mrf.mxu0
    %v2262 = vadd.f32 0.0, %v2261
    %v2263 = vpop.f32.mrf.mxu0
    %v2264 = vadd.f32 0.0, %v2263
    %2265 = vdwg.mxu0
    %2266 = vmatprep.subr.mxu0 %v325
    %2267 = vmatpush1.msra.mxu0 %v324
    %2268 = vmatprep.subr.mxu0 %v319
    %2269 = vmatpush1.msra.mxu0 %v318
    %2270 = vmatprep.subr.mxu0 %v313
    %2271 = vmatpush1.msra.mxu0 %v312
    %2272 = vmatprep.subr.mxu0 %v307
    %2273 = vmatpush1.msra.mxu0 %v306
    %2274 = vmatprep.subr.mxu0 %v301
    %2275 = vmatpush1.msra.mxu0 %v300
    %2276 = vmatprep.subr.mxu0 %v295
    %2277 = vmatpush1.msra.mxu0 %v294
    %2278 = vmatprep.subr.mxu0 %v289
    %2279 = vmatpush1.msra.mxu0 %v288
    %2280 = vmatprep.subr.mxu0 %v283
    %2281 = vmatpush1.msra.mxu0 %v282
    %2282 = vmatprep.subr.mxu0 %v277
    %2283 = vmatpush1.msra.mxu0 %v276
    %2284 = vmatprep.subr.mxu0 %v271
    %2285 = vmatpush1.msra.mxu0 %v270
    %2286 = vmatprep.subr.mxu0 %v265
    %2287 = vmatpush1.msra.mxu0 %v264
    %2288 = vmatprep.subr.mxu0 %v259
    %2289 = vmatpush1.msra.mxu0 %v258
    %2290 = vmatprep.subr.mxu0 %v253
    %2291 = vmatpush1.msra.mxu0 %v252
    %2292 = vmatprep.subr.mxu0 %v247
    %2293 = vmatpush1.msra.mxu0 %v246
    %2294 = vmatprep.subr.mxu0 %v241
    %2295 = vmatpush1.msra.mxu0 %v240
    %2296 = vmatprep.subr.mxu0 %v235
    %2297 = vmatpush1.msra.mxu0 %v234
    %2298 = vmatprep.subr.mxu0 0.0
    %2299 = vmatpush2.msra.mxu0 0.0
    %2300 = vmatprep.subr.mxu0 0.0
    %2301 = vmatpush2.msra.mxu0 0.0
    %2302 = vmatprep.subr.mxu0 0.0
    %2303 = vmatpush2.msra.mxu0 0.0
    %2304 = vmatprep.subr.mxu0 0.0
    %2305 = vmatpush2.msra.mxu0 0.0
    %2306 = vmatprep.subr.mxu0 0.0
    %2307 = vmatpush2.msra.mxu0 0.0
    %2308 = vmatprep.subr.mxu0 0.0
    %2309 = vmatpush2.msra.mxu0 0.0
    %2310 = vmatprep.subr.mxu0 0.0
    %2311 = vmatpush2.msra.mxu0 0.0
    %2312 = vmatprep.subr.mxu0 0.0
    %2313 = vmatpush2.msra.mxu0 0.0
    %2314 = vmatprep.subr.mxu0 0.0
    %2315 = vmatpush2.msra.mxu0 0.0
    %2316 = vmatprep.subr.mxu0 0.0
    %2317 = vmatpush2.msra.mxu0 0.0
    %2318 = vmatprep.subr.mxu0 0.0
    %2319 = vmatpush2.msra.mxu0 0.0
    %2320 = vmatprep.subr.mxu0 0.0
    %2321 = vmatpush2.msra.mxu0 0.0
    %2322 = vmatprep.subr.mxu0 0.0
    %2323 = vmatpush2.msra.mxu0 0.0
    %2324 = vmatprep.subr.mxu0 0.0
    %2325 = vmatpush2.msra.mxu0 0.0
    %2326 = vmatprep.subr.mxu0 0.0
    %2327 = vmatpush2.msra.mxu0 0.0
    %2328 = vmatprep.subr.mxu0 0.0
    %2329 = vmatpush2.msra.mxu0 0.0
    %2330 = vmatprep.mubr.f32.mxu0 0.0
    %2331 = vmatmul.mubr.f32.gmra.mxu0 %v2194
    %v2332 = vpop.f32.mrf.mxu0
    %v2333 = vadd.f32 0.0, %v2332
    %v2334 = vpop.f32.mrf.mxu0
    %v2335 = vadd.f32 0.0, %v2334
    %2336 = vdwg.mxu0
    %2337 = vmatprep.subr.mxu0 %v327
    %2338 = vmatpush1.msra.mxu0 %v326
    %2339 = vmatprep.subr.mxu0 %v321
    %2340 = vmatpush1.msra.mxu0 %v320
    %2341 = vmatprep.subr.mxu0 %v315
    %2342 = vmatpush1.msra.mxu0 %v314
    %2343 = vmatprep.subr.mxu0 %v309
    %2344 = vmatpush1.msra.mxu0 %v308
    %2345 = vmatprep.subr.mxu0 %v303
    %2346 = vmatpush1.msra.mxu0 %v302
    %2347 = vmatprep.subr.mxu0 %v297
    %2348 = vmatpush1.msra.mxu0 %v296
    %2349 = vmatprep.subr.mxu0 %v291
    %2350 = vmatpush1.msra.mxu0 %v290
    %2351 = vmatprep.subr.mxu0 %v285
    %2352 = vmatpush1.msra.mxu0 %v284
    %2353 = vmatprep.subr.mxu0 %v279
    %2354 = vmatpush1.msra.mxu0 %v278
    %2355 = vmatprep.subr.mxu0 %v273
    %2356 = vmatpush1.msra.mxu0 %v272
    %2357 = vmatprep.subr.mxu0 %v267
    %2358 = vmatpush1.msra.mxu0 %v266
    %2359 = vmatprep.subr.mxu0 %v261
    %2360 = vmatpush1.msra.mxu0 %v260
    %2361 = vmatprep.subr.mxu0 %v255
    %2362 = vmatpush1.msra.mxu0 %v254
    %2363 = vmatprep.subr.mxu0 %v249
    %2364 = vmatpush1.msra.mxu0 %v248
    %2365 = vmatprep.subr.mxu0 %v243
    %2366 = vmatpush1.msra.mxu0 %v242
    %2367 = vmatprep.subr.mxu0 %v237
    %2368 = vmatpush1.msra.mxu0 %v236
    %2369 = vmatprep.subr.mxu0 0.0
    %2370 = vmatpush2.msra.mxu0 0.0
    %2371 = vmatprep.subr.mxu0 0.0
    %2372 = vmatpush2.msra.mxu0 0.0
    %2373 = vmatprep.subr.mxu0 0.0
    %2374 = vmatpush2.msra.mxu0 0.0
    %2375 = vmatprep.subr.mxu0 0.0
    %2376 = vmatpush2.msra.mxu0 0.0
    %2377 = vmatprep.subr.mxu0 0.0
    %2378 = vmatpush2.msra.mxu0 0.0
    %2379 = vmatprep.subr.mxu0 0.0
    %2380 = vmatpush2.msra.mxu0 0.0
    %2381 = vmatprep.subr.mxu0 0.0
    %2382 = vmatpush2.msra.mxu0 0.0
    %2383 = vmatprep.subr.mxu0 0.0
    %2384 = vmatpush2.msra.mxu0 0.0
    %2385 = vmatprep.subr.mxu0 0.0
    %2386 = vmatpush2.msra.mxu0 0.0
    %2387 = vmatprep.subr.mxu0 0.0
    %2388 = vmatpush2.msra.mxu0 0.0
    %2389 = vmatprep.subr.mxu0 0.0
    %2390 = vmatpush2.msra.mxu0 0.0
    %2391 = vmatprep.subr.mxu0 0.0
    %2392 = vmatpush2.msra.mxu0 0.0
    %2393 = vmatprep.subr.mxu0 0.0
    %2394 = vmatpush2.msra.mxu0 0.0
    %2395 = vmatprep.subr.mxu0 0.0
    %2396 = vmatpush2.msra.mxu0 0.0
    %2397 = vmatprep.subr.mxu0 0.0
    %2398 = vmatpush2.msra.mxu0 0.0
    %2399 = vmatprep.subr.mxu0 0.0
    %2400 = vmatpush2.msra.mxu0 0.0
    %2401 = vmatprep.mubr.f32.mxu0 0.0
    %2402 = vmatmul.mubr.f32.gmra.mxu0 %v2194
    %v2403 = vpop.f32.mrf.mxu0
    %v2404 = vadd.f32 0.0, %v2403
    %v2405 = vpop.f32.mrf.mxu0
    %v2406 = vadd.f32 0.0, %v2405
    %2407 = vdwg.mxu0
    %v2408 = vadd.f32 %v2262, %v544
    %v2409 = vadd.f32 %v2264, %v548
    %v2410 = vadd.f32 %v2333, %v552
    %v2411 = vadd.f32 %v2335, %v204
    %v2412 = vadd.f32 %v2404, %v215
    %v2413 = vadd.f32 %v2406, %v226
    %v2414 = vadd.f32 %v2408, %v796
    %v2415 = vxor.u32 %v2414, 2147483648
    %v2416 = vmul.f32 %v2415, 1.442695
    %v2417 = vpow.pop %v2416
    %v2418 = vadd.f32 %v2417, 1.0
    %v2419 = vrcp.pop %v2418
    %v2420 = vmul.f32 1.0, %v2419
    %v2421 = vadd.f32 %v2409, %v797
    %v2422 = vxor.u32 %v2421, 2147483648
    %v2423 = vmul.f32 %v2422, 1.442695
    %v2424 = vpow.pop %v2423
    %v2425 = vadd.f32 %v2424, 1.0
    %v2426 = vrcp.pop %v2425
    %v2427 = vmul.f32 1.0, %v2426
    %v2428 = vmul.f32 %v2420, %v798
    %v2429 = vadd.f32 %v2410, %v2428
    %v2430 = vtanh.pop %v2429
    %v2431 = vsub.f32 1.0, %v2427
    %v2432 = vmul.f32 %v2431, %v2430
    %v2433 = vmul.f32 %v2427, %v589
    %v2434 = vadd.f32 %v2432, %v2433
    %2435 = vmatprep.subr.mxu0 %v651
    %2436 = vmatpush1.msra.mxu0 %v650
    %2437 = vmatprep.subr.mxu0 %v647
    %2438 = vmatpush1.msra.mxu0 %v646
    %2439 = vmatprep.subr.mxu0 %v643
    %2440 = vmatpush1.msra.mxu0 %v642
    %2441 = vmatprep.subr.mxu0 %v639
    %2442 = vmatpush1.msra.mxu0 %v638
    %2443 = vmatprep.subr.mxu0 %v635
    %2444 = vmatpush1.msra.mxu0 %v634
    %2445 = vmatprep.subr.mxu0 %v631
    %2446 = vmatpush1.msra.mxu0 %v630
    %2447 = vmatprep.subr.mxu0 %v627
    %2448 = vmatpush1.msra.mxu0 %v626
    %2449 = vmatprep.subr.mxu0 %v623
    %2450 = vmatpush1.msra.mxu0 %v622
    %2451 = vmatprep.subr.mxu0 %v619
    %2452 = vmatpush1.msra.mxu0 %v618
    %2453 = vmatprep.subr.mxu0 %v615
    %2454 = vmatpush1.msra.mxu0 %v614
    %2455 = vmatprep.subr.mxu0 %v611
    %2456 = vmatpush1.msra.mxu0 %v610
    %2457 = vmatprep.subr.mxu0 %v607
    %2458 = vmatpush1.msra.mxu0 %v606
    %2459 = vmatprep.subr.mxu0 %v603
    %2460 = vmatpush1.msra.mxu0 %v602
    %2461 = vmatprep.subr.mxu0 %v599
    %2462 = vmatpush1.msra.mxu0 %v598
    %2463 = vmatprep.subr.mxu0 %v595
    %2464 = vmatpush1.msra.mxu0 %v594
    %2465 = vmatprep.subr.mxu0 %v591
    %2466 = vmatpush1.msra.mxu0 %v590
    %2467 = vmatprep.subr.mxu0 0.0
    %2468 = vmatpush2.msra.mxu0 0.0
    %2469 = vmatprep.subr.mxu0 0.0
    %2470 = vmatpush2.msra.mxu0 0.0
    %2471 = vmatprep.subr.mxu0 0.0
    %2472 = vmatpush2.msra.mxu0 0.0
    %2473 = vmatprep.subr.mxu0 0.0
    %2474 = vmatpush2.msra.mxu0 0.0
    %2475 = vmatprep.subr.mxu0 0.0
    %2476 = vmatpush2.msra.mxu0 0.0
    %2477 = vmatprep.subr.mxu0 0.0
    %2478 = vmatpush2.msra.mxu0 0.0
    %2479 = vmatprep.subr.mxu0 0.0
    %2480 = vmatpush2.msra.mxu0 0.0
    %2481 = vmatprep.subr.mxu0 0.0
    %2482 = vmatpush2.msra.mxu0 0.0
    %2483 = vmatprep.subr.mxu0 0.0
    %2484 = vmatpush2.msra.mxu0 0.0
    %2485 = vmatprep.subr.mxu0 0.0
    %2486 = vmatpush2.msra.mxu0 0.0
    %2487 = vmatprep.subr.mxu0 0.0
    %2488 = vmatpush2.msra.mxu0 0.0
    %2489 = vmatprep.subr.mxu0 0.0
    %2490 = vmatpush2.msra.mxu0 0.0
    %2491 = vmatprep.subr.mxu0 0.0
    %2492 = vmatpush2.msra.mxu0 0.0
    %2493 = vmatprep.subr.mxu0 0.0
    %2494 = vmatpush2.msra.mxu0 0.0
    %2495 = vmatprep.subr.mxu0 0.0
    %2496 = vmatpush2.msra.mxu0 0.0
    %2497 = vmatprep.subr.mxu0 0.0
    %2498 = vmatpush2.msra.mxu0 0.0
    %2499 = vmatprep.mubr.f32.mxu0 0.0
    %2500 = vmatmul.mubr.f32.gmra.mxu0 %v2434
    %v2501 = vpop.f32.mrf.mxu0
    %v2502 = vadd.f32 0.0, %v2501
    %v2503 = vpop.f32.mrf.mxu0
    %v2504 = vadd.f32 0.0, %v2503
    %2505 = vdwg.mxu0
    %2506 = vmatprep.subr.mxu0 %v653
    %2507 = vmatpush1.msra.mxu0 %v652
    %2508 = vmatprep.subr.mxu0 %v649
    %2509 = vmatpush1.msra.mxu0 %v648
    %2510 = vmatprep.subr.mxu0 %v645
    %2511 = vmatpush1.msra.mxu0 %v644
    %2512 = vmatprep.subr.mxu0 %v641
    %2513 = vmatpush1.msra.mxu0 %v640
    %2514 = vmatprep.subr.mxu0 %v637
    %2515 = vmatpush1.msra.mxu0 %v636
    %2516 = vmatprep.subr.mxu0 %v633
    %2517 = vmatpush1.msra.mxu0 %v632
    %2518 = vmatprep.subr.mxu0 %v629
    %2519 = vmatpush1.msra.mxu0 %v628
    %2520 = vmatprep.subr.mxu0 %v625
    %2521 = vmatpush1.msra.mxu0 %v624
    %2522 = vmatprep.subr.mxu0 %v621
    %2523 = vmatpush1.msra.mxu0 %v620
    %2524 = vmatprep.subr.mxu0 %v617
    %2525 = vmatpush1.msra.mxu0 %v616
    %2526 = vmatprep.subr.mxu0 %v613
    %2527 = vmatpush1.msra.mxu0 %v612
    %2528 = vmatprep.subr.mxu0 %v609
    %2529 = vmatpush1.msra.mxu0 %v608
    %2530 = vmatprep.subr.mxu0 %v605
    %2531 = vmatpush1.msra.mxu0 %v604
    %2532 = vmatprep.subr.mxu0 %v601
    %2533 = vmatpush1.msra.mxu0 %v600
    %2534 = vmatprep.subr.mxu0 %v597
    %2535 = vmatpush1.msra.mxu0 %v596
    %2536 = vmatprep.subr.mxu0 %v593
    %2537 = vmatpush1.msra.mxu0 %v592
    %2538 = vmatprep.subr.mxu0 0.0
    %2539 = vmatpush2.msra.mxu0 0.0
    %2540 = vmatprep.subr.mxu0 0.0
    %2541 = vmatpush2.msra.mxu0 0.0
    %2542 = vmatprep.subr.mxu0 0.0
    %2543 = vmatpush2.msra.mxu0 0.0
    %2544 = vmatprep.subr.mxu0 0.0
    %2545 = vmatpush2.msra.mxu0 0.0
    %2546 = vmatprep.subr.mxu0 0.0
    %2547 = vmatpush2.msra.mxu0 0.0
    %2548 = vmatprep.subr.mxu0 0.0
    %2549 = vmatpush2.msra.mxu0 0.0
    %2550 = vmatprep.subr.mxu0 0.0
    %2551 = vmatpush2.msra.mxu0 0.0
    %2552 = vmatprep.subr.mxu0 0.0
    %2553 = vmatpush2.msra.mxu0 0.0
    %2554 = vmatprep.subr.mxu0 0.0
    %2555 = vmatpush2.msra.mxu0 0.0
    %2556 = vmatprep.subr.mxu0 0.0
    %2557 = vmatpush2.msra.mxu0 0.0
    %2558 = vmatprep.subr.mxu0 0.0
    %2559 = vmatpush2.msra.mxu0 0.0
    %2560 = vmatprep.subr.mxu0 0.0
    %2561 = vmatpush2.msra.mxu0 0.0
    %2562 = vmatprep.subr.mxu0 0.0
    %2563 = vmatpush2.msra.mxu0 0.0
    %2564 = vmatprep.subr.mxu0 0.0
    %2565 = vmatpush2.msra.mxu0 0.0
    %2566 = vmatprep.subr.mxu0 0.0
    %2567 = vmatpush2.msra.mxu0 0.0
    %2568 = vmatprep.subr.mxu0 0.0
    %2569 = vmatpush2.msra.mxu0 0.0
    %2570 = vmatprep.mubr.f32.mxu0 0.0
    %2571 = vmatmul.mubr.f32.gmra.mxu0 %v2434
    %v2572 = vpop.f32.mrf.mxu0
    %v2573 = vadd.f32 0.0, %v2572
    %v2574 = vpop.f32.mrf.mxu0
    %v2575 = vadd.f32 0.0, %v2574
    %2576 = vdwg.mxu0
    %v2577 = vadd.f32 %v2502, %v562
    %v2578 = vadd.f32 %v2504, %v573
    %v2579 = vadd.f32 %v2573, %v584
    %v2580 = vadd.f32 %v2575, %v803
    %vm2581 = vcmp.gt.f32.partialorder %v2580, 0.0
    %v2582 = vmin.f32 %v2580, 0.0
    %v2583 = vmul.f32 %v2582, 1.442695
    %v2584 = vpow.pop %v2583
    %v2585 = vsub.f32 %v2584, 1.0
    %v2586 = vsel %vm2581, %v2580, %v2585
    %v2587 = vadd.f32 %v2586, 0.0
    %v2588 = vsel %vm813, %v2587, 0.0
    %v2589 = vrot.slane %v2588, 4
    %v2590 = vadd.f32 %v2588, %v2589
    %v2591 = vrot.slane %v2590, 2
    %v2592 = vadd.f32 %v2590, %v2591
    %v2593 = vrot.slane %v2592, 1
    %v2594 = vadd.f32 %v2592, %v2593
    %v2595 = vmul.f32 %v2594, 0.125
    %v2596 = vsub.f32 %v2586, %v2595
    %v2597 = vmul.f32 %v2596, %v2596
    %v2598 = vadd.f32 %v2597, 0.0
    %v2599 = vsel %vm813, %v2598, 0.0
    %v2600 = vrot.slane %v2599, 4
    %v2601 = vadd.f32 %v2599, %v2600
    %v2602 = vrot.slane %v2601, 2
    %v2603 = vadd.f32 %v2601, %v2602
    %v2604 = vrot.slane %v2603, 1
    %v2605 = vadd.f32 %v2603, %v2604
    %v2606 = vmul.f32 %v2605, 0.14285715
    %v2607 = vrsqrt.pop %v2606
    %v2608 = vmul.f32 %v2596, %v2607
    %2609 = vrot.lane.b32.xlu0 %v115, 127
    %v2610 = vpop.permute.xlu0 %2609
    %v2612 = vadd.f32 %v2608, %v2610
    %2614 = vset.pattern.permute.xlu0 0
    %2615 = vperm.xlu0 %2614, %v2612
    %v2616 = vpop.permute.xlu0 %2615
    %v2618 = vmul.f32 %v2616, %v844
    %v2619 = vmul.f32 %v2616, %v848
    %v2620 = vmul.f32 %v2616, %v852
    %v2621 = vadd.f32 %v2618, %v859
    %v2622 = vadd.f32 %v2619, %v863
    %v2623 = vadd.f32 %v2620, %v867
    %v2624 = vadd.f32 %v2621, %v1227
    %v2625 = vxor.u32 %v2624, 2147483648
    %v2626 = vmul.f32 %v2625, 1.442695
    %v2627 = vpow.pop %v2626
    %v2628 = vadd.f32 %v2627, 1.0
    %v2629 = vrcp.pop %v2628
    %v2630 = vmul.f32 1.0, %v2629
    %v2631 = vadd.f32 %v2622, %v1228
    %v2632 = vxor.u32 %v2631, 2147483648
    %v2633 = vmul.f32 %v2632, 1.442695
    %v2634 = vpow.pop %v2633
    %v2635 = vadd.f32 %v2634, 1.0
    %v2636 = vrcp.pop %v2635
    %v2637 = vmul.f32 1.0, %v2636
    %v2638 = vmul.f32 %v2630, %v1229
    %v2639 = vadd.f32 %v2623, %v2638
    %v2640 = vtanh.pop %v2639
    %v2641 = vsub.f32 1.0, %v2637
    %v2642 = vmul.f32 %v2641, %v2640
    %v2643 = vmul.f32 %v2637, %v901
    %v2644 = vadd.f32 %v2642, %v2643
    %2645 = vmatprep.subr.mxu0 %v994
    %2646 = vmatpush1.msra.mxu0 %v993
    %2647 = vmatprep.subr.mxu0 %v988
    %2648 = vmatpush1.msra.mxu0 %v987
    %2649 = vmatprep.subr.mxu0 %v982
    %2650 = vmatpush1.msra.mxu0 %v981
    %2651 = vmatprep.subr.mxu0 %v976
    %2652 = vmatpush1.msra.mxu0 %v975
    %2653 = vmatprep.subr.mxu0 %v970
    %2654 = vmatpush1.msra.mxu0 %v969
    %2655 = vmatprep.subr.mxu0 %v964
    %2656 = vmatpush1.msra.mxu0 %v963
    %2657 = vmatprep.subr.mxu0 %v958
    %2658 = vmatpush1.msra.mxu0 %v957
    %2659 = vmatprep.subr.mxu0 %v952
    %2660 = vmatpush1.msra.mxu0 %v951
    %2661 = vmatprep.subr.mxu0 %v946
    %2662 = vmatpush1.msra.mxu0 %v945
    %2663 = vmatprep.subr.mxu0 %v940
    %2664 = vmatpush1.msra.mxu0 %v939
    %2665 = vmatprep.subr.mxu0 %v934
    %2666 = vmatpush1.msra.mxu0 %v933
    %2667 = vmatprep.subr.mxu0 %v928
    %2668 = vmatpush1.msra.mxu0 %v927
    %2669 = vmatprep.subr.mxu0 %v922
    %2670 = vmatpush1.msra.mxu0 %v921
    %2671 = vmatprep.subr.mxu0 %v916
    %2672 = vmatpush1.msra.mxu0 %v915
    %2673 = vmatprep.subr.mxu0 %v910
    %2674 = vmatpush1.msra.mxu0 %v909
    %2675 = vmatprep.subr.mxu0 %v904
    %2676 = vmatpush1.msra.mxu0 %v903
    %2677 = vmatprep.subr.mxu0 0.0
    %2678 = vmatpush2.msra.mxu0 0.0
    %2679 = vmatprep.subr.mxu0 0.0
    %2680 = vmatpush2.msra.mxu0 0.0
    %2681 = vmatprep.subr.mxu0 0.0
    %2682 = vmatpush2.msra.mxu0 0.0
    %2683 = vmatprep.subr.mxu0 0.0
    %2684 = vmatpush2.msra.mxu0 0.0
    %2685 = vmatprep.subr.mxu0 0.0
    %2686 = vmatpush2.msra.mxu0 0.0
    %2687 = vmatprep.subr.mxu0 0.0
    %2688 = vmatpush2.msra.mxu0 0.0
    %2689 = vmatprep.subr.mxu0 0.0
    %2690 = vmatpush2.msra.mxu0 0.0
    %2691 = vmatprep.subr.mxu0 0.0
    %2692 = vmatpush2.msra.mxu0 0.0
    %2693 = vmatprep.subr.mxu0 0.0
    %2694 = vmatpush2.msra.mxu0 0.0
    %2695 = vmatprep.subr.mxu0 0.0
    %2696 = vmatpush2.msra.mxu0 0.0
    %2697 = vmatprep.subr.mxu0 0.0
    %2698 = vmatpush2.msra.mxu0 0.0
    %2699 = vmatprep.subr.mxu0 0.0
    %2700 = vmatpush2.msra.mxu0 0.0
    %2701 = vmatprep.subr.mxu0 0.0
    %2702 = vmatpush2.msra.mxu0 0.0
    %2703 = vmatprep.subr.mxu0 0.0
    %2704 = vmatpush2.msra.mxu0 0.0
    %2705 = vmatprep.subr.mxu0 0.0
    %2706 = vmatpush2.msra.mxu0 0.0
    %2707 = vmatprep.subr.mxu0 0.0
    %2708 = vmatpush2.msra.mxu0 0.0
    %2709 = vmatprep.mubr.f32.mxu0 0.0
    %2710 = vmatmul.mubr.f32.gmra.mxu0 %v2644
    %v2711 = vpop.f32.mrf.mxu0
    %v2712 = vadd.f32 0.0, %v2711
    %v2713 = vpop.f32.mrf.mxu0
    %v2714 = vadd.f32 0.0, %v2713
    %2715 = vdwg.mxu0
    %2716 = vmatprep.subr.mxu0 %v996
    %2717 = vmatpush1.msra.mxu0 %v995
    %2718 = vmatprep.subr.mxu0 %v990
    %2719 = vmatpush1.msra.mxu0 %v989
    %2720 = vmatprep.subr.mxu0 %v984
    %2721 = vmatpush1.msra.mxu0 %v983
    %2722 = vmatprep.subr.mxu0 %v978
    %2723 = vmatpush1.msra.mxu0 %v977
    %2724 = vmatprep.subr.mxu0 %v972
    %2725 = vmatpush1.msra.mxu0 %v971
    %2726 = vmatprep.subr.mxu0 %v966
    %2727 = vmatpush1.msra.mxu0 %v965
    %2728 = vmatprep.subr.mxu0 %v960
    %2729 = vmatpush1.msra.mxu0 %v959
    %2730 = vmatprep.subr.mxu0 %v954
    %2731 = vmatpush1.msra.mxu0 %v953
    %2732 = vmatprep.subr.mxu0 %v948
    %2733 = vmatpush1.msra.mxu0 %v947
    %2734 = vmatprep.subr.mxu0 %v942
    %2735 = vmatpush1.msra.mxu0 %v941
    %2736 = vmatprep.subr.mxu0 %v936
    %2737 = vmatpush1.msra.mxu0 %v935
    %2738 = vmatprep.subr.mxu0 %v930
    %2739 = vmatpush1.msra.mxu0 %v929
    %2740 = vmatprep.subr.mxu0 %v924
    %2741 = vmatpush1.msra.mxu0 %v923
    %2742 = vmatprep.subr.mxu0 %v918
    %2743 = vmatpush1.msra.mxu0 %v917
    %2744 = vmatprep.subr.mxu0 %v912
    %2745 = vmatpush1.msra.mxu0 %v911
    %2746 = vmatprep.subr.mxu0 %v906
    %2747 = vmatpush1.msra.mxu0 %v905
    %2748 = vmatprep.subr.mxu0 0.0
    %2749 = vmatpush2.msra.mxu0 0.0
    %2750 = vmatprep.subr.mxu0 0.0
    %2751 = vmatpush2.msra.mxu0 0.0
    %2752 = vmatprep.subr.mxu0 0.0
    %2753 = vmatpush2.msra.mxu0 0.0
    %2754 = vmatprep.subr.mxu0 0.0
    %2755 = vmatpush2.msra.mxu0 0.0
    %2756 = vmatprep.subr.mxu0 0.0
    %2757 = vmatpush2.msra.mxu0 0.0
    %2758 = vmatprep.subr.mxu0 0.0
    %2759 = vmatpush2.msra.mxu0 0.0
    %2760 = vmatprep.subr.mxu0 0.0
    %2761 = vmatpush2.msra.mxu0 0.0
    %2762 = vmatprep.subr.mxu0 0.0
    %2763 = vmatpush2.msra.mxu0 0.0
    %2764 = vmatprep.subr.mxu0 0.0
    %2765 = vmatpush2.msra.mxu0 0.0
    %2766 = vmatprep.subr.mxu0 0.0
    %2767 = vmatpush2.msra.mxu0 0.0
    %2768 = vmatprep.subr.mxu0 0.0
    %2769 = vmatpush2.msra.mxu0 0.0
    %2770 = vmatprep.subr.mxu0 0.0
    %2771 = vmatpush2.msra.mxu0 0.0
    %2772 = vmatprep.subr.mxu0 0.0
    %2773 = vmatpush2.msra.mxu0 0.0
    %2774 = vmatprep.subr.mxu0 0.0
    %2775 = vmatpush2.msra.mxu0 0.0
    %2776 = vmatprep.subr.mxu0 0.0
    %2777 = vmatpush2.msra.mxu0 0.0
    %2778 = vmatprep.subr.mxu0 0.0
    %2779 = vmatpush2.msra.mxu0 0.0
    %2780 = vmatprep.mubr.f32.mxu0 0.0
    %2781 = vmatmul.mubr.f32.gmra.mxu0 %v2644
    %v2782 = vpop.f32.mrf.mxu0
    %v2783 = vadd.f32 0.0, %v2782
    %v2784 = vpop.f32.mrf.mxu0
    %v2785 = vadd.f32 0.0, %v2784
    %2786 = vdwg.mxu0
    %2787 = vmatprep.subr.mxu0 %v998
    %2788 = vmatpush1.msra.mxu0 %v997
    %2789 = vmatprep.subr.mxu0 %v992
    %2790 = vmatpush1.msra.mxu0 %v991
    %2791 = vmatprep.subr.mxu0 %v986
    %2792 = vmatpush1.msra.mxu0 %v985
    %2793 = vmatprep.subr.mxu0 %v980
    %2794 = vmatpush1.msra.mxu0 %v979
    %2795 = vmatprep.subr.mxu0 %v974
    %2796 = vmatpush1.msra.mxu0 %v973
    %2797 = vmatprep.subr.mxu0 %v968
    %2798 = vmatpush1.msra.mxu0 %v967
    %2799 = vmatprep.subr.mxu0 %v962
    %2800 = vmatpush1.msra.mxu0 %v961
    %2801 = vmatprep.subr.mxu0 %v956
    %2802 = vmatpush1.msra.mxu0 %v955
    %2803 = vmatprep.subr.mxu0 %v950
    %2804 = vmatpush1.msra.mxu0 %v949
    %2805 = vmatprep.subr.mxu0 %v944
    %2806 = vmatpush1.msra.mxu0 %v943
    %2807 = vmatprep.subr.mxu0 %v938
    %2808 = vmatpush1.msra.mxu0 %v937
    %2809 = vmatprep.subr.mxu0 %v932
    %2810 = vmatpush1.msra.mxu0 %v931
    %2811 = vmatprep.subr.mxu0 %v926
    %2812 = vmatpush1.msra.mxu0 %v925
    %2813 = vmatprep.subr.mxu0 %v920
    %2814 = vmatpush1.msra.mxu0 %v919
    %2815 = vmatprep.subr.mxu0 %v914
    %2816 = vmatpush1.msra.mxu0 %v913
    %2817 = vmatprep.subr.mxu0 %v908
    %2818 = vmatpush1.msra.mxu0 %v907
    %2819 = vmatprep.subr.mxu0 0.0
    %2820 = vmatpush2.msra.mxu0 0.0
    %2821 = vmatprep.subr.mxu0 0.0
    %2822 = vmatpush2.msra.mxu0 0.0
    %2823 = vmatprep.subr.mxu0 0.0
    %2824 = vmatpush2.msra.mxu0 0.0
    %2825 = vmatprep.subr.mxu0 0.0
    %2826 = vmatpush2.msra.mxu0 0.0
    %2827 = vmatprep.subr.mxu0 0.0
    %2828 = vmatpush2.msra.mxu0 0.0
    %2829 = vmatprep.subr.mxu0 0.0
    %2830 = vmatpush2.msra.mxu0 0.0
    %2831 = vmatprep.subr.mxu0 0.0
    %2832 = vmatpush2.msra.mxu0 0.0
    %2833 = vmatprep.subr.mxu0 0.0
    %2834 = vmatpush2.msra.mxu0 0.0
    %2835 = vmatprep.subr.mxu0 0.0
    %2836 = vmatpush2.msra.mxu0 0.0
    %2837 = vmatprep.subr.mxu0 0.0
    %2838 = vmatpush2.msra.mxu0 0.0
    %2839 = vmatprep.subr.mxu0 0.0
    %2840 = vmatpush2.msra.mxu0 0.0
    %2841 = vmatprep.subr.mxu0 0.0
    %2842 = vmatpush2.msra.mxu0 0.0
    %2843 = vmatprep.subr.mxu0 0.0
    %2844 = vmatpush2.msra.mxu0 0.0
    %2845 = vmatprep.subr.mxu0 0.0
    %2846 = vmatpush2.msra.mxu0 0.0
    %2847 = vmatprep.subr.mxu0 0.0
    %2848 = vmatpush2.msra.mxu0 0.0
    %2849 = vmatprep.subr.mxu0 0.0
    %2850 = vmatpush2.msra.mxu0 0.0
    %2851 = vmatprep.mubr.f32.mxu0 0.0
    %2852 = vmatmul.mubr.f32.gmra.mxu0 %v2644
    %v2853 = vpop.f32.mrf.mxu0
    %v2854 = vadd.f32 0.0, %v2853
    %v2855 = vpop.f32.mrf.mxu0
    %v2856 = vadd.f32 0.0, %v2855
    %2857 = vdwg.mxu0
    %v2858 = vadd.f32 %v2712, %v1215
    %v2859 = vadd.f32 %v2714, %v1219
    %v2860 = vadd.f32 %v2783, %v1223
    %v2861 = vadd.f32 %v2785, %v874
    %v2862 = vadd.f32 %v2854, %v885
    %v2863 = vadd.f32 %v2856, %v896
    %v2864 = vadd.f32 %v2858, %v1468
    %v2865 = vxor.u32 %v2864, 2147483648
    %v2866 = vmul.f32 %v2865, 1.442695
    %v2867 = vpow.pop %v2866
    %v2868 = vadd.f32 %v2867, 1.0
    %v2869 = vrcp.pop %v2868
    %v2870 = vmul.f32 1.0, %v2869
    %v2871 = vadd.f32 %v2859, %v1469
    %v2872 = vxor.u32 %v2871, 2147483648
    %v2873 = vmul.f32 %v2872, 1.442695
    %v2874 = vpow.pop %v2873
    %v2875 = vadd.f32 %v2874, 1.0
    %v2876 = vrcp.pop %v2875
    %v2877 = vmul.f32 1.0, %v2876
    %v2878 = vmul.f32 %v2870, %v1470
    %v2879 = vadd.f32 %v2860, %v2878
    %v2880 = vtanh.pop %v2879
    %v2881 = vsub.f32 1.0, %v2877
    %v2882 = vmul.f32 %v2881, %v2880
    %v2883 = vmul.f32 %v2877, %v1260
    %v2884 = vadd.f32 %v2882, %v2883
    %2885 = vmatprep.subr.mxu0 %v1323
    %2886 = vmatpush1.msra.mxu0 %v1322
    %2887 = vmatprep.subr.mxu0 %v1319
    %2888 = vmatpush1.msra.mxu0 %v1318
    %2889 = vmatprep.subr.mxu0 %v1315
    %2890 = vmatpush1.msra.mxu0 %v1314
    %2891 = vmatprep.subr.mxu0 %v1311
    %2892 = vmatpush1.msra.mxu0 %v1310
    %2893 = vmatprep.subr.mxu0 %v1307
    %2894 = vmatpush1.msra.mxu0 %v1306
    %2895 = vmatprep.subr.mxu0 %v1303
    %2896 = vmatpush1.msra.mxu0 %v1302
    %2897 = vmatprep.subr.mxu0 %v1299
    %2898 = vmatpush1.msra.mxu0 %v1298
    %2899 = vmatprep.subr.mxu0 %v1295
    %2900 = vmatpush1.msra.mxu0 %v1294
    %2901 = vmatprep.subr.mxu0 %v1291
    %2902 = vmatpush1.msra.mxu0 %v1290
    %2903 = vmatprep.subr.mxu0 %v1287
    %2904 = vmatpush1.msra.mxu0 %v1286
    %2905 = vmatprep.subr.mxu0 %v1283
    %2906 = vmatpush1.msra.mxu0 %v1282
    %2907 = vmatprep.subr.mxu0 %v1279
    %2908 = vmatpush1.msra.mxu0 %v1278
    %2909 = vmatprep.subr.mxu0 %v1275
    %2910 = vmatpush1.msra.mxu0 %v1274
    %2911 = vmatprep.subr.mxu0 %v1271
    %2912 = vmatpush1.msra.mxu0 %v1270
    %2913 = vmatprep.subr.mxu0 %v1267
    %2914 = vmatpush1.msra.mxu0 %v1266
    %2915 = vmatprep.subr.mxu0 %v1263
    %2916 = vmatpush1.msra.mxu0 %v1262
    %2917 = vmatprep.subr.mxu0 0.0
    %2918 = vmatpush2.msra.mxu0 0.0
    %2919 = vmatprep.subr.mxu0 0.0
    %2920 = vmatpush2.msra.mxu0 0.0
    %2921 = vmatprep.subr.mxu0 0.0
    %2922 = vmatpush2.msra.mxu0 0.0
    %2923 = vmatprep.subr.mxu0 0.0
    %2924 = vmatpush2.msra.mxu0 0.0
    %2925 = vmatprep.subr.mxu0 0.0
    %2926 = vmatpush2.msra.mxu0 0.0
    %2927 = vmatprep.subr.mxu0 0.0
    %2928 = vmatpush2.msra.mxu0 0.0
    %2929 = vmatprep.subr.mxu0 0.0
    %2930 = vmatpush2.msra.mxu0 0.0
    %2931 = vmatprep.subr.mxu0 0.0
    %2932 = vmatpush2.msra.mxu0 0.0
    %2933 = vmatprep.subr.mxu0 0.0
    %2934 = vmatpush2.msra.mxu0 0.0
    %2935 = vmatprep.subr.mxu0 0.0
    %2936 = vmatpush2.msra.mxu0 0.0
    %2937 = vmatprep.subr.mxu0 0.0
    %2938 = vmatpush2.msra.mxu0 0.0
    %2939 = vmatprep.subr.mxu0 0.0
    %2940 = vmatpush2.msra.mxu0 0.0
    %2941 = vmatprep.subr.mxu0 0.0
    %2942 = vmatpush2.msra.mxu0 0.0
    %2943 = vmatprep.subr.mxu0 0.0
    %2944 = vmatpush2.msra.mxu0 0.0
    %2945 = vmatprep.subr.mxu0 0.0
    %2946 = vmatpush2.msra.mxu0 0.0
    %2947 = vmatprep.subr.mxu0 0.0
    %2948 = vmatpush2.msra.mxu0 0.0
    %2949 = vmatprep.mubr.f32.mxu0 0.0
    %2950 = vmatmul.mubr.f32.gmra.mxu0 %v2884
    %v2951 = vpop.f32.mrf.mxu0
    %v2952 = vadd.f32 0.0, %v2951
    %v2953 = vpop.f32.mrf.mxu0
    %v2954 = vadd.f32 0.0, %v2953
    %2955 = vdwg.mxu0
    %2956 = vmatprep.subr.mxu0 %v1325
    %2957 = vmatpush1.msra.mxu0 %v1324
    %2958 = vmatprep.subr.mxu0 %v1321
    %2959 = vmatpush1.msra.mxu0 %v1320
    %2960 = vmatprep.subr.mxu0 %v1317
    %2961 = vmatpush1.msra.mxu0 %v1316
    %2962 = vmatprep.subr.mxu0 %v1313
    %2963 = vmatpush1.msra.mxu0 %v1312
    %2964 = vmatprep.subr.mxu0 %v1309
    %2965 = vmatpush1.msra.mxu0 %v1308
    %2966 = vmatprep.subr.mxu0 %v1305
    %2967 = vmatpush1.msra.mxu0 %v1304
    %2968 = vmatprep.subr.mxu0 %v1301
    %2969 = vmatpush1.msra.mxu0 %v1300
    %2970 = vmatprep.subr.mxu0 %v1297
    %2971 = vmatpush1.msra.mxu0 %v1296
    %2972 = vmatprep.subr.mxu0 %v1293
    %2973 = vmatpush1.msra.mxu0 %v1292
    %2974 = vmatprep.subr.mxu0 %v1289
    %2975 = vmatpush1.msra.mxu0 %v1288
    %2976 = vmatprep.subr.mxu0 %v1285
    %2977 = vmatpush1.msra.mxu0 %v1284
    %2978 = vmatprep.subr.mxu0 %v1281
    %2979 = vmatpush1.msra.mxu0 %v1280
    %2980 = vmatprep.subr.mxu0 %v1277
    %2981 = vmatpush1.msra.mxu0 %v1276
    %2982 = vmatprep.subr.mxu0 %v1273
    %2983 = vmatpush1.msra.mxu0 %v1272
    %2984 = vmatprep.subr.mxu0 %v1269
    %2985 = vmatpush1.msra.mxu0 %v1268
    %2986 = vmatprep.subr.mxu0 %v1265
    %2987 = vmatpush1.msra.mxu0 %v1264
    %2988 = vmatprep.subr.mxu0 0.0
    %2989 = vmatpush2.msra.mxu0 0.0
    %2990 = vmatprep.subr.mxu0 0.0
    %2991 = vmatpush2.msra.mxu0 0.0
    %2992 = vmatprep.subr.mxu0 0.0
    %2993 = vmatpush2.msra.mxu0 0.0
    %2994 = vmatprep.subr.mxu0 0.0
    %2995 = vmatpush2.msra.mxu0 0.0
    %2996 = vmatprep.subr.mxu0 0.0
    %2997 = vmatpush2.msra.mxu0 0.0
    %2998 = vmatprep.subr.mxu0 0.0
    %2999 = vmatpush2.msra.mxu0 0.0
    %3000 = vmatprep.subr.mxu0 0.0
    %3001 = vmatpush2.msra.mxu0 0.0
    %3002 = vmatprep.subr.mxu0 0.0
    %3003 = vmatpush2.msra.mxu0 0.0
    %3004 = vmatprep.subr.mxu0 0.0
    %3005 = vmatpush2.msra.mxu0 0.0
    %3006 = vmatprep.subr.mxu0 0.0
    %3007 = vmatpush2.msra.mxu0 0.0
    %3008 = vmatprep.subr.mxu0 0.0
    %3009 = vmatpush2.msra.mxu0 0.0
    %3010 = vmatprep.subr.mxu0 0.0
    %3011 = vmatpush2.msra.mxu0 0.0
    %3012 = vmatprep.subr.mxu0 0.0
    %3013 = vmatpush2.msra.mxu0 0.0
    %3014 = vmatprep.subr.mxu0 0.0
    %3015 = vmatpush2.msra.mxu0 0.0
    %3016 = vmatprep.subr.mxu0 0.0
    %3017 = vmatpush2.msra.mxu0 0.0
    %3018 = vmatprep.subr.mxu0 0.0
    %3019 = vmatpush2.msra.mxu0 0.0
    %3020 = vmatprep.mubr.f32.mxu0 0.0
    %3021 = vmatmul.mubr.f32.gmra.mxu0 %v2884
    %v3022 = vpop.f32.mrf.mxu0
    %v3023 = vadd.f32 0.0, %v3022
    %v3024 = vpop.f32.mrf.mxu0
    %v3025 = vadd.f32 0.0, %v3024
    %3026 = vdwg.mxu0
    %v3027 = vadd.f32 %v2952, %v1233
    %v3028 = vadd.f32 %v2954, %v1244
    %v3029 = vadd.f32 %v3023, %v1255
    %v3030 = vadd.f32 %v3025, %v1472
    %3032 = vset.pattern.permute.xlu0 0
    %3033 = vperm.xlu0 %3032, %v3030
    %v3034 = vpop.permute.xlu0 %3033
    %v3036 = vmul.f32 %v3034, %v1483
    %v3037 = vmul.f32 %v3034, %v1487
    %v3038 = vmul.f32 %v3034, %v1491
    %3039 = vset.pattern.permute.xlu0 1
    %3040 = vperm.xlu0 %3039, %v3030
    %v3041 = vpop.permute.xlu0 %3040
    %v3043 = vmul.f32 %v3041, %v1502
    %v3044 = vmul.f32 %v3041, %v1506
    %v3045 = vmul.f32 %v3041, %v1510
    %v3046 = vadd.f32 %v3036, %v3043
    %v3047 = vadd.f32 %v3037, %v3044
    %v3048 = vadd.f32 %v3038, %v3045
    %v3049 = vadd.f32 %v3046, %v1520
    %v3050 = vadd.f32 %v3047, %v1524
    %v3051 = vadd.f32 %v3048, %v1528
    %v3052 = vadd.f32 %v3049, %v1888
    %v3053 = vxor.u32 %v3052, 2147483648
    %v3054 = vmul.f32 %v3053, 1.442695
    %v3055 = vpow.pop %v3054
    %v3056 = vadd.f32 %v3055, 1.0
    %v3057 = vrcp.pop %v3056
    %v3058 = vmul.f32 1.0, %v3057
    %v3059 = vadd.f32 %v3050, %v1889
    %v3060 = vxor.u32 %v3059, 2147483648
    %v3061 = vmul.f32 %v3060, 1.442695
    %v3062 = vpow.pop %v3061
    %v3063 = vadd.f32 %v3062, 1.0
    %v3064 = vrcp.pop %v3063
    %v3065 = vmul.f32 1.0, %v3064
    %v3066 = vmul.f32 %v3058, %v1890
    %v3067 = vadd.f32 %v3051, %v3066
    %v3068 = vtanh.pop %v3067
    %v3069 = vsub.f32 1.0, %v3065
    %v3070 = vmul.f32 %v3069, %v3068
    %v3071 = vmul.f32 %v3065, %v1562
    %v3072 = vadd.f32 %v3070, %v3071
    %3073 = vmatprep.subr.mxu0 %v1655
    %3074 = vmatpush1.msra.mxu0 %v1654
    %3075 = vmatprep.subr.mxu0 %v1649
    %3076 = vmatpush1.msra.mxu0 %v1648
    %3077 = vmatprep.subr.mxu0 %v1643
    %3078 = vmatpush1.msra.mxu0 %v1642
    %3079 = vmatprep.subr.mxu0 %v1637
    %3080 = vmatpush1.msra.mxu0 %v1636
    %3081 = vmatprep.subr.mxu0 %v1631
    %3082 = vmatpush1.msra.mxu0 %v1630
    %3083 = vmatprep.subr.mxu0 %v1625
    %3084 = vmatpush1.msra.mxu0 %v1624
    %3085 = vmatprep.subr.mxu0 %v1619
    %3086 = vmatpush1.msra.mxu0 %v1618
    %3087 = vmatprep.subr.mxu0 %v1613
    %3088 = vmatpush1.msra.mxu0 %v1612
    %3089 = vmatprep.subr.mxu0 %v1607
    %3090 = vmatpush1.msra.mxu0 %v1606
    %3091 = vmatprep.subr.mxu0 %v1601
    %3092 = vmatpush1.msra.mxu0 %v1600
    %3093 = vmatprep.subr.mxu0 %v1595
    %3094 = vmatpush1.msra.mxu0 %v1594
    %3095 = vmatprep.subr.mxu0 %v1589
    %3096 = vmatpush1.msra.mxu0 %v1588
    %3097 = vmatprep.subr.mxu0 %v1583
    %3098 = vmatpush1.msra.mxu0 %v1582
    %3099 = vmatprep.subr.mxu0 %v1577
    %3100 = vmatpush1.msra.mxu0 %v1576
    %3101 = vmatprep.subr.mxu0 %v1571
    %3102 = vmatpush1.msra.mxu0 %v1570
    %3103 = vmatprep.subr.mxu0 %v1565
    %3104 = vmatpush1.msra.mxu0 %v1564
    %3105 = vmatprep.subr.mxu0 0.0
    %3106 = vmatpush2.msra.mxu0 0.0
    %3107 = vmatprep.subr.mxu0 0.0
    %3108 = vmatpush2.msra.mxu0 0.0
    %3109 = vmatprep.subr.mxu0 0.0
    %3110 = vmatpush2.msra.mxu0 0.0
    %3111 = vmatprep.subr.mxu0 0.0
    %3112 = vmatpush2.msra.mxu0 0.0
    %3113 = vmatprep.subr.mxu0 0.0
    %3114 = vmatpush2.msra.mxu0 0.0
    %3115 = vmatprep.subr.mxu0 0.0
    %3116 = vmatpush2.msra.mxu0 0.0
    %3117 = vmatprep.subr.mxu0 0.0
    %3118 = vmatpush2.msra.mxu0 0.0
    %3119 = vmatprep.subr.mxu0 0.0
    %3120 = vmatpush2.msra.mxu0 0.0
    %3121 = vmatprep.subr.mxu0 0.0
    %3122 = vmatpush2.msra.mxu0 0.0
    %3123 = vmatprep.subr.mxu0 0.0
    %3124 = vmatpush2.msra.mxu0 0.0
    %3125 = vmatprep.subr.mxu0 0.0
    %3126 = vmatpush2.msra.mxu0 0.0
    %3127 = vmatprep.subr.mxu0 0.0
    %3128 = vmatpush2.msra.mxu0 0.0
    %3129 = vmatprep.subr.mxu0 0.0
    %3130 = vmatpush2.msra.mxu0 0.0
    %3131 = vmatprep.subr.mxu0 0.0
    %3132 = vmatpush2.msra.mxu0 0.0
    %3133 = vmatprep.subr.mxu0 0.0
    %3134 = vmatpush2.msra.mxu0 0.0
    %3135 = vmatprep.subr.mxu0 0.0
    %3136 = vmatpush2.msra.mxu0 0.0
    %3137 = vmatprep.mubr.f32.mxu0 0.0
    %3138 = vmatmul.mubr.f32.gmra.mxu0 %v3072
    %v3139 = vpop.f32.mrf.mxu0
    %v3140 = vadd.f32 0.0, %v3139
    %v3141 = vpop.f32.mrf.mxu0
    %v3142 = vadd.f32 0.0, %v3141
    %3143 = vdwg.mxu0
    %3144 = vmatprep.subr.mxu0 %v1657
    %3145 = vmatpush1.msra.mxu0 %v1656
    %3146 = vmatprep.subr.mxu0 %v1651
    %3147 = vmatpush1.msra.mxu0 %v1650
    %3148 = vmatprep.subr.mxu0 %v1645
    %3149 = vmatpush1.msra.mxu0 %v1644
    %3150 = vmatprep.subr.mxu0 %v1639
    %3151 = vmatpush1.msra.mxu0 %v1638
    %3152 = vmatprep.subr.mxu0 %v1633
    %3153 = vmatpush1.msra.mxu0 %v1632
    %3154 = vmatprep.subr.mxu0 %v1627
    %3155 = vmatpush1.msra.mxu0 %v1626
    %3156 = vmatprep.subr.mxu0 %v1621
    %3157 = vmatpush1.msra.mxu0 %v1620
    %3158 = vmatprep.subr.mxu0 %v1615
    %3159 = vmatpush1.msra.mxu0 %v1614
    %3160 = vmatprep.subr.mxu0 %v1609
    %3161 = vmatpush1.msra.mxu0 %v1608
    %3162 = vmatprep.subr.mxu0 %v1603
    %3163 = vmatpush1.msra.mxu0 %v1602
    %3164 = vmatprep.subr.mxu0 %v1597
    %3165 = vmatpush1.msra.mxu0 %v1596
    %3166 = vmatprep.subr.mxu0 %v1591
    %3167 = vmatpush1.msra.mxu0 %v1590
    %3168 = vmatprep.subr.mxu0 %v1585
    %3169 = vmatpush1.msra.mxu0 %v1584
    %3170 = vmatprep.subr.mxu0 %v1579
    %3171 = vmatpush1.msra.mxu0 %v1578
    %3172 = vmatprep.subr.mxu0 %v1573
    %3173 = vmatpush1.msra.mxu0 %v1572
    %3174 = vmatprep.subr.mxu0 %v1567
    %3175 = vmatpush1.msra.mxu0 %v1566
    %3176 = vmatprep.subr.mxu0 0.0
    %3177 = vmatpush2.msra.mxu0 0.0
    %3178 = vmatprep.subr.mxu0 0.0
    %3179 = vmatpush2.msra.mxu0 0.0
    %3180 = vmatprep.subr.mxu0 0.0
    %3181 = vmatpush2.msra.mxu0 0.0
    %3182 = vmatprep.subr.mxu0 0.0
    %3183 = vmatpush2.msra.mxu0 0.0
    %3184 = vmatprep.subr.mxu0 0.0
    %3185 = vmatpush2.msra.mxu0 0.0
    %3186 = vmatprep.subr.mxu0 0.0
    %3187 = vmatpush2.msra.mxu0 0.0
    %3188 = vmatprep.subr.mxu0 0.0
    %3189 = vmatpush2.msra.mxu0 0.0
    %3190 = vmatprep.subr.mxu0 0.0
    %3191 = vmatpush2.msra.mxu0 0.0
    %3192 = vmatprep.subr.mxu0 0.0
    %3193 = vmatpush2.msra.mxu0 0.0
    %3194 = vmatprep.subr.mxu0 0.0
    %3195 = vmatpush2.msra.mxu0 0.0
    %3196 = vmatprep.subr.mxu0 0.0
    %3197 = vmatpush2.msra.mxu0 0.0
    %3198 = vmatprep.subr.mxu0 0.0
    %3199 = vmatpush2.msra.mxu0 0.0
    %3200 = vmatprep.subr.mxu0 0.0
    %3201 = vmatpush2.msra.mxu0 0.0
    %3202 = vmatprep.subr.mxu0 0.0
    %3203 = vmatpush2.msra.mxu0 0.0
    %3204 = vmatprep.subr.mxu0 0.0
    %3205 = vmatpush2.msra.mxu0 0.0
    %3206 = vmatprep.subr.mxu0 0.0
    %3207 = vmatpush2.msra.mxu0 0.0
    %3208 = vmatprep.mubr.f32.mxu0 0.0
    %3209 = vmatmul.mubr.f32.gmra.mxu0 %v3072
    %v3210 = vpop.f32.mrf.mxu0
    %v3211 = vadd.f32 0.0, %v3210
    %v3212 = vpop.f32.mrf.mxu0
    %v3213 = vadd.f32 0.0, %v3212
    %3214 = vdwg.mxu0
    %3215 = vmatprep.subr.mxu0 %v1659
    %3216 = vmatpush1.msra.mxu0 %v1658
    %3217 = vmatprep.subr.mxu0 %v1653
    %3218 = vmatpush1.msra.mxu0 %v1652
    %3219 = vmatprep.subr.mxu0 %v1647
    %3220 = vmatpush1.msra.mxu0 %v1646
    %3221 = vmatprep.subr.mxu0 %v1641
    %3222 = vmatpush1.msra.mxu0 %v1640
    %3223 = vmatprep.subr.mxu0 %v1635
    %3224 = vmatpush1.msra.mxu0 %v1634
    %3225 = vmatprep.subr.mxu0 %v1629
    %3226 = vmatpush1.msra.mxu0 %v1628
    %3227 = vmatprep.subr.mxu0 %v1623
    %3228 = vmatpush1.msra.mxu0 %v1622
    %3229 = vmatprep.subr.mxu0 %v1617
    %3230 = vmatpush1.msra.mxu0 %v1616
    %3231 = vmatprep.subr.mxu0 %v1611
    %3232 = vmatpush1.msra.mxu0 %v1610
    %3233 = vmatprep.subr.mxu0 %v1605
    %3234 = vmatpush1.msra.mxu0 %v1604
    %3235 = vmatprep.subr.mxu0 %v1599
    %3236 = vmatpush1.msra.mxu0 %v1598
    %3237 = vmatprep.subr.mxu0 %v1593
    %3238 = vmatpush1.msra.mxu0 %v1592
    %3239 = vmatprep.subr.mxu0 %v1587
    %3240 = vmatpush1.msra.mxu0 %v1586
    %3241 = vmatprep.subr.mxu0 %v1581
    %3242 = vmatpush1.msra.mxu0 %v1580
    %3243 = vmatprep.subr.mxu0 %v1575
    %3244 = vmatpush1.msra.mxu0 %v1574
    %3245 = vmatprep.subr.mxu0 %v1569
    %3246 = vmatpush1.msra.mxu0 %v1568
    %3247 = vmatprep.subr.mxu0 0.0
    %3248 = vmatpush2.msra.mxu0 0.0
    %3249 = vmatprep.subr.mxu0 0.0
    %3250 = vmatpush2.msra.mxu0 0.0
    %3251 = vmatprep.subr.mxu0 0.0
    %3252 = vmatpush2.msra.mxu0 0.0
    %3253 = vmatprep.subr.mxu0 0.0
    %3254 = vmatpush2.msra.mxu0 0.0
    %3255 = vmatprep.subr.mxu0 0.0
    %3256 = vmatpush2.msra.mxu0 0.0
    %3257 = vmatprep.subr.mxu0 0.0
    %3258 = vmatpush2.msra.mxu0 0.0
    %3259 = vmatprep.subr.mxu0 0.0
    %3260 = vmatpush2.msra.mxu0 0.0
    %3261 = vmatprep.subr.mxu0 0.0
    %3262 = vmatpush2.msra.mxu0 0.0
    %3263 = vmatprep.subr.mxu0 0.0
    %3264 = vmatpush2.msra.mxu0 0.0
    %3265 = vmatprep.subr.mxu0 0.0
    %3266 = vmatpush2.msra.mxu0 0.0
    %3267 = vmatprep.subr.mxu0 0.0
    %3268 = vmatpush2.msra.mxu0 0.0
    %3269 = vmatprep.subr.mxu0 0.0
    %3270 = vmatpush2.msra.mxu0 0.0
    %3271 = vmatprep.subr.mxu0 0.0
    %3272 = vmatpush2.msra.mxu0 0.0
    %3273 = vmatprep.subr.mxu0 0.0
    %3274 = vmatpush2.msra.mxu0 0.0
    %3275 = vmatprep.subr.mxu0 0.0
    %3276 = vmatpush2.msra.mxu0 0.0
    %3277 = vmatprep.subr.mxu0 0.0
    %3278 = vmatpush2.msra.mxu0 0.0
    %3279 = vmatprep.mubr.f32.mxu0 0.0
    %3280 = vmatmul.mubr.f32.gmra.mxu0 %v3072
    %v3281 = vpop.f32.mrf.mxu0
    %v3282 = vadd.f32 0.0, %v3281
    %v3283 = vpop.f32.mrf.mxu0
    %v3284 = vadd.f32 0.0, %v3283
    %3285 = vdwg.mxu0
    %v3286 = vadd.f32 %v3140, %v1876
    %v3287 = vadd.f32 %v3142, %v1880
    %v3288 = vadd.f32 %v3211, %v1884
    %v3289 = vadd.f32 %v3213, %v1535
    %v3290 = vadd.f32 %v3282, %v1546
    %v3291 = vadd.f32 %v3284, %v1557
    %v3292 = vadd.f32 %v3286, %v2129
    %v3293 = vxor.u32 %v3292, 2147483648
    %v3294 = vmul.f32 %v3293, 1.442695
    %v3295 = vpow.pop %v3294
    %v3296 = vadd.f32 %v3295, 1.0
    %v3297 = vrcp.pop %v3296
    %v3298 = vmul.f32 1.0, %v3297
    %v3299 = vadd.f32 %v3287, %v2130
    %v3300 = vxor.u32 %v3299, 2147483648
    %v3301 = vmul.f32 %v3300, 1.442695
    %v3302 = vpow.pop %v3301
    %v3303 = vadd.f32 %v3302, 1.0
    %v3304 = vrcp.pop %v3303
    %v3305 = vmul.f32 1.0, %v3304
    %v3306 = vmul.f32 %v3298, %v2131
    %v3307 = vadd.f32 %v3288, %v3306
    %v3308 = vtanh.pop %v3307
    %v3309 = vsub.f32 1.0, %v3305
    %v3310 = vmul.f32 %v3309, %v3308
    %v3311 = vmul.f32 %v3305, %v1921
    %v3312 = vadd.f32 %v3310, %v3311
    %3313 = vmatprep.subr.mxu0 %v1984
    %3314 = vmatpush1.msra.mxu0 %v1983
    %3315 = vmatprep.subr.mxu0 %v1980
    %3316 = vmatpush1.msra.mxu0 %v1979
    %3317 = vmatprep.subr.mxu0 %v1976
    %3318 = vmatpush1.msra.mxu0 %v1975
    %3319 = vmatprep.subr.mxu0 %v1972
    %3320 = vmatpush1.msra.mxu0 %v1971
    %3321 = vmatprep.subr.mxu0 %v1968
    %3322 = vmatpush1.msra.mxu0 %v1967
    %3323 = vmatprep.subr.mxu0 %v1964
    %3324 = vmatpush1.msra.mxu0 %v1963
    %3325 = vmatprep.subr.mxu0 %v1960
    %3326 = vmatpush1.msra.mxu0 %v1959
    %3327 = vmatprep.subr.mxu0 %v1956
    %3328 = vmatpush1.msra.mxu0 %v1955
    %3329 = vmatprep.subr.mxu0 %v1952
    %3330 = vmatpush1.msra.mxu0 %v1951
    %3331 = vmatprep.subr.mxu0 %v1948
    %3332 = vmatpush1.msra.mxu0 %v1947
    %3333 = vmatprep.subr.mxu0 %v1944
    %3334 = vmatpush1.msra.mxu0 %v1943
    %3335 = vmatprep.subr.mxu0 %v1940
    %3336 = vmatpush1.msra.mxu0 %v1939
    %3337 = vmatprep.subr.mxu0 %v1936
    %3338 = vmatpush1.msra.mxu0 %v1935
    %3339 = vmatprep.subr.mxu0 %v1932
    %3340 = vmatpush1.msra.mxu0 %v1931
    %3341 = vmatprep.subr.mxu0 %v1928
    %3342 = vmatpush1.msra.mxu0 %v1927
    %3343 = vmatprep.subr.mxu0 %v1924
    %3344 = vmatpush1.msra.mxu0 %v1923
    %3345 = vmatprep.subr.mxu0 0.0
    %3346 = vmatpush2.msra.mxu0 0.0
    %3347 = vmatprep.subr.mxu0 0.0
    %3348 = vmatpush2.msra.mxu0 0.0
    %3349 = vmatprep.subr.mxu0 0.0
    %3350 = vmatpush2.msra.mxu0 0.0
    %3351 = vmatprep.subr.mxu0 0.0
    %3352 = vmatpush2.msra.mxu0 0.0
    %3353 = vmatprep.subr.mxu0 0.0
    %3354 = vmatpush2.msra.mxu0 0.0
    %3355 = vmatprep.subr.mxu0 0.0
    %3356 = vmatpush2.msra.mxu0 0.0
    %3357 = vmatprep.subr.mxu0 0.0
    %3358 = vmatpush2.msra.mxu0 0.0
    %3359 = vmatprep.subr.mxu0 0.0
    %3360 = vmatpush2.msra.mxu0 0.0
    %3361 = vmatprep.subr.mxu0 0.0
    %3362 = vmatpush2.msra.mxu0 0.0
    %3363 = vmatprep.subr.mxu0 0.0
    %3364 = vmatpush2.msra.mxu0 0.0
    %3365 = vmatprep.subr.mxu0 0.0
    %3366 = vmatpush2.msra.mxu0 0.0
    %3367 = vmatprep.subr.mxu0 0.0
    %3368 = vmatpush2.msra.mxu0 0.0
    %3369 = vmatprep.subr.mxu0 0.0
    %3370 = vmatpush2.msra.mxu0 0.0
    %3371 = vmatprep.subr.mxu0 0.0
    %3372 = vmatpush2.msra.mxu0 0.0
    %3373 = vmatprep.subr.mxu0 0.0
    %3374 = vmatpush2.msra.mxu0 0.0
    %3375 = vmatprep.subr.mxu0 0.0
    %3376 = vmatpush2.msra.mxu0 0.0
    %3377 = vmatprep.mubr.f32.mxu0 0.0
    %3378 = vmatmul.mubr.f32.gmra.mxu0 %v3312
    %v3379 = vpop.f32.mrf.mxu0
    %v3380 = vadd.f32 0.0, %v3379
    %v3381 = vpop.f32.mrf.mxu0
    %v3382 = vadd.f32 0.0, %v3381
    %3383 = vdwg.mxu0
    %3384 = vmatprep.subr.mxu0 %v1986
    %3385 = vmatpush1.msra.mxu0 %v1985
    %3386 = vmatprep.subr.mxu0 %v1982
    %3387 = vmatpush1.msra.mxu0 %v1981
    %3388 = vmatprep.subr.mxu0 %v1978
    %3389 = vmatpush1.msra.mxu0 %v1977
    %3390 = vmatprep.subr.mxu0 %v1974
    %3391 = vmatpush1.msra.mxu0 %v1973
    %3392 = vmatprep.subr.mxu0 %v1970
    %3393 = vmatpush1.msra.mxu0 %v1969
    %3394 = vmatprep.subr.mxu0 %v1966
    %3395 = vmatpush1.msra.mxu0 %v1965
    %3396 = vmatprep.subr.mxu0 %v1962
    %3397 = vmatpush1.msra.mxu0 %v1961
    %3398 = vmatprep.subr.mxu0 %v1958
    %3399 = vmatpush1.msra.mxu0 %v1957
    %3400 = vmatprep.subr.mxu0 %v1954
    %3401 = vmatpush1.msra.mxu0 %v1953
    %3402 = vmatprep.subr.mxu0 %v1950
    %3403 = vmatpush1.msra.mxu0 %v1949
    %3404 = vmatprep.subr.mxu0 %v1946
    %3405 = vmatpush1.msra.mxu0 %v1945
    %3406 = vmatprep.subr.mxu0 %v1942
    %3407 = vmatpush1.msra.mxu0 %v1941
    %3408 = vmatprep.subr.mxu0 %v1938
    %3409 = vmatpush1.msra.mxu0 %v1937
    %3410 = vmatprep.subr.mxu0 %v1934
    %3411 = vmatpush1.msra.mxu0 %v1933
    %3412 = vmatprep.subr.mxu0 %v1930
    %3413 = vmatpush1.msra.mxu0 %v1929
    %3414 = vmatprep.subr.mxu0 %v1926
    %3415 = vmatpush1.msra.mxu0 %v1925
    %3416 = vmatprep.subr.mxu0 0.0
    %3417 = vmatpush2.msra.mxu0 0.0
    %3418 = vmatprep.subr.mxu0 0.0
    %3419 = vmatpush2.msra.mxu0 0.0
    %3420 = vmatprep.subr.mxu0 0.0
    %3421 = vmatpush2.msra.mxu0 0.0
    %3422 = vmatprep.subr.mxu0 0.0
    %3423 = vmatpush2.msra.mxu0 0.0
    %3424 = vmatprep.subr.mxu0 0.0
    %3425 = vmatpush2.msra.mxu0 0.0
    %3426 = vmatprep.subr.mxu0 0.0
    %3427 = vmatpush2.msra.mxu0 0.0
    %3428 = vmatprep.subr.mxu0 0.0
    %3429 = vmatpush2.msra.mxu0 0.0
    %3430 = vmatprep.subr.mxu0 0.0
    %3431 = vmatpush2.msra.mxu0 0.0
    %3432 = vmatprep.subr.mxu0 0.0
    %3433 = vmatpush2.msra.mxu0 0.0
    %3434 = vmatprep.subr.mxu0 0.0
    %3435 = vmatpush2.msra.mxu0 0.0
    %3436 = vmatprep.subr.mxu0 0.0
    %3437 = vmatpush2.msra.mxu0 0.0
    %3438 = vmatprep.subr.mxu0 0.0
    %3439 = vmatpush2.msra.mxu0 0.0
    %3440 = vmatprep.subr.mxu0 0.0
    %3441 = vmatpush2.msra.mxu0 0.0
    %3442 = vmatprep.subr.mxu0 0.0
    %3443 = vmatpush2.msra.mxu0 0.0
    %3444 = vmatprep.subr.mxu0 0.0
    %3445 = vmatpush2.msra.mxu0 0.0
    %3446 = vmatprep.subr.mxu0 0.0
    %3447 = vmatpush2.msra.mxu0 0.0
    %3448 = vmatprep.mubr.f32.mxu0 0.0
    %3449 = vmatmul.mubr.f32.gmra.mxu0 %v3312
    %v3450 = vpop.f32.mrf.mxu0
    %v3451 = vadd.f32 0.0, %v3450
    %v3452 = vpop.f32.mrf.mxu0
    %v3453 = vadd.f32 0.0, %v3452
    %3454 = vdwg.mxu0
    %v3455 = vadd.f32 %v3380, %v1894
    %v3456 = vadd.f32 %v3382, %v1905
    %v3457 = vadd.f32 %v3451, %v1916
    %v3458 = vadd.f32 %v3453, %v2133
    %v3459 = vadd.f32 %v3458, 0.0
    %v3460 = vsel %vm813, %v3459, 0.0
    %v3461 = vrot.slane %v3460, 4
    %v3462 = vadd.f32 %v3460, %v3461
    %v3463 = vrot.slane %v3462, 2
    %v3464 = vadd.f32 %v3462, %v3463
    %v3465 = vrot.slane %v3464, 1
    %v3466 = vadd.f32 %v3464, %v3465
    %v3467 = vmul.f32 %v3466, 0.125
    %v3468 = vsub.f32 %v3458, %v3467
    %v3469 = vmul.f32 %v3468, %v3468
    %v3470 = vadd.f32 %v3469, 0.0
    %v3471 = vsel %vm813, %v3470, 0.0
    %v3472 = vrot.slane %v3471, 4
    %v3473 = vadd.f32 %v3471, %v3472
    %v3474 = vrot.slane %v3473, 2
    %v3475 = vadd.f32 %v3473, %v3474
    %v3476 = vrot.slane %v3475, 1
    %v3477 = vadd.f32 %v3475, %v3476
    %v3478 = vmul.f32 %v3477, 0.14285715
    %v3479 = vrsqrt.pop %v3478
    %v3480 = vmul.f32 %v3468, %v3479
    %3481 = vrot.lane.b32.xlu0 %v115, 121
    %v3482 = vpop.permute.xlu0 %3481
    %v3484 = vadd.f32 %v3480, %v3482
    %3486 = vset.pattern.permute.xlu0 0
    %3487 = vperm.xlu0 %3486, %v3484
    %v3488 = vpop.permute.xlu0 %3487
    %v3490 = vmul.f32 %v3488, %v186
    %v3491 = vmul.f32 %v3488, %v190
    %v3492 = vmul.f32 %v3488, %v194
    %v3493 = vadd.f32 %v180, %v3490
    %v3494 = vadd.f32 %v181, %v3491
    %v3495 = vadd.f32 %v182, %v3492
    %v3496 = vadd.f32 %v3493, %v2411
    %v3497 = vxor.u32 %v3496, 2147483648
    %v3498 = vmul.f32 %v3497, 1.442695
    %v3499 = vpow.pop %v3498
    %v3500 = vadd.f32 %v3499, 1.0
    %v3501 = vrcp.pop %v3500
    %v3502 = vmul.f32 1.0, %v3501
    %v3503 = vadd.f32 %v3494, %v2412
    %v3504 = vxor.u32 %v3503, 2147483648
    %v3505 = vmul.f32 %v3504, 1.442695
    %v3506 = vpow.pop %v3505
    %v3507 = vadd.f32 %v3506, 1.0
    %v3508 = vrcp.pop %v3507
    %v3509 = vmul.f32 1.0, %v3508
    %v3510 = vmul.f32 %v3502, %v2413
    %v3511 = vadd.f32 %v3495, %v3510
    %v3512 = vtanh.pop %v3511
    %v3513 = vsub.f32 1.0, %v3509
    %v3514 = vmul.f32 %v3513, %v3512
    %v3515 = vmul.f32 %v3509, %v2194
    %v3516 = vadd.f32 %v3514, %v3515
    %3517 = vmatprep.subr.mxu0 %v323
    %3518 = vmatpush1.msra.mxu0 %v322
    %3519 = vmatprep.subr.mxu0 %v317
    %3520 = vmatpush1.msra.mxu0 %v316
    %3521 = vmatprep.subr.mxu0 %v311
    %3522 = vmatpush1.msra.mxu0 %v310
    %3523 = vmatprep.subr.mxu0 %v305
    %3524 = vmatpush1.msra.mxu0 %v304
    %3525 = vmatprep.subr.mxu0 %v299
    %3526 = vmatpush1.msra.mxu0 %v298
    %3527 = vmatprep.subr.mxu0 %v293
    %3528 = vmatpush1.msra.mxu0 %v292
    %3529 = vmatprep.subr.mxu0 %v287
    %3530 = vmatpush1.msra.mxu0 %v286
    %3531 = vmatprep.subr.mxu0 %v281
    %3532 = vmatpush1.msra.mxu0 %v280
    %3533 = vmatprep.subr.mxu0 %v275
    %3534 = vmatpush1.msra.mxu0 %v274
    %3535 = vmatprep.subr.mxu0 %v269
    %3536 = vmatpush1.msra.mxu0 %v268
    %3537 = vmatprep.subr.mxu0 %v263
    %3538 = vmatpush1.msra.mxu0 %v262
    %3539 = vmatprep.subr.mxu0 %v257
    %3540 = vmatpush1.msra.mxu0 %v256
    %3541 = vmatprep.subr.mxu0 %v251
    %3542 = vmatpush1.msra.mxu0 %v250
    %3543 = vmatprep.subr.mxu0 %v245
    %3544 = vmatpush1.msra.mxu0 %v244
    %3545 = vmatprep.subr.mxu0 %v239
    %3546 = vmatpush1.msra.mxu0 %v238
    %3547 = vmatprep.subr.mxu0 %v233
    %3548 = vmatpush1.msra.mxu0 %v232
    %3549 = vmatprep.subr.mxu0 0.0
    %3550 = vmatpush2.msra.mxu0 0.0
    %3551 = vmatprep.subr.mxu0 0.0
    %3552 = vmatpush2.msra.mxu0 0.0
    %3553 = vmatprep.subr.mxu0 0.0
    %3554 = vmatpush2.msra.mxu0 0.0
    %3555 = vmatprep.subr.mxu0 0.0
    %3556 = vmatpush2.msra.mxu0 0.0
    %3557 = vmatprep.subr.mxu0 0.0
    %3558 = vmatpush2.msra.mxu0 0.0
    %3559 = vmatprep.subr.mxu0 0.0
    %3560 = vmatpush2.msra.mxu0 0.0
    %3561 = vmatprep.subr.mxu0 0.0
    %3562 = vmatpush2.msra.mxu0 0.0
    %3563 = vmatprep.subr.mxu0 0.0
    %3564 = vmatpush2.msra.mxu0 0.0
    %3565 = vmatprep.subr.mxu0 0.0
    %3566 = vmatpush2.msra.mxu0 0.0
    %3567 = vmatprep.subr.mxu0 0.0
    %3568 = vmatpush2.msra.mxu0 0.0
    %3569 = vmatprep.subr.mxu0 0.0
    %3570 = vmatpush2.msra.mxu0 0.0
    %3571 = vmatprep.subr.mxu0 0.0
    %3572 = vmatpush2.msra.mxu0 0.0
    %3573 = vmatprep.subr.mxu0 0.0
    %3574 = vmatpush2.msra.mxu0 0.0
    %3575 = vmatprep.subr.mxu0 0.0
    %3576 = vmatpush2.msra.mxu0 0.0
    %3577 = vmatprep.subr.mxu0 0.0
    %3578 = vmatpush2.msra.mxu0 0.0
    %3579 = vmatprep.subr.mxu0 0.0
    %3580 = vmatpush2.msra.mxu0 0.0
    %3581 = vmatprep.mubr.f32.mxu0 0.0
    %3582 = vmatmul.mubr.f32.gmra.mxu0 %v3516
    %v3583 = vpop.f32.mrf.mxu0
    %v3584 = vadd.f32 0.0, %v3583
    %v3585 = vpop.f32.mrf.mxu0
    %v3586 = vadd.f32 0.0, %v3585
    %3587 = vdwg.mxu0
    %3588 = vmatprep.subr.mxu0 %v325
    %3589 = vmatpush1.msra.mxu0 %v324
    %3590 = vmatprep.subr.mxu0 %v319
    %3591 = vmatpush1.msra.mxu0 %v318
    %3592 = vmatprep.subr.mxu0 %v313
    %3593 = vmatpush1.msra.mxu0 %v312
    %3594 = vmatprep.subr.mxu0 %v307
    %3595 = vmatpush1.msra.mxu0 %v306
    %3596 = vmatprep.subr.mxu0 %v301
    %3597 = vmatpush1.msra.mxu0 %v300
    %3598 = vmatprep.subr.mxu0 %v295
    %3599 = vmatpush1.msra.mxu0 %v294
    %3600 = vmatprep.subr.mxu0 %v289
    %3601 = vmatpush1.msra.mxu0 %v288
    %3602 = vmatprep.subr.mxu0 %v283
    %3603 = vmatpush1.msra.mxu0 %v282
    %3604 = vmatprep.subr.mxu0 %v277
    %3605 = vmatpush1.msra.mxu0 %v276
    %3606 = vmatprep.subr.mxu0 %v271
    %3607 = vmatpush1.msra.mxu0 %v270
    %3608 = vmatprep.subr.mxu0 %v265
    %3609 = vmatpush1.msra.mxu0 %v264
    %3610 = vmatprep.subr.mxu0 %v259
    %3611 = vmatpush1.msra.mxu0 %v258
    %3612 = vmatprep.subr.mxu0 %v253
    %3613 = vmatpush1.msra.mxu0 %v252
    %3614 = vmatprep.subr.mxu0 %v247
    %3615 = vmatpush1.msra.mxu0 %v246
    %3616 = vmatprep.subr.mxu0 %v241
    %3617 = vmatpush1.msra.mxu0 %v240
    %3618 = vmatprep.subr.mxu0 %v235
    %3619 = vmatpush1.msra.mxu0 %v234
    %3620 = vmatprep.subr.mxu0 0.0
    %3621 = vmatpush2.msra.mxu0 0.0
    %3622 = vmatprep.subr.mxu0 0.0
    %3623 = vmatpush2.msra.mxu0 0.0
    %3624 = vmatprep.subr.mxu0 0.0
    %3625 = vmatpush2.msra.mxu0 0.0
    %3626 = vmatprep.subr.mxu0 0.0
    %3627 = vmatpush2.msra.mxu0 0.0
    %3628 = vmatprep.subr.mxu0 0.0
    %3629 = vmatpush2.msra.mxu0 0.0
    %3630 = vmatprep.subr.mxu0 0.0
    %3631 = vmatpush2.msra.mxu0 0.0
    %3632 = vmatprep.subr.mxu0 0.0
    %3633 = vmatpush2.msra.mxu0 0.0
    %3634 = vmatprep.subr.mxu0 0.0
    %3635 = vmatpush2.msra.mxu0 0.0
    %3636 = vmatprep.subr.mxu0 0.0
    %3637 = vmatpush2.msra.mxu0 0.0
    %3638 = vmatprep.subr.mxu0 0.0
    %3639 = vmatpush2.msra.mxu0 0.0
    %3640 = vmatprep.subr.mxu0 0.0
    %3641 = vmatpush2.msra.mxu0 0.0
    %3642 = vmatprep.subr.mxu0 0.0
    %3643 = vmatpush2.msra.mxu0 0.0
    %3644 = vmatprep.subr.mxu0 0.0
    %3645 = vmatpush2.msra.mxu0 0.0
    %3646 = vmatprep.subr.mxu0 0.0
    %3647 = vmatpush2.msra.mxu0 0.0
    %3648 = vmatprep.subr.mxu0 0.0
    %3649 = vmatpush2.msra.mxu0 0.0
    %3650 = vmatprep.subr.mxu0 0.0
    %3651 = vmatpush2.msra.mxu0 0.0
    %3652 = vmatprep.mubr.f32.mxu0 0.0
    %3653 = vmatmul.mubr.f32.gmra.mxu0 %v3516
    %v3654 = vpop.f32.mrf.mxu0
    %v3655 = vadd.f32 0.0, %v3654
    %v3656 = vpop.f32.mrf.mxu0
    %v3657 = vadd.f32 0.0, %v3656
    %3658 = vdwg.mxu0
    %3659 = vmatprep.subr.mxu0 %v327
    %3660 = vmatpush1.msra.mxu0 %v326
    %3661 = vmatprep.subr.mxu0 %v321
    %3662 = vmatpush1.msra.mxu0 %v320
    %3663 = vmatprep.subr.mxu0 %v315
    %3664 = vmatpush1.msra.mxu0 %v314
    %3665 = vmatprep.subr.mxu0 %v309
    %3666 = vmatpush1.msra.mxu0 %v308
    %3667 = vmatprep.subr.mxu0 %v303
    %3668 = vmatpush1.msra.mxu0 %v302
    %3669 = vmatprep.subr.mxu0 %v297
    %3670 = vmatpush1.msra.mxu0 %v296
    %3671 = vmatprep.subr.mxu0 %v291
    %3672 = vmatpush1.msra.mxu0 %v290
    %3673 = vmatprep.subr.mxu0 %v285
    %3674 = vmatpush1.msra.mxu0 %v284
    %3675 = vmatprep.subr.mxu0 %v279
    %3676 = vmatpush1.msra.mxu0 %v278
    %3677 = vmatprep.subr.mxu0 %v273
    %3678 = vmatpush1.msra.mxu0 %v272
    %3679 = vmatprep.subr.mxu0 %v267
    %3680 = vmatpush1.msra.mxu0 %v266
    %3681 = vmatprep.subr.mxu0 %v261
    %3682 = vmatpush1.msra.mxu0 %v260
    %3683 = vmatprep.subr.mxu0 %v255
    %3684 = vmatpush1.msra.mxu0 %v254
    %3685 = vmatprep.subr.mxu0 %v249
    %3686 = vmatpush1.msra.mxu0 %v248
    %3687 = vmatprep.subr.mxu0 %v243
    %3688 = vmatpush1.msra.mxu0 %v242
    %3689 = vmatprep.subr.mxu0 %v237
    %3690 = vmatpush1.msra.mxu0 %v236
    %3691 = vmatprep.subr.mxu0 0.0
    %3692 = vmatpush2.msra.mxu0 0.0
    %3693 = vmatprep.subr.mxu0 0.0
    %3694 = vmatpush2.msra.mxu0 0.0
    %3695 = vmatprep.subr.mxu0 0.0
    %3696 = vmatpush2.msra.mxu0 0.0
    %3697 = vmatprep.subr.mxu0 0.0
    %3698 = vmatpush2.msra.mxu0 0.0
    %3699 = vmatprep.subr.mxu0 0.0
    %3700 = vmatpush2.msra.mxu0 0.0
    %3701 = vmatprep.subr.mxu0 0.0
    %3702 = vmatpush2.msra.mxu0 0.0
    %3703 = vmatprep.subr.mxu0 0.0
    %3704 = vmatpush2.msra.mxu0 0.0
    %3705 = vmatprep.subr.mxu0 0.0
    %3706 = vmatpush2.msra.mxu0 0.0
    %3707 = vmatprep.subr.mxu0 0.0
    %3708 = vmatpush2.msra.mxu0 0.0
    %3709 = vmatprep.subr.mxu0 0.0
    %3710 = vmatpush2.msra.mxu0 0.0
    %3711 = vmatprep.subr.mxu0 0.0
    %3712 = vmatpush2.msra.mxu0 0.0
    %3713 = vmatprep.subr.mxu0 0.0
    %3714 = vmatpush2.msra.mxu0 0.0
    %3715 = vmatprep.subr.mxu0 0.0
    %3716 = vmatpush2.msra.mxu0 0.0
    %3717 = vmatprep.subr.mxu0 0.0
    %3718 = vmatpush2.msra.mxu0 0.0
    %3719 = vmatprep.subr.mxu0 0.0
    %3720 = vmatpush2.msra.mxu0 0.0
    %3721 = vmatprep.subr.mxu0 0.0
    %3722 = vmatpush2.msra.mxu0 0.0
    %3723 = vmatprep.mubr.f32.mxu0 0.0
    %3724 = vmatmul.mubr.f32.gmra.mxu0 %v3516
    %v3725 = vpop.f32.mrf.mxu0
    %v3726 = vadd.f32 0.0, %v3725
    %v3727 = vpop.f32.mrf.mxu0
    %v3728 = vadd.f32 0.0, %v3727
    %3729 = vdwg.mxu0
    %v3730 = vadd.f32 %v3584, %v544
    %v3731 = vadd.f32 %v3586, %v548
    %v3732 = vadd.f32 %v3655, %v552
    %v3733 = vadd.f32 %v3657, %v204
    %v3734 = vadd.f32 %v3726, %v215
    %v3735 = vadd.f32 %v3728, %v226
    %v3736 = vadd.f32 %v3730, %v2577
    %v3737 = vxor.u32 %v3736, 2147483648
    %v3738 = vmul.f32 %v3737, 1.442695
    %v3739 = vpow.pop %v3738
    %v3740 = vadd.f32 %v3739, 1.0
    %v3741 = vrcp.pop %v3740
    %v3742 = vmul.f32 1.0, %v3741
    %v3743 = vadd.f32 %v3731, %v2578
    %v3744 = vxor.u32 %v3743, 2147483648
    %v3745 = vmul.f32 %v3744, 1.442695
    %v3746 = vpow.pop %v3745
    %v3747 = vadd.f32 %v3746, 1.0
    %v3748 = vrcp.pop %v3747
    %v3749 = vmul.f32 1.0, %v3748
    %v3750 = vmul.f32 %v3742, %v2579
    %v3751 = vadd.f32 %v3732, %v3750
    %v3752 = vtanh.pop %v3751
    %v3753 = vsub.f32 1.0, %v3749
    %v3754 = vmul.f32 %v3753, %v3752
    %v3755 = vmul.f32 %v3749, %v2434
    %v3756 = vadd.f32 %v3754, %v3755
    %3757 = vmatprep.subr.mxu0 %v651
    %3758 = vmatpush1.msra.mxu0 %v650
    %3759 = vmatprep.subr.mxu0 %v647
    %3760 = vmatpush1.msra.mxu0 %v646
    %3761 = vmatprep.subr.mxu0 %v643
    %3762 = vmatpush1.msra.mxu0 %v642
    %3763 = vmatprep.subr.mxu0 %v639
    %3764 = vmatpush1.msra.mxu0 %v638
    %3765 = vmatprep.subr.mxu0 %v635
    %3766 = vmatpush1.msra.mxu0 %v634
    %3767 = vmatprep.subr.mxu0 %v631
    %3768 = vmatpush1.msra.mxu0 %v630
    %3769 = vmatprep.subr.mxu0 %v627
    %3770 = vmatpush1.msra.mxu0 %v626
    %3771 = vmatprep.subr.mxu0 %v623
    %3772 = vmatpush1.msra.mxu0 %v622
    %3773 = vmatprep.subr.mxu0 %v619
    %3774 = vmatpush1.msra.mxu0 %v618
    %3775 = vmatprep.subr.mxu0 %v615
    %3776 = vmatpush1.msra.mxu0 %v614
    %3777 = vmatprep.subr.mxu0 %v611
    %3778 = vmatpush1.msra.mxu0 %v610
    %3779 = vmatprep.subr.mxu0 %v607
    %3780 = vmatpush1.msra.mxu0 %v606
    %3781 = vmatprep.subr.mxu0 %v603
    %3782 = vmatpush1.msra.mxu0 %v602
    %3783 = vmatprep.subr.mxu0 %v599
    %3784 = vmatpush1.msra.mxu0 %v598
    %3785 = vmatprep.subr.mxu0 %v595
    %3786 = vmatpush1.msra.mxu0 %v594
    %3787 = vmatprep.subr.mxu0 %v591
    %3788 = vmatpush1.msra.mxu0 %v590
    %3789 = vmatprep.subr.mxu0 0.0
    %3790 = vmatpush2.msra.mxu0 0.0
    %3791 = vmatprep.subr.mxu0 0.0
    %3792 = vmatpush2.msra.mxu0 0.0
    %3793 = vmatprep.subr.mxu0 0.0
    %3794 = vmatpush2.msra.mxu0 0.0
    %3795 = vmatprep.subr.mxu0 0.0
    %3796 = vmatpush2.msra.mxu0 0.0
    %3797 = vmatprep.subr.mxu0 0.0
    %3798 = vmatpush2.msra.mxu0 0.0
    %3799 = vmatprep.subr.mxu0 0.0
    %3800 = vmatpush2.msra.mxu0 0.0
    %3801 = vmatprep.subr.mxu0 0.0
    %3802 = vmatpush2.msra.mxu0 0.0
    %3803 = vmatprep.subr.mxu0 0.0
    %3804 = vmatpush2.msra.mxu0 0.0
    %3805 = vmatprep.subr.mxu0 0.0
    %3806 = vmatpush2.msra.mxu0 0.0
    %3807 = vmatprep.subr.mxu0 0.0
    %3808 = vmatpush2.msra.mxu0 0.0
    %3809 = vmatprep.subr.mxu0 0.0
    %3810 = vmatpush2.msra.mxu0 0.0
    %3811 = vmatprep.subr.mxu0 0.0
    %3812 = vmatpush2.msra.mxu0 0.0
    %3813 = vmatprep.subr.mxu0 0.0
    %3814 = vmatpush2.msra.mxu0 0.0
    %3815 = vmatprep.subr.mxu0 0.0
    %3816 = vmatpush2.msra.mxu0 0.0
    %3817 = vmatprep.subr.mxu0 0.0
    %3818 = vmatpush2.msra.mxu0 0.0
    %3819 = vmatprep.subr.mxu0 0.0
    %3820 = vmatpush2.msra.mxu0 0.0
    %3821 = vmatprep.mubr.f32.mxu0 0.0
    %3822 = vmatmul.mubr.f32.gmra.mxu0 %v3756
    %v3823 = vpop.f32.mrf.mxu0
    %v3824 = vadd.f32 0.0, %v3823
    %v3825 = vpop.f32.mrf.mxu0
    %v3826 = vadd.f32 0.0, %v3825
    %3827 = vdwg.mxu0
    %3828 = vmatprep.subr.mxu0 %v653
    %3829 = vmatpush1.msra.mxu0 %v652
    %3830 = vmatprep.subr.mxu0 %v649
    %3831 = vmatpush1.msra.mxu0 %v648
    %3832 = vmatprep.subr.mxu0 %v645
    %3833 = vmatpush1.msra.mxu0 %v644
    %3834 = vmatprep.subr.mxu0 %v641
    %3835 = vmatpush1.msra.mxu0 %v640
    %3836 = vmatprep.subr.mxu0 %v637
    %3837 = vmatpush1.msra.mxu0 %v636
    %3838 = vmatprep.subr.mxu0 %v633
    %3839 = vmatpush1.msra.mxu0 %v632
    %3840 = vmatprep.subr.mxu0 %v629
    %3841 = vmatpush1.msra.mxu0 %v628
    %3842 = vmatprep.subr.mxu0 %v625
    %3843 = vmatpush1.msra.mxu0 %v624
    %3844 = vmatprep.subr.mxu0 %v621
    %3845 = vmatpush1.msra.mxu0 %v620
    %3846 = vmatprep.subr.mxu0 %v617
    %3847 = vmatpush1.msra.mxu0 %v616
    %3848 = vmatprep.subr.mxu0 %v613
    %3849 = vmatpush1.msra.mxu0 %v612
    %3850 = vmatprep.subr.mxu0 %v609
    %3851 = vmatpush1.msra.mxu0 %v608
    %3852 = vmatprep.subr.mxu0 %v605
    %3853 = vmatpush1.msra.mxu0 %v604
    %3854 = vmatprep.subr.mxu0 %v601
    %3855 = vmatpush1.msra.mxu0 %v600
    %3856 = vmatprep.subr.mxu0 %v597
    %3857 = vmatpush1.msra.mxu0 %v596
    %3858 = vmatprep.subr.mxu0 %v593
    %3859 = vmatpush1.msra.mxu0 %v592
    %3860 = vmatprep.subr.mxu0 0.0
    %3861 = vmatpush2.msra.mxu0 0.0
    %3862 = vmatprep.subr.mxu0 0.0
    %3863 = vmatpush2.msra.mxu0 0.0
    %3864 = vmatprep.subr.mxu0 0.0
    %3865 = vmatpush2.msra.mxu0 0.0
    %3866 = vmatprep.subr.mxu0 0.0
    %3867 = vmatpush2.msra.mxu0 0.0
    %3868 = vmatprep.subr.mxu0 0.0
    %3869 = vmatpush2.msra.mxu0 0.0
    %3870 = vmatprep.subr.mxu0 0.0
    %3871 = vmatpush2.msra.mxu0 0.0
    %3872 = vmatprep.subr.mxu0 0.0
    %3873 = vmatpush2.msra.mxu0 0.0
    %3874 = vmatprep.subr.mxu0 0.0
    %3875 = vmatpush2.msra.mxu0 0.0
    %3876 = vmatprep.subr.mxu0 0.0
    %3877 = vmatpush2.msra.mxu0 0.0
    %3878 = vmatprep.subr.mxu0 0.0
    %3879 = vmatpush2.msra.mxu0 0.0
    %3880 = vmatprep.subr.mxu0 0.0
    %3881 = vmatpush2.msra.mxu0 0.0
    %3882 = vmatprep.subr.mxu0 0.0
    %3883 = vmatpush2.msra.mxu0 0.0
    %3884 = vmatprep.subr.mxu0 0.0
    %3885 = vmatpush2.msra.mxu0 0.0
    %3886 = vmatprep.subr.mxu0 0.0
    %3887 = vmatpush2.msra.mxu0 0.0
    %3888 = vmatprep.subr.mxu0 0.0
    %3889 = vmatpush2.msra.mxu0 0.0
    %3890 = vmatprep.subr.mxu0 0.0
    %3891 = vmatpush2.msra.mxu0 0.0
    %3892 = vmatprep.mubr.f32.mxu0 0.0
    %3893 = vmatmul.mubr.f32.gmra.mxu0 %v3756
    %v3894 = vpop.f32.mrf.mxu0
    %v3895 = vadd.f32 0.0, %v3894
    %v3896 = vpop.f32.mrf.mxu0
    %v3897 = vadd.f32 0.0, %v3896
    %3898 = vdwg.mxu0
    %v3899 = vadd.f32 %v3824, %v562
    %v3900 = vadd.f32 %v3826, %v573
    %v3901 = vadd.f32 %v3895, %v584
    %v3902 = vadd.f32 %v3897, %v803
    %vm3903 = vcmp.gt.f32.partialorder %v3902, 0.0
    %v3904 = vmin.f32 %v3902, 0.0
    %v3905 = vmul.f32 %v3904, 1.442695
    %v3906 = vpow.pop %v3905
    %v3907 = vsub.f32 %v3906, 1.0
    %v3908 = vsel %vm3903, %v3902, %v3907
    %v3909 = vadd.f32 %v3908, 0.0
    %v3910 = vsel %vm813, %v3909, 0.0
    %v3911 = vrot.slane %v3910, 4
    %v3912 = vadd.f32 %v3910, %v3911
    %v3913 = vrot.slane %v3912, 2
    %v3914 = vadd.f32 %v3912, %v3913
    %v3915 = vrot.slane %v3914, 1
    %v3916 = vadd.f32 %v3914, %v3915
    %v3917 = vmul.f32 %v3916, 0.125
    %v3918 = vsub.f32 %v3908, %v3917
    %v3919 = vmul.f32 %v3918, %v3918
    %v3920 = vadd.f32 %v3919, 0.0
    %v3921 = vsel %vm813, %v3920, 0.0
    %v3922 = vrot.slane %v3921, 4
    %v3923 = vadd.f32 %v3921, %v3922
    %v3924 = vrot.slane %v3923, 2
    %v3925 = vadd.f32 %v3923, %v3924
    %v3926 = vrot.slane %v3925, 1
    %v3927 = vadd.f32 %v3925, %v3926
    %v3928 = vmul.f32 %v3927, 0.14285715
    %v3929 = vrsqrt.pop %v3928
    %v3930 = vmul.f32 %v3918, %v3929
    %3931 = vrot.lane.b32.xlu0 %v115, 126
    %v3932 = vpop.permute.xlu0 %3931
    %v3934 = vadd.f32 %v3930, %v3932
    %3936 = vset.pattern.permute.xlu0 0
    %3937 = vperm.xlu0 %3936, %v3934
    %v3938 = vpop.permute.xlu0 %3937
    %v3940 = vmul.f32 %v3938, %v844
    %v3941 = vmul.f32 %v3938, %v848
    %v3942 = vmul.f32 %v3938, %v852
    %v3943 = vadd.f32 %v3940, %v859
    %v3944 = vadd.f32 %v3941, %v863
    %v3945 = vadd.f32 %v3942, %v867
    %v3946 = vadd.f32 %v3943, %v2861
    %v3947 = vxor.u32 %v3946, 2147483648
    %v3948 = vmul.f32 %v3947, 1.442695
    %v3949 = vpow.pop %v3948
    %v3950 = vadd.f32 %v3949, 1.0
    %v3951 = vrcp.pop %v3950
    %v3952 = vmul.f32 1.0, %v3951
    %v3953 = vadd.f32 %v3944, %v2862
    %v3954 = vxor.u32 %v3953, 2147483648
    %v3955 = vmul.f32 %v3954, 1.442695
    %v3956 = vpow.pop %v3955
    %v3957 = vadd.f32 %v3956, 1.0
    %v3958 = vrcp.pop %v3957
    %v3959 = vmul.f32 1.0, %v3958
    %v3960 = vmul.f32 %v3952, %v2863
    %v3961 = vadd.f32 %v3945, %v3960
    %v3962 = vtanh.pop %v3961
    %v3963 = vsub.f32 1.0, %v3959
    %v3964 = vmul.f32 %v3963, %v3962
    %v3965 = vmul.f32 %v3959, %v2644
    %v3966 = vadd.f32 %v3964, %v3965
    %3967 = vmatprep.subr.mxu0 %v994
    %3968 = vmatpush1.msra.mxu0 %v993
    %3969 = vmatprep.subr.mxu0 %v988
    %3970 = vmatpush1.msra.mxu0 %v987
    %3971 = vmatprep.subr.mxu0 %v982
    %3972 = vmatpush1.msra.mxu0 %v981
    %3973 = vmatprep.subr.mxu0 %v976
    %3974 = vmatpush1.msra.mxu0 %v975
    %3975 = vmatprep.subr.mxu0 %v970
    %3976 = vmatpush1.msra.mxu0 %v969
    %3977 = vmatprep.subr.mxu0 %v964
    %3978 = vmatpush1.msra.mxu0 %v963
    %3979 = vmatprep.subr.mxu0 %v958
    %3980 = vmatpush1.msra.mxu0 %v957
    %3981 = vmatprep.subr.mxu0 %v952
    %3982 = vmatpush1.msra.mxu0 %v951
    %3983 = vmatprep.subr.mxu0 %v946
    %3984 = vmatpush1.msra.mxu0 %v945
    %3985 = vmatprep.subr.mxu0 %v940
    %3986 = vmatpush1.msra.mxu0 %v939
    %3987 = vmatprep.subr.mxu0 %v934
    %3988 = vmatpush1.msra.mxu0 %v933
    %3989 = vmatprep.subr.mxu0 %v928
    %3990 = vmatpush1.msra.mxu0 %v927
    %3991 = vmatprep.subr.mxu0 %v922
    %3992 = vmatpush1.msra.mxu0 %v921
    %3993 = vmatprep.subr.mxu0 %v916
    %3994 = vmatpush1.msra.mxu0 %v915
    %3995 = vmatprep.subr.mxu0 %v910
    %3996 = vmatpush1.msra.mxu0 %v909
    %3997 = vmatprep.subr.mxu0 %v904
    %3998 = vmatpush1.msra.mxu0 %v903
    %3999 = vmatprep.subr.mxu0 0.0
    %4000 = vmatpush2.msra.mxu0 0.0
    %4001 = vmatprep.subr.mxu0 0.0
    %4002 = vmatpush2.msra.mxu0 0.0
    %4003 = vmatprep.subr.mxu0 0.0
    %4004 = vmatpush2.msra.mxu0 0.0
    %4005 = vmatprep.subr.mxu0 0.0
    %4006 = vmatpush2.msra.mxu0 0.0
    %4007 = vmatprep.subr.mxu0 0.0
    %4008 = vmatpush2.msra.mxu0 0.0
    %4009 = vmatprep.subr.mxu0 0.0
    %4010 = vmatpush2.msra.mxu0 0.0
    %4011 = vmatprep.subr.mxu0 0.0
    %4012 = vmatpush2.msra.mxu0 0.0
    %4013 = vmatprep.subr.mxu0 0.0
    %4014 = vmatpush2.msra.mxu0 0.0
    %4015 = vmatprep.subr.mxu0 0.0
    %4016 = vmatpush2.msra.mxu0 0.0
    %4017 = vmatprep.subr.mxu0 0.0
    %4018 = vmatpush2.msra.mxu0 0.0
    %4019 = vmatprep.subr.mxu0 0.0
    %4020 = vmatpush2.msra.mxu0 0.0
    %4021 = vmatprep.subr.mxu0 0.0
    %4022 = vmatpush2.msra.mxu0 0.0
    %4023 = vmatprep.subr.mxu0 0.0
    %4024 = vmatpush2.msra.mxu0 0.0
    %4025 = vmatprep.subr.mxu0 0.0
    %4026 = vmatpush2.msra.mxu0 0.0
    %4027 = vmatprep.subr.mxu0 0.0
    %4028 = vmatpush2.msra.mxu0 0.0
    %4029 = vmatprep.subr.mxu0 0.0
    %4030 = vmatpush2.msra.mxu0 0.0
    %4031 = vmatprep.mubr.f32.mxu0 0.0
    %4032 = vmatmul.mubr.f32.gmra.mxu0 %v3966
    %v4033 = vpop.f32.mrf.mxu0
    %v4034 = vadd.f32 0.0, %v4033
    %v4035 = vpop.f32.mrf.mxu0
    %v4036 = vadd.f32 0.0, %v4035
    %4037 = vdwg.mxu0
    %4038 = vmatprep.subr.mxu0 %v996
    %4039 = vmatpush1.msra.mxu0 %v995
    %4040 = vmatprep.subr.mxu0 %v990
    %4041 = vmatpush1.msra.mxu0 %v989
    %4042 = vmatprep.subr.mxu0 %v984
    %4043 = vmatpush1.msra.mxu0 %v983
    %4044 = vmatprep.subr.mxu0 %v978
    %4045 = vmatpush1.msra.mxu0 %v977
    %4046 = vmatprep.subr.mxu0 %v972
    %4047 = vmatpush1.msra.mxu0 %v971
    %4048 = vmatprep.subr.mxu0 %v966
    %4049 = vmatpush1.msra.mxu0 %v965
    %4050 = vmatprep.subr.mxu0 %v960
    %4051 = vmatpush1.msra.mxu0 %v959
    %4052 = vmatprep.subr.mxu0 %v954
    %4053 = vmatpush1.msra.mxu0 %v953
    %4054 = vmatprep.subr.mxu0 %v948
    %4055 = vmatpush1.msra.mxu0 %v947
    %4056 = vmatprep.subr.mxu0 %v942
    %4057 = vmatpush1.msra.mxu0 %v941
    %4058 = vmatprep.subr.mxu0 %v936
    %4059 = vmatpush1.msra.mxu0 %v935
    %4060 = vmatprep.subr.mxu0 %v930
    %4061 = vmatpush1.msra.mxu0 %v929
    %4062 = vmatprep.subr.mxu0 %v924
    %4063 = vmatpush1.msra.mxu0 %v923
    %4064 = vmatprep.subr.mxu0 %v918
    %4065 = vmatpush1.msra.mxu0 %v917
    %4066 = vmatprep.subr.mxu0 %v912
    %4067 = vmatpush1.msra.mxu0 %v911
    %4068 = vmatprep.subr.mxu0 %v906
    %4069 = vmatpush1.msra.mxu0 %v905
    %4070 = vmatprep.subr.mxu0 0.0
    %4071 = vmatpush2.msra.mxu0 0.0
    %4072 = vmatprep.subr.mxu0 0.0
    %4073 = vmatpush2.msra.mxu0 0.0
    %4074 = vmatprep.subr.mxu0 0.0
    %4075 = vmatpush2.msra.mxu0 0.0
    %4076 = vmatprep.subr.mxu0 0.0
    %4077 = vmatpush2.msra.mxu0 0.0
    %4078 = vmatprep.subr.mxu0 0.0
    %4079 = vmatpush2.msra.mxu0 0.0
    %4080 = vmatprep.subr.mxu0 0.0
    %4081 = vmatpush2.msra.mxu0 0.0
    %4082 = vmatprep.subr.mxu0 0.0
    %4083 = vmatpush2.msra.mxu0 0.0
    %4084 = vmatprep.subr.mxu0 0.0
    %4085 = vmatpush2.msra.mxu0 0.0
    %4086 = vmatprep.subr.mxu0 0.0
    %4087 = vmatpush2.msra.mxu0 0.0
    %4088 = vmatprep.subr.mxu0 0.0
    %4089 = vmatpush2.msra.mxu0 0.0
    %4090 = vmatprep.subr.mxu0 0.0
    %4091 = vmatpush2.msra.mxu0 0.0
    %4092 = vmatprep.subr.mxu0 0.0
    %4093 = vmatpush2.msra.mxu0 0.0
    %4094 = vmatprep.subr.mxu0 0.0
    %4095 = vmatpush2.msra.mxu0 0.0
    %4096 = vmatprep.subr.mxu0 0.0
    %4097 = vmatpush2.msra.mxu0 0.0
    %4098 = vmatprep.subr.mxu0 0.0
    %4099 = vmatpush2.msra.mxu0 0.0
    %4100 = vmatprep.subr.mxu0 0.0
    %4101 = vmatpush2.msra.mxu0 0.0
    %4102 = vmatprep.mubr.f32.mxu0 0.0
    %4103 = vmatmul.mubr.f32.gmra.mxu0 %v3966
    %v4104 = vpop.f32.mrf.mxu0
    %v4105 = vadd.f32 0.0, %v4104
    %v4106 = vpop.f32.mrf.mxu0
    %v4107 = vadd.f32 0.0, %v4106
    %4108 = vdwg.mxu0
    %4109 = vmatprep.subr.mxu0 %v998
    %4110 = vmatpush1.msra.mxu0 %v997
    %4111 = vmatprep.subr.mxu0 %v992
    %4112 = vmatpush1.msra.mxu0 %v991
    %4113 = vmatprep.subr.mxu0 %v986
    %4114 = vmatpush1.msra.mxu0 %v985
    %4115 = vmatprep.subr.mxu0 %v980
    %4116 = vmatpush1.msra.mxu0 %v979
    %4117 = vmatprep.subr.mxu0 %v974
    %4118 = vmatpush1.msra.mxu0 %v973
    %4119 = vmatprep.subr.mxu0 %v968
    %4120 = vmatpush1.msra.mxu0 %v967
    %4121 = vmatprep.subr.mxu0 %v962
    %4122 = vmatpush1.msra.mxu0 %v961
    %4123 = vmatprep.subr.mxu0 %v956
    %4124 = vmatpush1.msra.mxu0 %v955
    %4125 = vmatprep.subr.mxu0 %v950
    %4126 = vmatpush1.msra.mxu0 %v949
    %4127 = vmatprep.subr.mxu0 %v944
    %4128 = vmatpush1.msra.mxu0 %v943
    %4129 = vmatprep.subr.mxu0 %v938
    %4130 = vmatpush1.msra.mxu0 %v937
    %4131 = vmatprep.subr.mxu0 %v932
    %4132 = vmatpush1.msra.mxu0 %v931
    %4133 = vmatprep.subr.mxu0 %v926
    %4134 = vmatpush1.msra.mxu0 %v925
    %4135 = vmatprep.subr.mxu0 %v920
    %4136 = vmatpush1.msra.mxu0 %v919
    %4137 = vmatprep.subr.mxu0 %v914
    %4138 = vmatpush1.msra.mxu0 %v913
    %4139 = vmatprep.subr.mxu0 %v908
    %4140 = vmatpush1.msra.mxu0 %v907
    %4141 = vmatprep.subr.mxu0 0.0
    %4142 = vmatpush2.msra.mxu0 0.0
    %4143 = vmatprep.subr.mxu0 0.0
    %4144 = vmatpush2.msra.mxu0 0.0
    %4145 = vmatprep.subr.mxu0 0.0
    %4146 = vmatpush2.msra.mxu0 0.0
    %4147 = vmatprep.subr.mxu0 0.0
    %4148 = vmatpush2.msra.mxu0 0.0
    %4149 = vmatprep.subr.mxu0 0.0
    %4150 = vmatpush2.msra.mxu0 0.0
    %4151 = vmatprep.subr.mxu0 0.0
    %4152 = vmatpush2.msra.mxu0 0.0
    %4153 = vmatprep.subr.mxu0 0.0
    %4154 = vmatpush2.msra.mxu0 0.0
    %4155 = vmatprep.subr.mxu0 0.0
    %4156 = vmatpush2.msra.mxu0 0.0
    %4157 = vmatprep.subr.mxu0 0.0
    %4158 = vmatpush2.msra.mxu0 0.0
    %4159 = vmatprep.subr.mxu0 0.0
    %4160 = vmatpush2.msra.mxu0 0.0
    %4161 = vmatprep.subr.mxu0 0.0
    %4162 = vmatpush2.msra.mxu0 0.0
    %4163 = vmatprep.subr.mxu0 0.0
    %4164 = vmatpush2.msra.mxu0 0.0
    %4165 = vmatprep.subr.mxu0 0.0
    %4166 = vmatpush2.msra.mxu0 0.0
    %4167 = vmatprep.subr.mxu0 0.0
    %4168 = vmatpush2.msra.mxu0 0.0
    %4169 = vmatprep.subr.mxu0 0.0
    %4170 = vmatpush2.msra.mxu0 0.0
    %4171 = vmatprep.subr.mxu0 0.0
    %4172 = vmatpush2.msra.mxu0 0.0
    %4173 = vmatprep.mubr.f32.mxu0 0.0
    %4174 = vmatmul.mubr.f32.gmra.mxu0 %v3966
    %v4175 = vpop.f32.mrf.mxu0
    %v4176 = vadd.f32 0.0, %v4175
    %v4177 = vpop.f32.mrf.mxu0
    %v4178 = vadd.f32 0.0, %v4177
    %4179 = vdwg.mxu0
    %v4180 = vadd.f32 %v4034, %v1215
    %v4181 = vadd.f32 %v4036, %v1219
    %v4182 = vadd.f32 %v4105, %v1223
    %v4183 = vadd.f32 %v4107, %v874
    %v4184 = vadd.f32 %v4176, %v885
    %v4185 = vadd.f32 %v4178, %v896
    %v4186 = vadd.f32 %v4180, %v3027
    %v4187 = vxor.u32 %v4186, 2147483648
    %v4188 = vmul.f32 %v4187, 1.442695
    %v4189 = vpow.pop %v4188
    %v4190 = vadd.f32 %v4189, 1.0
    %v4191 = vrcp.pop %v4190
    %v4192 = vmul.f32 1.0, %v4191
    %v4193 = vadd.f32 %v4181, %v3028
    %v4194 = vxor.u32 %v4193, 2147483648
    %v4195 = vmul.f32 %v4194, 1.442695
    %v4196 = vpow.pop %v4195
    %v4197 = vadd.f32 %v4196, 1.0
    %v4198 = vrcp.pop %v4197
    %v4199 = vmul.f32 1.0, %v4198
    %v4200 = vmul.f32 %v4192, %v3029
    %v4201 = vadd.f32 %v4182, %v4200
    %v4202 = vtanh.pop %v4201
    %v4203 = vsub.f32 1.0, %v4199
    %v4204 = vmul.f32 %v4203, %v4202
    %v4205 = vmul.f32 %v4199, %v2884
    %v4206 = vadd.f32 %v4204, %v4205
    %4207 = vmatprep.subr.mxu0 %v1323
    %4208 = vmatpush1.msra.mxu0 %v1322
    %4209 = vmatprep.subr.mxu0 %v1319
    %4210 = vmatpush1.msra.mxu0 %v1318
    %4211 = vmatprep.subr.mxu0 %v1315
    %4212 = vmatpush1.msra.mxu0 %v1314
    %4213 = vmatprep.subr.mxu0 %v1311
    %4214 = vmatpush1.msra.mxu0 %v1310
    %4215 = vmatprep.subr.mxu0 %v1307
    %4216 = vmatpush1.msra.mxu0 %v1306
    %4217 = vmatprep.subr.mxu0 %v1303
    %4218 = vmatpush1.msra.mxu0 %v1302
    %4219 = vmatprep.subr.mxu0 %v1299
    %4220 = vmatpush1.msra.mxu0 %v1298
    %4221 = vmatprep.subr.mxu0 %v1295
    %4222 = vmatpush1.msra.mxu0 %v1294
    %4223 = vmatprep.subr.mxu0 %v1291
    %4224 = vmatpush1.msra.mxu0 %v1290
    %4225 = vmatprep.subr.mxu0 %v1287
    %4226 = vmatpush1.msra.mxu0 %v1286
    %4227 = vmatprep.subr.mxu0 %v1283
    %4228 = vmatpush1.msra.mxu0 %v1282
    %4229 = vmatprep.subr.mxu0 %v1279
    %4230 = vmatpush1.msra.mxu0 %v1278
    %4231 = vmatprep.subr.mxu0 %v1275
    %4232 = vmatpush1.msra.mxu0 %v1274
    %4233 = vmatprep.subr.mxu0 %v1271
    %4234 = vmatpush1.msra.mxu0 %v1270
    %4235 = vmatprep.subr.mxu0 %v1267
    %4236 = vmatpush1.msra.mxu0 %v1266
    %4237 = vmatprep.subr.mxu0 %v1263
    %4238 = vmatpush1.msra.mxu0 %v1262
    %4239 = vmatprep.subr.mxu0 0.0
    %4240 = vmatpush2.msra.mxu0 0.0
    %4241 = vmatprep.subr.mxu0 0.0
    %4242 = vmatpush2.msra.mxu0 0.0
    %4243 = vmatprep.subr.mxu0 0.0
    %4244 = vmatpush2.msra.mxu0 0.0
    %4245 = vmatprep.subr.mxu0 0.0
    %4246 = vmatpush2.msra.mxu0 0.0
    %4247 = vmatprep.subr.mxu0 0.0
    %4248 = vmatpush2.msra.mxu0 0.0
    %4249 = vmatprep.subr.mxu0 0.0
    %4250 = vmatpush2.msra.mxu0 0.0
    %4251 = vmatprep.subr.mxu0 0.0
    %4252 = vmatpush2.msra.mxu0 0.0
    %4253 = vmatprep.subr.mxu0 0.0
    %4254 = vmatpush2.msra.mxu0 0.0
    %4255 = vmatprep.subr.mxu0 0.0
    %4256 = vmatpush2.msra.mxu0 0.0
    %4257 = vmatprep.subr.mxu0 0.0
    %4258 = vmatpush2.msra.mxu0 0.0
    %4259 = vmatprep.subr.mxu0 0.0
    %4260 = vmatpush2.msra.mxu0 0.0
    %4261 = vmatprep.subr.mxu0 0.0
    %4262 = vmatpush2.msra.mxu0 0.0
    %4263 = vmatprep.subr.mxu0 0.0
    %4264 = vmatpush2.msra.mxu0 0.0
    %4265 = vmatprep.subr.mxu0 0.0
    %4266 = vmatpush2.msra.mxu0 0.0
    %4267 = vmatprep.subr.mxu0 0.0
    %4268 = vmatpush2.msra.mxu0 0.0
    %4269 = vmatprep.subr.mxu0 0.0
    %4270 = vmatpush2.msra.mxu0 0.0
    %4271 = vmatprep.mubr.f32.mxu0 0.0
    %4272 = vmatmul.mubr.f32.gmra.mxu0 %v4206
    %v4273 = vpop.f32.mrf.mxu0
    %v4274 = vadd.f32 0.0, %v4273
    %v4275 = vpop.f32.mrf.mxu0
    %v4276 = vadd.f32 0.0, %v4275
    %4277 = vdwg.mxu0
    %4278 = vmatprep.subr.mxu0 %v1325
    %4279 = vmatpush1.msra.mxu0 %v1324
    %4280 = vmatprep.subr.mxu0 %v1321
    %4281 = vmatpush1.msra.mxu0 %v1320
    %4282 = vmatprep.subr.mxu0 %v1317
    %4283 = vmatpush1.msra.mxu0 %v1316
    %4284 = vmatprep.subr.mxu0 %v1313
    %4285 = vmatpush1.msra.mxu0 %v1312
    %4286 = vmatprep.subr.mxu0 %v1309
    %4287 = vmatpush1.msra.mxu0 %v1308
    %4288 = vmatprep.subr.mxu0 %v1305
    %4289 = vmatpush1.msra.mxu0 %v1304
    %4290 = vmatprep.subr.mxu0 %v1301
    %4291 = vmatpush1.msra.mxu0 %v1300
    %4292 = vmatprep.subr.mxu0 %v1297
    %4293 = vmatpush1.msra.mxu0 %v1296
    %4294 = vmatprep.subr.mxu0 %v1293
    %4295 = vmatpush1.msra.mxu0 %v1292
    %4296 = vmatprep.subr.mxu0 %v1289
    %4297 = vmatpush1.msra.mxu0 %v1288
    %4298 = vmatprep.subr.mxu0 %v1285
    %4299 = vmatpush1.msra.mxu0 %v1284
    %4300 = vmatprep.subr.mxu0 %v1281
    %4301 = vmatpush1.msra.mxu0 %v1280
    %4302 = vmatprep.subr.mxu0 %v1277
    %4303 = vmatpush1.msra.mxu0 %v1276
    %4304 = vmatprep.subr.mxu0 %v1273
    %4305 = vmatpush1.msra.mxu0 %v1272
    %4306 = vmatprep.subr.mxu0 %v1269
    %4307 = vmatpush1.msra.mxu0 %v1268
    %4308 = vmatprep.subr.mxu0 %v1265
    %4309 = vmatpush1.msra.mxu0 %v1264
    %4310 = vmatprep.subr.mxu0 0.0
    %4311 = vmatpush2.msra.mxu0 0.0
    %4312 = vmatprep.subr.mxu0 0.0
    %4313 = vmatpush2.msra.mxu0 0.0
    %4314 = vmatprep.subr.mxu0 0.0
    %4315 = vmatpush2.msra.mxu0 0.0
    %4316 = vmatprep.subr.mxu0 0.0
    %4317 = vmatpush2.msra.mxu0 0.0
    %4318 = vmatprep.subr.mxu0 0.0
    %4319 = vmatpush2.msra.mxu0 0.0
    %4320 = vmatprep.subr.mxu0 0.0
    %4321 = vmatpush2.msra.mxu0 0.0
    %4322 = vmatprep.subr.mxu0 0.0
    %4323 = vmatpush2.msra.mxu0 0.0
    %4324 = vmatprep.subr.mxu0 0.0
    %4325 = vmatpush2.msra.mxu0 0.0
    %4326 = vmatprep.subr.mxu0 0.0
    %4327 = vmatpush2.msra.mxu0 0.0
    %4328 = vmatprep.subr.mxu0 0.0
    %4329 = vmatpush2.msra.mxu0 0.0
    %4330 = vmatprep.subr.mxu0 0.0
    %4331 = vmatpush2.msra.mxu0 0.0
    %4332 = vmatprep.subr.mxu0 0.0
    %4333 = vmatpush2.msra.mxu0 0.0
    %4334 = vmatprep.subr.mxu0 0.0
    %4335 = vmatpush2.msra.mxu0 0.0
    %4336 = vmatprep.subr.mxu0 0.0
    %4337 = vmatpush2.msra.mxu0 0.0
    %4338 = vmatprep.subr.mxu0 0.0
    %4339 = vmatpush2.msra.mxu0 0.0
    %4340 = vmatprep.subr.mxu0 0.0
    %4341 = vmatpush2.msra.mxu0 0.0
    %4342 = vmatprep.mubr.f32.mxu0 0.0
    %4343 = vmatmul.mubr.f32.gmra.mxu0 %v4206
    %v4344 = vpop.f32.mrf.mxu0
    %v4345 = vadd.f32 0.0, %v4344
    %v4346 = vpop.f32.mrf.mxu0
    %v4347 = vadd.f32 0.0, %v4346
    %4348 = vdwg.mxu0
    %v4349 = vadd.f32 %v4274, %v1233
    %v4350 = vadd.f32 %v4276, %v1244
    %v4351 = vadd.f32 %v4345, %v1255
    %v4352 = vadd.f32 %v4347, %v1472
    %4354 = vset.pattern.permute.xlu0 0
    %4355 = vperm.xlu0 %4354, %v4352
    %v4356 = vpop.permute.xlu0 %4355
    %v4358 = vmul.f32 %v4356, %v1483
    %v4359 = vmul.f32 %v4356, %v1487
    %v4360 = vmul.f32 %v4356, %v1491
    %4361 = vset.pattern.permute.xlu0 1
    %4362 = vperm.xlu0 %4361, %v4352
    %v4363 = vpop.permute.xlu0 %4362
    %v4365 = vmul.f32 %v4363, %v1502
    %v4366 = vmul.f32 %v4363, %v1506
    %v4367 = vmul.f32 %v4363, %v1510
    %v4368 = vadd.f32 %v4358, %v4365
    %v4369 = vadd.f32 %v4359, %v4366
    %v4370 = vadd.f32 %v4360, %v4367
    %v4371 = vadd.f32 %v4368, %v1520
    %v4372 = vadd.f32 %v4369, %v1524
    %v4373 = vadd.f32 %v4370, %v1528
    %v4374 = vadd.f32 %v4371, %v3289
    %v4375 = vxor.u32 %v4374, 2147483648
    %v4376 = vmul.f32 %v4375, 1.442695
    %v4377 = vpow.pop %v4376
    %v4378 = vadd.f32 %v4377, 1.0
    %v4379 = vrcp.pop %v4378
    %v4380 = vmul.f32 1.0, %v4379
    %v4381 = vadd.f32 %v4372, %v3290
    %v4382 = vxor.u32 %v4381, 2147483648
    %v4383 = vmul.f32 %v4382, 1.442695
    %v4384 = vpow.pop %v4383
    %v4385 = vadd.f32 %v4384, 1.0
    %v4386 = vrcp.pop %v4385
    %v4387 = vmul.f32 1.0, %v4386
    %v4388 = vmul.f32 %v4380, %v3291
    %v4389 = vadd.f32 %v4373, %v4388
    %v4390 = vtanh.pop %v4389
    %v4391 = vsub.f32 1.0, %v4387
    %v4392 = vmul.f32 %v4391, %v4390
    %v4393 = vmul.f32 %v4387, %v3072
    %v4394 = vadd.f32 %v4392, %v4393
    %4395 = vmatprep.subr.mxu0 %v1655
    %4396 = vmatpush1.msra.mxu0 %v1654
    %4397 = vmatprep.subr.mxu0 %v1649
    %4398 = vmatpush1.msra.mxu0 %v1648
    %4399 = vmatprep.subr.mxu0 %v1643
    %4400 = vmatpush1.msra.mxu0 %v1642
    %4401 = vmatprep.subr.mxu0 %v1637
    %4402 = vmatpush1.msra.mxu0 %v1636
    %4403 = vmatprep.subr.mxu0 %v1631
    %4404 = vmatpush1.msra.mxu0 %v1630
    %4405 = vmatprep.subr.mxu0 %v1625
    %4406 = vmatpush1.msra.mxu0 %v1624
    %4407 = vmatprep.subr.mxu0 %v1619
    %4408 = vmatpush1.msra.mxu0 %v1618
    %4409 = vmatprep.subr.mxu0 %v1613
    %4410 = vmatpush1.msra.mxu0 %v1612
    %4411 = vmatprep.subr.mxu0 %v1607
    %4412 = vmatpush1.msra.mxu0 %v1606
    %4413 = vmatprep.subr.mxu0 %v1601
    %4414 = vmatpush1.msra.mxu0 %v1600
    %4415 = vmatprep.subr.mxu0 %v1595
    %4416 = vmatpush1.msra.mxu0 %v1594
    %4417 = vmatprep.subr.mxu0 %v1589
    %4418 = vmatpush1.msra.mxu0 %v1588
    %4419 = vmatprep.subr.mxu0 %v1583
    %4420 = vmatpush1.msra.mxu0 %v1582
    %4421 = vmatprep.subr.mxu0 %v1577
    %4422 = vmatpush1.msra.mxu0 %v1576
    %4423 = vmatprep.subr.mxu0 %v1571
    %4424 = vmatpush1.msra.mxu0 %v1570
    %4425 = vmatprep.subr.mxu0 %v1565
    %4426 = vmatpush1.msra.mxu0 %v1564
    %4427 = vmatprep.subr.mxu0 0.0
    %4428 = vmatpush2.msra.mxu0 0.0
    %4429 = vmatprep.subr.mxu0 0.0
    %4430 = vmatpush2.msra.mxu0 0.0
    %4431 = vmatprep.subr.mxu0 0.0
    %4432 = vmatpush2.msra.mxu0 0.0
    %4433 = vmatprep.subr.mxu0 0.0
    %4434 = vmatpush2.msra.mxu0 0.0
    %4435 = vmatprep.subr.mxu0 0.0
    %4436 = vmatpush2.msra.mxu0 0.0
    %4437 = vmatprep.subr.mxu0 0.0
    %4438 = vmatpush2.msra.mxu0 0.0
    %4439 = vmatprep.subr.mxu0 0.0
    %4440 = vmatpush2.msra.mxu0 0.0
    %4441 = vmatprep.subr.mxu0 0.0
    %4442 = vmatpush2.msra.mxu0 0.0
    %4443 = vmatprep.subr.mxu0 0.0
    %4444 = vmatpush2.msra.mxu0 0.0
    %4445 = vmatprep.subr.mxu0 0.0
    %4446 = vmatpush2.msra.mxu0 0.0
    %4447 = vmatprep.subr.mxu0 0.0
    %4448 = vmatpush2.msra.mxu0 0.0
    %4449 = vmatprep.subr.mxu0 0.0
    %4450 = vmatpush2.msra.mxu0 0.0
    %4451 = vmatprep.subr.mxu0 0.0
    %4452 = vmatpush2.msra.mxu0 0.0
    %4453 = vmatprep.subr.mxu0 0.0
    %4454 = vmatpush2.msra.mxu0 0.0
    %4455 = vmatprep.subr.mxu0 0.0
    %4456 = vmatpush2.msra.mxu0 0.0
    %4457 = vmatprep.subr.mxu0 0.0
    %4458 = vmatpush2.msra.mxu0 0.0
    %4459 = vmatprep.mubr.f32.mxu0 0.0
    %4460 = vmatmul.mubr.f32.gmra.mxu0 %v4394
    %v4461 = vpop.f32.mrf.mxu0
    %v4462 = vadd.f32 0.0, %v4461
    %v4463 = vpop.f32.mrf.mxu0
    %v4464 = vadd.f32 0.0, %v4463
    %4465 = vdwg.mxu0
    %4466 = vmatprep.subr.mxu0 %v1657
    %4467 = vmatpush1.msra.mxu0 %v1656
    %4468 = vmatprep.subr.mxu0 %v1651
    %4469 = vmatpush1.msra.mxu0 %v1650
    %4470 = vmatprep.subr.mxu0 %v1645
    %4471 = vmatpush1.msra.mxu0 %v1644
    %4472 = vmatprep.subr.mxu0 %v1639
    %4473 = vmatpush1.msra.mxu0 %v1638
    %4474 = vmatprep.subr.mxu0 %v1633
    %4475 = vmatpush1.msra.mxu0 %v1632
    %4476 = vmatprep.subr.mxu0 %v1627
    %4477 = vmatpush1.msra.mxu0 %v1626
    %4478 = vmatprep.subr.mxu0 %v1621
    %4479 = vmatpush1.msra.mxu0 %v1620
    %4480 = vmatprep.subr.mxu0 %v1615
    %4481 = vmatpush1.msra.mxu0 %v1614
    %4482 = vmatprep.subr.mxu0 %v1609
    %4483 = vmatpush1.msra.mxu0 %v1608
    %4484 = vmatprep.subr.mxu0 %v1603
    %4485 = vmatpush1.msra.mxu0 %v1602
    %4486 = vmatprep.subr.mxu0 %v1597
    %4487 = vmatpush1.msra.mxu0 %v1596
    %4488 = vmatprep.subr.mxu0 %v1591
    %4489 = vmatpush1.msra.mxu0 %v1590
    %4490 = vmatprep.subr.mxu0 %v1585
    %4491 = vmatpush1.msra.mxu0 %v1584
    %4492 = vmatprep.subr.mxu0 %v1579
    %4493 = vmatpush1.msra.mxu0 %v1578
    %4494 = vmatprep.subr.mxu0 %v1573
    %4495 = vmatpush1.msra.mxu0 %v1572
    %4496 = vmatprep.subr.mxu0 %v1567
    %4497 = vmatpush1.msra.mxu0 %v1566
    %4498 = vmatprep.subr.mxu0 0.0
    %4499 = vmatpush2.msra.mxu0 0.0
    %4500 = vmatprep.subr.mxu0 0.0
    %4501 = vmatpush2.msra.mxu0 0.0
    %4502 = vmatprep.subr.mxu0 0.0
    %4503 = vmatpush2.msra.mxu0 0.0
    %4504 = vmatprep.subr.mxu0 0.0
    %4505 = vmatpush2.msra.mxu0 0.0
    %4506 = vmatprep.subr.mxu0 0.0
    %4507 = vmatpush2.msra.mxu0 0.0
    %4508 = vmatprep.subr.mxu0 0.0
    %4509 = vmatpush2.msra.mxu0 0.0
    %4510 = vmatprep.subr.mxu0 0.0
    %4511 = vmatpush2.msra.mxu0 0.0
    %4512 = vmatprep.subr.mxu0 0.0
    %4513 = vmatpush2.msra.mxu0 0.0
    %4514 = vmatprep.subr.mxu0 0.0
    %4515 = vmatpush2.msra.mxu0 0.0
    %4516 = vmatprep.subr.mxu0 0.0
    %4517 = vmatpush2.msra.mxu0 0.0
    %4518 = vmatprep.subr.mxu0 0.0
    %4519 = vmatpush2.msra.mxu0 0.0
    %4520 = vmatprep.subr.mxu0 0.0
    %4521 = vmatpush2.msra.mxu0 0.0
    %4522 = vmatprep.subr.mxu0 0.0
    %4523 = vmatpush2.msra.mxu0 0.0
    %4524 = vmatprep.subr.mxu0 0.0
    %4525 = vmatpush2.msra.mxu0 0.0
    %4526 = vmatprep.subr.mxu0 0.0
    %4527 = vmatpush2.msra.mxu0 0.0
    %4528 = vmatprep.subr.mxu0 0.0
    %4529 = vmatpush2.msra.mxu0 0.0
    %4530 = vmatprep.mubr.f32.mxu0 0.0
    %4531 = vmatmul.mubr.f32.gmra.mxu0 %v4394
    %v4532 = vpop.f32.mrf.mxu0
    %v4533 = vadd.f32 0.0, %v4532
    %v4534 = vpop.f32.mrf.mxu0
    %v4535 = vadd.f32 0.0, %v4534
    %4536 = vdwg.mxu0
    %4537 = vmatprep.subr.mxu0 %v1659
    %4538 = vmatpush1.msra.mxu0 %v1658
    %4539 = vmatprep.subr.mxu0 %v1653
    %4540 = vmatpush1.msra.mxu0 %v1652
    %4541 = vmatprep.subr.mxu0 %v1647
    %4542 = vmatpush1.msra.mxu0 %v1646
    %4543 = vmatprep.subr.mxu0 %v1641
    %4544 = vmatpush1.msra.mxu0 %v1640
    %4545 = vmatprep.subr.mxu0 %v1635
    %4546 = vmatpush1.msra.mxu0 %v1634
    %4547 = vmatprep.subr.mxu0 %v1629
    %4548 = vmatpush1.msra.mxu0 %v1628
    %4549 = vmatprep.subr.mxu0 %v1623
    %4550 = vmatpush1.msra.mxu0 %v1622
    %4551 = vmatprep.subr.mxu0 %v1617
    %4552 = vmatpush1.msra.mxu0 %v1616
    %4553 = vmatprep.subr.mxu0 %v1611
    %4554 = vmatpush1.msra.mxu0 %v1610
    %4555 = vmatprep.subr.mxu0 %v1605
    %4556 = vmatpush1.msra.mxu0 %v1604
    %4557 = vmatprep.subr.mxu0 %v1599
    %4558 = vmatpush1.msra.mxu0 %v1598
    %4559 = vmatprep.subr.mxu0 %v1593
    %4560 = vmatpush1.msra.mxu0 %v1592
    %4561 = vmatprep.subr.mxu0 %v1587
    %4562 = vmatpush1.msra.mxu0 %v1586
    %4563 = vmatprep.subr.mxu0 %v1581
    %4564 = vmatpush1.msra.mxu0 %v1580
    %4565 = vmatprep.subr.mxu0 %v1575
    %4566 = vmatpush1.msra.mxu0 %v1574
    %4567 = vmatprep.subr.mxu0 %v1569
    %4568 = vmatpush1.msra.mxu0 %v1568
    %4569 = vmatprep.subr.mxu0 0.0
    %4570 = vmatpush2.msra.mxu0 0.0
    %4571 = vmatprep.subr.mxu0 0.0
    %4572 = vmatpush2.msra.mxu0 0.0
    %4573 = vmatprep.subr.mxu0 0.0
    %4574 = vmatpush2.msra.mxu0 0.0
    %4575 = vmatprep.subr.mxu0 0.0
    %4576 = vmatpush2.msra.mxu0 0.0
    %4577 = vmatprep.subr.mxu0 0.0
    %4578 = vmatpush2.msra.mxu0 0.0
    %4579 = vmatprep.subr.mxu0 0.0
    %4580 = vmatpush2.msra.mxu0 0.0
    %4581 = vmatprep.subr.mxu0 0.0
    %4582 = vmatpush2.msra.mxu0 0.0
    %4583 = vmatprep.subr.mxu0 0.0
    %4584 = vmatpush2.msra.mxu0 0.0
    %4585 = vmatprep.subr.mxu0 0.0
    %4586 = vmatpush2.msra.mxu0 0.0
    %4587 = vmatprep.subr.mxu0 0.0
    %4588 = vmatpush2.msra.mxu0 0.0
    %4589 = vmatprep.subr.mxu0 0.0
    %4590 = vmatpush2.msra.mxu0 0.0
    %4591 = vmatprep.subr.mxu0 0.0
    %4592 = vmatpush2.msra.mxu0 0.0
    %4593 = vmatprep.subr.mxu0 0.0
    %4594 = vmatpush2.msra.mxu0 0.0
    %4595 = vmatprep.subr.mxu0 0.0
    %4596 = vmatpush2.msra.mxu0 0.0
    %4597 = vmatprep.subr.mxu0 0.0
    %4598 = vmatpush2.msra.mxu0 0.0
    %4599 = vmatprep.subr.mxu0 0.0
    %4600 = vmatpush2.msra.mxu0 0.0
    %4601 = vmatprep.mubr.f32.mxu0 0.0
    %4602 = vmatmul.mubr.f32.gmra.mxu0 %v4394
    %v4603 = vpop.f32.mrf.mxu0
    %v4604 = vadd.f32 0.0, %v4603
    %v4605 = vpop.f32.mrf.mxu0
    %v4606 = vadd.f32 0.0, %v4605
    %4607 = vdwg.mxu0
    %v4608 = vadd.f32 %v4462, %v1876
    %v4609 = vadd.f32 %v4464, %v1880
    %v4610 = vadd.f32 %v4533, %v1884
    %v4611 = vadd.f32 %v4535, %v1535
    %v4612 = vadd.f32 %v4604, %v1546
    %v4613 = vadd.f32 %v4606, %v1557
    %v4614 = vadd.f32 %v4608, %v3455
    %v4615 = vxor.u32 %v4614, 2147483648
    %v4616 = vmul.f32 %v4615, 1.442695
    %v4617 = vpow.pop %v4616
    %v4618 = vadd.f32 %v4617, 1.0
    %v4619 = vrcp.pop %v4618
    %v4620 = vmul.f32 1.0, %v4619
    %v4621 = vadd.f32 %v4609, %v3456
    %v4622 = vxor.u32 %v4621, 2147483648
    %v4623 = vmul.f32 %v4622, 1.442695
    %v4624 = vpow.pop %v4623
    %v4625 = vadd.f32 %v4624, 1.0
    %v4626 = vrcp.pop %v4625
    %v4627 = vmul.f32 1.0, %v4626
    %v4628 = vmul.f32 %v4620, %v3457
    %v4629 = vadd.f32 %v4610, %v4628
    %v4630 = vtanh.pop %v4629
    %v4631 = vsub.f32 1.0, %v4627
    %v4632 = vmul.f32 %v4631, %v4630
    %v4633 = vmul.f32 %v4627, %v3312
    %v4634 = vadd.f32 %v4632, %v4633
    %4635 = vmatprep.subr.mxu0 %v1984
    %4636 = vmatpush1.msra.mxu0 %v1983
    %4637 = vmatprep.subr.mxu0 %v1980
    %4638 = vmatpush1.msra.mxu0 %v1979
    %4639 = vmatprep.subr.mxu0 %v1976
    %4640 = vmatpush1.msra.mxu0 %v1975
    %4641 = vmatprep.subr.mxu0 %v1972
    %4642 = vmatpush1.msra.mxu0 %v1971
    %4643 = vmatprep.subr.mxu0 %v1968
    %4644 = vmatpush1.msra.mxu0 %v1967
    %4645 = vmatprep.subr.mxu0 %v1964
    %4646 = vmatpush1.msra.mxu0 %v1963
    %4647 = vmatprep.subr.mxu0 %v1960
    %4648 = vmatpush1.msra.mxu0 %v1959
    %4649 = vmatprep.subr.mxu0 %v1956
    %4650 = vmatpush1.msra.mxu0 %v1955
    %4651 = vmatprep.subr.mxu0 %v1952
    %4652 = vmatpush1.msra.mxu0 %v1951
    %4653 = vmatprep.subr.mxu0 %v1948
    %4654 = vmatpush1.msra.mxu0 %v1947
    %4655 = vmatprep.subr.mxu0 %v1944
    %4656 = vmatpush1.msra.mxu0 %v1943
    %4657 = vmatprep.subr.mxu0 %v1940
    %4658 = vmatpush1.msra.mxu0 %v1939
    %4659 = vmatprep.subr.mxu0 %v1936
    %4660 = vmatpush1.msra.mxu0 %v1935
    %4661 = vmatprep.subr.mxu0 %v1932
    %4662 = vmatpush1.msra.mxu0 %v1931
    %4663 = vmatprep.subr.mxu0 %v1928
    %4664 = vmatpush1.msra.mxu0 %v1927
    %4665 = vmatprep.subr.mxu0 %v1924
    %4666 = vmatpush1.msra.mxu0 %v1923
    %4667 = vmatprep.subr.mxu0 0.0
    %4668 = vmatpush2.msra.mxu0 0.0
    %4669 = vmatprep.subr.mxu0 0.0
    %4670 = vmatpush2.msra.mxu0 0.0
    %4671 = vmatprep.subr.mxu0 0.0
    %4672 = vmatpush2.msra.mxu0 0.0
    %4673 = vmatprep.subr.mxu0 0.0
    %4674 = vmatpush2.msra.mxu0 0.0
    %4675 = vmatprep.subr.mxu0 0.0
    %4676 = vmatpush2.msra.mxu0 0.0
    %4677 = vmatprep.subr.mxu0 0.0
    %4678 = vmatpush2.msra.mxu0 0.0
    %4679 = vmatprep.subr.mxu0 0.0
    %4680 = vmatpush2.msra.mxu0 0.0
    %4681 = vmatprep.subr.mxu0 0.0
    %4682 = vmatpush2.msra.mxu0 0.0
    %4683 = vmatprep.subr.mxu0 0.0
    %4684 = vmatpush2.msra.mxu0 0.0
    %4685 = vmatprep.subr.mxu0 0.0
    %4686 = vmatpush2.msra.mxu0 0.0
    %4687 = vmatprep.subr.mxu0 0.0
    %4688 = vmatpush2.msra.mxu0 0.0
    %4689 = vmatprep.subr.mxu0 0.0
    %4690 = vmatpush2.msra.mxu0 0.0
    %4691 = vmatprep.subr.mxu0 0.0
    %4692 = vmatpush2.msra.mxu0 0.0
    %4693 = vmatprep.subr.mxu0 0.0
    %4694 = vmatpush2.msra.mxu0 0.0
    %4695 = vmatprep.subr.mxu0 0.0
    %4696 = vmatpush2.msra.mxu0 0.0
    %4697 = vmatprep.subr.mxu0 0.0
    %4698 = vmatpush2.msra.mxu0 0.0
    %4699 = vmatprep.mubr.f32.mxu0 0.0
    %4700 = vmatmul.mubr.f32.gmra.mxu0 %v4634
    %v4701 = vpop.f32.mrf.mxu0
    %v4702 = vadd.f32 0.0, %v4701
    %v4703 = vpop.f32.mrf.mxu0
    %v4704 = vadd.f32 0.0, %v4703
    %4705 = vdwg.mxu0
    %4706 = vmatprep.subr.mxu0 %v1986
    %4707 = vmatpush1.msra.mxu0 %v1985
    %4708 = vmatprep.subr.mxu0 %v1982
    %4709 = vmatpush1.msra.mxu0 %v1981
    %4710 = vmatprep.subr.mxu0 %v1978
    %4711 = vmatpush1.msra.mxu0 %v1977
    %4712 = vmatprep.subr.mxu0 %v1974
    %4713 = vmatpush1.msra.mxu0 %v1973
    %4714 = vmatprep.subr.mxu0 %v1970
    %4715 = vmatpush1.msra.mxu0 %v1969
    %4716 = vmatprep.subr.mxu0 %v1966
    %4717 = vmatpush1.msra.mxu0 %v1965
    %4718 = vmatprep.subr.mxu0 %v1962
    %4719 = vmatpush1.msra.mxu0 %v1961
    %4720 = vmatprep.subr.mxu0 %v1958
    %4721 = vmatpush1.msra.mxu0 %v1957
    %4722 = vmatprep.subr.mxu0 %v1954
    %4723 = vmatpush1.msra.mxu0 %v1953
    %4724 = vmatprep.subr.mxu0 %v1950
    %4725 = vmatpush1.msra.mxu0 %v1949
    %4726 = vmatprep.subr.mxu0 %v1946
    %4727 = vmatpush1.msra.mxu0 %v1945
    %4728 = vmatprep.subr.mxu0 %v1942
    %4729 = vmatpush1.msra.mxu0 %v1941
    %4730 = vmatprep.subr.mxu0 %v1938
    %4731 = vmatpush1.msra.mxu0 %v1937
    %4732 = vmatprep.subr.mxu0 %v1934
    %4733 = vmatpush1.msra.mxu0 %v1933
    %4734 = vmatprep.subr.mxu0 %v1930
    %4735 = vmatpush1.msra.mxu0 %v1929
    %4736 = vmatprep.subr.mxu0 %v1926
    %4737 = vmatpush1.msra.mxu0 %v1925
    %4738 = vmatprep.subr.mxu0 0.0
    %4739 = vmatpush2.msra.mxu0 0.0
    %4740 = vmatprep.subr.mxu0 0.0
    %4741 = vmatpush2.msra.mxu0 0.0
    %4742 = vmatprep.subr.mxu0 0.0
    %4743 = vmatpush2.msra.mxu0 0.0
    %4744 = vmatprep.subr.mxu0 0.0
    %4745 = vmatpush2.msra.mxu0 0.0
    %4746 = vmatprep.subr.mxu0 0.0
    %4747 = vmatpush2.msra.mxu0 0.0
    %4748 = vmatprep.subr.mxu0 0.0
    %4749 = vmatpush2.msra.mxu0 0.0
    %4750 = vmatprep.subr.mxu0 0.0
    %4751 = vmatpush2.msra.mxu0 0.0
    %4752 = vmatprep.subr.mxu0 0.0
    %4753 = vmatpush2.msra.mxu0 0.0
    %4754 = vmatprep.subr.mxu0 0.0
    %4755 = vmatpush2.msra.mxu0 0.0
    %4756 = vmatprep.subr.mxu0 0.0
    %4757 = vmatpush2.msra.mxu0 0.0
    %4758 = vmatprep.subr.mxu0 0.0
    %4759 = vmatpush2.msra.mxu0 0.0
    %4760 = vmatprep.subr.mxu0 0.0
    %4761 = vmatpush2.msra.mxu0 0.0
    %4762 = vmatprep.subr.mxu0 0.0
    %4763 = vmatpush2.msra.mxu0 0.0
    %4764 = vmatprep.subr.mxu0 0.0
    %4765 = vmatpush2.msra.mxu0 0.0
    %4766 = vmatprep.subr.mxu0 0.0
    %4767 = vmatpush2.msra.mxu0 0.0
    %4768 = vmatprep.subr.mxu0 0.0
    %4769 = vmatpush2.msra.mxu0 0.0
    %4770 = vmatprep.mubr.f32.mxu0 0.0
    %4771 = vmatmul.mubr.f32.gmra.mxu0 %v4634
    %v4772 = vpop.f32.mrf.mxu0
    %v4773 = vadd.f32 0.0, %v4772
    %v4774 = vpop.f32.mrf.mxu0
    %v4775 = vadd.f32 0.0, %v4774
    %4776 = vdwg.mxu0
    %v4777 = vadd.f32 %v4702, %v1894
    %v4778 = vadd.f32 %v4704, %v1905
    %v4779 = vadd.f32 %v4773, %v1916
    %v4780 = vadd.f32 %v4775, %v2133
    %v4781 = vadd.f32 %v4780, 0.0
    %v4782 = vsel %vm813, %v4781, 0.0
    %v4783 = vrot.slane %v4782, 4
    %v4784 = vadd.f32 %v4782, %v4783
    %v4785 = vrot.slane %v4784, 2
    %v4786 = vadd.f32 %v4784, %v4785
    %v4787 = vrot.slane %v4786, 1
    %v4788 = vadd.f32 %v4786, %v4787
    %v4789 = vmul.f32 %v4788, 0.125
    %v4790 = vsub.f32 %v4780, %v4789
    %v4791 = vmul.f32 %v4790, %v4790
    %v4792 = vadd.f32 %v4791, 0.0
    %v4793 = vsel %vm813, %v4792, 0.0
    %v4794 = vrot.slane %v4793, 4
    %v4795 = vadd.f32 %v4793, %v4794
    %v4796 = vrot.slane %v4795, 2
    %v4797 = vadd.f32 %v4795, %v4796
    %v4798 = vrot.slane %v4797, 1
    %v4799 = vadd.f32 %v4797, %v4798
    %v4800 = vmul.f32 %v4799, 0.14285715
    %v4801 = vrsqrt.pop %v4800
    %v4802 = vmul.f32 %v4790, %v4801
    %4803 = vrot.lane.b32.xlu0 %v115, 120
    %v4804 = vpop.permute.xlu0 %4803
    %v4806 = vadd.f32 %v4802, %v4804
    %4808 = vset.pattern.permute.xlu0 0
    %4809 = vperm.xlu0 %4808, %v4806
    %v4810 = vpop.permute.xlu0 %4809
    %v4812 = vmul.f32 %v4810, %v186
    %v4813 = vmul.f32 %v4810, %v190
    %v4814 = vmul.f32 %v4810, %v194
    %v4815 = vadd.f32 %v180, %v4812
    %v4816 = vadd.f32 %v181, %v4813
    %v4817 = vadd.f32 %v182, %v4814
    %v4818 = vadd.f32 %v4815, %v3733
    %v4819 = vxor.u32 %v4818, 2147483648
    %v4820 = vmul.f32 %v4819, 1.442695
    %v4821 = vpow.pop %v4820
    %v4822 = vadd.f32 %v4821, 1.0
    %v4823 = vrcp.pop %v4822
    %v4824 = vmul.f32 1.0, %v4823
    %v4825 = vadd.f32 %v4816, %v3734
    %v4826 = vxor.u32 %v4825, 2147483648
    %v4827 = vmul.f32 %v4826, 1.442695
    %v4828 = vpow.pop %v4827
    %v4829 = vadd.f32 %v4828, 1.0
    %v4830 = vrcp.pop %v4829
    %v4831 = vmul.f32 1.0, %v4830
    %v4832 = vmul.f32 %v4824, %v3735
    %v4833 = vadd.f32 %v4817, %v4832
    %v4834 = vtanh.pop %v4833
    %v4835 = vsub.f32 1.0, %v4831
    %v4836 = vmul.f32 %v4835, %v4834
    %v4837 = vmul.f32 %v4831, %v3516
    %v4838 = vadd.f32 %v4836, %v4837
    %4839 = vmatprep.subr.mxu0 %v323
    %4840 = vmatpush1.msra.mxu0 %v322
    %4841 = vmatprep.subr.mxu0 %v317
    %4842 = vmatpush1.msra.mxu0 %v316
    %4843 = vmatprep.subr.mxu0 %v311
    %4844 = vmatpush1.msra.mxu0 %v310
    %4845 = vmatprep.subr.mxu0 %v305
    %4846 = vmatpush1.msra.mxu0 %v304
    %4847 = vmatprep.subr.mxu0 %v299
    %4848 = vmatpush1.msra.mxu0 %v298
    %4849 = vmatprep.subr.mxu0 %v293
    %4850 = vmatpush1.msra.mxu0 %v292
    %4851 = vmatprep.subr.mxu0 %v287
    %4852 = vmatpush1.msra.mxu0 %v286
    %4853 = vmatprep.subr.mxu0 %v281
    %4854 = vmatpush1.msra.mxu0 %v280
    %4855 = vmatprep.subr.mxu0 %v275
    %4856 = vmatpush1.msra.mxu0 %v274
    %4857 = vmatprep.subr.mxu0 %v269
    %4858 = vmatpush1.msra.mxu0 %v268
    %4859 = vmatprep.subr.mxu0 %v263
    %4860 = vmatpush1.msra.mxu0 %v262
    %4861 = vmatprep.subr.mxu0 %v257
    %4862 = vmatpush1.msra.mxu0 %v256
    %4863 = vmatprep.subr.mxu0 %v251
    %4864 = vmatpush1.msra.mxu0 %v250
    %4865 = vmatprep.subr.mxu0 %v245
    %4866 = vmatpush1.msra.mxu0 %v244
    %4867 = vmatprep.subr.mxu0 %v239
    %4868 = vmatpush1.msra.mxu0 %v238
    %4869 = vmatprep.subr.mxu0 %v233
    %4870 = vmatpush1.msra.mxu0 %v232
    %4871 = vmatprep.subr.mxu0 0.0
    %4872 = vmatpush2.msra.mxu0 0.0
    %4873 = vmatprep.subr.mxu0 0.0
    %4874 = vmatpush2.msra.mxu0 0.0
    %4875 = vmatprep.subr.mxu0 0.0
    %4876 = vmatpush2.msra.mxu0 0.0
    %4877 = vmatprep.subr.mxu0 0.0
    %4878 = vmatpush2.msra.mxu0 0.0
    %4879 = vmatprep.subr.mxu0 0.0
    %4880 = vmatpush2.msra.mxu0 0.0
    %4881 = vmatprep.subr.mxu0 0.0
    %4882 = vmatpush2.msra.mxu0 0.0
    %4883 = vmatprep.subr.mxu0 0.0
    %4884 = vmatpush2.msra.mxu0 0.0
    %4885 = vmatprep.subr.mxu0 0.0
    %4886 = vmatpush2.msra.mxu0 0.0
    %4887 = vmatprep.subr.mxu0 0.0
    %4888 = vmatpush2.msra.mxu0 0.0
    %4889 = vmatprep.subr.mxu0 0.0
    %4890 = vmatpush2.msra.mxu0 0.0
    %4891 = vmatprep.subr.mxu0 0.0
    %4892 = vmatpush2.msra.mxu0 0.0
    %4893 = vmatprep.subr.mxu0 0.0
    %4894 = vmatpush2.msra.mxu0 0.0
    %4895 = vmatprep.subr.mxu0 0.0
    %4896 = vmatpush2.msra.mxu0 0.0
    %4897 = vmatprep.subr.mxu0 0.0
    %4898 = vmatpush2.msra.mxu0 0.0
    %4899 = vmatprep.subr.mxu0 0.0
    %4900 = vmatpush2.msra.mxu0 0.0
    %4901 = vmatprep.subr.mxu0 0.0
    %4902 = vmatpush2.msra.mxu0 0.0
    %4903 = vmatprep.mubr.f32.mxu0 0.0
    %4904 = vmatmul.mubr.f32.gmra.mxu0 %v4838
    %v4905 = vpop.f32.mrf.mxu0
    %v4906 = vadd.f32 0.0, %v4905
    %v4907 = vpop.f32.mrf.mxu0
    %v4908 = vadd.f32 0.0, %v4907
    %4909 = vdwg.mxu0
    %4910 = vmatprep.subr.mxu0 %v325
    %4911 = vmatpush1.msra.mxu0 %v324
    %4912 = vmatprep.subr.mxu0 %v319
    %4913 = vmatpush1.msra.mxu0 %v318
    %4914 = vmatprep.subr.mxu0 %v313
    %4915 = vmatpush1.msra.mxu0 %v312
    %4916 = vmatprep.subr.mxu0 %v307
    %4917 = vmatpush1.msra.mxu0 %v306
    %4918 = vmatprep.subr.mxu0 %v301
    %4919 = vmatpush1.msra.mxu0 %v300
    %4920 = vmatprep.subr.mxu0 %v295
    %4921 = vmatpush1.msra.mxu0 %v294
    %4922 = vmatprep.subr.mxu0 %v289
    %4923 = vmatpush1.msra.mxu0 %v288
    %4924 = vmatprep.subr.mxu0 %v283
    %4925 = vmatpush1.msra.mxu0 %v282
    %4926 = vmatprep.subr.mxu0 %v277
    %4927 = vmatpush1.msra.mxu0 %v276
    %4928 = vmatprep.subr.mxu0 %v271
    %4929 = vmatpush1.msra.mxu0 %v270
    %4930 = vmatprep.subr.mxu0 %v265
    %4931 = vmatpush1.msra.mxu0 %v264
    %4932 = vmatprep.subr.mxu0 %v259
    %4933 = vmatpush1.msra.mxu0 %v258
    %4934 = vmatprep.subr.mxu0 %v253
    %4935 = vmatpush1.msra.mxu0 %v252
    %4936 = vmatprep.subr.mxu0 %v247
    %4937 = vmatpush1.msra.mxu0 %v246
    %4938 = vmatprep.subr.mxu0 %v241
    %4939 = vmatpush1.msra.mxu0 %v240
    %4940 = vmatprep.subr.mxu0 %v235
    %4941 = vmatpush1.msra.mxu0 %v234
    %4942 = vmatprep.subr.mxu0 0.0
    %4943 = vmatpush2.msra.mxu0 0.0
    %4944 = vmatprep.subr.mxu0 0.0
    %4945 = vmatpush2.msra.mxu0 0.0
    %4946 = vmatprep.subr.mxu0 0.0
    %4947 = vmatpush2.msra.mxu0 0.0
    %4948 = vmatprep.subr.mxu0 0.0
    %4949 = vmatpush2.msra.mxu0 0.0
    %4950 = vmatprep.subr.mxu0 0.0
    %4951 = vmatpush2.msra.mxu0 0.0
    %4952 = vmatprep.subr.mxu0 0.0
    %4953 = vmatpush2.msra.mxu0 0.0
    %4954 = vmatprep.subr.mxu0 0.0
    %4955 = vmatpush2.msra.mxu0 0.0
    %4956 = vmatprep.subr.mxu0 0.0
    %4957 = vmatpush2.msra.mxu0 0.0
    %4958 = vmatprep.subr.mxu0 0.0
    %4959 = vmatpush2.msra.mxu0 0.0
    %4960 = vmatprep.subr.mxu0 0.0
    %4961 = vmatpush2.msra.mxu0 0.0
    %4962 = vmatprep.subr.mxu0 0.0
    %4963 = vmatpush2.msra.mxu0 0.0
    %4964 = vmatprep.subr.mxu0 0.0
    %4965 = vmatpush2.msra.mxu0 0.0
    %4966 = vmatprep.subr.mxu0 0.0
    %4967 = vmatpush2.msra.mxu0 0.0
    %4968 = vmatprep.subr.mxu0 0.0
    %4969 = vmatpush2.msra.mxu0 0.0
    %4970 = vmatprep.subr.mxu0 0.0
    %4971 = vmatpush2.msra.mxu0 0.0
    %4972 = vmatprep.subr.mxu0 0.0
    %4973 = vmatpush2.msra.mxu0 0.0
    %4974 = vmatprep.mubr.f32.mxu0 0.0
    %4975 = vmatmul.mubr.f32.gmra.mxu0 %v4838
    %v4976 = vpop.f32.mrf.mxu0
    %v4977 = vadd.f32 0.0, %v4976
    %v4978 = vpop.f32.mrf.mxu0
    %v4979 = vadd.f32 0.0, %v4978
    %4980 = vdwg.mxu0
    %4981 = vmatprep.subr.mxu0 %v327
    %4982 = vmatpush1.msra.mxu0 %v326
    %4983 = vmatprep.subr.mxu0 %v321
    %4984 = vmatpush1.msra.mxu0 %v320
    %4985 = vmatprep.subr.mxu0 %v315
    %4986 = vmatpush1.msra.mxu0 %v314
    %4987 = vmatprep.subr.mxu0 %v309
    %4988 = vmatpush1.msra.mxu0 %v308
    %4989 = vmatprep.subr.mxu0 %v303
    %4990 = vmatpush1.msra.mxu0 %v302
    %4991 = vmatprep.subr.mxu0 %v297
    %4992 = vmatpush1.msra.mxu0 %v296
    %4993 = vmatprep.subr.mxu0 %v291
    %4994 = vmatpush1.msra.mxu0 %v290
    %4995 = vmatprep.subr.mxu0 %v285
    %4996 = vmatpush1.msra.mxu0 %v284
    %4997 = vmatprep.subr.mxu0 %v279
    %4998 = vmatpush1.msra.mxu0 %v278
    %4999 = vmatprep.subr.mxu0 %v273
    %5000 = vmatpush1.msra.mxu0 %v272
    %5001 = vmatprep.subr.mxu0 %v267
    %5002 = vmatpush1.msra.mxu0 %v266
    %5003 = vmatprep.subr.mxu0 %v261
    %5004 = vmatpush1.msra.mxu0 %v260
    %5005 = vmatprep.subr.mxu0 %v255
    %5006 = vmatpush1.msra.mxu0 %v254
    %5007 = vmatprep.subr.mxu0 %v249
    %5008 = vmatpush1.msra.mxu0 %v248
    %5009 = vmatprep.subr.mxu0 %v243
    %5010 = vmatpush1.msra.mxu0 %v242
    %5011 = vmatprep.subr.mxu0 %v237
    %5012 = vmatpush1.msra.mxu0 %v236
    %5013 = vmatprep.subr.mxu0 0.0
    %5014 = vmatpush2.msra.mxu0 0.0
    %5015 = vmatprep.subr.mxu0 0.0
    %5016 = vmatpush2.msra.mxu0 0.0
    %5017 = vmatprep.subr.mxu0 0.0
    %5018 = vmatpush2.msra.mxu0 0.0
    %5019 = vmatprep.subr.mxu0 0.0
    %5020 = vmatpush2.msra.mxu0 0.0
    %5021 = vmatprep.subr.mxu0 0.0
    %5022 = vmatpush2.msra.mxu0 0.0
    %5023 = vmatprep.subr.mxu0 0.0
    %5024 = vmatpush2.msra.mxu0 0.0
    %5025 = vmatprep.subr.mxu0 0.0
    %5026 = vmatpush2.msra.mxu0 0.0
    %5027 = vmatprep.subr.mxu0 0.0
    %5028 = vmatpush2.msra.mxu0 0.0
    %5029 = vmatprep.subr.mxu0 0.0
    %5030 = vmatpush2.msra.mxu0 0.0
    %5031 = vmatprep.subr.mxu0 0.0
    %5032 = vmatpush2.msra.mxu0 0.0
    %5033 = vmatprep.subr.mxu0 0.0
    %5034 = vmatpush2.msra.mxu0 0.0
    %5035 = vmatprep.subr.mxu0 0.0
    %5036 = vmatpush2.msra.mxu0 0.0
    %5037 = vmatprep.subr.mxu0 0.0
    %5038 = vmatpush2.msra.mxu0 0.0
    %5039 = vmatprep.subr.mxu0 0.0
    %5040 = vmatpush2.msra.mxu0 0.0
    %5041 = vmatprep.subr.mxu0 0.0
    %5042 = vmatpush2.msra.mxu0 0.0
    %5043 = vmatprep.subr.mxu0 0.0
    %5044 = vmatpush2.msra.mxu0 0.0
    %5045 = vmatprep.mubr.f32.mxu0 0.0
    %5046 = vmatmul.mubr.f32.gmra.mxu0 %v4838
    %v5047 = vpop.f32.mrf.mxu0
    %v5048 = vadd.f32 0.0, %v5047
    %v5049 = vpop.f32.mrf.mxu0
    %v5050 = vadd.f32 0.0, %v5049
    %5051 = vdwg.mxu0
    %v5052 = vadd.f32 %v4906, %v544
    %v5053 = vadd.f32 %v4908, %v548
    %v5054 = vadd.f32 %v4977, %v552
    %v5055 = vadd.f32 %v4979, %v204
    %v5056 = vadd.f32 %v5048, %v215
    %v5057 = vadd.f32 %v5050, %v226
    %v5058 = vadd.f32 %v5052, %v3899
    %v5059 = vxor.u32 %v5058, 2147483648
    %v5060 = vmul.f32 %v5059, 1.442695
    %v5061 = vpow.pop %v5060
    %v5062 = vadd.f32 %v5061, 1.0
    %v5063 = vrcp.pop %v5062
    %v5064 = vmul.f32 1.0, %v5063
    %v5065 = vadd.f32 %v5053, %v3900
    %v5066 = vxor.u32 %v5065, 2147483648
    %v5067 = vmul.f32 %v5066, 1.442695
    %v5068 = vpow.pop %v5067
    %v5069 = vadd.f32 %v5068, 1.0
    %v5070 = vrcp.pop %v5069
    %v5071 = vmul.f32 1.0, %v5070
    %v5072 = vmul.f32 %v5064, %v3901
    %v5073 = vadd.f32 %v5054, %v5072
    %v5074 = vtanh.pop %v5073
    %v5075 = vsub.f32 1.0, %v5071
    %v5076 = vmul.f32 %v5075, %v5074
    %v5077 = vmul.f32 %v5071, %v3756
    %v5078 = vadd.f32 %v5076, %v5077
    %5079 = vmatprep.subr.mxu0 %v651
    %5080 = vmatpush1.msra.mxu0 %v650
    %5081 = vmatprep.subr.mxu0 %v647
    %5082 = vmatpush1.msra.mxu0 %v646
    %5083 = vmatprep.subr.mxu0 %v643
    %5084 = vmatpush1.msra.mxu0 %v642
    %5085 = vmatprep.subr.mxu0 %v639
    %5086 = vmatpush1.msra.mxu0 %v638
    %5087 = vmatprep.subr.mxu0 %v635
    %5088 = vmatpush1.msra.mxu0 %v634
    %5089 = vmatprep.subr.mxu0 %v631
    %5090 = vmatpush1.msra.mxu0 %v630
    %5091 = vmatprep.subr.mxu0 %v627
    %5092 = vmatpush1.msra.mxu0 %v626
    %5093 = vmatprep.subr.mxu0 %v623
    %5094 = vmatpush1.msra.mxu0 %v622
    %5095 = vmatprep.subr.mxu0 %v619
    %5096 = vmatpush1.msra.mxu0 %v618
    %5097 = vmatprep.subr.mxu0 %v615
    %5098 = vmatpush1.msra.mxu0 %v614
    %5099 = vmatprep.subr.mxu0 %v611
    %5100 = vmatpush1.msra.mxu0 %v610
    %5101 = vmatprep.subr.mxu0 %v607
    %5102 = vmatpush1.msra.mxu0 %v606
    %5103 = vmatprep.subr.mxu0 %v603
    %5104 = vmatpush1.msra.mxu0 %v602
    %5105 = vmatprep.subr.mxu0 %v599
    %5106 = vmatpush1.msra.mxu0 %v598
    %5107 = vmatprep.subr.mxu0 %v595
    %5108 = vmatpush1.msra.mxu0 %v594
    %5109 = vmatprep.subr.mxu0 %v591
    %5110 = vmatpush1.msra.mxu0 %v590
    %5111 = vmatprep.subr.mxu0 0.0
    %5112 = vmatpush2.msra.mxu0 0.0
    %5113 = vmatprep.subr.mxu0 0.0
    %5114 = vmatpush2.msra.mxu0 0.0
    %5115 = vmatprep.subr.mxu0 0.0
    %5116 = vmatpush2.msra.mxu0 0.0
    %5117 = vmatprep.subr.mxu0 0.0
    %5118 = vmatpush2.msra.mxu0 0.0
    %5119 = vmatprep.subr.mxu0 0.0
    %5120 = vmatpush2.msra.mxu0 0.0
    %5121 = vmatprep.subr.mxu0 0.0
    %5122 = vmatpush2.msra.mxu0 0.0
    %5123 = vmatprep.subr.mxu0 0.0
    %5124 = vmatpush2.msra.mxu0 0.0
    %5125 = vmatprep.subr.mxu0 0.0
    %5126 = vmatpush2.msra.mxu0 0.0
    %5127 = vmatprep.subr.mxu0 0.0
    %5128 = vmatpush2.msra.mxu0 0.0
    %5129 = vmatprep.subr.mxu0 0.0
    %5130 = vmatpush2.msra.mxu0 0.0
    %5131 = vmatprep.subr.mxu0 0.0
    %5132 = vmatpush2.msra.mxu0 0.0
    %5133 = vmatprep.subr.mxu0 0.0
    %5134 = vmatpush2.msra.mxu0 0.0
    %5135 = vmatprep.subr.mxu0 0.0
    %5136 = vmatpush2.msra.mxu0 0.0
    %5137 = vmatprep.subr.mxu0 0.0
    %5138 = vmatpush2.msra.mxu0 0.0
    %5139 = vmatprep.subr.mxu0 0.0
    %5140 = vmatpush2.msra.mxu0 0.0
    %5141 = vmatprep.subr.mxu0 0.0
    %5142 = vmatpush2.msra.mxu0 0.0
    %5143 = vmatprep.mubr.f32.mxu0 0.0
    %5144 = vmatmul.mubr.f32.gmra.mxu0 %v5078
    %v5145 = vpop.f32.mrf.mxu0
    %v5146 = vadd.f32 0.0, %v5145
    %v5147 = vpop.f32.mrf.mxu0
    %v5148 = vadd.f32 0.0, %v5147
    %5149 = vdwg.mxu0
    %5150 = vmatprep.subr.mxu0 %v653
    %5151 = vmatpush1.msra.mxu0 %v652
    %5152 = vmatprep.subr.mxu0 %v649
    %5153 = vmatpush1.msra.mxu0 %v648
    %5154 = vmatprep.subr.mxu0 %v645
    %5155 = vmatpush1.msra.mxu0 %v644
    %5156 = vmatprep.subr.mxu0 %v641
    %5157 = vmatpush1.msra.mxu0 %v640
    %5158 = vmatprep.subr.mxu0 %v637
    %5159 = vmatpush1.msra.mxu0 %v636
    %5160 = vmatprep.subr.mxu0 %v633
    %5161 = vmatpush1.msra.mxu0 %v632
    %5162 = vmatprep.subr.mxu0 %v629
    %5163 = vmatpush1.msra.mxu0 %v628
    %5164 = vmatprep.subr.mxu0 %v625
    %5165 = vmatpush1.msra.mxu0 %v624
    %5166 = vmatprep.subr.mxu0 %v621
    %5167 = vmatpush1.msra.mxu0 %v620
    %5168 = vmatprep.subr.mxu0 %v617
    %5169 = vmatpush1.msra.mxu0 %v616
    %5170 = vmatprep.subr.mxu0 %v613
    %5171 = vmatpush1.msra.mxu0 %v612
    %5172 = vmatprep.subr.mxu0 %v609
    %5173 = vmatpush1.msra.mxu0 %v608
    %5174 = vmatprep.subr.mxu0 %v605
    %5175 = vmatpush1.msra.mxu0 %v604
    %5176 = vmatprep.subr.mxu0 %v601
    %5177 = vmatpush1.msra.mxu0 %v600
    %5178 = vmatprep.subr.mxu0 %v597
    %5179 = vmatpush1.msra.mxu0 %v596
    %5180 = vmatprep.subr.mxu0 %v593
    %5181 = vmatpush1.msra.mxu0 %v592
    %5182 = vmatprep.subr.mxu0 0.0
    %5183 = vmatpush2.msra.mxu0 0.0
    %5184 = vmatprep.subr.mxu0 0.0
    %5185 = vmatpush2.msra.mxu0 0.0
    %5186 = vmatprep.subr.mxu0 0.0
    %5187 = vmatpush2.msra.mxu0 0.0
    %5188 = vmatprep.subr.mxu0 0.0
    %5189 = vmatpush2.msra.mxu0 0.0
    %5190 = vmatprep.subr.mxu0 0.0
    %5191 = vmatpush2.msra.mxu0 0.0
    %5192 = vmatprep.subr.mxu0 0.0
    %5193 = vmatpush2.msra.mxu0 0.0
    %5194 = vmatprep.subr.mxu0 0.0
    %5195 = vmatpush2.msra.mxu0 0.0
    %5196 = vmatprep.subr.mxu0 0.0
    %5197 = vmatpush2.msra.mxu0 0.0
    %5198 = vmatprep.subr.mxu0 0.0
    %5199 = vmatpush2.msra.mxu0 0.0
    %5200 = vmatprep.subr.mxu0 0.0
    %5201 = vmatpush2.msra.mxu0 0.0
    %5202 = vmatprep.subr.mxu0 0.0
    %5203 = vmatpush2.msra.mxu0 0.0
    %5204 = vmatprep.subr.mxu0 0.0
    %5205 = vmatpush2.msra.mxu0 0.0
    %5206 = vmatprep.subr.mxu0 0.0
    %5207 = vmatpush2.msra.mxu0 0.0
    %5208 = vmatprep.subr.mxu0 0.0
    %5209 = vmatpush2.msra.mxu0 0.0
    %5210 = vmatprep.subr.mxu0 0.0
    %5211 = vmatpush2.msra.mxu0 0.0
    %5212 = vmatprep.subr.mxu0 0.0
    %5213 = vmatpush2.msra.mxu0 0.0
    %5214 = vmatprep.mubr.f32.mxu0 0.0
    %5215 = vmatmul.mubr.f32.gmra.mxu0 %v5078
    %v5216 = vpop.f32.mrf.mxu0
    %v5217 = vadd.f32 0.0, %v5216
    %v5218 = vpop.f32.mrf.mxu0
    %v5219 = vadd.f32 0.0, %v5218
    %5220 = vdwg.mxu0
    %v5221 = vadd.f32 %v5146, %v562
    %v5222 = vadd.f32 %v5148, %v573
    %v5223 = vadd.f32 %v5217, %v584
    %v5224 = vadd.f32 %v5219, %v803
    %vm5225 = vcmp.gt.f32.partialorder %v5224, 0.0
    %v5226 = vmin.f32 %v5224, 0.0
    %v5227 = vmul.f32 %v5226, 1.442695
    %v5228 = vpow.pop %v5227
    %v5229 = vsub.f32 %v5228, 1.0
    %v5230 = vsel %vm5225, %v5224, %v5229
    %v5231 = vadd.f32 %v5230, 0.0
    %v5232 = vsel %vm813, %v5231, 0.0
    %v5233 = vrot.slane %v5232, 4
    %v5234 = vadd.f32 %v5232, %v5233
    %v5235 = vrot.slane %v5234, 2
    %v5236 = vadd.f32 %v5234, %v5235
    %v5237 = vrot.slane %v5236, 1
    %v5238 = vadd.f32 %v5236, %v5237
    %v5239 = vmul.f32 %v5238, 0.125
    %v5240 = vsub.f32 %v5230, %v5239
    %v5241 = vmul.f32 %v5240, %v5240
    %v5242 = vadd.f32 %v5241, 0.0
    %v5243 = vsel %vm813, %v5242, 0.0
    %v5244 = vrot.slane %v5243, 4
    %v5245 = vadd.f32 %v5243, %v5244
    %v5246 = vrot.slane %v5245, 2
    %v5247 = vadd.f32 %v5245, %v5246
    %v5248 = vrot.slane %v5247, 1
    %v5249 = vadd.f32 %v5247, %v5248
    %v5250 = vmul.f32 %v5249, 0.14285715
    %v5251 = vrsqrt.pop %v5250
    %v5252 = vmul.f32 %v5240, %v5251
    %5253 = vrot.lane.b32.xlu0 %v115, 125
    %v5254 = vpop.permute.xlu0 %5253
    %v5256 = vadd.f32 %v5252, %v5254
    %5258 = vset.pattern.permute.xlu0 0
    %5259 = vperm.xlu0 %5258, %v5256
    %v5260 = vpop.permute.xlu0 %5259
    %v5262 = vmul.f32 %v5260, %v844
    %v5263 = vmul.f32 %v5260, %v848
    %v5264 = vmul.f32 %v5260, %v852
    %v5265 = vadd.f32 %v5262, %v859
    %v5266 = vadd.f32 %v5263, %v863
    %v5267 = vadd.f32 %v5264, %v867
    %v5268 = vadd.f32 %v5265, %v4183
    %v5269 = vxor.u32 %v5268, 2147483648
    %v5270 = vmul.f32 %v5269, 1.442695
    %v5271 = vpow.pop %v5270
    %v5272 = vadd.f32 %v5271, 1.0
    %v5273 = vrcp.pop %v5272
    %v5274 = vmul.f32 1.0, %v5273
    %v5275 = vadd.f32 %v5266, %v4184
    %v5276 = vxor.u32 %v5275, 2147483648
    %v5277 = vmul.f32 %v5276, 1.442695
    %v5278 = vpow.pop %v5277
    %v5279 = vadd.f32 %v5278, 1.0
    %v5280 = vrcp.pop %v5279
    %v5281 = vmul.f32 1.0, %v5280
    %v5282 = vmul.f32 %v5274, %v4185
    %v5283 = vadd.f32 %v5267, %v5282
    %v5284 = vtanh.pop %v5283
    %v5285 = vsub.f32 1.0, %v5281
    %v5286 = vmul.f32 %v5285, %v5284
    %v5287 = vmul.f32 %v5281, %v3966
    %v5288 = vadd.f32 %v5286, %v5287
    %5289 = vmatprep.subr.mxu0 %v994
    %5290 = vmatpush1.msra.mxu0 %v993
    %5291 = vmatprep.subr.mxu0 %v988
    %5292 = vmatpush1.msra.mxu0 %v987
    %5293 = vmatprep.subr.mxu0 %v982
    %5294 = vmatpush1.msra.mxu0 %v981
    %5295 = vmatprep.subr.mxu0 %v976
    %5296 = vmatpush1.msra.mxu0 %v975
    %5297 = vmatprep.subr.mxu0 %v970
    %5298 = vmatpush1.msra.mxu0 %v969
    %5299 = vmatprep.subr.mxu0 %v964
    %5300 = vmatpush1.msra.mxu0 %v963
    %5301 = vmatprep.subr.mxu0 %v958
    %5302 = vmatpush1.msra.mxu0 %v957
    %5303 = vmatprep.subr.mxu0 %v952
    %5304 = vmatpush1.msra.mxu0 %v951
    %5305 = vmatprep.subr.mxu0 %v946
    %5306 = vmatpush1.msra.mxu0 %v945
    %5307 = vmatprep.subr.mxu0 %v940
    %5308 = vmatpush1.msra.mxu0 %v939
    %5309 = vmatprep.subr.mxu0 %v934
    %5310 = vmatpush1.msra.mxu0 %v933
    %5311 = vmatprep.subr.mxu0 %v928
    %5312 = vmatpush1.msra.mxu0 %v927
    %5313 = vmatprep.subr.mxu0 %v922
    %5314 = vmatpush1.msra.mxu0 %v921
    %5315 = vmatprep.subr.mxu0 %v916
    %5316 = vmatpush1.msra.mxu0 %v915
    %5317 = vmatprep.subr.mxu0 %v910
    %5318 = vmatpush1.msra.mxu0 %v909
    %5319 = vmatprep.subr.mxu0 %v904
    %5320 = vmatpush1.msra.mxu0 %v903
    %5321 = vmatprep.subr.mxu0 0.0
    %5322 = vmatpush2.msra.mxu0 0.0
    %5323 = vmatprep.subr.mxu0 0.0
    %5324 = vmatpush2.msra.mxu0 0.0
    %5325 = vmatprep.subr.mxu0 0.0
    %5326 = vmatpush2.msra.mxu0 0.0
    %5327 = vmatprep.subr.mxu0 0.0
    %5328 = vmatpush2.msra.mxu0 0.0
    %5329 = vmatprep.subr.mxu0 0.0
    %5330 = vmatpush2.msra.mxu0 0.0
    %5331 = vmatprep.subr.mxu0 0.0
    %5332 = vmatpush2.msra.mxu0 0.0
    %5333 = vmatprep.subr.mxu0 0.0
    %5334 = vmatpush2.msra.mxu0 0.0
    %5335 = vmatprep.subr.mxu0 0.0
    %5336 = vmatpush2.msra.mxu0 0.0
    %5337 = vmatprep.subr.mxu0 0.0
    %5338 = vmatpush2.msra.mxu0 0.0
    %5339 = vmatprep.subr.mxu0 0.0
    %5340 = vmatpush2.msra.mxu0 0.0
    %5341 = vmatprep.subr.mxu0 0.0
    %5342 = vmatpush2.msra.mxu0 0.0
    %5343 = vmatprep.subr.mxu0 0.0
    %5344 = vmatpush2.msra.mxu0 0.0
    %5345 = vmatprep.subr.mxu0 0.0
    %5346 = vmatpush2.msra.mxu0 0.0
    %5347 = vmatprep.subr.mxu0 0.0
    %5348 = vmatpush2.msra.mxu0 0.0
    %5349 = vmatprep.subr.mxu0 0.0
    %5350 = vmatpush2.msra.mxu0 0.0
    %5351 = vmatprep.subr.mxu0 0.0
    %5352 = vmatpush2.msra.mxu0 0.0
    %5353 = vmatprep.mubr.f32.mxu0 0.0
    %5354 = vmatmul.mubr.f32.gmra.mxu0 %v5288
    %v5355 = vpop.f32.mrf.mxu0
    %v5356 = vadd.f32 0.0, %v5355
    %v5357 = vpop.f32.mrf.mxu0
    %v5358 = vadd.f32 0.0, %v5357
    %5359 = vdwg.mxu0
    %5360 = vmatprep.subr.mxu0 %v996
    %5361 = vmatpush1.msra.mxu0 %v995
    %5362 = vmatprep.subr.mxu0 %v990
    %5363 = vmatpush1.msra.mxu0 %v989
    %5364 = vmatprep.subr.mxu0 %v984
    %5365 = vmatpush1.msra.mxu0 %v983
    %5366 = vmatprep.subr.mxu0 %v978
    %5367 = vmatpush1.msra.mxu0 %v977
    %5368 = vmatprep.subr.mxu0 %v972
    %5369 = vmatpush1.msra.mxu0 %v971
    %5370 = vmatprep.subr.mxu0 %v966
    %5371 = vmatpush1.msra.mxu0 %v965
    %5372 = vmatprep.subr.mxu0 %v960
    %5373 = vmatpush1.msra.mxu0 %v959
    %5374 = vmatprep.subr.mxu0 %v954
    %5375 = vmatpush1.msra.mxu0 %v953
    %5376 = vmatprep.subr.mxu0 %v948
    %5377 = vmatpush1.msra.mxu0 %v947
    %5378 = vmatprep.subr.mxu0 %v942
    %5379 = vmatpush1.msra.mxu0 %v941
    %5380 = vmatprep.subr.mxu0 %v936
    %5381 = vmatpush1.msra.mxu0 %v935
    %5382 = vmatprep.subr.mxu0 %v930
    %5383 = vmatpush1.msra.mxu0 %v929
    %5384 = vmatprep.subr.mxu0 %v924
    %5385 = vmatpush1.msra.mxu0 %v923
    %5386 = vmatprep.subr.mxu0 %v918
    %5387 = vmatpush1.msra.mxu0 %v917
    %5388 = vmatprep.subr.mxu0 %v912
    %5389 = vmatpush1.msra.mxu0 %v911
    %5390 = vmatprep.subr.mxu0 %v906
    %5391 = vmatpush1.msra.mxu0 %v905
    %5392 = vmatprep.subr.mxu0 0.0
    %5393 = vmatpush2.msra.mxu0 0.0
    %5394 = vmatprep.subr.mxu0 0.0
    %5395 = vmatpush2.msra.mxu0 0.0
    %5396 = vmatprep.subr.mxu0 0.0
    %5397 = vmatpush2.msra.mxu0 0.0
    %5398 = vmatprep.subr.mxu0 0.0
    %5399 = vmatpush2.msra.mxu0 0.0
    %5400 = vmatprep.subr.mxu0 0.0
    %5401 = vmatpush2.msra.mxu0 0.0
    %5402 = vmatprep.subr.mxu0 0.0
    %5403 = vmatpush2.msra.mxu0 0.0
    %5404 = vmatprep.subr.mxu0 0.0
    %5405 = vmatpush2.msra.mxu0 0.0
    %5406 = vmatprep.subr.mxu0 0.0
    %5407 = vmatpush2.msra.mxu0 0.0
    %5408 = vmatprep.subr.mxu0 0.0
    %5409 = vmatpush2.msra.mxu0 0.0
    %5410 = vmatprep.subr.mxu0 0.0
    %5411 = vmatpush2.msra.mxu0 0.0
    %5412 = vmatprep.subr.mxu0 0.0
    %5413 = vmatpush2.msra.mxu0 0.0
    %5414 = vmatprep.subr.mxu0 0.0
    %5415 = vmatpush2.msra.mxu0 0.0
    %5416 = vmatprep.subr.mxu0 0.0
    %5417 = vmatpush2.msra.mxu0 0.0
    %5418 = vmatprep.subr.mxu0 0.0
    %5419 = vmatpush2.msra.mxu0 0.0
    %5420 = vmatprep.subr.mxu0 0.0
    %5421 = vmatpush2.msra.mxu0 0.0
    %5422 = vmatprep.subr.mxu0 0.0
    %5423 = vmatpush2.msra.mxu0 0.0
    %5424 = vmatprep.mubr.f32.mxu0 0.0
    %5425 = vmatmul.mubr.f32.gmra.mxu0 %v5288
    %v5426 = vpop.f32.mrf.mxu0
    %v5427 = vadd.f32 0.0, %v5426
    %v5428 = vpop.f32.mrf.mxu0
    %v5429 = vadd.f32 0.0, %v5428
    %5430 = vdwg.mxu0
    %5431 = vmatprep.subr.mxu0 %v998
    %5432 = vmatpush1.msra.mxu0 %v997
    %5433 = vmatprep.subr.mxu0 %v992
    %5434 = vmatpush1.msra.mxu0 %v991
    %5435 = vmatprep.subr.mxu0 %v986
    %5436 = vmatpush1.msra.mxu0 %v985
    %5437 = vmatprep.subr.mxu0 %v980
    %5438 = vmatpush1.msra.mxu0 %v979
    %5439 = vmatprep.subr.mxu0 %v974
    %5440 = vmatpush1.msra.mxu0 %v973
    %5441 = vmatprep.subr.mxu0 %v968
    %5442 = vmatpush1.msra.mxu0 %v967
    %5443 = vmatprep.subr.mxu0 %v962
    %5444 = vmatpush1.msra.mxu0 %v961
    %5445 = vmatprep.subr.mxu0 %v956
    %5446 = vmatpush1.msra.mxu0 %v955
    %5447 = vmatprep.subr.mxu0 %v950
    %5448 = vmatpush1.msra.mxu0 %v949
    %5449 = vmatprep.subr.mxu0 %v944
    %5450 = vmatpush1.msra.mxu0 %v943
    %5451 = vmatprep.subr.mxu0 %v938
    %5452 = vmatpush1.msra.mxu0 %v937
    %5453 = vmatprep.subr.mxu0 %v932
    %5454 = vmatpush1.msra.mxu0 %v931
    %5455 = vmatprep.subr.mxu0 %v926
    %5456 = vmatpush1.msra.mxu0 %v925
    %5457 = vmatprep.subr.mxu0 %v920
    %5458 = vmatpush1.msra.mxu0 %v919
    %5459 = vmatprep.subr.mxu0 %v914
    %5460 = vmatpush1.msra.mxu0 %v913
    %5461 = vmatprep.subr.mxu0 %v908
    %5462 = vmatpush1.msra.mxu0 %v907
    %5463 = vmatprep.subr.mxu0 0.0
    %5464 = vmatpush2.msra.mxu0 0.0
    %5465 = vmatprep.subr.mxu0 0.0
    %5466 = vmatpush2.msra.mxu0 0.0
    %5467 = vmatprep.subr.mxu0 0.0
    %5468 = vmatpush2.msra.mxu0 0.0
    %5469 = vmatprep.subr.mxu0 0.0
    %5470 = vmatpush2.msra.mxu0 0.0
    %5471 = vmatprep.subr.mxu0 0.0
    %5472 = vmatpush2.msra.mxu0 0.0
    %5473 = vmatprep.subr.mxu0 0.0
    %5474 = vmatpush2.msra.mxu0 0.0
    %5475 = vmatprep.subr.mxu0 0.0
    %5476 = vmatpush2.msra.mxu0 0.0
    %5477 = vmatprep.subr.mxu0 0.0
    %5478 = vmatpush2.msra.mxu0 0.0
    %5479 = vmatprep.subr.mxu0 0.0
    %5480 = vmatpush2.msra.mxu0 0.0
    %5481 = vmatprep.subr.mxu0 0.0
    %5482 = vmatpush2.msra.mxu0 0.0
    %5483 = vmatprep.subr.mxu0 0.0
    %5484 = vmatpush2.msra.mxu0 0.0
    %5485 = vmatprep.subr.mxu0 0.0
    %5486 = vmatpush2.msra.mxu0 0.0
    %5487 = vmatprep.subr.mxu0 0.0
    %5488 = vmatpush2.msra.mxu0 0.0
    %5489 = vmatprep.subr.mxu0 0.0
    %5490 = vmatpush2.msra.mxu0 0.0
    %5491 = vmatprep.subr.mxu0 0.0
    %5492 = vmatpush2.msra.mxu0 0.0
    %5493 = vmatprep.subr.mxu0 0.0
    %5494 = vmatpush2.msra.mxu0 0.0
    %5495 = vmatprep.mubr.f32.mxu0 0.0
    %5496 = vmatmul.mubr.f32.gmra.mxu0 %v5288
    %v5497 = vpop.f32.mrf.mxu0
    %v5498 = vadd.f32 0.0, %v5497
    %v5499 = vpop.f32.mrf.mxu0
    %v5500 = vadd.f32 0.0, %v5499
    %5501 = vdwg.mxu0
    %v5502 = vadd.f32 %v5356, %v1215
    %v5503 = vadd.f32 %v5358, %v1219
    %v5504 = vadd.f32 %v5427, %v1223
    %v5505 = vadd.f32 %v5429, %v874
    %v5506 = vadd.f32 %v5498, %v885
    %v5507 = vadd.f32 %v5500, %v896
    %v5508 = vadd.f32 %v5502, %v4349
    %v5509 = vxor.u32 %v5508, 2147483648
    %v5510 = vmul.f32 %v5509, 1.442695
    %v5511 = vpow.pop %v5510
    %v5512 = vadd.f32 %v5511, 1.0
    %v5513 = vrcp.pop %v5512
    %v5514 = vmul.f32 1.0, %v5513
    %v5515 = vadd.f32 %v5503, %v4350
    %v5516 = vxor.u32 %v5515, 2147483648
    %v5517 = vmul.f32 %v5516, 1.442695
    %v5518 = vpow.pop %v5517
    %v5519 = vadd.f32 %v5518, 1.0
    %v5520 = vrcp.pop %v5519
    %v5521 = vmul.f32 1.0, %v5520
    %v5522 = vmul.f32 %v5514, %v4351
    %v5523 = vadd.f32 %v5504, %v5522
    %v5524 = vtanh.pop %v5523
    %v5525 = vsub.f32 1.0, %v5521
    %v5526 = vmul.f32 %v5525, %v5524
    %v5527 = vmul.f32 %v5521, %v4206
    %v5528 = vadd.f32 %v5526, %v5527
    %5529 = vmatprep.subr.mxu0 %v1323
    %5530 = vmatpush1.msra.mxu0 %v1322
    %5531 = vmatprep.subr.mxu0 %v1319
    %5532 = vmatpush1.msra.mxu0 %v1318
    %5533 = vmatprep.subr.mxu0 %v1315
    %5534 = vmatpush1.msra.mxu0 %v1314
    %5535 = vmatprep.subr.mxu0 %v1311
    %5536 = vmatpush1.msra.mxu0 %v1310
    %5537 = vmatprep.subr.mxu0 %v1307
    %5538 = vmatpush1.msra.mxu0 %v1306
    %5539 = vmatprep.subr.mxu0 %v1303
    %5540 = vmatpush1.msra.mxu0 %v1302
    %5541 = vmatprep.subr.mxu0 %v1299
    %5542 = vmatpush1.msra.mxu0 %v1298
    %5543 = vmatprep.subr.mxu0 %v1295
    %5544 = vmatpush1.msra.mxu0 %v1294
    %5545 = vmatprep.subr.mxu0 %v1291
    %5546 = vmatpush1.msra.mxu0 %v1290
    %5547 = vmatprep.subr.mxu0 %v1287
    %5548 = vmatpush1.msra.mxu0 %v1286
    %5549 = vmatprep.subr.mxu0 %v1283
    %5550 = vmatpush1.msra.mxu0 %v1282
    %5551 = vmatprep.subr.mxu0 %v1279
    %5552 = vmatpush1.msra.mxu0 %v1278
    %5553 = vmatprep.subr.mxu0 %v1275
    %5554 = vmatpush1.msra.mxu0 %v1274
    %5555 = vmatprep.subr.mxu0 %v1271
    %5556 = vmatpush1.msra.mxu0 %v1270
    %5557 = vmatprep.subr.mxu0 %v1267
    %5558 = vmatpush1.msra.mxu0 %v1266
    %5559 = vmatprep.subr.mxu0 %v1263
    %5560 = vmatpush1.msra.mxu0 %v1262
    %5561 = vmatprep.subr.mxu0 0.0
    %5562 = vmatpush2.msra.mxu0 0.0
    %5563 = vmatprep.subr.mxu0 0.0
    %5564 = vmatpush2.msra.mxu0 0.0
    %5565 = vmatprep.subr.mxu0 0.0
    %5566 = vmatpush2.msra.mxu0 0.0
    %5567 = vmatprep.subr.mxu0 0.0
    %5568 = vmatpush2.msra.mxu0 0.0
    %5569 = vmatprep.subr.mxu0 0.0
    %5570 = vmatpush2.msra.mxu0 0.0
    %5571 = vmatprep.subr.mxu0 0.0
    %5572 = vmatpush2.msra.mxu0 0.0
    %5573 = vmatprep.subr.mxu0 0.0
    %5574 = vmatpush2.msra.mxu0 0.0
    %5575 = vmatprep.subr.mxu0 0.0
    %5576 = vmatpush2.msra.mxu0 0.0
    %5577 = vmatprep.subr.mxu0 0.0
    %5578 = vmatpush2.msra.mxu0 0.0
    %5579 = vmatprep.subr.mxu0 0.0
    %5580 = vmatpush2.msra.mxu0 0.0
    %5581 = vmatprep.subr.mxu0 0.0
    %5582 = vmatpush2.msra.mxu0 0.0
    %5583 = vmatprep.subr.mxu0 0.0
    %5584 = vmatpush2.msra.mxu0 0.0
    %5585 = vmatprep.subr.mxu0 0.0
    %5586 = vmatpush2.msra.mxu0 0.0
    %5587 = vmatprep.subr.mxu0 0.0
    %5588 = vmatpush2.msra.mxu0 0.0
    %5589 = vmatprep.subr.mxu0 0.0
    %5590 = vmatpush2.msra.mxu0 0.0
    %5591 = vmatprep.subr.mxu0 0.0
    %5592 = vmatpush2.msra.mxu0 0.0
    %5593 = vmatprep.mubr.f32.mxu0 0.0
    %5594 = vmatmul.mubr.f32.gmra.mxu0 %v5528
    %v5595 = vpop.f32.mrf.mxu0
    %v5596 = vadd.f32 0.0, %v5595
    %v5597 = vpop.f32.mrf.mxu0
    %v5598 = vadd.f32 0.0, %v5597
    %5599 = vdwg.mxu0
    %5600 = vmatprep.subr.mxu0 %v1325
    %5601 = vmatpush1.msra.mxu0 %v1324
    %5602 = vmatprep.subr.mxu0 %v1321
    %5603 = vmatpush1.msra.mxu0 %v1320
    %5604 = vmatprep.subr.mxu0 %v1317
    %5605 = vmatpush1.msra.mxu0 %v1316
    %5606 = vmatprep.subr.mxu0 %v1313
    %5607 = vmatpush1.msra.mxu0 %v1312
    %5608 = vmatprep.subr.mxu0 %v1309
    %5609 = vmatpush1.msra.mxu0 %v1308
    %5610 = vmatprep.subr.mxu0 %v1305
    %5611 = vmatpush1.msra.mxu0 %v1304
    %5612 = vmatprep.subr.mxu0 %v1301
    %5613 = vmatpush1.msra.mxu0 %v1300
    %5614 = vmatprep.subr.mxu0 %v1297
    %5615 = vmatpush1.msra.mxu0 %v1296
    %5616 = vmatprep.subr.mxu0 %v1293
    %5617 = vmatpush1.msra.mxu0 %v1292
    %5618 = vmatprep.subr.mxu0 %v1289
    %5619 = vmatpush1.msra.mxu0 %v1288
    %5620 = vmatprep.subr.mxu0 %v1285
    %5621 = vmatpush1.msra.mxu0 %v1284
    %5622 = vmatprep.subr.mxu0 %v1281
    %5623 = vmatpush1.msra.mxu0 %v1280
    %5624 = vmatprep.subr.mxu0 %v1277
    %5625 = vmatpush1.msra.mxu0 %v1276
    %5626 = vmatprep.subr.mxu0 %v1273
    %5627 = vmatpush1.msra.mxu0 %v1272
    %5628 = vmatprep.subr.mxu0 %v1269
    %5629 = vmatpush1.msra.mxu0 %v1268
    %5630 = vmatprep.subr.mxu0 %v1265
    %5631 = vmatpush1.msra.mxu0 %v1264
    %5632 = vmatprep.subr.mxu0 0.0
    %5633 = vmatpush2.msra.mxu0 0.0
    %5634 = vmatprep.subr.mxu0 0.0
    %5635 = vmatpush2.msra.mxu0 0.0
    %5636 = vmatprep.subr.mxu0 0.0
    %5637 = vmatpush2.msra.mxu0 0.0
    %5638 = vmatprep.subr.mxu0 0.0
    %5639 = vmatpush2.msra.mxu0 0.0
    %5640 = vmatprep.subr.mxu0 0.0
    %5641 = vmatpush2.msra.mxu0 0.0
    %5642 = vmatprep.subr.mxu0 0.0
    %5643 = vmatpush2.msra.mxu0 0.0
    %5644 = vmatprep.subr.mxu0 0.0
    %5645 = vmatpush2.msra.mxu0 0.0
    %5646 = vmatprep.subr.mxu0 0.0
    %5647 = vmatpush2.msra.mxu0 0.0
    %5648 = vmatprep.subr.mxu0 0.0
    %5649 = vmatpush2.msra.mxu0 0.0
    %5650 = vmatprep.subr.mxu0 0.0
    %5651 = vmatpush2.msra.mxu0 0.0
    %5652 = vmatprep.subr.mxu0 0.0
    %5653 = vmatpush2.msra.mxu0 0.0
    %5654 = vmatprep.subr.mxu0 0.0
    %5655 = vmatpush2.msra.mxu0 0.0
    %5656 = vmatprep.subr.mxu0 0.0
    %5657 = vmatpush2.msra.mxu0 0.0
    %5658 = vmatprep.subr.mxu0 0.0
    %5659 = vmatpush2.msra.mxu0 0.0
    %5660 = vmatprep.subr.mxu0 0.0
    %5661 = vmatpush2.msra.mxu0 0.0
    %5662 = vmatprep.subr.mxu0 0.0
    %5663 = vmatpush2.msra.mxu0 0.0
    %5664 = vmatprep.mubr.f32.mxu0 0.0
    %5665 = vmatmul.mubr.f32.gmra.mxu0 %v5528
    %v5666 = vpop.f32.mrf.mxu0
    %v5667 = vadd.f32 0.0, %v5666
    %v5668 = vpop.f32.mrf.mxu0
    %v5669 = vadd.f32 0.0, %v5668
    %5670 = vdwg.mxu0
    %v5671 = vadd.f32 %v5596, %v1233
    %v5672 = vadd.f32 %v5598, %v1244
    %v5673 = vadd.f32 %v5667, %v1255
    %v5674 = vadd.f32 %v5669, %v1472
    %5676 = vset.pattern.permute.xlu0 0
    %5677 = vperm.xlu0 %5676, %v5674
    %v5678 = vpop.permute.xlu0 %5677
    %v5680 = vmul.f32 %v5678, %v1483
    %v5681 = vmul.f32 %v5678, %v1487
    %v5682 = vmul.f32 %v5678, %v1491
    %5683 = vset.pattern.permute.xlu0 1
    %5684 = vperm.xlu0 %5683, %v5674
    %v5685 = vpop.permute.xlu0 %5684
    %v5687 = vmul.f32 %v5685, %v1502
    %v5688 = vmul.f32 %v5685, %v1506
    %v5689 = vmul.f32 %v5685, %v1510
    %v5690 = vadd.f32 %v5680, %v5687
    %v5691 = vadd.f32 %v5681, %v5688
    %v5692 = vadd.f32 %v5682, %v5689
    %v5693 = vadd.f32 %v5690, %v1520
    %v5694 = vadd.f32 %v5691, %v1524
    %v5695 = vadd.f32 %v5692, %v1528
    %v5696 = vadd.f32 %v5693, %v4611
    %v5697 = vxor.u32 %v5696, 2147483648
    %v5698 = vmul.f32 %v5697, 1.442695
    %v5699 = vpow.pop %v5698
    %v5700 = vadd.f32 %v5699, 1.0
    %v5701 = vrcp.pop %v5700
    %v5702 = vmul.f32 1.0, %v5701
    %v5703 = vadd.f32 %v5694, %v4612
    %v5704 = vxor.u32 %v5703, 2147483648
    %v5705 = vmul.f32 %v5704, 1.442695
    %v5706 = vpow.pop %v5705
    %v5707 = vadd.f32 %v5706, 1.0
    %v5708 = vrcp.pop %v5707
    %v5709 = vmul.f32 1.0, %v5708
    %v5710 = vmul.f32 %v5702, %v4613
    %v5711 = vadd.f32 %v5695, %v5710
    %v5712 = vtanh.pop %v5711
    %v5713 = vsub.f32 1.0, %v5709
    %v5714 = vmul.f32 %v5713, %v5712
    %v5715 = vmul.f32 %v5709, %v4394
    %v5716 = vadd.f32 %v5714, %v5715
    %5717 = vmatprep.subr.mxu0 %v1655
    %5718 = vmatpush1.msra.mxu0 %v1654
    %5719 = vmatprep.subr.mxu0 %v1649
    %5720 = vmatpush1.msra.mxu0 %v1648
    %5721 = vmatprep.subr.mxu0 %v1643
    %5722 = vmatpush1.msra.mxu0 %v1642
    %5723 = vmatprep.subr.mxu0 %v1637
    %5724 = vmatpush1.msra.mxu0 %v1636
    %5725 = vmatprep.subr.mxu0 %v1631
    %5726 = vmatpush1.msra.mxu0 %v1630
    %5727 = vmatprep.subr.mxu0 %v1625
    %5728 = vmatpush1.msra.mxu0 %v1624
    %5729 = vmatprep.subr.mxu0 %v1619
    %5730 = vmatpush1.msra.mxu0 %v1618
    %5731 = vmatprep.subr.mxu0 %v1613
    %5732 = vmatpush1.msra.mxu0 %v1612
    %5733 = vmatprep.subr.mxu0 %v1607
    %5734 = vmatpush1.msra.mxu0 %v1606
    %5735 = vmatprep.subr.mxu0 %v1601
    %5736 = vmatpush1.msra.mxu0 %v1600
    %5737 = vmatprep.subr.mxu0 %v1595
    %5738 = vmatpush1.msra.mxu0 %v1594
    %5739 = vmatprep.subr.mxu0 %v1589
    %5740 = vmatpush1.msra.mxu0 %v1588
    %5741 = vmatprep.subr.mxu0 %v1583
    %5742 = vmatpush1.msra.mxu0 %v1582
    %5743 = vmatprep.subr.mxu0 %v1577
    %5744 = vmatpush1.msra.mxu0 %v1576
    %5745 = vmatprep.subr.mxu0 %v1571
    %5746 = vmatpush1.msra.mxu0 %v1570
    %5747 = vmatprep.subr.mxu0 %v1565
    %5748 = vmatpush1.msra.mxu0 %v1564
    %5749 = vmatprep.subr.mxu0 0.0
    %5750 = vmatpush2.msra.mxu0 0.0
    %5751 = vmatprep.subr.mxu0 0.0
    %5752 = vmatpush2.msra.mxu0 0.0
    %5753 = vmatprep.subr.mxu0 0.0
    %5754 = vmatpush2.msra.mxu0 0.0
    %5755 = vmatprep.subr.mxu0 0.0
    %5756 = vmatpush2.msra.mxu0 0.0
    %5757 = vmatprep.subr.mxu0 0.0
    %5758 = vmatpush2.msra.mxu0 0.0
    %5759 = vmatprep.subr.mxu0 0.0
    %5760 = vmatpush2.msra.mxu0 0.0
    %5761 = vmatprep.subr.mxu0 0.0
    %5762 = vmatpush2.msra.mxu0 0.0
    %5763 = vmatprep.subr.mxu0 0.0
    %5764 = vmatpush2.msra.mxu0 0.0
    %5765 = vmatprep.subr.mxu0 0.0
    %5766 = vmatpush2.msra.mxu0 0.0
    %5767 = vmatprep.subr.mxu0 0.0
    %5768 = vmatpush2.msra.mxu0 0.0
    %5769 = vmatprep.subr.mxu0 0.0
    %5770 = vmatpush2.msra.mxu0 0.0
    %5771 = vmatprep.subr.mxu0 0.0
    %5772 = vmatpush2.msra.mxu0 0.0
    %5773 = vmatprep.subr.mxu0 0.0
    %5774 = vmatpush2.msra.mxu0 0.0
    %5775 = vmatprep.subr.mxu0 0.0
    %5776 = vmatpush2.msra.mxu0 0.0
    %5777 = vmatprep.subr.mxu0 0.0
    %5778 = vmatpush2.msra.mxu0 0.0
    %5779 = vmatprep.subr.mxu0 0.0
    %5780 = vmatpush2.msra.mxu0 0.0
    %5781 = vmatprep.mubr.f32.mxu0 0.0
    %5782 = vmatmul.mubr.f32.gmra.mxu0 %v5716
    %v5783 = vpop.f32.mrf.mxu0
    %v5784 = vadd.f32 0.0, %v5783
    %v5785 = vpop.f32.mrf.mxu0
    %v5786 = vadd.f32 0.0, %v5785
    %5787 = vdwg.mxu0
    %5788 = vmatprep.subr.mxu0 %v1657
    %5789 = vmatpush1.msra.mxu0 %v1656
    %5790 = vmatprep.subr.mxu0 %v1651
    %5791 = vmatpush1.msra.mxu0 %v1650
    %5792 = vmatprep.subr.mxu0 %v1645
    %5793 = vmatpush1.msra.mxu0 %v1644
    %5794 = vmatprep.subr.mxu0 %v1639
    %5795 = vmatpush1.msra.mxu0 %v1638
    %5796 = vmatprep.subr.mxu0 %v1633
    %5797 = vmatpush1.msra.mxu0 %v1632
    %5798 = vmatprep.subr.mxu0 %v1627
    %5799 = vmatpush1.msra.mxu0 %v1626
    %5800 = vmatprep.subr.mxu0 %v1621
    %5801 = vmatpush1.msra.mxu0 %v1620
    %5802 = vmatprep.subr.mxu0 %v1615
    %5803 = vmatpush1.msra.mxu0 %v1614
    %5804 = vmatprep.subr.mxu0 %v1609
    %5805 = vmatpush1.msra.mxu0 %v1608
    %5806 = vmatprep.subr.mxu0 %v1603
    %5807 = vmatpush1.msra.mxu0 %v1602
    %5808 = vmatprep.subr.mxu0 %v1597
    %5809 = vmatpush1.msra.mxu0 %v1596
    %5810 = vmatprep.subr.mxu0 %v1591
    %5811 = vmatpush1.msra.mxu0 %v1590
    %5812 = vmatprep.subr.mxu0 %v1585
    %5813 = vmatpush1.msra.mxu0 %v1584
    %5814 = vmatprep.subr.mxu0 %v1579
    %5815 = vmatpush1.msra.mxu0 %v1578
    %5816 = vmatprep.subr.mxu0 %v1573
    %5817 = vmatpush1.msra.mxu0 %v1572
    %5818 = vmatprep.subr.mxu0 %v1567
    %5819 = vmatpush1.msra.mxu0 %v1566
    %5820 = vmatprep.subr.mxu0 0.0
    %5821 = vmatpush2.msra.mxu0 0.0
    %5822 = vmatprep.subr.mxu0 0.0
    %5823 = vmatpush2.msra.mxu0 0.0
    %5824 = vmatprep.subr.mxu0 0.0
    %5825 = vmatpush2.msra.mxu0 0.0
    %5826 = vmatprep.subr.mxu0 0.0
    %5827 = vmatpush2.msra.mxu0 0.0
    %5828 = vmatprep.subr.mxu0 0.0
    %5829 = vmatpush2.msra.mxu0 0.0
    %5830 = vmatprep.subr.mxu0 0.0
    %5831 = vmatpush2.msra.mxu0 0.0
    %5832 = vmatprep.subr.mxu0 0.0
    %5833 = vmatpush2.msra.mxu0 0.0
    %5834 = vmatprep.subr.mxu0 0.0
    %5835 = vmatpush2.msra.mxu0 0.0
    %5836 = vmatprep.subr.mxu0 0.0
    %5837 = vmatpush2.msra.mxu0 0.0
    %5838 = vmatprep.subr.mxu0 0.0
    %5839 = vmatpush2.msra.mxu0 0.0
    %5840 = vmatprep.subr.mxu0 0.0
    %5841 = vmatpush2.msra.mxu0 0.0
    %5842 = vmatprep.subr.mxu0 0.0
    %5843 = vmatpush2.msra.mxu0 0.0
    %5844 = vmatprep.subr.mxu0 0.0
    %5845 = vmatpush2.msra.mxu0 0.0
    %5846 = vmatprep.subr.mxu0 0.0
    %5847 = vmatpush2.msra.mxu0 0.0
    %5848 = vmatprep.subr.mxu0 0.0
    %5849 = vmatpush2.msra.mxu0 0.0
    %5850 = vmatprep.subr.mxu0 0.0
    %5851 = vmatpush2.msra.mxu0 0.0
    %5852 = vmatprep.mubr.f32.mxu0 0.0
    %5853 = vmatmul.mubr.f32.gmra.mxu0 %v5716
    %v5854 = vpop.f32.mrf.mxu0
    %v5855 = vadd.f32 0.0, %v5854
    %v5856 = vpop.f32.mrf.mxu0
    %v5857 = vadd.f32 0.0, %v5856
    %5858 = vdwg.mxu0
    %5859 = vmatprep.subr.mxu0 %v1659
    %5860 = vmatpush1.msra.mxu0 %v1658
    %5861 = vmatprep.subr.mxu0 %v1653
    %5862 = vmatpush1.msra.mxu0 %v1652
    %5863 = vmatprep.subr.mxu0 %v1647
    %5864 = vmatpush1.msra.mxu0 %v1646
    %5865 = vmatprep.subr.mxu0 %v1641
    %5866 = vmatpush1.msra.mxu0 %v1640
    %5867 = vmatprep.subr.mxu0 %v1635
    %5868 = vmatpush1.msra.mxu0 %v1634
    %5869 = vmatprep.subr.mxu0 %v1629
    %5870 = vmatpush1.msra.mxu0 %v1628
    %5871 = vmatprep.subr.mxu0 %v1623
    %5872 = vmatpush1.msra.mxu0 %v1622
    %5873 = vmatprep.subr.mxu0 %v1617
    %5874 = vmatpush1.msra.mxu0 %v1616
    %5875 = vmatprep.subr.mxu0 %v1611
    %5876 = vmatpush1.msra.mxu0 %v1610
    %5877 = vmatprep.subr.mxu0 %v1605
    %5878 = vmatpush1.msra.mxu0 %v1604
    %5879 = vmatprep.subr.mxu0 %v1599
    %5880 = vmatpush1.msra.mxu0 %v1598
    %5881 = vmatprep.subr.mxu0 %v1593
    %5882 = vmatpush1.msra.mxu0 %v1592
    %5883 = vmatprep.subr.mxu0 %v1587
    %5884 = vmatpush1.msra.mxu0 %v1586
    %5885 = vmatprep.subr.mxu0 %v1581
    %5886 = vmatpush1.msra.mxu0 %v1580
    %5887 = vmatprep.subr.mxu0 %v1575
    %5888 = vmatpush1.msra.mxu0 %v1574
    %5889 = vmatprep.subr.mxu0 %v1569
    %5890 = vmatpush1.msra.mxu0 %v1568
    %5891 = vmatprep.subr.mxu0 0.0
    %5892 = vmatpush2.msra.mxu0 0.0
    %5893 = vmatprep.subr.mxu0 0.0
    %5894 = vmatpush2.msra.mxu0 0.0
    %5895 = vmatprep.subr.mxu0 0.0
    %5896 = vmatpush2.msra.mxu0 0.0
    %5897 = vmatprep.subr.mxu0 0.0
    %5898 = vmatpush2.msra.mxu0 0.0
    %5899 = vmatprep.subr.mxu0 0.0
    %5900 = vmatpush2.msra.mxu0 0.0
    %5901 = vmatprep.subr.mxu0 0.0
    %5902 = vmatpush2.msra.mxu0 0.0
    %5903 = vmatprep.subr.mxu0 0.0
    %5904 = vmatpush2.msra.mxu0 0.0
    %5905 = vmatprep.subr.mxu0 0.0
    %5906 = vmatpush2.msra.mxu0 0.0
    %5907 = vmatprep.subr.mxu0 0.0
    %5908 = vmatpush2.msra.mxu0 0.0
    %5909 = vmatprep.subr.mxu0 0.0
    %5910 = vmatpush2.msra.mxu0 0.0
    %5911 = vmatprep.subr.mxu0 0.0
    %5912 = vmatpush2.msra.mxu0 0.0
    %5913 = vmatprep.subr.mxu0 0.0
    %5914 = vmatpush2.msra.mxu0 0.0
    %5915 = vmatprep.subr.mxu0 0.0
    %5916 = vmatpush2.msra.mxu0 0.0
    %5917 = vmatprep.subr.mxu0 0.0
    %5918 = vmatpush2.msra.mxu0 0.0
    %5919 = vmatprep.subr.mxu0 0.0
    %5920 = vmatpush2.msra.mxu0 0.0
    %5921 = vmatprep.subr.mxu0 0.0
    %5922 = vmatpush2.msra.mxu0 0.0
    %5923 = vmatprep.mubr.f32.mxu0 0.0
    %5924 = vmatmul.mubr.f32.gmra.mxu0 %v5716
    %v5925 = vpop.f32.mrf.mxu0
    %v5926 = vadd.f32 0.0, %v5925
    %v5927 = vpop.f32.mrf.mxu0
    %v5928 = vadd.f32 0.0, %v5927
    %5929 = vdwg.mxu0
    %v5930 = vadd.f32 %v5784, %v1876
    %v5931 = vadd.f32 %v5786, %v1880
    %v5932 = vadd.f32 %v5855, %v1884
    %v5933 = vadd.f32 %v5857, %v1535
    %v5934 = vadd.f32 %v5926, %v1546
    %v5935 = vadd.f32 %v5928, %v1557
    %v5936 = vadd.f32 %v5930, %v4777
    %v5937 = vxor.u32 %v5936, 2147483648
    %v5938 = vmul.f32 %v5937, 1.442695
    %v5939 = vpow.pop %v5938
    %v5940 = vadd.f32 %v5939, 1.0
    %v5941 = vrcp.pop %v5940
    %v5942 = vmul.f32 1.0, %v5941
    %v5943 = vadd.f32 %v5931, %v4778
    %v5944 = vxor.u32 %v5943, 2147483648
    %v5945 = vmul.f32 %v5944, 1.442695
    %v5946 = vpow.pop %v5945
    %v5947 = vadd.f32 %v5946, 1.0
    %v5948 = vrcp.pop %v5947
    %v5949 = vmul.f32 1.0, %v5948
    %v5950 = vmul.f32 %v5942, %v4779
    %v5951 = vadd.f32 %v5932, %v5950
    %v5952 = vtanh.pop %v5951
    %v5953 = vsub.f32 1.0, %v5949
    %v5954 = vmul.f32 %v5953, %v5952
    %v5955 = vmul.f32 %v5949, %v4634
    %v5956 = vadd.f32 %v5954, %v5955
    %5957 = vmatprep.subr.mxu0 %v1984
    %5958 = vmatpush1.msra.mxu0 %v1983
    %5959 = vmatprep.subr.mxu0 %v1980
    %5960 = vmatpush1.msra.mxu0 %v1979
    %5961 = vmatprep.subr.mxu0 %v1976
    %5962 = vmatpush1.msra.mxu0 %v1975
    %5963 = vmatprep.subr.mxu0 %v1972
    %5964 = vmatpush1.msra.mxu0 %v1971
    %5965 = vmatprep.subr.mxu0 %v1968
    %5966 = vmatpush1.msra.mxu0 %v1967
    %5967 = vmatprep.subr.mxu0 %v1964
    %5968 = vmatpush1.msra.mxu0 %v1963
    %5969 = vmatprep.subr.mxu0 %v1960
    %5970 = vmatpush1.msra.mxu0 %v1959
    %5971 = vmatprep.subr.mxu0 %v1956
    %5972 = vmatpush1.msra.mxu0 %v1955
    %5973 = vmatprep.subr.mxu0 %v1952
    %5974 = vmatpush1.msra.mxu0 %v1951
    %5975 = vmatprep.subr.mxu0 %v1948
    %5976 = vmatpush1.msra.mxu0 %v1947
    %5977 = vmatprep.subr.mxu0 %v1944
    %5978 = vmatpush1.msra.mxu0 %v1943
    %5979 = vmatprep.subr.mxu0 %v1940
    %5980 = vmatpush1.msra.mxu0 %v1939
    %5981 = vmatprep.subr.mxu0 %v1936
    %5982 = vmatpush1.msra.mxu0 %v1935
    %5983 = vmatprep.subr.mxu0 %v1932
    %5984 = vmatpush1.msra.mxu0 %v1931
    %5985 = vmatprep.subr.mxu0 %v1928
    %5986 = vmatpush1.msra.mxu0 %v1927
    %5987 = vmatprep.subr.mxu0 %v1924
    %5988 = vmatpush1.msra.mxu0 %v1923
    %5989 = vmatprep.subr.mxu0 0.0
    %5990 = vmatpush2.msra.mxu0 0.0
    %5991 = vmatprep.subr.mxu0 0.0
    %5992 = vmatpush2.msra.mxu0 0.0
    %5993 = vmatprep.subr.mxu0 0.0
    %5994 = vmatpush2.msra.mxu0 0.0
    %5995 = vmatprep.subr.mxu0 0.0
    %5996 = vmatpush2.msra.mxu0 0.0
    %5997 = vmatprep.subr.mxu0 0.0
    %5998 = vmatpush2.msra.mxu0 0.0
    %5999 = vmatprep.subr.mxu0 0.0
    %6000 = vmatpush2.msra.mxu0 0.0
    %6001 = vmatprep.subr.mxu0 0.0
    %6002 = vmatpush2.msra.mxu0 0.0
    %6003 = vmatprep.subr.mxu0 0.0
    %6004 = vmatpush2.msra.mxu0 0.0
    %6005 = vmatprep.subr.mxu0 0.0
    %6006 = vmatpush2.msra.mxu0 0.0
    %6007 = vmatprep.subr.mxu0 0.0
    %6008 = vmatpush2.msra.mxu0 0.0
    %6009 = vmatprep.subr.mxu0 0.0
    %6010 = vmatpush2.msra.mxu0 0.0
    %6011 = vmatprep.subr.mxu0 0.0
    %6012 = vmatpush2.msra.mxu0 0.0
    %6013 = vmatprep.subr.mxu0 0.0
    %6014 = vmatpush2.msra.mxu0 0.0
    %6015 = vmatprep.subr.mxu0 0.0
    %6016 = vmatpush2.msra.mxu0 0.0
    %6017 = vmatprep.subr.mxu0 0.0
    %6018 = vmatpush2.msra.mxu0 0.0
    %6019 = vmatprep.subr.mxu0 0.0
    %6020 = vmatpush2.msra.mxu0 0.0
    %6021 = vmatprep.mubr.f32.mxu0 0.0
    %6022 = vmatmul.mubr.f32.gmra.mxu0 %v5956
    %v6023 = vpop.f32.mrf.mxu0
    %v6024 = vadd.f32 0.0, %v6023
    %v6025 = vpop.f32.mrf.mxu0
    %v6026 = vadd.f32 0.0, %v6025
    %6027 = vdwg.mxu0
    %6028 = vmatprep.subr.mxu0 %v1986
    %6029 = vmatpush1.msra.mxu0 %v1985
    %6030 = vmatprep.subr.mxu0 %v1982
    %6031 = vmatpush1.msra.mxu0 %v1981
    %6032 = vmatprep.subr.mxu0 %v1978
    %6033 = vmatpush1.msra.mxu0 %v1977
    %6034 = vmatprep.subr.mxu0 %v1974
    %6035 = vmatpush1.msra.mxu0 %v1973
    %6036 = vmatprep.subr.mxu0 %v1970
    %6037 = vmatpush1.msra.mxu0 %v1969
    %6038 = vmatprep.subr.mxu0 %v1966
    %6039 = vmatpush1.msra.mxu0 %v1965
    %6040 = vmatprep.subr.mxu0 %v1962
    %6041 = vmatpush1.msra.mxu0 %v1961
    %6042 = vmatprep.subr.mxu0 %v1958
    %6043 = vmatpush1.msra.mxu0 %v1957
    %6044 = vmatprep.subr.mxu0 %v1954
    %6045 = vmatpush1.msra.mxu0 %v1953
    %6046 = vmatprep.subr.mxu0 %v1950
    %6047 = vmatpush1.msra.mxu0 %v1949
    %6048 = vmatprep.subr.mxu0 %v1946
    %6049 = vmatpush1.msra.mxu0 %v1945
    %6050 = vmatprep.subr.mxu0 %v1942
    %6051 = vmatpush1.msra.mxu0 %v1941
    %6052 = vmatprep.subr.mxu0 %v1938
    %6053 = vmatpush1.msra.mxu0 %v1937
    %6054 = vmatprep.subr.mxu0 %v1934
    %6055 = vmatpush1.msra.mxu0 %v1933
    %6056 = vmatprep.subr.mxu0 %v1930
    %6057 = vmatpush1.msra.mxu0 %v1929
    %6058 = vmatprep.subr.mxu0 %v1926
    %6059 = vmatpush1.msra.mxu0 %v1925
    %6060 = vmatprep.subr.mxu0 0.0
    %6061 = vmatpush2.msra.mxu0 0.0
    %6062 = vmatprep.subr.mxu0 0.0
    %6063 = vmatpush2.msra.mxu0 0.0
    %6064 = vmatprep.subr.mxu0 0.0
    %6065 = vmatpush2.msra.mxu0 0.0
    %6066 = vmatprep.subr.mxu0 0.0
    %6067 = vmatpush2.msra.mxu0 0.0
    %6068 = vmatprep.subr.mxu0 0.0
    %6069 = vmatpush2.msra.mxu0 0.0
    %6070 = vmatprep.subr.mxu0 0.0
    %6071 = vmatpush2.msra.mxu0 0.0
    %6072 = vmatprep.subr.mxu0 0.0
    %6073 = vmatpush2.msra.mxu0 0.0
    %6074 = vmatprep.subr.mxu0 0.0
    %6075 = vmatpush2.msra.mxu0 0.0
    %6076 = vmatprep.subr.mxu0 0.0
    %6077 = vmatpush2.msra.mxu0 0.0
    %6078 = vmatprep.subr.mxu0 0.0
    %6079 = vmatpush2.msra.mxu0 0.0
    %6080 = vmatprep.subr.mxu0 0.0
    %6081 = vmatpush2.msra.mxu0 0.0
    %6082 = vmatprep.subr.mxu0 0.0
    %6083 = vmatpush2.msra.mxu0 0.0
    %6084 = vmatprep.subr.mxu0 0.0
    %6085 = vmatpush2.msra.mxu0 0.0
    %6086 = vmatprep.subr.mxu0 0.0
    %6087 = vmatpush2.msra.mxu0 0.0
    %6088 = vmatprep.subr.mxu0 0.0
    %6089 = vmatpush2.msra.mxu0 0.0
    %6090 = vmatprep.subr.mxu0 0.0
    %6091 = vmatpush2.msra.mxu0 0.0
    %6092 = vmatprep.mubr.f32.mxu0 0.0
    %6093 = vmatmul.mubr.f32.gmra.mxu0 %v5956
    %v6094 = vpop.f32.mrf.mxu0
    %v6095 = vadd.f32 0.0, %v6094
    %v6096 = vpop.f32.mrf.mxu0
    %v6097 = vadd.f32 0.0, %v6096
    %6098 = vdwg.mxu0
    %v6099 = vadd.f32 %v6024, %v1894
    %v6100 = vadd.f32 %v6026, %v1905
    %v6101 = vadd.f32 %v6095, %v1916
    %v6102 = vadd.f32 %v6097, %v2133
    %v6103 = vadd.f32 %v6102, 0.0
    %v6104 = vsel %vm813, %v6103, 0.0
    %v6105 = vrot.slane %v6104, 4
    %v6106 = vadd.f32 %v6104, %v6105
    %v6107 = vrot.slane %v6106, 2
    %v6108 = vadd.f32 %v6106, %v6107
    %v6109 = vrot.slane %v6108, 1
    %v6110 = vadd.f32 %v6108, %v6109
    %v6111 = vmul.f32 %v6110, 0.125
    %v6112 = vsub.f32 %v6102, %v6111
    %v6113 = vmul.f32 %v6112, %v6112
    %v6114 = vadd.f32 %v6113, 0.0
    %v6115 = vsel %vm813, %v6114, 0.0
    %v6116 = vrot.slane %v6115, 4
    %v6117 = vadd.f32 %v6115, %v6116
    %v6118 = vrot.slane %v6117, 2
    %v6119 = vadd.f32 %v6117, %v6118
    %v6120 = vrot.slane %v6119, 1
    %v6121 = vadd.f32 %v6119, %v6120
    %v6122 = vmul.f32 %v6121, 0.14285715
    %v6123 = vrsqrt.pop %v6122
    %v6124 = vmul.f32 %v6112, %v6123
    %6125 = vrot.lane.b32.xlu0 %v115, 119
    %v6126 = vpop.permute.xlu0 %6125
    %v6128 = vadd.f32 %v6124, %v6126
    %6130 = vset.pattern.permute.xlu0 0
    %6131 = vperm.xlu0 %6130, %v6128
    %v6132 = vpop.permute.xlu0 %6131
    %v6134 = vmul.f32 %v6132, %v186
    %v6135 = vmul.f32 %v6132, %v190
    %v6136 = vmul.f32 %v6132, %v194
    %v6137 = vadd.f32 %v180, %v6134
    %v6138 = vadd.f32 %v181, %v6135
    %v6139 = vadd.f32 %v182, %v6136
    %v6140 = vadd.f32 %v6137, %v5055
    %v6141 = vxor.u32 %v6140, 2147483648
    %v6142 = vmul.f32 %v6141, 1.442695
    %v6143 = vpow.pop %v6142
    %v6144 = vadd.f32 %v6143, 1.0
    %v6145 = vrcp.pop %v6144
    %v6146 = vmul.f32 1.0, %v6145
    %v6147 = vadd.f32 %v6138, %v5056
    %v6148 = vxor.u32 %v6147, 2147483648
    %v6149 = vmul.f32 %v6148, 1.442695
    %v6150 = vpow.pop %v6149
    %v6151 = vadd.f32 %v6150, 1.0
    %v6152 = vrcp.pop %v6151
    %v6153 = vmul.f32 1.0, %v6152
    %v6154 = vmul.f32 %v6146, %v5057
    %v6155 = vadd.f32 %v6139, %v6154
    %v6156 = vtanh.pop %v6155
    %v6157 = vsub.f32 1.0, %v6153
    %v6158 = vmul.f32 %v6157, %v6156
    %v6159 = vmul.f32 %v6153, %v4838
    %v6160 = vadd.f32 %v6158, %v6159
    %6161 = vmatprep.subr.mxu0 %v323
    %6162 = vmatpush1.msra.mxu0 %v322
    %6163 = vmatprep.subr.mxu0 %v317
    %6164 = vmatpush1.msra.mxu0 %v316
    %6165 = vmatprep.subr.mxu0 %v311
    %6166 = vmatpush1.msra.mxu0 %v310
    %6167 = vmatprep.subr.mxu0 %v305
    %6168 = vmatpush1.msra.mxu0 %v304
    %6169 = vmatprep.subr.mxu0 %v299
    %6170 = vmatpush1.msra.mxu0 %v298
    %6171 = vmatprep.subr.mxu0 %v293
    %6172 = vmatpush1.msra.mxu0 %v292
    %6173 = vmatprep.subr.mxu0 %v287
    %6174 = vmatpush1.msra.mxu0 %v286
    %6175 = vmatprep.subr.mxu0 %v281
    %6176 = vmatpush1.msra.mxu0 %v280
    %6177 = vmatprep.subr.mxu0 %v275
    %6178 = vmatpush1.msra.mxu0 %v274
    %6179 = vmatprep.subr.mxu0 %v269
    %6180 = vmatpush1.msra.mxu0 %v268
    %6181 = vmatprep.subr.mxu0 %v263
    %6182 = vmatpush1.msra.mxu0 %v262
    %6183 = vmatprep.subr.mxu0 %v257
    %6184 = vmatpush1.msra.mxu0 %v256
    %6185 = vmatprep.subr.mxu0 %v251
    %6186 = vmatpush1.msra.mxu0 %v250
    %6187 = vmatprep.subr.mxu0 %v245
    %6188 = vmatpush1.msra.mxu0 %v244
    %6189 = vmatprep.subr.mxu0 %v239
    %6190 = vmatpush1.msra.mxu0 %v238
    %6191 = vmatprep.subr.mxu0 %v233
    %6192 = vmatpush1.msra.mxu0 %v232
    %6193 = vmatprep.subr.mxu0 0.0
    %6194 = vmatpush2.msra.mxu0 0.0
    %6195 = vmatprep.subr.mxu0 0.0
    %6196 = vmatpush2.msra.mxu0 0.0
    %6197 = vmatprep.subr.mxu0 0.0
    %6198 = vmatpush2.msra.mxu0 0.0
    %6199 = vmatprep.subr.mxu0 0.0
    %6200 = vmatpush2.msra.mxu0 0.0
    %6201 = vmatprep.subr.mxu0 0.0
    %6202 = vmatpush2.msra.mxu0 0.0
    %6203 = vmatprep.subr.mxu0 0.0
    %6204 = vmatpush2.msra.mxu0 0.0
    %6205 = vmatprep.subr.mxu0 0.0
    %6206 = vmatpush2.msra.mxu0 0.0
    %6207 = vmatprep.subr.mxu0 0.0
    %6208 = vmatpush2.msra.mxu0 0.0
    %6209 = vmatprep.subr.mxu0 0.0
    %6210 = vmatpush2.msra.mxu0 0.0
    %6211 = vmatprep.subr.mxu0 0.0
    %6212 = vmatpush2.msra.mxu0 0.0
    %6213 = vmatprep.subr.mxu0 0.0
    %6214 = vmatpush2.msra.mxu0 0.0
    %6215 = vmatprep.subr.mxu0 0.0
    %6216 = vmatpush2.msra.mxu0 0.0
    %6217 = vmatprep.subr.mxu0 0.0
    %6218 = vmatpush2.msra.mxu0 0.0
    %6219 = vmatprep.subr.mxu0 0.0
    %6220 = vmatpush2.msra.mxu0 0.0
    %6221 = vmatprep.subr.mxu0 0.0
    %6222 = vmatpush2.msra.mxu0 0.0
    %6223 = vmatprep.subr.mxu0 0.0
    %6224 = vmatpush2.msra.mxu0 0.0
    %6225 = vmatprep.mubr.f32.mxu0 0.0
    %6226 = vmatmul.mubr.f32.gmra.mxu0 %v6160
    %v6227 = vpop.f32.mrf.mxu0
    %v6228 = vadd.f32 0.0, %v6227
    %v6229 = vpop.f32.mrf.mxu0
    %v6230 = vadd.f32 0.0, %v6229
    %6231 = vdwg.mxu0
    %6232 = vmatprep.subr.mxu0 %v325
    %6233 = vmatpush1.msra.mxu0 %v324
    %6234 = vmatprep.subr.mxu0 %v319
    %6235 = vmatpush1.msra.mxu0 %v318
    %6236 = vmatprep.subr.mxu0 %v313
    %6237 = vmatpush1.msra.mxu0 %v312
    %6238 = vmatprep.subr.mxu0 %v307
    %6239 = vmatpush1.msra.mxu0 %v306
    %6240 = vmatprep.subr.mxu0 %v301
    %6241 = vmatpush1.msra.mxu0 %v300
    %6242 = vmatprep.subr.mxu0 %v295
    %6243 = vmatpush1.msra.mxu0 %v294
    %6244 = vmatprep.subr.mxu0 %v289
    %6245 = vmatpush1.msra.mxu0 %v288
    %6246 = vmatprep.subr.mxu0 %v283
    %6247 = vmatpush1.msra.mxu0 %v282
    %6248 = vmatprep.subr.mxu0 %v277
    %6249 = vmatpush1.msra.mxu0 %v276
    %6250 = vmatprep.subr.mxu0 %v271
    %6251 = vmatpush1.msra.mxu0 %v270
    %6252 = vmatprep.subr.mxu0 %v265
    %6253 = vmatpush1.msra.mxu0 %v264
    %6254 = vmatprep.subr.mxu0 %v259
    %6255 = vmatpush1.msra.mxu0 %v258
    %6256 = vmatprep.subr.mxu0 %v253
    %6257 = vmatpush1.msra.mxu0 %v252
    %6258 = vmatprep.subr.mxu0 %v247
    %6259 = vmatpush1.msra.mxu0 %v246
    %6260 = vmatprep.subr.mxu0 %v241
    %6261 = vmatpush1.msra.mxu0 %v240
    %6262 = vmatprep.subr.mxu0 %v235
    %6263 = vmatpush1.msra.mxu0 %v234
    %6264 = vmatprep.subr.mxu0 0.0
    %6265 = vmatpush2.msra.mxu0 0.0
    %6266 = vmatprep.subr.mxu0 0.0
    %6267 = vmatpush2.msra.mxu0 0.0
    %6268 = vmatprep.subr.mxu0 0.0
    %6269 = vmatpush2.msra.mxu0 0.0
    %6270 = vmatprep.subr.mxu0 0.0
    %6271 = vmatpush2.msra.mxu0 0.0
    %6272 = vmatprep.subr.mxu0 0.0
    %6273 = vmatpush2.msra.mxu0 0.0
    %6274 = vmatprep.subr.mxu0 0.0
    %6275 = vmatpush2.msra.mxu0 0.0
    %6276 = vmatprep.subr.mxu0 0.0
    %6277 = vmatpush2.msra.mxu0 0.0
    %6278 = vmatprep.subr.mxu0 0.0
    %6279 = vmatpush2.msra.mxu0 0.0
    %6280 = vmatprep.subr.mxu0 0.0
    %6281 = vmatpush2.msra.mxu0 0.0
    %6282 = vmatprep.subr.mxu0 0.0
    %6283 = vmatpush2.msra.mxu0 0.0
    %6284 = vmatprep.subr.mxu0 0.0
    %6285 = vmatpush2.msra.mxu0 0.0
    %6286 = vmatprep.subr.mxu0 0.0
    %6287 = vmatpush2.msra.mxu0 0.0
    %6288 = vmatprep.subr.mxu0 0.0
    %6289 = vmatpush2.msra.mxu0 0.0
    %6290 = vmatprep.subr.mxu0 0.0
    %6291 = vmatpush2.msra.mxu0 0.0
    %6292 = vmatprep.subr.mxu0 0.0
    %6293 = vmatpush2.msra.mxu0 0.0
    %6294 = vmatprep.subr.mxu0 0.0
    %6295 = vmatpush2.msra.mxu0 0.0
    %6296 = vmatprep.mubr.f32.mxu0 0.0
    %6297 = vmatmul.mubr.f32.gmra.mxu0 %v6160
    %v6298 = vpop.f32.mrf.mxu0
    %v6299 = vadd.f32 0.0, %v6298
    %v6300 = vpop.f32.mrf.mxu0
    %v6301 = vadd.f32 0.0, %v6300
    %6302 = vdwg.mxu0
    %6303 = vmatprep.subr.mxu0 %v327
    %6304 = vmatpush1.msra.mxu0 %v326
    %6305 = vmatprep.subr.mxu0 %v321
    %6306 = vmatpush1.msra.mxu0 %v320
    %6307 = vmatprep.subr.mxu0 %v315
    %6308 = vmatpush1.msra.mxu0 %v314
    %6309 = vmatprep.subr.mxu0 %v309
    %6310 = vmatpush1.msra.mxu0 %v308
    %6311 = vmatprep.subr.mxu0 %v303
    %6312 = vmatpush1.msra.mxu0 %v302
    %6313 = vmatprep.subr.mxu0 %v297
    %6314 = vmatpush1.msra.mxu0 %v296
    %6315 = vmatprep.subr.mxu0 %v291
    %6316 = vmatpush1.msra.mxu0 %v290
    %6317 = vmatprep.subr.mxu0 %v285
    %6318 = vmatpush1.msra.mxu0 %v284
    %6319 = vmatprep.subr.mxu0 %v279
    %6320 = vmatpush1.msra.mxu0 %v278
    %6321 = vmatprep.subr.mxu0 %v273
    %6322 = vmatpush1.msra.mxu0 %v272
    %6323 = vmatprep.subr.mxu0 %v267
    %6324 = vmatpush1.msra.mxu0 %v266
    %6325 = vmatprep.subr.mxu0 %v261
    %6326 = vmatpush1.msra.mxu0 %v260
    %6327 = vmatprep.subr.mxu0 %v255
    %6328 = vmatpush1.msra.mxu0 %v254
    %6329 = vmatprep.subr.mxu0 %v249
    %6330 = vmatpush1.msra.mxu0 %v248
    %6331 = vmatprep.subr.mxu0 %v243
    %6332 = vmatpush1.msra.mxu0 %v242
    %6333 = vmatprep.subr.mxu0 %v237
    %6334 = vmatpush1.msra.mxu0 %v236
    %6335 = vmatprep.subr.mxu0 0.0
    %6336 = vmatpush2.msra.mxu0 0.0
    %6337 = vmatprep.subr.mxu0 0.0
    %6338 = vmatpush2.msra.mxu0 0.0
    %6339 = vmatprep.subr.mxu0 0.0
    %6340 = vmatpush2.msra.mxu0 0.0
    %6341 = vmatprep.subr.mxu0 0.0
    %6342 = vmatpush2.msra.mxu0 0.0
    %6343 = vmatprep.subr.mxu0 0.0
    %6344 = vmatpush2.msra.mxu0 0.0
    %6345 = vmatprep.subr.mxu0 0.0
    %6346 = vmatpush2.msra.mxu0 0.0
    %6347 = vmatprep.subr.mxu0 0.0
    %6348 = vmatpush2.msra.mxu0 0.0
    %6349 = vmatprep.subr.mxu0 0.0
    %6350 = vmatpush2.msra.mxu0 0.0
    %6351 = vmatprep.subr.mxu0 0.0
    %6352 = vmatpush2.msra.mxu0 0.0
    %6353 = vmatprep.subr.mxu0 0.0
    %6354 = vmatpush2.msra.mxu0 0.0
    %6355 = vmatprep.subr.mxu0 0.0
    %6356 = vmatpush2.msra.mxu0 0.0
    %6357 = vmatprep.subr.mxu0 0.0
    %6358 = vmatpush2.msra.mxu0 0.0
    %6359 = vmatprep.subr.mxu0 0.0
    %6360 = vmatpush2.msra.mxu0 0.0
    %6361 = vmatprep.subr.mxu0 0.0
    %6362 = vmatpush2.msra.mxu0 0.0
    %6363 = vmatprep.subr.mxu0 0.0
    %6364 = vmatpush2.msra.mxu0 0.0
    %6365 = vmatprep.subr.mxu0 0.0
    %6366 = vmatpush2.msra.mxu0 0.0
    %6367 = vmatprep.mubr.f32.mxu0 0.0
    %6368 = vmatmul.mubr.f32.gmra.mxu0 %v6160
    %v6369 = vpop.f32.mrf.mxu0
    %v6370 = vadd.f32 0.0, %v6369
    %v6371 = vpop.f32.mrf.mxu0
    %v6372 = vadd.f32 0.0, %v6371
    %6373 = vdwg.mxu0
    %v6374 = vadd.f32 %v6228, %v544
    %v6375 = vadd.f32 %v6230, %v548
    %v6376 = vadd.f32 %v6299, %v552
    %v6377 = vadd.f32 %v6301, %v204
    %v6378 = vadd.f32 %v6370, %v215
    %v6379 = vadd.f32 %v6372, %v226
    %v6380 = vadd.f32 %v6374, %v5221
    %v6381 = vxor.u32 %v6380, 2147483648
    %v6382 = vmul.f32 %v6381, 1.442695
    %v6383 = vpow.pop %v6382
    %v6384 = vadd.f32 %v6383, 1.0
    %v6385 = vrcp.pop %v6384
    %v6386 = vmul.f32 1.0, %v6385
    %v6387 = vadd.f32 %v6375, %v5222
    %v6388 = vxor.u32 %v6387, 2147483648
    %v6389 = vmul.f32 %v6388, 1.442695
    %v6390 = vpow.pop %v6389
    %v6391 = vadd.f32 %v6390, 1.0
    %v6392 = vrcp.pop %v6391
    %v6393 = vmul.f32 1.0, %v6392
    %v6394 = vmul.f32 %v6386, %v5223
    %v6395 = vadd.f32 %v6376, %v6394
    %v6396 = vtanh.pop %v6395
    %v6397 = vsub.f32 1.0, %v6393
    %v6398 = vmul.f32 %v6397, %v6396
    %v6399 = vmul.f32 %v6393, %v5078
    %v6400 = vadd.f32 %v6398, %v6399
    %6401 = vmatprep.subr.mxu0 %v651
    %6402 = vmatpush1.msra.mxu0 %v650
    %6403 = vmatprep.subr.mxu0 %v647
    %6404 = vmatpush1.msra.mxu0 %v646
    %6405 = vmatprep.subr.mxu0 %v643
    %6406 = vmatpush1.msra.mxu0 %v642
    %6407 = vmatprep.subr.mxu0 %v639
    %6408 = vmatpush1.msra.mxu0 %v638
    %6409 = vmatprep.subr.mxu0 %v635
    %6410 = vmatpush1.msra.mxu0 %v634
    %6411 = vmatprep.subr.mxu0 %v631
    %6412 = vmatpush1.msra.mxu0 %v630
    %6413 = vmatprep.subr.mxu0 %v627
    %6414 = vmatpush1.msra.mxu0 %v626
    %6415 = vmatprep.subr.mxu0 %v623
    %6416 = vmatpush1.msra.mxu0 %v622
    %6417 = vmatprep.subr.mxu0 %v619
    %6418 = vmatpush1.msra.mxu0 %v618
    %6419 = vmatprep.subr.mxu0 %v615
    %6420 = vmatpush1.msra.mxu0 %v614
    %6421 = vmatprep.subr.mxu0 %v611
    %6422 = vmatpush1.msra.mxu0 %v610
    %6423 = vmatprep.subr.mxu0 %v607
    %6424 = vmatpush1.msra.mxu0 %v606
    %6425 = vmatprep.subr.mxu0 %v603
    %6426 = vmatpush1.msra.mxu0 %v602
    %6427 = vmatprep.subr.mxu0 %v599
    %6428 = vmatpush1.msra.mxu0 %v598
    %6429 = vmatprep.subr.mxu0 %v595
    %6430 = vmatpush1.msra.mxu0 %v594
    %6431 = vmatprep.subr.mxu0 %v591
    %6432 = vmatpush1.msra.mxu0 %v590
    %6433 = vmatprep.subr.mxu0 0.0
    %6434 = vmatpush2.msra.mxu0 0.0
    %6435 = vmatprep.subr.mxu0 0.0
    %6436 = vmatpush2.msra.mxu0 0.0
    %6437 = vmatprep.subr.mxu0 0.0
    %6438 = vmatpush2.msra.mxu0 0.0
    %6439 = vmatprep.subr.mxu0 0.0
    %6440 = vmatpush2.msra.mxu0 0.0
    %6441 = vmatprep.subr.mxu0 0.0
    %6442 = vmatpush2.msra.mxu0 0.0
    %6443 = vmatprep.subr.mxu0 0.0
    %6444 = vmatpush2.msra.mxu0 0.0
    %6445 = vmatprep.subr.mxu0 0.0
    %6446 = vmatpush2.msra.mxu0 0.0
    %6447 = vmatprep.subr.mxu0 0.0
    %6448 = vmatpush2.msra.mxu0 0.0
    %6449 = vmatprep.subr.mxu0 0.0
    %6450 = vmatpush2.msra.mxu0 0.0
    %6451 = vmatprep.subr.mxu0 0.0
    %6452 = vmatpush2.msra.mxu0 0.0
    %6453 = vmatprep.subr.mxu0 0.0
    %6454 = vmatpush2.msra.mxu0 0.0
    %6455 = vmatprep.subr.mxu0 0.0
    %6456 = vmatpush2.msra.mxu0 0.0
    %6457 = vmatprep.subr.mxu0 0.0
    %6458 = vmatpush2.msra.mxu0 0.0
    %6459 = vmatprep.subr.mxu0 0.0
    %6460 = vmatpush2.msra.mxu0 0.0
    %6461 = vmatprep.subr.mxu0 0.0
    %6462 = vmatpush2.msra.mxu0 0.0
    %6463 = vmatprep.subr.mxu0 0.0
    %6464 = vmatpush2.msra.mxu0 0.0
    %6465 = vmatprep.mubr.f32.mxu0 0.0
    %6466 = vmatmul.mubr.f32.gmra.mxu0 %v6400
    %v6467 = vpop.f32.mrf.mxu0
    %v6468 = vadd.f32 0.0, %v6467
    %v6469 = vpop.f32.mrf.mxu0
    %v6470 = vadd.f32 0.0, %v6469
    %6471 = vdwg.mxu0
    %6472 = vmatprep.subr.mxu0 %v653
    %6473 = vmatpush1.msra.mxu0 %v652
    %6474 = vmatprep.subr.mxu0 %v649
    %6475 = vmatpush1.msra.mxu0 %v648
    %6476 = vmatprep.subr.mxu0 %v645
    %6477 = vmatpush1.msra.mxu0 %v644
    %6478 = vmatprep.subr.mxu0 %v641
    %6479 = vmatpush1.msra.mxu0 %v640
    %6480 = vmatprep.subr.mxu0 %v637
    %6481 = vmatpush1.msra.mxu0 %v636
    %6482 = vmatprep.subr.mxu0 %v633
    %6483 = vmatpush1.msra.mxu0 %v632
    %6484 = vmatprep.subr.mxu0 %v629
    %6485 = vmatpush1.msra.mxu0 %v628
    %6486 = vmatprep.subr.mxu0 %v625
    %6487 = vmatpush1.msra.mxu0 %v624
    %6488 = vmatprep.subr.mxu0 %v621
    %6489 = vmatpush1.msra.mxu0 %v620
    %6490 = vmatprep.subr.mxu0 %v617
    %6491 = vmatpush1.msra.mxu0 %v616
    %6492 = vmatprep.subr.mxu0 %v613
    %6493 = vmatpush1.msra.mxu0 %v612
    %6494 = vmatprep.subr.mxu0 %v609
    %6495 = vmatpush1.msra.mxu0 %v608
    %6496 = vmatprep.subr.mxu0 %v605
    %6497 = vmatpush1.msra.mxu0 %v604
    %6498 = vmatprep.subr.mxu0 %v601
    %6499 = vmatpush1.msra.mxu0 %v600
    %6500 = vmatprep.subr.mxu0 %v597
    %6501 = vmatpush1.msra.mxu0 %v596
    %6502 = vmatprep.subr.mxu0 %v593
    %6503 = vmatpush1.msra.mxu0 %v592
    %6504 = vmatprep.subr.mxu0 0.0
    %6505 = vmatpush2.msra.mxu0 0.0
    %6506 = vmatprep.subr.mxu0 0.0
    %6507 = vmatpush2.msra.mxu0 0.0
    %6508 = vmatprep.subr.mxu0 0.0
    %6509 = vmatpush2.msra.mxu0 0.0
    %6510 = vmatprep.subr.mxu0 0.0
    %6511 = vmatpush2.msra.mxu0 0.0
    %6512 = vmatprep.subr.mxu0 0.0
    %6513 = vmatpush2.msra.mxu0 0.0
    %6514 = vmatprep.subr.mxu0 0.0
    %6515 = vmatpush2.msra.mxu0 0.0
    %6516 = vmatprep.subr.mxu0 0.0
    %6517 = vmatpush2.msra.mxu0 0.0
    %6518 = vmatprep.subr.mxu0 0.0
    %6519 = vmatpush2.msra.mxu0 0.0
    %6520 = vmatprep.subr.mxu0 0.0
    %6521 = vmatpush2.msra.mxu0 0.0
    %6522 = vmatprep.subr.mxu0 0.0
    %6523 = vmatpush2.msra.mxu0 0.0
    %6524 = vmatprep.subr.mxu0 0.0
    %6525 = vmatpush2.msra.mxu0 0.0
    %6526 = vmatprep.subr.mxu0 0.0
    %6527 = vmatpush2.msra.mxu0 0.0
    %6528 = vmatprep.subr.mxu0 0.0
    %6529 = vmatpush2.msra.mxu0 0.0
    %6530 = vmatprep.subr.mxu0 0.0
    %6531 = vmatpush2.msra.mxu0 0.0
    %6532 = vmatprep.subr.mxu0 0.0
    %6533 = vmatpush2.msra.mxu0 0.0
    %6534 = vmatprep.subr.mxu0 0.0
    %6535 = vmatpush2.msra.mxu0 0.0
    %6536 = vmatprep.mubr.f32.mxu0 0.0
    %6537 = vmatmul.mubr.f32.gmra.mxu0 %v6400
    %v6538 = vpop.f32.mrf.mxu0
    %v6539 = vadd.f32 0.0, %v6538
    %v6540 = vpop.f32.mrf.mxu0
    %v6541 = vadd.f32 0.0, %v6540
    %6542 = vdwg.mxu0
    %v6543 = vadd.f32 %v6468, %v562
    %v6544 = vadd.f32 %v6470, %v573
    %v6545 = vadd.f32 %v6539, %v584
    %v6546 = vadd.f32 %v6541, %v803
    %vm6547 = vcmp.gt.f32.partialorder %v6546, 0.0
    %v6548 = vmin.f32 %v6546, 0.0
    %v6549 = vmul.f32 %v6548, 1.442695
    %v6550 = vpow.pop %v6549
    %v6551 = vsub.f32 %v6550, 1.0
    %v6552 = vsel %vm6547, %v6546, %v6551
    %v6553 = vadd.f32 %v6552, 0.0
    %v6554 = vsel %vm813, %v6553, 0.0
    %v6555 = vrot.slane %v6554, 4
    %v6556 = vadd.f32 %v6554, %v6555
    %v6557 = vrot.slane %v6556, 2
    %v6558 = vadd.f32 %v6556, %v6557
    %v6559 = vrot.slane %v6558, 1
    %v6560 = vadd.f32 %v6558, %v6559
    %v6561 = vmul.f32 %v6560, 0.125
    %v6562 = vsub.f32 %v6552, %v6561
    %v6563 = vmul.f32 %v6562, %v6562
    %v6564 = vadd.f32 %v6563, 0.0
    %v6565 = vsel %vm813, %v6564, 0.0
    %v6566 = vrot.slane %v6565, 4
    %v6567 = vadd.f32 %v6565, %v6566
    %v6568 = vrot.slane %v6567, 2
    %v6569 = vadd.f32 %v6567, %v6568
    %v6570 = vrot.slane %v6569, 1
    %v6571 = vadd.f32 %v6569, %v6570
    %v6572 = vmul.f32 %v6571, 0.14285715
    %v6573 = vrsqrt.pop %v6572
    %v6574 = vmul.f32 %v6562, %v6573
    %6575 = vrot.lane.b32.xlu0 %v115, 124
    %v6576 = vpop.permute.xlu0 %6575
    %v6578 = vadd.f32 %v6574, %v6576
    %6580 = vset.pattern.permute.xlu0 0
    %6581 = vperm.xlu0 %6580, %v6578
    %v6582 = vpop.permute.xlu0 %6581
    %v6584 = vmul.f32 %v6582, %v844
    %v6585 = vmul.f32 %v6582, %v848
    %v6586 = vmul.f32 %v6582, %v852
    %v6587 = vadd.f32 %v6584, %v859
    %v6588 = vadd.f32 %v6585, %v863
    %v6589 = vadd.f32 %v6586, %v867
    %v6590 = vadd.f32 %v6587, %v5505
    %v6591 = vxor.u32 %v6590, 2147483648
    %v6592 = vmul.f32 %v6591, 1.442695
    %v6593 = vpow.pop %v6592
    %v6594 = vadd.f32 %v6593, 1.0
    %v6595 = vrcp.pop %v6594
    %v6596 = vmul.f32 1.0, %v6595
    %v6597 = vadd.f32 %v6588, %v5506
    %v6598 = vxor.u32 %v6597, 2147483648
    %v6599 = vmul.f32 %v6598, 1.442695
    %v6600 = vpow.pop %v6599
    %v6601 = vadd.f32 %v6600, 1.0
    %v6602 = vrcp.pop %v6601
    %v6603 = vmul.f32 1.0, %v6602
    %v6604 = vmul.f32 %v6596, %v5507
    %v6605 = vadd.f32 %v6589, %v6604
    %v6606 = vtanh.pop %v6605
    %v6607 = vsub.f32 1.0, %v6603
    %v6608 = vmul.f32 %v6607, %v6606
    %v6609 = vmul.f32 %v6603, %v5288
    %v6610 = vadd.f32 %v6608, %v6609
    %6611 = vmatprep.subr.mxu0 %v994
    %6612 = vmatpush1.msra.mxu0 %v993
    %6613 = vmatprep.subr.mxu0 %v988
    %6614 = vmatpush1.msra.mxu0 %v987
    %6615 = vmatprep.subr.mxu0 %v982
    %6616 = vmatpush1.msra.mxu0 %v981
    %6617 = vmatprep.subr.mxu0 %v976
    %6618 = vmatpush1.msra.mxu0 %v975
    %6619 = vmatprep.subr.mxu0 %v970
    %6620 = vmatpush1.msra.mxu0 %v969
    %6621 = vmatprep.subr.mxu0 %v964
    %6622 = vmatpush1.msra.mxu0 %v963
    %6623 = vmatprep.subr.mxu0 %v958
    %6624 = vmatpush1.msra.mxu0 %v957
    %6625 = vmatprep.subr.mxu0 %v952
    %6626 = vmatpush1.msra.mxu0 %v951
    %6627 = vmatprep.subr.mxu0 %v946
    %6628 = vmatpush1.msra.mxu0 %v945
    %6629 = vmatprep.subr.mxu0 %v940
    %6630 = vmatpush1.msra.mxu0 %v939
    %6631 = vmatprep.subr.mxu0 %v934
    %6632 = vmatpush1.msra.mxu0 %v933
    %6633 = vmatprep.subr.mxu0 %v928
    %6634 = vmatpush1.msra.mxu0 %v927
    %6635 = vmatprep.subr.mxu0 %v922
    %6636 = vmatpush1.msra.mxu0 %v921
    %6637 = vmatprep.subr.mxu0 %v916
    %6638 = vmatpush1.msra.mxu0 %v915
    %6639 = vmatprep.subr.mxu0 %v910
    %6640 = vmatpush1.msra.mxu0 %v909
    %6641 = vmatprep.subr.mxu0 %v904
    %6642 = vmatpush1.msra.mxu0 %v903
    %6643 = vmatprep.subr.mxu0 0.0
    %6644 = vmatpush2.msra.mxu0 0.0
    %6645 = vmatprep.subr.mxu0 0.0
    %6646 = vmatpush2.msra.mxu0 0.0
    %6647 = vmatprep.subr.mxu0 0.0
    %6648 = vmatpush2.msra.mxu0 0.0
    %6649 = vmatprep.subr.mxu0 0.0
    %6650 = vmatpush2.msra.mxu0 0.0
    %6651 = vmatprep.subr.mxu0 0.0
    %6652 = vmatpush2.msra.mxu0 0.0
    %6653 = vmatprep.subr.mxu0 0.0
    %6654 = vmatpush2.msra.mxu0 0.0
    %6655 = vmatprep.subr.mxu0 0.0
    %6656 = vmatpush2.msra.mxu0 0.0
    %6657 = vmatprep.subr.mxu0 0.0
    %6658 = vmatpush2.msra.mxu0 0.0
    %6659 = vmatprep.subr.mxu0 0.0
    %6660 = vmatpush2.msra.mxu0 0.0
    %6661 = vmatprep.subr.mxu0 0.0
    %6662 = vmatpush2.msra.mxu0 0.0
    %6663 = vmatprep.subr.mxu0 0.0
    %6664 = vmatpush2.msra.mxu0 0.0
    %6665 = vmatprep.subr.mxu0 0.0
    %6666 = vmatpush2.msra.mxu0 0.0
    %6667 = vmatprep.subr.mxu0 0.0
    %6668 = vmatpush2.msra.mxu0 0.0
    %6669 = vmatprep.subr.mxu0 0.0
    %6670 = vmatpush2.msra.mxu0 0.0
    %6671 = vmatprep.subr.mxu0 0.0
    %6672 = vmatpush2.msra.mxu0 0.0
    %6673 = vmatprep.subr.mxu0 0.0
    %6674 = vmatpush2.msra.mxu0 0.0
    %6675 = vmatprep.mubr.f32.mxu0 0.0
    %6676 = vmatmul.mubr.f32.gmra.mxu0 %v6610
    %v6677 = vpop.f32.mrf.mxu0
    %v6678 = vadd.f32 0.0, %v6677
    %v6679 = vpop.f32.mrf.mxu0
    %v6680 = vadd.f32 0.0, %v6679
    %6681 = vdwg.mxu0
    %6682 = vmatprep.subr.mxu0 %v996
    %6683 = vmatpush1.msra.mxu0 %v995
    %6684 = vmatprep.subr.mxu0 %v990
    %6685 = vmatpush1.msra.mxu0 %v989
    %6686 = vmatprep.subr.mxu0 %v984
    %6687 = vmatpush1.msra.mxu0 %v983
    %6688 = vmatprep.subr.mxu0 %v978
    %6689 = vmatpush1.msra.mxu0 %v977
    %6690 = vmatprep.subr.mxu0 %v972
    %6691 = vmatpush1.msra.mxu0 %v971
    %6692 = vmatprep.subr.mxu0 %v966
    %6693 = vmatpush1.msra.mxu0 %v965
    %6694 = vmatprep.subr.mxu0 %v960
    %6695 = vmatpush1.msra.mxu0 %v959
    %6696 = vmatprep.subr.mxu0 %v954
    %6697 = vmatpush1.msra.mxu0 %v953
    %6698 = vmatprep.subr.mxu0 %v948
    %6699 = vmatpush1.msra.mxu0 %v947
    %6700 = vmatprep.subr.mxu0 %v942
    %6701 = vmatpush1.msra.mxu0 %v941
    %6702 = vmatprep.subr.mxu0 %v936
    %6703 = vmatpush1.msra.mxu0 %v935
    %6704 = vmatprep.subr.mxu0 %v930
    %6705 = vmatpush1.msra.mxu0 %v929
    %6706 = vmatprep.subr.mxu0 %v924
    %6707 = vmatpush1.msra.mxu0 %v923
    %6708 = vmatprep.subr.mxu0 %v918
    %6709 = vmatpush1.msra.mxu0 %v917
    %6710 = vmatprep.subr.mxu0 %v912
    %6711 = vmatpush1.msra.mxu0 %v911
    %6712 = vmatprep.subr.mxu0 %v906
    %6713 = vmatpush1.msra.mxu0 %v905
    %6714 = vmatprep.subr.mxu0 0.0
    %6715 = vmatpush2.msra.mxu0 0.0
    %6716 = vmatprep.subr.mxu0 0.0
    %6717 = vmatpush2.msra.mxu0 0.0
    %6718 = vmatprep.subr.mxu0 0.0
    %6719 = vmatpush2.msra.mxu0 0.0
    %6720 = vmatprep.subr.mxu0 0.0
    %6721 = vmatpush2.msra.mxu0 0.0
    %6722 = vmatprep.subr.mxu0 0.0
    %6723 = vmatpush2.msra.mxu0 0.0
    %6724 = vmatprep.subr.mxu0 0.0
    %6725 = vmatpush2.msra.mxu0 0.0
    %6726 = vmatprep.subr.mxu0 0.0
    %6727 = vmatpush2.msra.mxu0 0.0
    %6728 = vmatprep.subr.mxu0 0.0
    %6729 = vmatpush2.msra.mxu0 0.0
    %6730 = vmatprep.subr.mxu0 0.0
    %6731 = vmatpush2.msra.mxu0 0.0
    %6732 = vmatprep.subr.mxu0 0.0
    %6733 = vmatpush2.msra.mxu0 0.0
    %6734 = vmatprep.subr.mxu0 0.0
    %6735 = vmatpush2.msra.mxu0 0.0
    %6736 = vmatprep.subr.mxu0 0.0
    %6737 = vmatpush2.msra.mxu0 0.0
    %6738 = vmatprep.subr.mxu0 0.0
    %6739 = vmatpush2.msra.mxu0 0.0
    %6740 = vmatprep.subr.mxu0 0.0
    %6741 = vmatpush2.msra.mxu0 0.0
    %6742 = vmatprep.subr.mxu0 0.0
    %6743 = vmatpush2.msra.mxu0 0.0
    %6744 = vmatprep.subr.mxu0 0.0
    %6745 = vmatpush2.msra.mxu0 0.0
    %6746 = vmatprep.mubr.f32.mxu0 0.0
    %6747 = vmatmul.mubr.f32.gmra.mxu0 %v6610
    %v6748 = vpop.f32.mrf.mxu0
    %v6749 = vadd.f32 0.0, %v6748
    %v6750 = vpop.f32.mrf.mxu0
    %v6751 = vadd.f32 0.0, %v6750
    %6752 = vdwg.mxu0
    %6753 = vmatprep.subr.mxu0 %v998
    %6754 = vmatpush1.msra.mxu0 %v997
    %6755 = vmatprep.subr.mxu0 %v992
    %6756 = vmatpush1.msra.mxu0 %v991
    %6757 = vmatprep.subr.mxu0 %v986
    %6758 = vmatpush1.msra.mxu0 %v985
    %6759 = vmatprep.subr.mxu0 %v980
    %6760 = vmatpush1.msra.mxu0 %v979
    %6761 = vmatprep.subr.mxu0 %v974
    %6762 = vmatpush1.msra.mxu0 %v973
    %6763 = vmatprep.subr.mxu0 %v968
    %6764 = vmatpush1.msra.mxu0 %v967
    %6765 = vmatprep.subr.mxu0 %v962
    %6766 = vmatpush1.msra.mxu0 %v961
    %6767 = vmatprep.subr.mxu0 %v956
    %6768 = vmatpush1.msra.mxu0 %v955
    %6769 = vmatprep.subr.mxu0 %v950
    %6770 = vmatpush1.msra.mxu0 %v949
    %6771 = vmatprep.subr.mxu0 %v944
    %6772 = vmatpush1.msra.mxu0 %v943
    %6773 = vmatprep.subr.mxu0 %v938
    %6774 = vmatpush1.msra.mxu0 %v937
    %6775 = vmatprep.subr.mxu0 %v932
    %6776 = vmatpush1.msra.mxu0 %v931
    %6777 = vmatprep.subr.mxu0 %v926
    %6778 = vmatpush1.msra.mxu0 %v925
    %6779 = vmatprep.subr.mxu0 %v920
    %6780 = vmatpush1.msra.mxu0 %v919
    %6781 = vmatprep.subr.mxu0 %v914
    %6782 = vmatpush1.msra.mxu0 %v913
    %6783 = vmatprep.subr.mxu0 %v908
    %6784 = vmatpush1.msra.mxu0 %v907
    %6785 = vmatprep.subr.mxu0 0.0
    %6786 = vmatpush2.msra.mxu0 0.0
    %6787 = vmatprep.subr.mxu0 0.0
    %6788 = vmatpush2.msra.mxu0 0.0
    %6789 = vmatprep.subr.mxu0 0.0
    %6790 = vmatpush2.msra.mxu0 0.0
    %6791 = vmatprep.subr.mxu0 0.0
    %6792 = vmatpush2.msra.mxu0 0.0
    %6793 = vmatprep.subr.mxu0 0.0
    %6794 = vmatpush2.msra.mxu0 0.0
    %6795 = vmatprep.subr.mxu0 0.0
    %6796 = vmatpush2.msra.mxu0 0.0
    %6797 = vmatprep.subr.mxu0 0.0
    %6798 = vmatpush2.msra.mxu0 0.0
    %6799 = vmatprep.subr.mxu0 0.0
    %6800 = vmatpush2.msra.mxu0 0.0
    %6801 = vmatprep.subr.mxu0 0.0
    %6802 = vmatpush2.msra.mxu0 0.0
    %6803 = vmatprep.subr.mxu0 0.0
    %6804 = vmatpush2.msra.mxu0 0.0
    %6805 = vmatprep.subr.mxu0 0.0
    %6806 = vmatpush2.msra.mxu0 0.0
    %6807 = vmatprep.subr.mxu0 0.0
    %6808 = vmatpush2.msra.mxu0 0.0
    %6809 = vmatprep.subr.mxu0 0.0
    %6810 = vmatpush2.msra.mxu0 0.0
    %6811 = vmatprep.subr.mxu0 0.0
    %6812 = vmatpush2.msra.mxu0 0.0
    %6813 = vmatprep.subr.mxu0 0.0
    %6814 = vmatpush2.msra.mxu0 0.0
    %6815 = vmatprep.subr.mxu0 0.0
    %6816 = vmatpush2.msra.mxu0 0.0
    %6817 = vmatprep.mubr.f32.mxu0 0.0
    %6818 = vmatmul.mubr.f32.gmra.mxu0 %v6610
    %v6819 = vpop.f32.mrf.mxu0
    %v6820 = vadd.f32 0.0, %v6819
    %v6821 = vpop.f32.mrf.mxu0
    %v6822 = vadd.f32 0.0, %v6821
    %6823 = vdwg.mxu0
    %v6824 = vadd.f32 %v6678, %v1215
    %v6825 = vadd.f32 %v6680, %v1219
    %v6826 = vadd.f32 %v6749, %v1223
    %v6827 = vadd.f32 %v6751, %v874
    %v6828 = vadd.f32 %v6820, %v885
    %v6829 = vadd.f32 %v6822, %v896
    %v6830 = vadd.f32 %v6824, %v5671
    %v6831 = vxor.u32 %v6830, 2147483648
    %v6832 = vmul.f32 %v6831, 1.442695
    %v6833 = vpow.pop %v6832
    %v6834 = vadd.f32 %v6833, 1.0
    %v6835 = vrcp.pop %v6834
    %v6836 = vmul.f32 1.0, %v6835
    %v6837 = vadd.f32 %v6825, %v5672
    %v6838 = vxor.u32 %v6837, 2147483648
    %v6839 = vmul.f32 %v6838, 1.442695
    %v6840 = vpow.pop %v6839
    %v6841 = vadd.f32 %v6840, 1.0
    %v6842 = vrcp.pop %v6841
    %v6843 = vmul.f32 1.0, %v6842
    %v6844 = vmul.f32 %v6836, %v5673
    %v6845 = vadd.f32 %v6826, %v6844
    %v6846 = vtanh.pop %v6845
    %v6847 = vsub.f32 1.0, %v6843
    %v6848 = vmul.f32 %v6847, %v6846
    %v6849 = vmul.f32 %v6843, %v5528
    %v6850 = vadd.f32 %v6848, %v6849
    %6851 = vmatprep.subr.mxu0 %v1323
    %6852 = vmatpush1.msra.mxu0 %v1322
    %6853 = vmatprep.subr.mxu0 %v1319
    %6854 = vmatpush1.msra.mxu0 %v1318
    %6855 = vmatprep.subr.mxu0 %v1315
    %6856 = vmatpush1.msra.mxu0 %v1314
    %6857 = vmatprep.subr.mxu0 %v1311
    %6858 = vmatpush1.msra.mxu0 %v1310
    %6859 = vmatprep.subr.mxu0 %v1307
    %6860 = vmatpush1.msra.mxu0 %v1306
    %6861 = vmatprep.subr.mxu0 %v1303
    %6862 = vmatpush1.msra.mxu0 %v1302
    %6863 = vmatprep.subr.mxu0 %v1299
    %6864 = vmatpush1.msra.mxu0 %v1298
    %6865 = vmatprep.subr.mxu0 %v1295
    %6866 = vmatpush1.msra.mxu0 %v1294
    %6867 = vmatprep.subr.mxu0 %v1291
    %6868 = vmatpush1.msra.mxu0 %v1290
    %6869 = vmatprep.subr.mxu0 %v1287
    %6870 = vmatpush1.msra.mxu0 %v1286
    %6871 = vmatprep.subr.mxu0 %v1283
    %6872 = vmatpush1.msra.mxu0 %v1282
    %6873 = vmatprep.subr.mxu0 %v1279
    %6874 = vmatpush1.msra.mxu0 %v1278
    %6875 = vmatprep.subr.mxu0 %v1275
    %6876 = vmatpush1.msra.mxu0 %v1274
    %6877 = vmatprep.subr.mxu0 %v1271
    %6878 = vmatpush1.msra.mxu0 %v1270
    %6879 = vmatprep.subr.mxu0 %v1267
    %6880 = vmatpush1.msra.mxu0 %v1266
    %6881 = vmatprep.subr.mxu0 %v1263
    %6882 = vmatpush1.msra.mxu0 %v1262
    %6883 = vmatprep.subr.mxu0 0.0
    %6884 = vmatpush2.msra.mxu0 0.0
    %6885 = vmatprep.subr.mxu0 0.0
    %6886 = vmatpush2.msra.mxu0 0.0
    %6887 = vmatprep.subr.mxu0 0.0
    %6888 = vmatpush2.msra.mxu0 0.0
    %6889 = vmatprep.subr.mxu0 0.0
    %6890 = vmatpush2.msra.mxu0 0.0
    %6891 = vmatprep.subr.mxu0 0.0
    %6892 = vmatpush2.msra.mxu0 0.0
    %6893 = vmatprep.subr.mxu0 0.0
    %6894 = vmatpush2.msra.mxu0 0.0
    %6895 = vmatprep.subr.mxu0 0.0
    %6896 = vmatpush2.msra.mxu0 0.0
    %6897 = vmatprep.subr.mxu0 0.0
    %6898 = vmatpush2.msra.mxu0 0.0
    %6899 = vmatprep.subr.mxu0 0.0
    %6900 = vmatpush2.msra.mxu0 0.0
    %6901 = vmatprep.subr.mxu0 0.0
    %6902 = vmatpush2.msra.mxu0 0.0
    %6903 = vmatprep.subr.mxu0 0.0
    %6904 = vmatpush2.msra.mxu0 0.0
    %6905 = vmatprep.subr.mxu0 0.0
    %6906 = vmatpush2.msra.mxu0 0.0
    %6907 = vmatprep.subr.mxu0 0.0
    %6908 = vmatpush2.msra.mxu0 0.0
    %6909 = vmatprep.subr.mxu0 0.0
    %6910 = vmatpush2.msra.mxu0 0.0
    %6911 = vmatprep.subr.mxu0 0.0
    %6912 = vmatpush2.msra.mxu0 0.0
    %6913 = vmatprep.subr.mxu0 0.0
    %6914 = vmatpush2.msra.mxu0 0.0
    %6915 = vmatprep.mubr.f32.mxu0 0.0
    %6916 = vmatmul.mubr.f32.gmra.mxu0 %v6850
    %v6917 = vpop.f32.mrf.mxu0
    %v6918 = vadd.f32 0.0, %v6917
    %v6919 = vpop.f32.mrf.mxu0
    %v6920 = vadd.f32 0.0, %v6919
    %6921 = vdwg.mxu0
    %6922 = vmatprep.subr.mxu0 %v1325
    %6923 = vmatpush1.msra.mxu0 %v1324
    %6924 = vmatprep.subr.mxu0 %v1321
    %6925 = vmatpush1.msra.mxu0 %v1320
    %6926 = vmatprep.subr.mxu0 %v1317
    %6927 = vmatpush1.msra.mxu0 %v1316
    %6928 = vmatprep.subr.mxu0 %v1313
    %6929 = vmatpush1.msra.mxu0 %v1312
    %6930 = vmatprep.subr.mxu0 %v1309
    %6931 = vmatpush1.msra.mxu0 %v1308
    %6932 = vmatprep.subr.mxu0 %v1305
    %6933 = vmatpush1.msra.mxu0 %v1304
    %6934 = vmatprep.subr.mxu0 %v1301
    %6935 = vmatpush1.msra.mxu0 %v1300
    %6936 = vmatprep.subr.mxu0 %v1297
    %6937 = vmatpush1.msra.mxu0 %v1296
    %6938 = vmatprep.subr.mxu0 %v1293
    %6939 = vmatpush1.msra.mxu0 %v1292
    %6940 = vmatprep.subr.mxu0 %v1289
    %6941 = vmatpush1.msra.mxu0 %v1288
    %6942 = vmatprep.subr.mxu0 %v1285
    %6943 = vmatpush1.msra.mxu0 %v1284
    %6944 = vmatprep.subr.mxu0 %v1281
    %6945 = vmatpush1.msra.mxu0 %v1280
    %6946 = vmatprep.subr.mxu0 %v1277
    %6947 = vmatpush1.msra.mxu0 %v1276
    %6948 = vmatprep.subr.mxu0 %v1273
    %6949 = vmatpush1.msra.mxu0 %v1272
    %6950 = vmatprep.subr.mxu0 %v1269
    %6951 = vmatpush1.msra.mxu0 %v1268
    %6952 = vmatprep.subr.mxu0 %v1265
    %6953 = vmatpush1.msra.mxu0 %v1264
    %6954 = vmatprep.subr.mxu0 0.0
    %6955 = vmatpush2.msra.mxu0 0.0
    %6956 = vmatprep.subr.mxu0 0.0
    %6957 = vmatpush2.msra.mxu0 0.0
    %6958 = vmatprep.subr.mxu0 0.0
    %6959 = vmatpush2.msra.mxu0 0.0
    %6960 = vmatprep.subr.mxu0 0.0
    %6961 = vmatpush2.msra.mxu0 0.0
    %6962 = vmatprep.subr.mxu0 0.0
    %6963 = vmatpush2.msra.mxu0 0.0
    %6964 = vmatprep.subr.mxu0 0.0
    %6965 = vmatpush2.msra.mxu0 0.0
    %6966 = vmatprep.subr.mxu0 0.0
    %6967 = vmatpush2.msra.mxu0 0.0
    %6968 = vmatprep.subr.mxu0 0.0
    %6969 = vmatpush2.msra.mxu0 0.0
    %6970 = vmatprep.subr.mxu0 0.0
    %6971 = vmatpush2.msra.mxu0 0.0
    %6972 = vmatprep.subr.mxu0 0.0
    %6973 = vmatpush2.msra.mxu0 0.0
    %6974 = vmatprep.subr.mxu0 0.0
    %6975 = vmatpush2.msra.mxu0 0.0
    %6976 = vmatprep.subr.mxu0 0.0
    %6977 = vmatpush2.msra.mxu0 0.0
    %6978 = vmatprep.subr.mxu0 0.0
    %6979 = vmatpush2.msra.mxu0 0.0
    %6980 = vmatprep.subr.mxu0 0.0
    %6981 = vmatpush2.msra.mxu0 0.0
    %6982 = vmatprep.subr.mxu0 0.0
    %6983 = vmatpush2.msra.mxu0 0.0
    %6984 = vmatprep.subr.mxu0 0.0
    %6985 = vmatpush2.msra.mxu0 0.0
    %6986 = vmatprep.mubr.f32.mxu0 0.0
    %6987 = vmatmul.mubr.f32.gmra.mxu0 %v6850
    %v6988 = vpop.f32.mrf.mxu0
    %v6989 = vadd.f32 0.0, %v6988
    %v6990 = vpop.f32.mrf.mxu0
    %v6991 = vadd.f32 0.0, %v6990
    %6992 = vdwg.mxu0
    %v6993 = vadd.f32 %v6918, %v1233
    %v6994 = vadd.f32 %v6920, %v1244
    %v6995 = vadd.f32 %v6989, %v1255
    %v6996 = vadd.f32 %v6991, %v1472
    %6998 = vset.pattern.permute.xlu0 0
    %6999 = vperm.xlu0 %6998, %v6996
    %v7000 = vpop.permute.xlu0 %6999
    %v7002 = vmul.f32 %v7000, %v1483
    %v7003 = vmul.f32 %v7000, %v1487
    %v7004 = vmul.f32 %v7000, %v1491
    %7005 = vset.pattern.permute.xlu0 1
    %7006 = vperm.xlu0 %7005, %v6996
    %v7007 = vpop.permute.xlu0 %7006
    %v7009 = vmul.f32 %v7007, %v1502
    %v7010 = vmul.f32 %v7007, %v1506
    %v7011 = vmul.f32 %v7007, %v1510
    %v7012 = vadd.f32 %v7002, %v7009
    %v7013 = vadd.f32 %v7003, %v7010
    %v7014 = vadd.f32 %v7004, %v7011
    %v7015 = vadd.f32 %v7012, %v1520
    %v7016 = vadd.f32 %v7013, %v1524
    %v7017 = vadd.f32 %v7014, %v1528
    %v7018 = vadd.f32 %v7015, %v5933
    %v7019 = vxor.u32 %v7018, 2147483648
    %v7020 = vmul.f32 %v7019, 1.442695
    %v7021 = vpow.pop %v7020
    %v7022 = vadd.f32 %v7021, 1.0
    %v7023 = vrcp.pop %v7022
    %v7024 = vmul.f32 1.0, %v7023
    %v7025 = vadd.f32 %v7016, %v5934
    %v7026 = vxor.u32 %v7025, 2147483648
    %v7027 = vmul.f32 %v7026, 1.442695
    %v7028 = vpow.pop %v7027
    %v7029 = vadd.f32 %v7028, 1.0
    %v7030 = vrcp.pop %v7029
    %v7031 = vmul.f32 1.0, %v7030
    %v7032 = vmul.f32 %v7024, %v5935
    %v7033 = vadd.f32 %v7017, %v7032
    %v7034 = vtanh.pop %v7033
    %v7035 = vsub.f32 1.0, %v7031
    %v7036 = vmul.f32 %v7035, %v7034
    %v7037 = vmul.f32 %v7031, %v5716
    %v7038 = vadd.f32 %v7036, %v7037
    %7039 = vmatprep.subr.mxu0 %v1655
    %7040 = vmatpush1.msra.mxu0 %v1654
    %7041 = vmatprep.subr.mxu0 %v1649
    %7042 = vmatpush1.msra.mxu0 %v1648
    %7043 = vmatprep.subr.mxu0 %v1643
    %7044 = vmatpush1.msra.mxu0 %v1642
    %7045 = vmatprep.subr.mxu0 %v1637
    %7046 = vmatpush1.msra.mxu0 %v1636
    %7047 = vmatprep.subr.mxu0 %v1631
    %7048 = vmatpush1.msra.mxu0 %v1630
    %7049 = vmatprep.subr.mxu0 %v1625
    %7050 = vmatpush1.msra.mxu0 %v1624
    %7051 = vmatprep.subr.mxu0 %v1619
    %7052 = vmatpush1.msra.mxu0 %v1618
    %7053 = vmatprep.subr.mxu0 %v1613
    %7054 = vmatpush1.msra.mxu0 %v1612
    %7055 = vmatprep.subr.mxu0 %v1607
    %7056 = vmatpush1.msra.mxu0 %v1606
    %7057 = vmatprep.subr.mxu0 %v1601
    %7058 = vmatpush1.msra.mxu0 %v1600
    %7059 = vmatprep.subr.mxu0 %v1595
    %7060 = vmatpush1.msra.mxu0 %v1594
    %7061 = vmatprep.subr.mxu0 %v1589
    %7062 = vmatpush1.msra.mxu0 %v1588
    %7063 = vmatprep.subr.mxu0 %v1583
    %7064 = vmatpush1.msra.mxu0 %v1582
    %7065 = vmatprep.subr.mxu0 %v1577
    %7066 = vmatpush1.msra.mxu0 %v1576
    %7067 = vmatprep.subr.mxu0 %v1571
    %7068 = vmatpush1.msra.mxu0 %v1570
    %7069 = vmatprep.subr.mxu0 %v1565
    %7070 = vmatpush1.msra.mxu0 %v1564
    %7071 = vmatprep.subr.mxu0 0.0
    %7072 = vmatpush2.msra.mxu0 0.0
    %7073 = vmatprep.subr.mxu0 0.0
    %7074 = vmatpush2.msra.mxu0 0.0
    %7075 = vmatprep.subr.mxu0 0.0
    %7076 = vmatpush2.msra.mxu0 0.0
    %7077 = vmatprep.subr.mxu0 0.0
    %7078 = vmatpush2.msra.mxu0 0.0
    %7079 = vmatprep.subr.mxu0 0.0
    %7080 = vmatpush2.msra.mxu0 0.0
    %7081 = vmatprep.subr.mxu0 0.0
    %7082 = vmatpush2.msra.mxu0 0.0
    %7083 = vmatprep.subr.mxu0 0.0
    %7084 = vmatpush2.msra.mxu0 0.0
    %7085 = vmatprep.subr.mxu0 0.0
    %7086 = vmatpush2.msra.mxu0 0.0
    %7087 = vmatprep.subr.mxu0 0.0
    %7088 = vmatpush2.msra.mxu0 0.0
    %7089 = vmatprep.subr.mxu0 0.0
    %7090 = vmatpush2.msra.mxu0 0.0
    %7091 = vmatprep.subr.mxu0 0.0
    %7092 = vmatpush2.msra.mxu0 0.0
    %7093 = vmatprep.subr.mxu0 0.0
    %7094 = vmatpush2.msra.mxu0 0.0
    %7095 = vmatprep.subr.mxu0 0.0
    %7096 = vmatpush2.msra.mxu0 0.0
    %7097 = vmatprep.subr.mxu0 0.0
    %7098 = vmatpush2.msra.mxu0 0.0
    %7099 = vmatprep.subr.mxu0 0.0
    %7100 = vmatpush2.msra.mxu0 0.0
    %7101 = vmatprep.subr.mxu0 0.0
    %7102 = vmatpush2.msra.mxu0 0.0
    %7103 = vmatprep.mubr.f32.mxu0 0.0
    %7104 = vmatmul.mubr.f32.gmra.mxu0 %v7038
    %v7105 = vpop.f32.mrf.mxu0
    %v7106 = vadd.f32 0.0, %v7105
    %v7107 = vpop.f32.mrf.mxu0
    %v7108 = vadd.f32 0.0, %v7107
    %7109 = vdwg.mxu0
    %7110 = vmatprep.subr.mxu0 %v1657
    %7111 = vmatpush1.msra.mxu0 %v1656
    %7112 = vmatprep.subr.mxu0 %v1651
    %7113 = vmatpush1.msra.mxu0 %v1650
    %7114 = vmatprep.subr.mxu0 %v1645
    %7115 = vmatpush1.msra.mxu0 %v1644
    %7116 = vmatprep.subr.mxu0 %v1639
    %7117 = vmatpush1.msra.mxu0 %v1638
    %7118 = vmatprep.subr.mxu0 %v1633
    %7119 = vmatpush1.msra.mxu0 %v1632
    %7120 = vmatprep.subr.mxu0 %v1627
    %7121 = vmatpush1.msra.mxu0 %v1626
    %7122 = vmatprep.subr.mxu0 %v1621
    %7123 = vmatpush1.msra.mxu0 %v1620
    %7124 = vmatprep.subr.mxu0 %v1615
    %7125 = vmatpush1.msra.mxu0 %v1614
    %7126 = vmatprep.subr.mxu0 %v1609
    %7127 = vmatpush1.msra.mxu0 %v1608
    %7128 = vmatprep.subr.mxu0 %v1603
    %7129 = vmatpush1.msra.mxu0 %v1602
    %7130 = vmatprep.subr.mxu0 %v1597
    %7131 = vmatpush1.msra.mxu0 %v1596
    %7132 = vmatprep.subr.mxu0 %v1591
    %7133 = vmatpush1.msra.mxu0 %v1590
    %7134 = vmatprep.subr.mxu0 %v1585
    %7135 = vmatpush1.msra.mxu0 %v1584
    %7136 = vmatprep.subr.mxu0 %v1579
    %7137 = vmatpush1.msra.mxu0 %v1578
    %7138 = vmatprep.subr.mxu0 %v1573
    %7139 = vmatpush1.msra.mxu0 %v1572
    %7140 = vmatprep.subr.mxu0 %v1567
    %7141 = vmatpush1.msra.mxu0 %v1566
    %7142 = vmatprep.subr.mxu0 0.0
    %7143 = vmatpush2.msra.mxu0 0.0
    %7144 = vmatprep.subr.mxu0 0.0
    %7145 = vmatpush2.msra.mxu0 0.0
    %7146 = vmatprep.subr.mxu0 0.0
    %7147 = vmatpush2.msra.mxu0 0.0
    %7148 = vmatprep.subr.mxu0 0.0
    %7149 = vmatpush2.msra.mxu0 0.0
    %7150 = vmatprep.subr.mxu0 0.0
    %7151 = vmatpush2.msra.mxu0 0.0
    %7152 = vmatprep.subr.mxu0 0.0
    %7153 = vmatpush2.msra.mxu0 0.0
    %7154 = vmatprep.subr.mxu0 0.0
    %7155 = vmatpush2.msra.mxu0 0.0
    %7156 = vmatprep.subr.mxu0 0.0
    %7157 = vmatpush2.msra.mxu0 0.0
    %7158 = vmatprep.subr.mxu0 0.0
    %7159 = vmatpush2.msra.mxu0 0.0
    %7160 = vmatprep.subr.mxu0 0.0
    %7161 = vmatpush2.msra.mxu0 0.0
    %7162 = vmatprep.subr.mxu0 0.0
    %7163 = vmatpush2.msra.mxu0 0.0
    %7164 = vmatprep.subr.mxu0 0.0
    %7165 = vmatpush2.msra.mxu0 0.0
    %7166 = vmatprep.subr.mxu0 0.0
    %7167 = vmatpush2.msra.mxu0 0.0
    %7168 = vmatprep.subr.mxu0 0.0
    %7169 = vmatpush2.msra.mxu0 0.0
    %7170 = vmatprep.subr.mxu0 0.0
    %7171 = vmatpush2.msra.mxu0 0.0
    %7172 = vmatprep.subr.mxu0 0.0
    %7173 = vmatpush2.msra.mxu0 0.0
    %7174 = vmatprep.mubr.f32.mxu0 0.0
    %7175 = vmatmul.mubr.f32.gmra.mxu0 %v7038
    %v7176 = vpop.f32.mrf.mxu0
    %v7177 = vadd.f32 0.0, %v7176
    %v7178 = vpop.f32.mrf.mxu0
    %7179 = vdwg.mxu0
    %v7180 = vadd.f32 %v7106, %v1876
    %v7181 = vadd.f32 %v7108, %v1880
    %v7182 = vadd.f32 %v7177, %v1884
    %v7183 = vadd.f32 %v7180, %v6099
    %v7184 = vxor.u32 %v7183, 2147483648
    %v7185 = vmul.f32 %v7184, 1.442695
    %v7186 = vpow.pop %v7185
    %v7187 = vadd.f32 %v7186, 1.0
    %v7188 = vrcp.pop %v7187
    %v7189 = vmul.f32 1.0, %v7188
    %v7190 = vadd.f32 %v7181, %v6100
    %v7191 = vxor.u32 %v7190, 2147483648
    %v7192 = vmul.f32 %v7191, 1.442695
    %v7193 = vpow.pop %v7192
    %v7194 = vadd.f32 %v7193, 1.0
    %v7195 = vrcp.pop %v7194
    %v7196 = vmul.f32 1.0, %v7195
    %v7197 = vmul.f32 %v7189, %v6101
    %v7198 = vadd.f32 %v7182, %v7197
    %v7199 = vtanh.pop %v7198
    %v7200 = vsub.f32 1.0, %v7196
    %v7201 = vmul.f32 %v7200, %v7199
    %v7202 = vmul.f32 %v7196, %v5956
    %v7203 = vadd.f32 %v7201, %v7202
    %7204 = vmatprep.subr.mxu0 %v1986
    %7205 = vmatpush1.msra.mxu0 %v1985
    %7206 = vmatprep.subr.mxu0 %v1982
    %7207 = vmatpush1.msra.mxu0 %v1981
    %7208 = vmatprep.subr.mxu0 %v1978
    %7209 = vmatpush1.msra.mxu0 %v1977
    %7210 = vmatprep.subr.mxu0 %v1974
    %7211 = vmatpush1.msra.mxu0 %v1973
    %7212 = vmatprep.subr.mxu0 %v1970
    %7213 = vmatpush1.msra.mxu0 %v1969
    %7214 = vmatprep.subr.mxu0 %v1966
    %7215 = vmatpush1.msra.mxu0 %v1965
    %7216 = vmatprep.subr.mxu0 %v1962
    %7217 = vmatpush1.msra.mxu0 %v1961
    %7218 = vmatprep.subr.mxu0 %v1958
    %7219 = vmatpush1.msra.mxu0 %v1957
    %7220 = vmatprep.subr.mxu0 %v1954
    %7221 = vmatpush1.msra.mxu0 %v1953
    %7222 = vmatprep.subr.mxu0 %v1950
    %7223 = vmatpush1.msra.mxu0 %v1949
    %7224 = vmatprep.subr.mxu0 %v1946
    %7225 = vmatpush1.msra.mxu0 %v1945
    %7226 = vmatprep.subr.mxu0 %v1942
    %7227 = vmatpush1.msra.mxu0 %v1941
    %7228 = vmatprep.subr.mxu0 %v1938
    %7229 = vmatpush1.msra.mxu0 %v1937
    %7230 = vmatprep.subr.mxu0 %v1934
    %7231 = vmatpush1.msra.mxu0 %v1933
    %7232 = vmatprep.subr.mxu0 %v1930
    %7233 = vmatpush1.msra.mxu0 %v1929
    %7234 = vmatprep.subr.mxu0 %v1926
    %7235 = vmatpush1.msra.mxu0 %v1925
    %7236 = vmatprep.subr.mxu0 0.0
    %7237 = vmatpush2.msra.mxu0 0.0
    %7238 = vmatprep.subr.mxu0 0.0
    %7239 = vmatpush2.msra.mxu0 0.0
    %7240 = vmatprep.subr.mxu0 0.0
    %7241 = vmatpush2.msra.mxu0 0.0
    %7242 = vmatprep.subr.mxu0 0.0
    %7243 = vmatpush2.msra.mxu0 0.0
    %7244 = vmatprep.subr.mxu0 0.0
    %7245 = vmatpush2.msra.mxu0 0.0
    %7246 = vmatprep.subr.mxu0 0.0
    %7247 = vmatpush2.msra.mxu0 0.0
    %7248 = vmatprep.subr.mxu0 0.0
    %7249 = vmatpush2.msra.mxu0 0.0
    %7250 = vmatprep.subr.mxu0 0.0
    %7251 = vmatpush2.msra.mxu0 0.0
    %7252 = vmatprep.subr.mxu0 0.0
    %7253 = vmatpush2.msra.mxu0 0.0
    %7254 = vmatprep.subr.mxu0 0.0
    %7255 = vmatpush2.msra.mxu0 0.0
    %7256 = vmatprep.subr.mxu0 0.0
    %7257 = vmatpush2.msra.mxu0 0.0
    %7258 = vmatprep.subr.mxu0 0.0
    %7259 = vmatpush2.msra.mxu0 0.0
    %7260 = vmatprep.subr.mxu0 0.0
    %7261 = vmatpush2.msra.mxu0 0.0
    %7262 = vmatprep.subr.mxu0 0.0
    %7263 = vmatpush2.msra.mxu0 0.0
    %7264 = vmatprep.subr.mxu0 0.0
    %7265 = vmatpush2.msra.mxu0 0.0
    %7266 = vmatprep.subr.mxu0 0.0
    %7267 = vmatpush2.msra.mxu0 0.0
    %7268 = vmatprep.mubr.f32.mxu0 0.0
    %7269 = vmatmul.mubr.f32.gmra.mxu0 %v7203
    %v7270 = vpop.f32.mrf.mxu0
    %v7271 = vpop.f32.mrf.mxu0
    %v7272 = vadd.f32 0.0, %v7271
    %7273 = vdwg.mxu0
    %v7274 = vadd.f32 %v7272, %v2133
    %v7275 = vadd.f32 %v7274, 0.0
    %v7276 = vsel %vm813, %v7275, 0.0
    %v7277 = vrot.slane %v7276, 4
    %v7278 = vadd.f32 %v7276, %v7277
    %v7279 = vrot.slane %v7278, 2
    %v7280 = vadd.f32 %v7278, %v7279
    %v7281 = vrot.slane %v7280, 1
    %v7282 = vadd.f32 %v7280, %v7281
    %v7283 = vmul.f32 %v7282, 0.125
    %v7284 = vsub.f32 %v7274, %v7283
    %v7285 = vmul.f32 %v7284, %v7284
    %v7286 = vadd.f32 %v7285, 0.0
    %v7287 = vsel %vm813, %v7286, 0.0
    %v7288 = vrot.slane %v7287, 4
    %v7289 = vadd.f32 %v7287, %v7288
    %v7290 = vrot.slane %v7289, 2
    %v7291 = vadd.f32 %v7289, %v7290
    %v7292 = vrot.slane %v7291, 1
    %v7293 = vadd.f32 %v7291, %v7292
    %v7294 = vmul.f32 %v7293, 0.14285715
    %v7295 = vrsqrt.pop %v7294
    %v7296 = vmul.f32 %v7284, %v7295
    %7297 = vrot.lane.b32.xlu0 %v115, 118
    %v7298 = vpop.permute.xlu0 %7297
    %v7300 = vadd.f32 %v7296, %v7298
    %7302 = vset.pattern.permute.xlu0 0
    %7303 = vperm.xlu0 %7302, %v7300
    %v7304 = vpop.permute.xlu0 %7303
    %v7306 = vmul.f32 %v7304, %v186
    %v7307 = vmul.f32 %v7304, %v190
    %v7308 = vmul.f32 %v7304, %v194
    %v7309 = vadd.f32 %v180, %v7306
    %v7310 = vadd.f32 %v181, %v7307
    %v7311 = vadd.f32 %v182, %v7308
    %v7312 = vadd.f32 %v7309, %v6377
    %v7313 = vxor.u32 %v7312, 2147483648
    %v7314 = vmul.f32 %v7313, 1.442695
    %v7315 = vpow.pop %v7314
    %v7316 = vadd.f32 %v7315, 1.0
    %v7317 = vrcp.pop %v7316
    %v7318 = vmul.f32 1.0, %v7317
    %v7319 = vadd.f32 %v7310, %v6378
    %v7320 = vxor.u32 %v7319, 2147483648
    %v7321 = vmul.f32 %v7320, 1.442695
    %v7322 = vpow.pop %v7321
    %v7323 = vadd.f32 %v7322, 1.0
    %v7324 = vrcp.pop %v7323
    %v7325 = vmul.f32 1.0, %v7324
    %v7326 = vmul.f32 %v7318, %v6379
    %v7327 = vadd.f32 %v7311, %v7326
    %v7328 = vtanh.pop %v7327
    %v7329 = vsub.f32 1.0, %v7325
    %v7330 = vmul.f32 %v7329, %v7328
    %v7331 = vmul.f32 %v7325, %v6160
    %v7332 = vadd.f32 %v7330, %v7331
    %v7333 = vld [vmem:[#allocation9] sm:$0xff]
    %v7334 = vld [vmem:[#allocation9 + $0x8] sm:$0xff]
    %v7335 = vld [vmem:[#allocation9 + $0x10] sm:$0xff]
    %v7336 = vld [vmem:[#allocation9 + $0x30] sm:$0xff]
    %v7337 = vld [vmem:[#allocation9 + $0x38] sm:$0xff]
    %v7338 = vld [vmem:[#allocation9 + $0x40] sm:$0xff]
    %v7339 = vld [vmem:[#allocation9 + $0x60] sm:$0xff]
    %v7340 = vld [vmem:[#allocation9 + $0x68] sm:$0xff]
    %v7341 = vld [vmem:[#allocation9 + $0x70] sm:$0xff]
    %v7342 = vld [vmem:[#allocation9 + $0x90] sm:$0xff]
    %v7343 = vld [vmem:[#allocation9 + $0x98] sm:$0xff]
    %v7344 = vld [vmem:[#allocation9 + $0xa0] sm:$0xff]
    %v7345 = vld [vmem:[#allocation9 + $0xc0] sm:$0xff]
    %v7346 = vld [vmem:[#allocation9 + $0xc8] sm:$0xff]
    %v7347 = vld [vmem:[#allocation9 + $0xd0] sm:$0xff]
    %v7348 = vld [vmem:[#allocation9 + $0xf0] sm:$0xff]
    %v7349 = vld [vmem:[#allocation9 + $0xf8] sm:$0xff]
    %v7350 = vld [vmem:[#allocation9 + $0x100] sm:$0xff]
    %v7351 = vld [vmem:[#allocation9 + $0x120] sm:$0xff]
    %v7352 = vld [vmem:[#allocation9 + $0x128] sm:$0xff]
    %v7353 = vld [vmem:[#allocation9 + $0x130] sm:$0xff]
    %v7354 = vld [vmem:[#allocation9 + $0x150] sm:$0xff]
    %v7355 = vld [vmem:[#allocation9 + $0x158] sm:$0xff]
    %v7356 = vld [vmem:[#allocation9 + $0x160] sm:$0xff]
    %v7357 = vld [vmem:[#allocation9 + $0x180] sm:$0xff]
    %v7358 = vld [vmem:[#allocation9 + $0x188] sm:$0xff]
    %v7359 = vld [vmem:[#allocation9 + $0x190] sm:$0xff]
    %v7360 = vld [vmem:[#allocation9 + $0x1b0] sm:$0xff]
    %v7361 = vld [vmem:[#allocation9 + $0x1b8] sm:$0xff]
    %v7362 = vld [vmem:[#allocation9 + $0x1c0] sm:$0xff]
    %v7363 = vld [vmem:[#allocation9 + $0x1e0] sm:$0xff]
    %v7364 = vld [vmem:[#allocation9 + $0x1e8] sm:$0xff]
    %v7365 = vld [vmem:[#allocation9 + $0x1f0] sm:$0xff]
    %v7366 = vld [vmem:[#allocation9 + $0x210] sm:$0xff]
    %v7367 = vld [vmem:[#allocation9 + $0x218] sm:$0xff]
    %v7368 = vld [vmem:[#allocation9 + $0x220] sm:$0xff]
    %v7369 = vld [vmem:[#allocation9 + $0x240] sm:$0xff]
    %v7370 = vld [vmem:[#allocation9 + $0x248] sm:$0xff]
    %v7371 = vld [vmem:[#allocation9 + $0x250] sm:$0xff]
    %v7372 = vld [vmem:[#allocation9 + $0x270] sm:$0xff]
    %v7373 = vld [vmem:[#allocation9 + $0x278] sm:$0xff]
    %v7374 = vld [vmem:[#allocation9 + $0x280] sm:$0xff]
    %v7375 = vld [vmem:[#allocation9 + $0x2a0] sm:$0xff]
    %v7376 = vld [vmem:[#allocation9 + $0x2a8] sm:$0xff]
    %v7377 = vld [vmem:[#allocation9 + $0x2b0] sm:$0xff]
    %v7378 = vld [vmem:[#allocation9 + $0x2d0] sm:$0xff]
    %v7379 = vld [vmem:[#allocation9 + $0x2d8] sm:$0xff]
    %v7380 = vld [vmem:[#allocation9 + $0x2e0] sm:$0xff]
    %7381 = vmatprep.subr.mxu0 %v7379
    %7382 = vmatpush1.msra.mxu0 %v7378
    %7383 = vmatprep.subr.mxu0 %v7376
    %7384 = vmatpush1.msra.mxu0 %v7375
    %7385 = vmatprep.subr.mxu0 %v7373
    %7386 = vmatpush1.msra.mxu0 %v7372
    %7387 = vmatprep.subr.mxu0 %v7370
    %7388 = vmatpush1.msra.mxu0 %v7369
    %7389 = vmatprep.subr.mxu0 %v7367
    %7390 = vmatpush1.msra.mxu0 %v7366
    %7391 = vmatprep.subr.mxu0 %v7364
    %7392 = vmatpush1.msra.mxu0 %v7363
    %7393 = vmatprep.subr.mxu0 %v7361
    %7394 = vmatpush1.msra.mxu0 %v7360
    %7395 = vmatprep.subr.mxu0 %v7358
    %7396 = vmatpush1.msra.mxu0 %v7357
    %7397 = vmatprep.subr.mxu0 %v7355
    %7398 = vmatpush1.msra.mxu0 %v7354
    %7399 = vmatprep.subr.mxu0 %v7352
    %7400 = vmatpush1.msra.mxu0 %v7351
    %7401 = vmatprep.subr.mxu0 %v7349
    %7402 = vmatpush1.msra.mxu0 %v7348
    %7403 = vmatprep.subr.mxu0 %v7346
    %7404 = vmatpush1.msra.mxu0 %v7345
    %7405 = vmatprep.subr.mxu0 %v7343
    %7406 = vmatpush1.msra.mxu0 %v7342
    %7407 = vmatprep.subr.mxu0 %v7340
    %7408 = vmatpush1.msra.mxu0 %v7339
    %7409 = vmatprep.subr.mxu0 %v7337
    %7410 = vmatpush1.msra.mxu0 %v7336
    %7411 = vmatprep.subr.mxu0 %v7334
    %7412 = vmatpush1.msra.mxu0 %v7333
    %7413 = vmatprep.subr.mxu0 0.0
    %7414 = vmatpush2.msra.mxu0 0.0
    %7415 = vmatprep.subr.mxu0 0.0
    %7416 = vmatpush2.msra.mxu0 0.0
    %7417 = vmatprep.subr.mxu0 0.0
    %7418 = vmatpush2.msra.mxu0 0.0
    %7419 = vmatprep.subr.mxu0 0.0
    %7420 = vmatpush2.msra.mxu0 0.0
    %7421 = vmatprep.subr.mxu0 0.0
    %7422 = vmatpush2.msra.mxu0 0.0
    %7423 = vmatprep.subr.mxu0 0.0
    %7424 = vmatpush2.msra.mxu0 0.0
    %7425 = vmatprep.subr.mxu0 0.0
    %7426 = vmatpush2.msra.mxu0 0.0
    %7427 = vmatprep.subr.mxu0 0.0
    %7428 = vmatpush2.msra.mxu0 0.0
    %7429 = vmatprep.subr.mxu0 0.0
    %7430 = vmatpush2.msra.mxu0 0.0
    %7431 = vmatprep.subr.mxu0 0.0
    %7432 = vmatpush2.msra.mxu0 0.0
    %7433 = vmatprep.subr.mxu0 0.0
    %7434 = vmatpush2.msra.mxu0 0.0
    %7435 = vmatprep.subr.mxu0 0.0
    %7436 = vmatpush2.msra.mxu0 0.0
    %7437 = vmatprep.subr.mxu0 0.0
    %7438 = vmatpush2.msra.mxu0 0.0
    %7439 = vmatprep.subr.mxu0 0.0
    %7440 = vmatpush2.msra.mxu0 0.0
    %7441 = vmatprep.subr.mxu0 0.0
    %7442 = vmatpush2.msra.mxu0 0.0
    %7443 = vmatprep.subr.mxu0 0.0
    %7444 = vmatpush2.msra.mxu0 0.0
    %7445 = vmatprep.mubr.f32.mxu0 0.0
    %7446 = vmatmul.mubr.f32.gmra.mxu0 %v7332
    %v7447 = vpop.f32.mrf.mxu0
    %v7448 = vadd.f32 %v544, %v7447
    %v7449 = vpop.f32.mrf.mxu0
    %v7450 = vadd.f32 %v548, %v7449
    %7451 = vdwg.mxu0
    %7452 = vmatprep.subr.mxu0 0.0
    %7453 = vmatpush1.msra.mxu0 %v7380
    %7454 = vmatprep.subr.mxu0 0.0
    %7455 = vmatpush1.msra.mxu0 %v7377
    %7456 = vmatprep.subr.mxu0 0.0
    %7457 = vmatpush1.msra.mxu0 %v7374
    %7458 = vmatprep.subr.mxu0 0.0
    %7459 = vmatpush1.msra.mxu0 %v7371
    %7460 = vmatprep.subr.mxu0 0.0
    %7461 = vmatpush1.msra.mxu0 %v7368
    %7462 = vmatprep.subr.mxu0 0.0
    %7463 = vmatpush1.msra.mxu0 %v7365
    %7464 = vmatprep.subr.mxu0 0.0
    %7465 = vmatpush1.msra.mxu0 %v7362
    %7466 = vmatprep.subr.mxu0 0.0
    %7467 = vmatpush1.msra.mxu0 %v7359
    %7468 = vmatprep.subr.mxu0 0.0
    %7469 = vmatpush1.msra.mxu0 %v7356
    %7470 = vmatprep.subr.mxu0 0.0
    %7471 = vmatpush1.msra.mxu0 %v7353
    %7472 = vmatprep.subr.mxu0 0.0
    %7473 = vmatpush1.msra.mxu0 %v7350
    %7474 = vmatprep.subr.mxu0 0.0
    %7475 = vmatpush1.msra.mxu0 %v7347
    %7476 = vmatprep.subr.mxu0 0.0
    %7477 = vmatpush1.msra.mxu0 %v7344
    %7478 = vmatprep.subr.mxu0 0.0
    %7479 = vmatpush1.msra.mxu0 %v7341
    %7480 = vmatprep.subr.mxu0 0.0
    %7481 = vmatpush1.msra.mxu0 %v7338
    %7482 = vmatprep.subr.mxu0 0.0
    %7483 = vmatpush1.msra.mxu0 %v7335
    %7484 = vmatprep.subr.mxu0 0.0
    %7485 = vmatpush2.msra.mxu0 0.0
    %7486 = vmatprep.subr.mxu0 0.0
    %7487 = vmatpush2.msra.mxu0 0.0
    %7488 = vmatprep.subr.mxu0 0.0
    %7489 = vmatpush2.msra.mxu0 0.0
    %7490 = vmatprep.subr.mxu0 0.0
    %7491 = vmatpush2.msra.mxu0 0.0
    %7492 = vmatprep.subr.mxu0 0.0
    %7493 = vmatpush2.msra.mxu0 0.0
    %7494 = vmatprep.subr.mxu0 0.0
    %7495 = vmatpush2.msra.mxu0 0.0
    %7496 = vmatprep.subr.mxu0 0.0
    %7497 = vmatpush2.msra.mxu0 0.0
    %7498 = vmatprep.subr.mxu0 0.0
    %7499 = vmatpush2.msra.mxu0 0.0
    %7500 = vmatprep.subr.mxu0 0.0
    %7501 = vmatpush2.msra.mxu0 0.0
    %7502 = vmatprep.subr.mxu0 0.0
    %7503 = vmatpush2.msra.mxu0 0.0
    %7504 = vmatprep.subr.mxu0 0.0
    %7505 = vmatpush2.msra.mxu0 0.0
    %7506 = vmatprep.subr.mxu0 0.0
    %7507 = vmatpush2.msra.mxu0 0.0
    %7508 = vmatprep.subr.mxu0 0.0
    %7509 = vmatpush2.msra.mxu0 0.0
    %7510 = vmatprep.subr.mxu0 0.0
    %7511 = vmatpush2.msra.mxu0 0.0
    %7512 = vmatprep.subr.mxu0 0.0
    %7513 = vmatpush2.msra.mxu0 0.0
    %7514 = vmatprep.subr.mxu0 0.0
    %7515 = vmatpush2.msra.mxu0 0.0
    %7516 = vmatprep.mubr.f32.mxu0 0.0
    %7517 = vmatmul.mubr.f32.gmra.mxu0 %v7332
    %v7518 = vpop.f32.mrf.mxu0
    %v7519 = vadd.f32 %v552, %v7518
    %v7520 = vpop.f32.mrf.mxu0
    %7521 = vdwg.mxu0
    %v7522 = vadd.f32 %v7448, %v6543
    %v7523 = vxor.u32 %v7522, 2147483648
    %v7524 = vmul.f32 %v7523, 1.442695
    %v7525 = vpow.pop %v7524
    %v7526 = vadd.f32 %v7525, 1.0
    %v7527 = vrcp.pop %v7526
    %v7528 = vmul.f32 1.0, %v7527
    %v7529 = vadd.f32 %v7450, %v6544
    %v7530 = vxor.u32 %v7529, 2147483648
    %v7531 = vmul.f32 %v7530, 1.442695
    %v7532 = vpow.pop %v7531
    %v7533 = vadd.f32 %v7532, 1.0
    %v7534 = vrcp.pop %v7533
    %v7535 = vmul.f32 1.0, %v7534
    %v7536 = vmul.f32 %v7528, %v6545
    %v7537 = vadd.f32 %v7519, %v7536
    %v7538 = vtanh.pop %v7537
    %v7539 = vsub.f32 1.0, %v7535
    %v7540 = vmul.f32 %v7539, %v7538
    %v7541 = vmul.f32 %v7535, %v6400
    %v7542 = vadd.f32 %v7540, %v7541
    %7543 = vmatprep.subr.mxu0 0.0
    %7544 = vmatpush1.msra.mxu0 %v653
    %7545 = vmatprep.subr.mxu0 0.0
    %7546 = vmatpush1.msra.mxu0 %v649
    %7547 = vmatprep.subr.mxu0 0.0
    %7548 = vmatpush1.msra.mxu0 %v645
    %7549 = vmatprep.subr.mxu0 0.0
    %7550 = vmatpush1.msra.mxu0 %v641
    %7551 = vmatprep.subr.mxu0 0.0
    %7552 = vmatpush1.msra.mxu0 %v637
    %7553 = vmatprep.subr.mxu0 0.0
    %7554 = vmatpush1.msra.mxu0 %v633
    %7555 = vmatprep.subr.mxu0 0.0
    %7556 = vmatpush1.msra.mxu0 %v629
    %7557 = vmatprep.subr.mxu0 0.0
    %7558 = vmatpush1.msra.mxu0 %v625
    %7559 = vmatprep.subr.mxu0 0.0
    %7560 = vmatpush1.msra.mxu0 %v621
    %7561 = vmatprep.subr.mxu0 0.0
    %7562 = vmatpush1.msra.mxu0 %v617
    %7563 = vmatprep.subr.mxu0 0.0
    %7564 = vmatpush1.msra.mxu0 %v613
    %7565 = vmatprep.subr.mxu0 0.0
    %7566 = vmatpush1.msra.mxu0 %v609
    %7567 = vmatprep.subr.mxu0 0.0
    %7568 = vmatpush1.msra.mxu0 %v605
    %7569 = vmatprep.subr.mxu0 0.0
    %7570 = vmatpush1.msra.mxu0 %v601
    %7571 = vmatprep.subr.mxu0 0.0
    %7572 = vmatpush1.msra.mxu0 %v597
    %7573 = vmatprep.subr.mxu0 0.0
    %7574 = vmatpush1.msra.mxu0 %v593
    %7575 = vmatprep.subr.mxu0 0.0
    %7576 = vmatpush2.msra.mxu0 0.0
    %7577 = vmatprep.subr.mxu0 0.0
    %7578 = vmatpush2.msra.mxu0 0.0
    %7579 = vmatprep.subr.mxu0 0.0
    %7580 = vmatpush2.msra.mxu0 0.0
    %7581 = vmatprep.subr.mxu0 0.0
    %7582 = vmatpush2.msra.mxu0 0.0
    %7583 = vmatprep.subr.mxu0 0.0
    %7584 = vmatpush2.msra.mxu0 0.0
    %7585 = vmatprep.subr.mxu0 0.0
    %7586 = vmatpush2.msra.mxu0 0.0
    %7587 = vmatprep.subr.mxu0 0.0
    %7588 = vmatpush2.msra.mxu0 0.0
    %7589 = vmatprep.subr.mxu0 0.0
    %7590 = vmatpush2.msra.mxu0 0.0
    %7591 = vmatprep.subr.mxu0 0.0
    %7592 = vmatpush2.msra.mxu0 0.0
    %7593 = vmatprep.subr.mxu0 0.0
    %7594 = vmatpush2.msra.mxu0 0.0
    %7595 = vmatprep.subr.mxu0 0.0
    %7596 = vmatpush2.msra.mxu0 0.0
    %7597 = vmatprep.subr.mxu0 0.0
    %7598 = vmatpush2.msra.mxu0 0.0
    %7599 = vmatprep.subr.mxu0 0.0
    %7600 = vmatpush2.msra.mxu0 0.0
    %7601 = vmatprep.subr.mxu0 0.0
    %7602 = vmatpush2.msra.mxu0 0.0
    %7603 = vmatprep.subr.mxu0 0.0
    %7604 = vmatpush2.msra.mxu0 0.0
    %7605 = vmatprep.subr.mxu0 0.0
    %7606 = vmatpush2.msra.mxu0 0.0
    %7607 = vmatprep.mubr.f32.mxu0 0.0
    %7608 = vmatmul.mubr.f32.gmra.mxu0 %v7542
    %v7609 = vpop.f32.mrf.mxu0
    %v7610 = vadd.f32 0.0, %v7609
    %v7611 = vpop.f32.mrf.mxu0
    %7612 = vdwg.mxu0
    %v7613 = vadd.f32 %v7610, %v803
    %vm7614 = vcmp.gt.f32.partialorder %v7613, 0.0
    %v7615 = vmin.f32 %v7613, 0.0
    %v7616 = vmul.f32 %v7615, 1.442695
    %v7617 = vpow.pop %v7616
    %v7618 = vsub.f32 %v7617, 1.0
    %v7619 = vsel %vm7614, %v7613, %v7618
    %v7620 = vadd.f32 %v7619, 0.0
    %v7621 = vsel %vm813, %v7620, 0.0
    %v7622 = vrot.slane %v7621, 4
    %v7623 = vadd.f32 %v7621, %v7622
    %v7624 = vrot.slane %v7623, 2
    %v7625 = vadd.f32 %v7623, %v7624
    %v7626 = vrot.slane %v7625, 1
    %v7627 = vadd.f32 %v7625, %v7626
    %v7628 = vmul.f32 %v7627, 0.125
    %v7629 = vsub.f32 %v7619, %v7628
    %v7630 = vmul.f32 %v7629, %v7629
    %v7631 = vadd.f32 %v7630, 0.0
    %v7632 = vsel %vm813, %v7631, 0.0
    %v7633 = vrot.slane %v7632, 4
    %v7634 = vadd.f32 %v7632, %v7633
    %v7635 = vrot.slane %v7634, 2
    %v7636 = vadd.f32 %v7634, %v7635
    %v7637 = vrot.slane %v7636, 1
    %v7638 = vadd.f32 %v7636, %v7637
    %v7639 = vmul.f32 %v7638, 0.14285715
    %v7640 = vrsqrt.pop %v7639
    %v7641 = vmul.f32 %v7629, %v7640
    %7642 = vrot.lane.b32.xlu0 %v115, 123
    %v7643 = vpop.permute.xlu0 %7642
    %v7645 = vadd.f32 %v7641, %v7643
    %7647 = vset.pattern.permute.xlu0 0
    %7648 = vperm.xlu0 %7647, %v7645
    %v7649 = vpop.permute.xlu0 %7648
    %v7651 = vmul.f32 %v7649, %v844
    %v7652 = vmul.f32 %v7649, %v848
    %v7653 = vmul.f32 %v7649, %v852
    %v7654 = vadd.f32 %v7651, %v859
    %v7655 = vadd.f32 %v7652, %v863
    %v7656 = vadd.f32 %v7653, %v867
    %v7657 = vadd.f32 %v7654, %v6827
    %v7658 = vxor.u32 %v7657, 2147483648
    %v7659 = vmul.f32 %v7658, 1.442695
    %v7660 = vpow.pop %v7659
    %v7661 = vadd.f32 %v7660, 1.0
    %v7662 = vrcp.pop %v7661
    %v7663 = vmul.f32 1.0, %v7662
    %v7664 = vadd.f32 %v7655, %v6828
    %v7665 = vxor.u32 %v7664, 2147483648
    %v7666 = vmul.f32 %v7665, 1.442695
    %v7667 = vpow.pop %v7666
    %v7668 = vadd.f32 %v7667, 1.0
    %v7669 = vrcp.pop %v7668
    %v7670 = vmul.f32 1.0, %v7669
    %v7671 = vmul.f32 %v7663, %v6829
    %v7672 = vadd.f32 %v7656, %v7671
    %v7673 = vtanh.pop %v7672
    %v7674 = vsub.f32 1.0, %v7670
    %v7675 = vmul.f32 %v7674, %v7673
    %v7676 = vmul.f32 %v7670, %v6610
    %v7677 = vadd.f32 %v7675, %v7676
    %v7678 = vld [vmem:[%s902] sm:$0xff]
    %v7679 = vld [vmem:[%s902 + $0x8] sm:$0xff]
    %v7680 = vld [vmem:[%s902 + $0x10] sm:$0xff]
    %v7681 = vld [vmem:[%s902 + $0x30] sm:$0xff]
    %v7682 = vld [vmem:[%s902 + $0x38] sm:$0xff]
    %v7683 = vld [vmem:[%s902 + $0x40] sm:$0xff]
    %v7684 = vld [vmem:[%s902 + $0x60] sm:$0xff]
    %v7685 = vld [vmem:[%s902 + $0x68] sm:$0xff]
    %v7686 = vld [vmem:[%s902 + $0x70] sm:$0xff]
    %v7687 = vld [vmem:[%s902 + $0x90] sm:$0xff]
    %v7688 = vld [vmem:[%s902 + $0x98] sm:$0xff]
    %v7689 = vld [vmem:[%s902 + $0xa0] sm:$0xff]
    %v7690 = vld [vmem:[%s902 + $0xc0] sm:$0xff]
    %v7691 = vld [vmem:[%s902 + $0xc8] sm:$0xff]
    %v7692 = vld [vmem:[%s902 + $0xd0] sm:$0xff]
    %v7693 = vld [vmem:[%s902 + $0xf0] sm:$0xff]
    %v7694 = vld [vmem:[%s902 + $0xf8] sm:$0xff]
    %v7695 = vld [vmem:[%s902 + $0x100] sm:$0xff]
    %v7696 = vld [vmem:[%s902 + $0x120] sm:$0xff]
    %v7697 = vld [vmem:[%s902 + $0x128] sm:$0xff]
    %v7698 = vld [vmem:[%s902 + $0x130] sm:$0xff]
    %v7699 = vld [vmem:[%s902 + $0x150] sm:$0xff]
    %v7700 = vld [vmem:[%s902 + $0x158] sm:$0xff]
    %v7701 = vld [vmem:[%s902 + $0x160] sm:$0xff]
    %v7702 = vld [vmem:[%s902 + $0x180] sm:$0xff]
    %v7703 = vld [vmem:[%s902 + $0x188] sm:$0xff]
    %v7704 = vld [vmem:[%s902 + $0x190] sm:$0xff]
    %v7705 = vld [vmem:[%s902 + $0x1b0] sm:$0xff]
    %v7706 = vld [vmem:[%s902 + $0x1b8] sm:$0xff]
    %v7707 = vld [vmem:[%s902 + $0x1c0] sm:$0xff]
    %v7708 = vld [vmem:[%s902 + $0x1e0] sm:$0xff]
    %v7709 = vld [vmem:[%s902 + $0x1e8] sm:$0xff]
    %v7710 = vld [vmem:[%s902 + $0x1f0] sm:$0xff]
    %v7711 = vld [vmem:[%s902 + $0x210] sm:$0xff]
    %v7712 = vld [vmem:[%s902 + $0x218] sm:$0xff]
    %v7713 = vld [vmem:[%s902 + $0x220] sm:$0xff]
    %v7714 = vld [vmem:[%s902 + $0x240] sm:$0xff]
    %v7715 = vld [vmem:[%s902 + $0x248] sm:$0xff]
    %v7716 = vld [vmem:[%s902 + $0x250] sm:$0xff]
    %v7717 = vld [vmem:[%s902 + $0x270] sm:$0xff]
    %v7718 = vld [vmem:[%s902 + $0x278] sm:$0xff]
    %v7719 = vld [vmem:[%s902 + $0x280] sm:$0xff]
    %v7720 = vld [vmem:[%s902 + $0x2a0] sm:$0xff]
    %v7721 = vld [vmem:[%s902 + $0x2a8] sm:$0xff]
    %v7722 = vld [vmem:[%s902 + $0x2b0] sm:$0xff]
    %v7723 = vld [vmem:[%s902 + $0x2d0] sm:$0xff]
    %v7724 = vld [vmem:[%s902 + $0x2d8] sm:$0xff]
    %v7725 = vld [vmem:[%s902 + $0x2e0] sm:$0xff]
    %7726 = vmatprep.subr.mxu0 %v7724
    %7727 = vmatpush1.msra.mxu0 %v7723
    %7728 = vmatprep.subr.mxu0 %v7721
    %7729 = vmatpush1.msra.mxu0 %v7720
    %7730 = vmatprep.subr.mxu0 %v7718
    %7731 = vmatpush1.msra.mxu0 %v7717
    %7732 = vmatprep.subr.mxu0 %v7715
    %7733 = vmatpush1.msra.mxu0 %v7714
    %7734 = vmatprep.subr.mxu0 %v7712
    %7735 = vmatpush1.msra.mxu0 %v7711
    %7736 = vmatprep.subr.mxu0 %v7709
    %7737 = vmatpush1.msra.mxu0 %v7708
    %7738 = vmatprep.subr.mxu0 %v7706
    %7739 = vmatpush1.msra.mxu0 %v7705
    %7740 = vmatprep.subr.mxu0 %v7703
    %7741 = vmatpush1.msra.mxu0 %v7702
    %7742 = vmatprep.subr.mxu0 %v7700
    %7743 = vmatpush1.msra.mxu0 %v7699
    %7744 = vmatprep.subr.mxu0 %v7697
    %7745 = vmatpush1.msra.mxu0 %v7696
    %7746 = vmatprep.subr.mxu0 %v7694
    %7747 = vmatpush1.msra.mxu0 %v7693
    %7748 = vmatprep.subr.mxu0 %v7691
    %7749 = vmatpush1.msra.mxu0 %v7690
    %7750 = vmatprep.subr.mxu0 %v7688
    %7751 = vmatpush1.msra.mxu0 %v7687
    %7752 = vmatprep.subr.mxu0 %v7685
    %7753 = vmatpush1.msra.mxu0 %v7684
    %7754 = vmatprep.subr.mxu0 %v7682
    %7755 = vmatpush1.msra.mxu0 %v7681
    %7756 = vmatprep.subr.mxu0 %v7679
    %7757 = vmatpush1.msra.mxu0 %v7678
    %7758 = vmatprep.subr.mxu0 0.0
    %7759 = vmatpush2.msra.mxu0 0.0
    %7760 = vmatprep.subr.mxu0 0.0
    %7761 = vmatpush2.msra.mxu0 0.0
    %7762 = vmatprep.subr.mxu0 0.0
    %7763 = vmatpush2.msra.mxu0 0.0
    %7764 = vmatprep.subr.mxu0 0.0
    %7765 = vmatpush2.msra.mxu0 0.0
    %7766 = vmatprep.subr.mxu0 0.0
    %7767 = vmatpush2.msra.mxu0 0.0
    %7768 = vmatprep.subr.mxu0 0.0
    %7769 = vmatpush2.msra.mxu0 0.0
    %7770 = vmatprep.subr.mxu0 0.0
    %7771 = vmatpush2.msra.mxu0 0.0
    %7772 = vmatprep.subr.mxu0 0.0
    %7773 = vmatpush2.msra.mxu0 0.0
    %7774 = vmatprep.subr.mxu0 0.0
    %7775 = vmatpush2.msra.mxu0 0.0
    %7776 = vmatprep.subr.mxu0 0.0
    %7777 = vmatpush2.msra.mxu0 0.0
    %7778 = vmatprep.subr.mxu0 0.0
    %7779 = vmatpush2.msra.mxu0 0.0
    %7780 = vmatprep.subr.mxu0 0.0
    %7781 = vmatpush2.msra.mxu0 0.0
    %7782 = vmatprep.subr.mxu0 0.0
    %7783 = vmatpush2.msra.mxu0 0.0
    %7784 = vmatprep.subr.mxu0 0.0
    %7785 = vmatpush2.msra.mxu0 0.0
    %7786 = vmatprep.subr.mxu0 0.0
    %7787 = vmatpush2.msra.mxu0 0.0
    %7788 = vmatprep.subr.mxu0 0.0
    %7789 = vmatpush2.msra.mxu0 0.0
    %7790 = vmatprep.mubr.f32.mxu0 0.0
    %7791 = vmatmul.mubr.f32.gmra.mxu0 %v7677
    %v7792 = vpop.f32.mrf.mxu0
    %v7793 = vadd.f32 %v1215, %v7792
    %v7794 = vpop.f32.mrf.mxu0
    %v7795 = vadd.f32 %v1219, %v7794
    %7796 = vdwg.mxu0
    %7797 = vmatprep.subr.mxu0 0.0
    %7798 = vmatpush1.msra.mxu0 %v7725
    %7799 = vmatprep.subr.mxu0 0.0
    %7800 = vmatpush1.msra.mxu0 %v7722
    %7801 = vmatprep.subr.mxu0 0.0
    %7802 = vmatpush1.msra.mxu0 %v7719
    %7803 = vmatprep.subr.mxu0 0.0
    %7804 = vmatpush1.msra.mxu0 %v7716
    %7805 = vmatprep.subr.mxu0 0.0
    %7806 = vmatpush1.msra.mxu0 %v7713
    %7807 = vmatprep.subr.mxu0 0.0
    %7808 = vmatpush1.msra.mxu0 %v7710
    %7809 = vmatprep.subr.mxu0 0.0
    %7810 = vmatpush1.msra.mxu0 %v7707
    %7811 = vmatprep.subr.mxu0 0.0
    %7812 = vmatpush1.msra.mxu0 %v7704
    %7813 = vmatprep.subr.mxu0 0.0
    %7814 = vmatpush1.msra.mxu0 %v7701
    %7815 = vmatprep.subr.mxu0 0.0
    %7816 = vmatpush1.msra.mxu0 %v7698
    %7817 = vmatprep.subr.mxu0 0.0
    %7818 = vmatpush1.msra.mxu0 %v7695
    %7819 = vmatprep.subr.mxu0 0.0
    %7820 = vmatpush1.msra.mxu0 %v7692
    %7821 = vmatprep.subr.mxu0 0.0
    %7822 = vmatpush1.msra.mxu0 %v7689
    %7823 = vmatprep.subr.mxu0 0.0
    %7824 = vmatpush1.msra.mxu0 %v7686
    %7825 = vmatprep.subr.mxu0 0.0
    %7826 = vmatpush1.msra.mxu0 %v7683
    %7827 = vmatprep.subr.mxu0 0.0
    %7828 = vmatpush1.msra.mxu0 %v7680
    %7829 = vmatprep.subr.mxu0 0.0
    %7830 = vmatpush2.msra.mxu0 0.0
    %7831 = vmatprep.subr.mxu0 0.0
    %7832 = vmatpush2.msra.mxu0 0.0
    %7833 = vmatprep.subr.mxu0 0.0
    %7834 = vmatpush2.msra.mxu0 0.0
    %7835 = vmatprep.subr.mxu0 0.0
    %7836 = vmatpush2.msra.mxu0 0.0
    %7837 = vmatprep.subr.mxu0 0.0
    %7838 = vmatpush2.msra.mxu0 0.0
    %7839 = vmatprep.subr.mxu0 0.0
    %7840 = vmatpush2.msra.mxu0 0.0
    %7841 = vmatprep.subr.mxu0 0.0
    %7842 = vmatpush2.msra.mxu0 0.0
    %7843 = vmatprep.subr.mxu0 0.0
    %7844 = vmatpush2.msra.mxu0 0.0
    %7845 = vmatprep.subr.mxu0 0.0
    %7846 = vmatpush2.msra.mxu0 0.0
    %7847 = vmatprep.subr.mxu0 0.0
    %7848 = vmatpush2.msra.mxu0 0.0
    %7849 = vmatprep.subr.mxu0 0.0
    %7850 = vmatpush2.msra.mxu0 0.0
    %7851 = vmatprep.subr.mxu0 0.0
    %7852 = vmatpush2.msra.mxu0 0.0
    %7853 = vmatprep.subr.mxu0 0.0
    %7854 = vmatpush2.msra.mxu0 0.0
    %7855 = vmatprep.subr.mxu0 0.0
    %7856 = vmatpush2.msra.mxu0 0.0
    %7857 = vmatprep.subr.mxu0 0.0
    %7858 = vmatpush2.msra.mxu0 0.0
    %7859 = vmatprep.subr.mxu0 0.0
    %7860 = vmatpush2.msra.mxu0 0.0
    %7861 = vmatprep.mubr.f32.mxu0 0.0
    %7862 = vmatmul.mubr.f32.gmra.mxu0 %v7677
    %v7863 = vpop.f32.mrf.mxu0
    %v7864 = vadd.f32 %v1223, %v7863
    %v7865 = vpop.f32.mrf.mxu0
    %7866 = vdwg.mxu0
    %v7867 = vadd.f32 %v7793, %v6993
    %v7868 = vxor.u32 %v7867, 2147483648
    %v7869 = vmul.f32 %v7868, 1.442695
    %v7870 = vpow.pop %v7869
    %v7871 = vadd.f32 %v7870, 1.0
    %v7872 = vrcp.pop %v7871
    %v7873 = vmul.f32 1.0, %v7872
    %v7874 = vadd.f32 %v7795, %v6994
    %v7875 = vxor.u32 %v7874, 2147483648
    %v7876 = vmul.f32 %v7875, 1.442695
    %v7877 = vpow.pop %v7876
    %v7878 = vadd.f32 %v7877, 1.0
    %v7879 = vrcp.pop %v7878
    %v7880 = vmul.f32 1.0, %v7879
    %v7881 = vmul.f32 %v7873, %v6995
    %v7882 = vadd.f32 %v7864, %v7881
    %v7883 = vtanh.pop %v7882
    %v7884 = vsub.f32 1.0, %v7880
    %v7885 = vmul.f32 %v7884, %v7883
    %v7886 = vmul.f32 %v7880, %v6850
    %v7887 = vadd.f32 %v7885, %v7886
    %7888 = vmatprep.subr.mxu0 0.0
    %7889 = vmatpush1.msra.mxu0 %v1325
    %7890 = vmatprep.subr.mxu0 0.0
    %7891 = vmatpush1.msra.mxu0 %v1321
    %7892 = vmatprep.subr.mxu0 0.0
    %7893 = vmatpush1.msra.mxu0 %v1317
    %7894 = vmatprep.subr.mxu0 0.0
    %7895 = vmatpush1.msra.mxu0 %v1313
    %7896 = vmatprep.subr.mxu0 0.0
    %7897 = vmatpush1.msra.mxu0 %v1309
    %7898 = vmatprep.subr.mxu0 0.0
    %7899 = vmatpush1.msra.mxu0 %v1305
    %7900 = vmatprep.subr.mxu0 0.0
    %7901 = vmatpush1.msra.mxu0 %v1301
    %7902 = vmatprep.subr.mxu0 0.0
    %7903 = vmatpush1.msra.mxu0 %v1297
    %7904 = vmatprep.subr.mxu0 0.0
    %7905 = vmatpush1.msra.mxu0 %v1293
    %7906 = vmatprep.subr.mxu0 0.0
    %7907 = vmatpush1.msra.mxu0 %v1289
    %7908 = vmatprep.subr.mxu0 0.0
    %7909 = vmatpush1.msra.mxu0 %v1285
    %7910 = vmatprep.subr.mxu0 0.0
    %7911 = vmatpush1.msra.mxu0 %v1281
    %7912 = vmatprep.subr.mxu0 0.0
    %7913 = vmatpush1.msra.mxu0 %v1277
    %7914 = vmatprep.subr.mxu0 0.0
    %7915 = vmatpush1.msra.mxu0 %v1273
    %7916 = vmatprep.subr.mxu0 0.0
    %7917 = vmatpush1.msra.mxu0 %v1269
    %7918 = vmatprep.subr.mxu0 0.0
    %7919 = vmatpush1.msra.mxu0 %v1265
    %7920 = vmatprep.subr.mxu0 0.0
    %7921 = vmatpush2.msra.mxu0 0.0
    %7922 = vmatprep.subr.mxu0 0.0
    %7923 = vmatpush2.msra.mxu0 0.0
    %7924 = vmatprep.subr.mxu0 0.0
    %7925 = vmatpush2.msra.mxu0 0.0
    %7926 = vmatprep.subr.mxu0 0.0
    %7927 = vmatpush2.msra.mxu0 0.0
    %7928 = vmatprep.subr.mxu0 0.0
    %7929 = vmatpush2.msra.mxu0 0.0
    %7930 = vmatprep.subr.mxu0 0.0
    %7931 = vmatpush2.msra.mxu0 0.0
    %7932 = vmatprep.subr.mxu0 0.0
    %7933 = vmatpush2.msra.mxu0 0.0
    %7934 = vmatprep.subr.mxu0 0.0
    %7935 = vmatpush2.msra.mxu0 0.0
    %7936 = vmatprep.subr.mxu0 0.0
    %7937 = vmatpush2.msra.mxu0 0.0
    %7938 = vmatprep.subr.mxu0 0.0
    %7939 = vmatpush2.msra.mxu0 0.0
    %7940 = vmatprep.subr.mxu0 0.0
    %7941 = vmatpush2.msra.mxu0 0.0
    %7942 = vmatprep.subr.mxu0 0.0
    %7943 = vmatpush2.msra.mxu0 0.0
    %7944 = vmatprep.subr.mxu0 0.0
    %7945 = vmatpush2.msra.mxu0 0.0
    %7946 = vmatprep.subr.mxu0 0.0
    %7947 = vmatpush2.msra.mxu0 0.0
    %7948 = vmatprep.subr.mxu0 0.0
    %7949 = vmatpush2.msra.mxu0 0.0
    %7950 = vmatprep.subr.mxu0 0.0
    %7951 = vmatpush2.msra.mxu0 0.0
    %7952 = vmatprep.mubr.f32.mxu0 0.0
    %7953 = vmatmul.mubr.f32.gmra.mxu0 %v7887
    %v7954 = vpop.f32.mrf.mxu0
    %v7955 = vadd.f32 0.0, %v7954
    %v7956 = vpop.f32.mrf.mxu0
    %7957 = vdwg.mxu0
    %v7958 = vadd.f32 %v7955, %v1472
    %v7959 = vxor.u32 %v7958, 2147483648
    %v7960 = vmul.f32 %v7959, 1.442695
    %v7961 = vpow.pop %v7960
    %v7962 = vadd.f32 %v7961, 1.0
    %v7963 = vrcp.pop %v7962
    %v7964 = vmul.f32 1.0, %v7963
    %vm7965 = vcmask 15360
    %7966 = vst.msk [vmem:[%s8] sm:$0xff] %vm7965, %v7964
    // Predicated region
    $region62: #{tpu_custom_call.1} parent=1 // pred_check
      _
    $region63: #{tpu_custom_call.1} parent=1 // pred_check_branch
      %7968 = sbr.rel (0) target = $region65
    $region64: #{tpu_custom_call.1} parent=1 // pred_region
      _
    $region65: #{tpu_custom_call.1} parent=1 // pred_fallthru
      _
    // Predicated region
    $region66: #{tpu_custom_call.1} parent=1 // pred_check
      _
    $region67: #{tpu_custom_call.1} parent=1 // pred_check_branch
      %7970 = sbr.rel (0) target = $region69
    $region68: #{tpu_custom_call.1} parent=1 // pred_region
      _
    $region69: #{tpu_custom_call.1} parent=1 // pred_fallthru
      _
    %7971 = vsyncpa [#allocation3], 1
    %7972 = vsyncpa [#allocation5], 1
    %7973 = vsyncpa [#allocation8], 1
    %7974 = vsyncpa [#allocation11], 1

</llo_original>
